<compile_context>
chip_gen: v7x
topology: tpu7x:2x2x1
jax: 0.10.0
libtpu: 0.0.40
codegen_flags: <defaults>
</compile_context>

<pallas_src>
import math
import numpy as np
import jax
import jax.numpy as jnp
from jax.experimental import pallas as pl
from jax.experimental.pallas import tpu as pltpu

# ----------------------- model configuration (small, deterministic) -----------
FC     = 4            # cfg.NUM_CONTROL_FEATURES
P      = 6            # cfg.NUM_PRED_FEATURES
F_ALL  = 10           # cfg.NUM_ALL_FEATURES
IN_LEN = 8            # args.in_len
D      = 32           # args.d_model
DFF    = 64           # args.d_ff
L      = 2            # args.e_layers
H      = 4            # attention heads
DH     = D // H
SCALE  = DH ** -0.5
N      = F_ALL + FC   # 14 real tokens
NP     = 16           # padded token count (multiple of 8 sublanes)
EMB_K  = IN_LEN + FC  # combined embedding contraction dim (12)
EPS    = 1e-5         # nn.LayerNorm default
NEG    = -1e30        # key-padding bias


# ----------------------------- shared math helpers -----------------------------
def _layer_norm(v, g, b):
    mu = jnp.mean(v, axis=-1, keepdims=True)
    var = jnp.mean((v - mu) ** 2, axis=-1, keepdims=True)
    return (v - mu) * jax.lax.rsqrt(var + EPS) * g + b


def _gelu_tanh(x):
    # tanh-form GELU: transcendental goes to the EUP slot instead of VALU.
    c = math.sqrt(2.0 / math.pi)
    return 0.5 * x * (1.0 + jnp.tanh(c * (x + 0.044715 * x * x * x)))


def _gelu_exact(x):
    return 0.5 * x * (1.0 + jax.lax.erf(x * (1.0 / math.sqrt(2.0))))


# --------------------------------- the kernel ----------------------------------
def make_kernel(BB):
    BBNP = BB * NP

    def kernel(xc_ref, bias_ref, w_emb_ref,
               wq_ref, wk_ref, wv_ref, wo_ref, bo_ref,
               ln1g_ref, ln1b_ref, ln2g_ref, ln2b_ref,
               wff1_ref, bff1_ref, wff2_ref, bff2_ref,
               lngg_ref, lngb_ref, wgen_ref, bgen_ref, mmean_ref,
               out_ref, attn_ref):
        # ---- fused input + spec embedding: one (BB*NP, 12) x (12, D) matmul ----
        x = jnp.dot(xc_ref[...], w_emb_ref[...],
                    preferred_element_type=jnp.float32) + bias_ref[...]      # (BBNP, D)

        # key-padding bias (key columns >= N are pad tokens)
        kcol = jax.lax.broadcasted_iota(jnp.int32, (1, 1, NP), 2)
        key_bias = jnp.where(kcol < N, 0.0, NEG).astype(jnp.float32)         # (1, 1, NP)

        for l in range(L):
            # ------------------ attention branch (pre-norm) ------------------
            y = _layer_norm(x, ln1g_ref[l:l + 1], ln1b_ref[l:l + 1])         # (BBNP, D)
            attn_out = None
            for h in range(H):
                # per-head weight slabs (leading-dim ref indexing -> no lane slicing)
                q = jnp.dot(y, wq_ref[l, h], preferred_element_type=jnp.float32)  # (BBNP, DH)
                k = jnp.dot(y, wk_ref[l, h], preferred_element_type=jnp.float32)
                v = jnp.dot(y, wv_ref[l, h], preferred_element_type=jnp.float32)
                q3 = q.reshape(BB, NP, DH)
                k3 = k.reshape(BB, NP, DH)
                v3 = v.reshape(BB, NP, DH)
                # scale 1/sqrt(DH) is folded into wq at wrapper time
                s = jnp.einsum('bqd,bkd->bqk', q3, k3,
                               preferred_element_type=jnp.float32)            # (BB, NP, NP)
                s = s + key_bias
                s = s - jnp.max(s, axis=-1, keepdims=True)
                e = jnp.exp(s)
                p = e * pl.reciprocal(jnp.sum(e, axis=-1, keepdims=True), approx=True)
                attn_ref[l, h] = p                                            # dense (BB,16,16) store
                o3 = jnp.einsum('bqk,bkd->bqd', p, v3,
                                preferred_element_type=jnp.float32)           # (BB, NP, DH)
                # fused per-head output projection (no head concat)
                head = jnp.dot(o3.reshape(BBNP, DH), wo_ref[l, h],
                               preferred_element_type=jnp.float32)            # (BBNP, D)
                attn_out = head if attn_out is None else attn_out + head
            x = attn_out + bo_ref[l:l + 1] + x

            # ------------------ feed-forward branch (pre-norm) ----------------
            y = _layer_norm(x, ln2g_ref[l:l + 1], ln2b_ref[l:l + 1])
            h1 = jnp.dot(y, wff1_ref[l], preferred_element_type=jnp.float32) + bff1_ref[l:l + 1]
            h1 = _gelu_tanh(h1)
            x = jnp.dot(h1, wff2_ref[l], preferred_element_type=jnp.float32) + bff2_ref[l:l + 1] + x

        # ---- masked mean over real tokens (selector matmul) + generator ----
        xm = jnp.dot(mmean_ref[...], x, preferred_element_type=jnp.float32)   # (BB, D)
        xm = _layer_norm(xm, lngg_ref[...], lngb_ref[...])
        out_ref[0] = jnp.dot(xm, wgen_ref[...], preferred_element_type=jnp.float32) + bgen_ref[...]

    return kernel


# ------------------------------ wrapper / glue ---------------------------------
def base_transformer_forward(params, inp, spec, block_b=None):
    """inp: (B, IN_LEN, F_ALL) float32, spec: (B, FC) float32."""
    B = inp.shape[0]
    # batch block per grid step; keep >= 2 grid steps when B >= 2 (v7x dual-TC)
    BB = block_b if block_b is not None else max(1, min(8, pl.cdiv(B, 2)))
    n_blk = pl.cdiv(B, BB)
    B_pad = n_blk * BB
    BBNP = BB * NP
    f32 = jnp.float32

    # ---- layout plumbing (wrapper side, tiny): padded combined-embedding input ----
    x_perm = jnp.transpose(inp, (0, 2, 1)).astype(f32)                        # (B, F_ALL, IN_LEN)
    feat_rows = jnp.concatenate([x_perm, jnp.zeros((B, F_ALL, FC), f32)], axis=-1)
    spec_rows = jnp.concatenate(
        [jnp.zeros((B, FC, IN_LEN), f32),
         spec.astype(f32)[:, :, None] * jnp.eye(FC, dtype=f32)[None]], axis=-1)
    pad_rows = jnp.zeros((B, NP - N, EMB_K), f32)
    x_comb = jnp.concatenate([feat_rows, spec_rows, pad_rows], axis=1)        # (B, NP, EMB_K)
    if B_pad > B:
        x_comb = jnp.concatenate([x_comb, jnp.zeros((B_pad - B, NP, EMB_K), f32)], axis=0)
    x_flat = x_comb.reshape(B_pad * NP, EMB_K)

    # combined embedding weight + per-row bias (tiled over the BB block)
    w_emb = jnp.concatenate([params["W_in"], params["W_spec"]], axis=0)       # (EMB_K, D)
    bias_rows = jnp.concatenate(
        [jnp.broadcast_to(params["b_in"], (F_ALL, D)), params["b_spec"],
         jnp.zeros((NP - N, D), f32)], axis=0)                                # (NP, D)
    bias_tiled = jnp.tile(bias_rows, (BB, 1))                                 # (BBNP, D)

    # per-head weight slabs; fold attention scale into Q weights
    wqkv = params["W_qkv"]                                                    # (L, D, 3D)

    def heads(wslab):                                                         # (L, D, D) -> (L, H, D, DH)
        return wslab.reshape(L, D, H, DH).transpose(0, 2, 1, 3)

    wq = heads(wqkv[:, :, 0 * D:1 * D]) * SCALE
    wk = heads(wqkv[:, :, 1 * D:2 * D])
    wv = heads(wqkv[:, :, 2 * D:3 * D])
    wo = params["W_o"].reshape(L, H, DH, D)                                   # fused per-head out-proj

    # per-batch masked-mean selector over the real N tokens
    m_np = np.zeros((BB, BBNP), np.float32)
    for b in range(BB):
        m_np[b, b * NP:b * NP + N] = 1.0 / N
    m_mean = jnp.asarray(m_np)

    full = lambda shape: pl.BlockSpec(shape, lambda i, n=len(shape): (0,) * n)

    in_specs = [
        pl.BlockSpec((BBNP, EMB_K), lambda i: (i, 0)),
        full((BBNP, D)), full((EMB_K, D)),
        full((L, H, D, DH)), full((L, H, D, DH)), full((L, H, D, DH)),
        full((L, H, DH, D)), full((L, D)),
        full((L, D)), full((L, D)), full((L, D)), full((L, D)),
        full((L, D, DFF)), full((L, DFF)), full((L, DFF, D)), full((L, D)),
        full((1, D)), full((1, D)), full((D, P)), full((1, P)),
        full((BB, BBNP)),
    ]
    out_specs = (
        pl.BlockSpec((1, BB, P), lambda i: (i, 0, 0)),
        pl.BlockSpec((L, H, BB, NP, NP), lambda i: (0, 0, i, 0, 0)),
    )
    out_shape = (
        jax.ShapeDtypeStruct((n_blk, BB, P), f32),
        jax.ShapeDtypeStruct((L, H, B_pad, NP, NP), f32),
    )

    out, attn = pl.pallas_call(
        make_kernel(BB),
        grid=(n_blk,),
        in_specs=in_specs,
        out_specs=out_specs,
        out_shape=out_shape,
        compiler_params=pltpu.CompilerParams(dimension_semantics=("parallel",)),
    )(
        x_flat, bias_tiled, w_emb,
        wq, wk, wv, wo, params["b_o"],
        params["ln1_g"], params["ln1_b"], params["ln2_g"], params["ln2_b"],
        params["W_ff1"], params["b_ff1"], params["W_ff2"], params["b_ff2"],
        params["lng_g"], params["lng_b"], params["W_gen"], params["b_gen"],
        m_mean,
    )
    out = out.reshape(B_pad, P)[:B]
    # torch.cat over layers along dim 0 of (B,H,N,N) maps == (L,B,H,N,N).reshape(L*B,...)
    attn = attn[:, :, :B, :N, :N].transpose(0, 2, 1, 3, 4).reshape(L * B, H, N, N)
    return out, attn


# ------------------------- pure-JAX reference (for checking) -------------------
def forward_ref(params, inp, spec):
    B = inp.shape[0]
    x = jnp.transpose(inp, (0, 2, 1)) @ params["W_in"] + params["b_in"]            # (B,F_ALL,D)
    sp = spec[:, :, None] * params["W_spec"][None] + params["b_spec"][None]        # (B,FC,D)
    x = jnp.concatenate([x, sp], axis=1)                                           # (B,N,D)
    attn_all = []
    for l in range(L):
        y = _layer_norm(x, params["ln1_g"][l], params["ln1_b"][l])
        qkv = y @ params["W_qkv"][l]
        q, k, v = jnp.split(qkv, 3, axis=-1)
        sh = lambda t: t.reshape(B, N, H, DH).transpose(0, 2, 1, 3)
        qh, kh, vh = sh(q), sh(k), sh(v)
        s = jnp.einsum("bhnd,bhmd->bhnm", qh, kh) * SCALE
        p = jax.nn.softmax(s, axis=-1)
        attn_all.append(p)
        o = jnp.einsum("bhnm,bhmd->bhnd", p, vh).transpose(0, 2, 1, 3).reshape(B, N, D)
        x = o @ params["W_o"][l] + params["b_o"][l] + x
        y = _layer_norm(x, params["ln2_g"][l], params["ln2_b"][l])
        h1 = _gelu_exact(y @ params["W_ff1"][l] + params["b_ff1"][l])
        x = h1 @ params["W_ff2"][l] + params["b_ff2"][l] + x
    xm = _layer_norm(x.mean(axis=1), params["lng_g"][0], params["lng_b"][0])
    out = xm @ params["W_gen"] + params["b_gen"]
    return out, jnp.stack(attn_all, axis=0).reshape(L * B, H, N, N)


# ------------------------------- parameter init ---------------------------------
def init_params(key):
    ks = jax.random.split(key, 16)
    nrm = lambda k, shape, s=0.2: (s * jax.random.normal(k, shape)).astype(jnp.float32)
    return {
        "W_in":   nrm(ks[0], (IN_LEN, D)),
        "b_in":   nrm(ks[1], (1, D), 0.05),
        "W_spec": nrm(ks[2], (FC, D)),
        "b_spec": nrm(ks[3], (FC, D), 0.05),
        "ln1_g":  jnp.ones((L, D), jnp.float32),
        "ln1_b":  jnp.zeros((L, D), jnp.float32),
        "W_qkv":  nrm(ks[4], (L, D, 3 * D)),
        "W_o":    nrm(ks[5], (L, D, D)),
        "b_o":    nrm(ks[6], (L, D), 0.05),
        "ln2_g":  jnp.ones((L, D), jnp.float32),
        "ln2_b":  jnp.zeros((L, D), jnp.float32),
        "W_ff1":  nrm(ks[7], (L, D, DFF)),
        "b_ff1":  nrm(ks[8], (L, DFF), 0.05),
        "W_ff2":  nrm(ks[9], (L, DFF, D)),
        "b_ff2":  nrm(ks[10], (L, D), 0.05),
        "lng_g":  jnp.ones((1, D), jnp.float32),
        "lng_b":  jnp.zeros((1, D), jnp.float32),
        "W_gen":  nrm(ks[11], (D, P)),
        "b_gen":  nrm(ks[12], (1, P), 0.05),
    }


# ------------------------------------ main ---------------------------------------
if __name__ == "__main__":
    key = jax.random.PRNGKey(0)
    kp, ki, ks = jax.random.split(key, 3)
    params = init_params(kp)

    B = 2
    inp = jax.random.normal(ki, (B, IN_LEN, F_ALL), jnp.float32)   # (B, in_len, num_all_features)
    spec = jax.random.normal(ks, (B, FC), jnp.float32)             # (B, num_control_features)

    out_k, attn_k = jax.block_until_ready(base_transformer_forward(params, inp, spec))
    out_r, attn_r = jax.block_until_ready(forward_ref(params, inp, spec))

    assert out_k.shape == (B, P) and attn_k.shape == (L * B, H, N, N)
    np.testing.assert_allclose(np.asarray(out_k), np.asarray(out_r), rtol=1e-2, atol=1e-2)
    np.testing.assert_allclose(np.asarray(attn_k), np.asarray(attn_r), rtol=1e-2, atol=1e-2)

    print("KERNEL_OK")
</pallas_src>

<mosaic_0001>
module attributes {stable_mosaic.version = 11 : i64} {
  func.func @kernel(%arg0: i32, %arg1: memref<16x12xf32, #tpu.memory_space<vmem>>, %arg2: memref<16x32xf32, #tpu.memory_space<vmem>>, %arg3: memref<12x32xf32, #tpu.memory_space<vmem>>, %arg4: memref<2x4x32x8xf32, #tpu.memory_space<vmem>>, %arg5: memref<2x4x32x8xf32, #tpu.memory_space<vmem>>, %arg6: memref<2x4x32x8xf32, #tpu.memory_space<vmem>>, %arg7: memref<2x4x8x32xf32, #tpu.memory_space<vmem>>, %arg8: memref<2x32xf32, #tpu.memory_space<vmem>>, %arg9: memref<2x32xf32, #tpu.memory_space<vmem>>, %arg10: memref<2x32xf32, #tpu.memory_space<vmem>>, %arg11: memref<2x32xf32, #tpu.memory_space<vmem>>, %arg12: memref<2x32xf32, #tpu.memory_space<vmem>>, %arg13: memref<2x32x64xf32, #tpu.memory_space<vmem>>, %arg14: memref<2x64xf32, #tpu.memory_space<vmem>>, %arg15: memref<2x64x32xf32, #tpu.memory_space<vmem>>, %arg16: memref<2x32xf32, #tpu.memory_space<vmem>>, %arg17: memref<1x32xf32, #tpu.memory_space<vmem>>, %arg18: memref<1x32xf32, #tpu.memory_space<vmem>>, %arg19: memref<32x6xf32, #tpu.memory_space<vmem>>, %arg20: memref<1x6xf32, #tpu.memory_space<vmem>>, %arg21: memref<1x16xf32, #tpu.memory_space<vmem>>, %arg22: memref<1x1x6xf32, #tpu.memory_space<vmem>>, %arg23: memref<2x4x1x16x16xf32, #tpu.memory_space<vmem>>) attributes {dimension_semantics = [#tpu.dimension_semantics<parallel>], iteration_bounds = array<i64: 2>, scalar_prefetch = 0 : i64, scratch_operands = 0 : i64, tpu.core_type = #tpu.core_type<tc>, window_params = [{transform_indices = @transform_0, window_bounds = array<i64: 16, 12>}, {pipeline_mode = #tpu.pipeline_mode<synchronous>, transform_indices = @transform_1, window_bounds = array<i64: 16, 32>}, {pipeline_mode = #tpu.pipeline_mode<synchronous>, transform_indices = @transform_2, window_bounds = array<i64: 12, 32>}, {pipeline_mode = #tpu.pipeline_mode<synchronous>, transform_indices = @transform_3, window_bounds = array<i64: 2, 4, 32, 8>}, {pipeline_mode = #tpu.pipeline_mode<synchronous>, transform_indices = @transform_4, window_bounds = array<i64: 2, 4, 32, 8>}, {pipeline_mode = #tpu.pipeline_mode<synchronous>, transform_indices = @transform_5, window_bounds = array<i64: 2, 4, 32, 8>}, {pipeline_mode = #tpu.pipeline_mode<synchronous>, transform_indices = @transform_6, window_bounds = array<i64: 2, 4, 8, 32>}, {pipeline_mode = #tpu.pipeline_mode<synchronous>, transform_indices = @transform_7, window_bounds = array<i64: 2, 32>}, {pipeline_mode = #tpu.pipeline_mode<synchronous>, transform_indices = @transform_8, window_bounds = array<i64: 2, 32>}, {pipeline_mode = #tpu.pipeline_mode<synchronous>, transform_indices = @transform_9, window_bounds = array<i64: 2, 32>}, {pipeline_mode = #tpu.pipeline_mode<synchronous>, transform_indices = @transform_10, window_bounds = array<i64: 2, 32>}, {pipeline_mode = #tpu.pipeline_mode<synchronous>, transform_indices = @transform_11, window_bounds = array<i64: 2, 32>}, {pipeline_mode = #tpu.pipeline_mode<synchronous>, transform_indices = @transform_12, window_bounds = array<i64: 2, 32, 64>}, {pipeline_mode = #tpu.pipeline_mode<synchronous>, transform_indices = @transform_13, window_bounds = array<i64: 2, 64>}, {pipeline_mode = #tpu.pipeline_mode<synchronous>, transform_indices = @transform_14, window_bounds = array<i64: 2, 64, 32>}, {pipeline_mode = #tpu.pipeline_mode<synchronous>, transform_indices = @transform_15, window_bounds = array<i64: 2, 32>}, {pipeline_mode = #tpu.pipeline_mode<synchronous>, transform_indices = @transform_16, window_bounds = array<i64: 1, 32>}, {pipeline_mode = #tpu.pipeline_mode<synchronous>, transform_indices = @transform_17, window_bounds = array<i64: 1, 32>}, {pipeline_mode = #tpu.pipeline_mode<synchronous>, transform_indices = @transform_18, window_bounds = array<i64: 32, 6>}, {pipeline_mode = #tpu.pipeline_mode<synchronous>, transform_indices = @transform_19, window_bounds = array<i64: 1, 6>}, {pipeline_mode = #tpu.pipeline_mode<synchronous>, transform_indices = @transform_20, window_bounds = array<i64: 1, 16>}, {transform_indices = @transform_21, window_bounds = array<i64: 1, 1, 6>}, {transform_indices = @transform_22, window_bounds = array<i64: 2, 4, 1, 16, 16>}]} {
    %c0 = arith.constant 0 : index
    %c0_0 = arith.constant 0 : index
    %0 = vector.load %arg1[%c0, %c0_0] : memref<16x12xf32, #tpu.memory_space<vmem>>, vector<16x12xf32>
    %c0_1 = arith.constant 0 : index
    %c0_2 = arith.constant 0 : index
    %1 = vector.load %arg3[%c0_1, %c0_2] : memref<12x32xf32, #tpu.memory_space<vmem>>, vector<12x32xf32>
    %cst = arith.constant dense<0.000000e+00> : vector<16x32xf32>
    %2 = tpu.matmul %0, %1, %cst {dimension_numbers = #tpu.dot_dimension_numbers<[1], [0], [0], [1], [0, 0, 1, 1], [], []>} : vector<16x12xf32>, vector<12x32xf32>, vector<16x32xf32> -> vector<16x32xf32>
    %c0_3 = arith.constant 0 : index
    %c0_4 = arith.constant 0 : index
    %3 = vector.load %arg2[%c0_3, %c0_4] : memref<16x32xf32, #tpu.memory_space<vmem>>, vector<16x32xf32>
    %4 = arith.addf %2, %3 : vector<16x32xf32>
    %5 = tpu.iota {dimensions = array<i32: 2>} : vector<1x1x16xi32>
    %c14_i32 = arith.constant 14 : i32
    %6 = vector.broadcast %c14_i32 : i32 to vector<1x1x16xi32>
    %7 = arith.cmpi slt, %5, %6 : vector<1x1x16xi32>
    %cst_5 = arith.constant 0.000000e+00 : f32
    %cst_6 = arith.constant -1.000000e+30 : f32
    %8 = vector.broadcast %cst_5 : f32 to vector<1x1x16xf32>
    %9 = vector.broadcast %cst_6 : f32 to vector<1x1x16xf32>
    %10 = arith.select %7, %8, %9 : vector<1x1x16xi1>, vector<1x1x16xf32>
    %c0_7 = arith.constant 0 : index
    %c0_8 = arith.constant 0 : index
    %11 = vector.load %arg9[%c0_7, %c0_8] : memref<2x32xf32, #tpu.memory_space<vmem>>, vector<1x32xf32>
    %c0_9 = arith.constant 0 : index
    %c0_10 = arith.constant 0 : index
    %12 = vector.load %arg10[%c0_9, %c0_10] : memref<2x32xf32, #tpu.memory_space<vmem>>, vector<1x32xf32>
    %cst_11 = arith.constant dense<0.000000e+00> : vector<16xf32>
    %13 = vector.multi_reduction <add>, %4, %cst_11 [1] : vector<16x32xf32> to vector<16xf32>
    %14 = vector.shape_cast %13 : vector<16xf32> to vector<16x1xf32>
    %cst_12 = arith.constant 3.200000e+01 : f32
    %15 = vector.broadcast %cst_12 : f32 to vector<16x1xf32>
    %16 = arith.divf %14, %15 : vector<16x1xf32>
    %17 = vector.broadcast %16 : vector<16x1xf32> to vector<16x32xf32>
    %18 = arith.subf %4, %17 : vector<16x32xf32>
    %19 = arith.mulf %18, %18 : vector<16x32xf32>
    %cst_13 = arith.constant dense<0.000000e+00> : vector<16xf32>
    %20 = vector.multi_reduction <add>, %19, %cst_13 [1] : vector<16x32xf32> to vector<16xf32>
    %21 = vector.shape_cast %20 : vector<16xf32> to vector<16x1xf32>
    %cst_14 = arith.constant 3.200000e+01 : f32
    %22 = vector.broadcast %cst_14 : f32 to vector<16x1xf32>
    %23 = arith.divf %21, %22 : vector<16x1xf32>
    %24 = vector.broadcast %16 : vector<16x1xf32> to vector<16x32xf32>
    %25 = arith.subf %4, %24 : vector<16x32xf32>
    %cst_15 = arith.constant 9.99999974E-6 : f32
    %26 = vector.broadcast %cst_15 : f32 to vector<16x1xf32>
    %27 = arith.addf %23, %26 : vector<16x1xf32>
    %28 = math.rsqrt %27 : vector<16x1xf32>
    %29 = vector.broadcast %28 : vector<16x1xf32> to vector<16x32xf32>
    %30 = arith.mulf %25, %29 : vector<16x32xf32>
    %31 = vector.broadcast %11 : vector<1x32xf32> to vector<16x32xf32>
    %32 = arith.mulf %30, %31 : vector<16x32xf32>
    %33 = vector.broadcast %12 : vector<1x32xf32> to vector<16x32xf32>
    %34 = arith.addf %32, %33 : vector<16x32xf32>
    %c0_16 = arith.constant 0 : index
    %c0_17 = arith.constant 0 : index
    %c0_18 = arith.constant 0 : index
    %c0_19 = arith.constant 0 : index
    %35 = vector.load %arg4[%c0_16, %c0_17, %c0_18, %c0_19] : memref<2x4x32x8xf32, #tpu.memory_space<vmem>>, vector<1x1x32x8xf32>
    %36 = vector.shape_cast %35 : vector<1x1x32x8xf32> to vector<32x8xf32>
    %cst_20 = arith.constant dense<0.000000e+00> : vector<16x8xf32>
    %37 = tpu.matmul %34, %36, %cst_20 {dimension_numbers = #tpu.dot_dimension_numbers<[1], [0], [0], [1], [0, 0, 1, 1], [], []>} : vector<16x32xf32>, vector<32x8xf32>, vector<16x8xf32> -> vector<16x8xf32>
    %c0_21 = arith.constant 0 : index
    %c0_22 = arith.constant 0 : index
    %c0_23 = arith.constant 0 : index
    %c0_24 = arith.constant 0 : index
    %38 = vector.load %arg5[%c0_21, %c0_22, %c0_23, %c0_24] : memref<2x4x32x8xf32, #tpu.memory_space<vmem>>, vector<1x1x32x8xf32>
    %39 = vector.shape_cast %38 : vector<1x1x32x8xf32> to vector<32x8xf32>
    %cst_25 = arith.constant dense<0.000000e+00> : vector<16x8xf32>
    %40 = tpu.matmul %34, %39, %cst_25 {dimension_numbers = #tpu.dot_dimension_numbers<[1], [0], [0], [1], [0, 0, 1, 1], [], []>} : vector<16x32xf32>, vector<32x8xf32>, vector<16x8xf32> -> vector<16x8xf32>
    %c0_26 = arith.constant 0 : index
    %c0_27 = arith.constant 0 : index
    %c0_28 = arith.constant 0 : index
    %c0_29 = arith.constant 0 : index
    %41 = vector.load %arg6[%c0_26, %c0_27, %c0_28, %c0_29] : memref<2x4x32x8xf32, #tpu.memory_space<vmem>>, vector<1x1x32x8xf32>
    %42 = vector.shape_cast %41 : vector<1x1x32x8xf32> to vector<32x8xf32>
    %cst_30 = arith.constant dense<0.000000e+00> : vector<16x8xf32>
    %43 = tpu.matmul %34, %42, %cst_30 {dimension_numbers = #tpu.dot_dimension_numbers<[1], [0], [0], [1], [0, 0, 1, 1], [], []>} : vector<16x32xf32>, vector<32x8xf32>, vector<16x8xf32> -> vector<16x8xf32>
    %44 = vector.shape_cast %37 : vector<16x8xf32> to vector<1x16x8xf32>
    %45 = vector.shape_cast %40 : vector<16x8xf32> to vector<1x16x8xf32>
    %46 = vector.shape_cast %43 : vector<16x8xf32> to vector<1x16x8xf32>
    "tpu.trace_start"() <{level = 10 : i32, message = "bqd,bkd->bqk"}> : () -> ()
    %cst_31 = arith.constant dense<0.000000e+00> : vector<1x16x16xf32>
    %47 = tpu.matmul %44, %45, %cst_31 {dimension_numbers = #tpu.dot_dimension_numbers<[2], [2], [1], [1], [0, 0, 0, 1, 1, 1], [0], [0]>} : vector<1x16x8xf32>, vector<1x16x8xf32>, vector<1x16x16xf32> -> vector<1x16x16xf32>
    "tpu.trace_stop"() : () -> ()
    %48 = vector.broadcast %10 : vector<1x1x16xf32> to vector<1x16x16xf32>
    %49 = arith.addf %47, %48 : vector<1x16x16xf32>
    %cst_32 = arith.constant dense<0xFF800000> : vector<1x16xf32>
    %50 = vector.multi_reduction <maximumf>, %49, %cst_32 [2] : vector<1x16x16xf32> to vector<1x16xf32>
    %51 = vector.shape_cast %50 : vector<1x16xf32> to vector<1x16x1xf32>
    %52 = vector.broadcast %51 : vector<1x16x1xf32> to vector<1x16x16xf32>
    %53 = arith.subf %49, %52 : vector<1x16x16xf32>
    %54 = math.exp %53 : vector<1x16x16xf32>
    %cst_33 = arith.constant dense<0.000000e+00> : vector<1x16xf32>
    %55 = vector.multi_reduction <add>, %54, %cst_33 [2] : vector<1x16x16xf32> to vector<1x16xf32>
    %56 = vector.shape_cast %55 : vector<1x16xf32> to vector<1x16x1xf32>
    %57 = tpu.reciprocal %56 {approx = true} : vector<1x16x1xf32> -> vector<1x16x1xf32>
    %58 = vector.broadcast %57 : vector<1x16x1xf32> to vector<1x16x16xf32>
    %59 = arith.mulf %54, %58 : vector<1x16x16xf32>
    %c0_34 = arith.constant 0 : index
    %c0_35 = arith.constant 0 : index
    %c0_36 = arith.constant 0 : index
    %c0_37 = arith.constant 0 : index
    %c0_38 = arith.constant 0 : index
    %60 = vector.load %arg23[%c0_34, %c0_35, %c0_36, %c0_37, %c0_38] : memref<2x4x1x16x16xf32, #tpu.memory_space<vmem>>, vector<1x1x1x16x16xf32>
    %61 = vector.shape_cast %60 : vector<1x1x1x16x16xf32> to vector<1x16x16xf32>
    %62 = vector.shape_cast %59 : vector<1x16x16xf32> to vector<1x1x1x16x16xf32>
    tpu.vector_store %arg23[%c0_34, %c0_35, %c0_36, %c0_37, %c0_38], %62 {strides = array<i32>} : memref<2x4x1x16x16xf32, #tpu.memory_space<vmem>>, vector<1x1x1x16x16xf32>,
    "tpu.trace_start"() <{level = 10 : i32, message = "bqk,bkd->bqd"}> : () -> ()
    %cst_39 = arith.constant dense<0.000000e+00> : vector<1x16x8xf32>
    %63 = tpu.matmul %59, %46, %cst_39 {dimension_numbers = #tpu.dot_dimension_numbers<[2], [1], [1], [2], [0, 0, 0, 1, 1, 2], [0], [0]>} : vector<1x16x16xf32>, vector<1x16x8xf32>, vector<1x16x8xf32> -> vector<1x16x8xf32>
    "tpu.trace_stop"() : () -> ()
    %64 = vector.shape_cast %63 : vector<1x16x8xf32> to vector<16x8xf32>
    %c0_40 = arith.constant 0 : index
    %c0_41 = arith.constant 0 : index
    %c0_42 = arith.constant 0 : index
    %c0_43 = arith.constant 0 : index
    %65 = vector.load %arg7[%c0_40, %c0_41, %c0_42, %c0_43] : memref<2x4x8x32xf32, #tpu.memory_space<vmem>>, vector<1x1x8x32xf32>
    %66 = vector.shape_cast %65 : vector<1x1x8x32xf32> to vector<8x32xf32>
    %cst_44 = arith.constant dense<0.000000e+00> : vector<16x32xf32>
    %67 = tpu.matmul %64, %66, %cst_44 {dimension_numbers = #tpu.dot_dimension_numbers<[1], [0], [0], [1], [0, 0, 1, 1], [], []>} : vector<16x8xf32>, vector<8x32xf32>, vector<16x32xf32> -> vector<16x32xf32>
    %c0_45 = arith.constant 0 : index
    %c1 = arith.constant 1 : index
    %c0_46 = arith.constant 0 : index
    %c0_47 = arith.constant 0 : index
    %68 = vector.load %arg4[%c0_45, %c1, %c0_46, %c0_47] : memref<2x4x32x8xf32, #tpu.memory_space<vmem>>, vector<1x1x32x8xf32>
    %69 = vector.shape_cast %68 : vector<1x1x32x8xf32> to vector<32x8xf32>
    %cst_48 = arith.constant dense<0.000000e+00> : vector<16x8xf32>
    %70 = tpu.matmul %34, %69, %cst_48 {dimension_numbers = #tpu.dot_dimension_numbers<[1], [0], [0], [1], [0, 0, 1, 1], [], []>} : vector<16x32xf32>, vector<32x8xf32>, vector<16x8xf32> -> vector<16x8xf32>
    %c0_49 = arith.constant 0 : index
    %c1_50 = arith.constant 1 : index
    %c0_51 = arith.constant 0 : index
    %c0_52 = arith.constant 0 : index
    %71 = vector.load %arg5[%c0_49, %c1_50, %c0_51, %c0_52] : memref<2x4x32x8xf32, #tpu.memory_space<vmem>>, vector<1x1x32x8xf32>
    %72 = vector.shape_cast %71 : vector<1x1x32x8xf32> to vector<32x8xf32>
    %cst_53 = arith.constant dense<0.000000e+00> : vector<16x8xf32>
    %73 = tpu.matmul %34, %72, %cst_53 {dimension_numbers = #tpu.dot_dimension_numbers<[1], [0], [0], [1], [0, 0, 1, 1], [], []>} : vector<16x32xf32>, vector<32x8xf32>, vector<16x8xf32> -> vector<16x8xf32>
    %c0_54 = arith.constant 0 : index
    %c1_55 = arith.constant 1 : index
    %c0_56 = arith.constant 0 : index
    %c0_57 = arith.constant 0 : index
    %74 = vector.load %arg6[%c0_54, %c1_55, %c0_56, %c0_57] : memref<2x4x32x8xf32, #tpu.memory_space<vmem>>, vector<1x1x32x8xf32>
    %75 = vector.shape_cast %74 : vector<1x1x32x8xf32> to vector<32x8xf32>
    %cst_58 = arith.constant dense<0.000000e+00> : vector<16x8xf32>
    %76 = tpu.matmul %34, %75, %cst_58 {dimension_numbers = #tpu.dot_dimension_numbers<[1], [0], [0], [1], [0, 0, 1, 1], [], []>} : vector<16x32xf32>, vector<32x8xf32>, vector<16x8xf32> -> vector<16x8xf32>
    %77 = vector.shape_cast %70 : vector<16x8xf32> to vector<1x16x8xf32>
    %78 = vector.shape_cast %73 : vector<16x8xf32> to vector<1x16x8xf32>
    %79 = vector.shape_cast %76 : vector<16x8xf32> to vector<1x16x8xf32>
    "tpu.trace_start"() <{level = 10 : i32, message = "bqd,bkd->bqk"}> : () -> ()
    %cst_59 = arith.constant dense<0.000000e+00> : vector<1x16x16xf32>
    %80 = tpu.matmul %77, %78, %cst_59 {dimension_numbers = #tpu.dot_dimension_numbers<[2], [2], [1], [1], [0, 0, 0, 1, 1, 1], [0], [0]>} : vector<1x16x8xf32>, vector<1x16x8xf32>, vector<1x16x16xf32> -> vector<1x16x16xf32>
    "tpu.trace_stop"() : () -> ()
    %81 = vector.broadcast %10 : vector<1x1x16xf32> to vector<1x16x16xf32>
    %82 = arith.addf %80, %81 : vector<1x16x16xf32>
    %cst_60 = arith.constant dense<0xFF800000> : vector<1x16xf32>
    %83 = vector.multi_reduction <maximumf>, %82, %cst_60 [2] : vector<1x16x16xf32> to vector<1x16xf32>
    %84 = vector.shape_cast %83 : vector<1x16xf32> to vector<1x16x1xf32>
    %85 = vector.broadcast %84 : vector<1x16x1xf32> to vector<1x16x16xf32>
    %86 = arith.subf %82, %85 : vector<1x16x16xf32>
    %87 = math.exp %86 : vector<1x16x16xf32>
    %cst_61 = arith.constant dense<0.000000e+00> : vector<1x16xf32>
    %88 = vector.multi_reduction <add>, %87, %cst_61 [2] : vector<1x16x16xf32> to vector<1x16xf32>
    %89 = vector.shape_cast %88 : vector<1x16xf32> to vector<1x16x1xf32>
    %90 = tpu.reciprocal %89 {approx = true} : vector<1x16x1xf32> -> vector<1x16x1xf32>
    %91 = vector.broadcast %90 : vector<1x16x1xf32> to vector<1x16x16xf32>
    %92 = arith.mulf %87, %91 : vector<1x16x16xf32>
    %c0_62 = arith.constant 0 : index
    %c1_63 = arith.constant 1 : index
    %c0_64 = arith.constant 0 : index
    %c0_65 = arith.constant 0 : index
    %c0_66 = arith.constant 0 : index
    %93 = vector.load %arg23[%c0_62, %c1_63, %c0_64, %c0_65, %c0_66] : memref<2x4x1x16x16xf32, #tpu.memory_space<vmem>>, vector<1x1x1x16x16xf32>
    %94 = vector.shape_cast %93 : vector<1x1x1x16x16xf32> to vector<1x16x16xf32>
    %95 = vector.shape_cast %92 : vector<1x16x16xf32> to vector<1x1x1x16x16xf32>
    tpu.vector_store %arg23[%c0_62, %c1_63, %c0_64, %c0_65, %c0_66], %95 {strides = array<i32>} : memref<2x4x1x16x16xf32, #tpu.memory_space<vmem>>, vector<1x1x1x16x16xf32>,
    "tpu.trace_start"() <{level = 10 : i32, message = "bqk,bkd->bqd"}> : () -> ()
    %cst_67 = arith.constant dense<0.000000e+00> : vector<1x16x8xf32>
    %96 = tpu.matmul %92, %79, %cst_67 {dimension_numbers = #tpu.dot_dimension_numbers<[2], [1], [1], [2], [0, 0, 0, 1, 1, 2], [0], [0]>} : vector<1x16x16xf32>, vector<1x16x8xf32>, vector<1x16x8xf32> -> vector<1x16x8xf32>
    "tpu.trace_stop"() : () -> ()
    %97 = vector.shape_cast %96 : vector<1x16x8xf32> to vector<16x8xf32>
    %c0_68 = arith.constant 0 : index
    %c1_69 = arith.constant 1 : index
    %c0_70 = arith.constant 0 : index
    %c0_71 = arith.constant 0 : index
    %98 = vector.load %arg7[%c0_68, %c1_69, %c0_70, %c0_71] : memref<2x4x8x32xf32, #tpu.memory_space<vmem>>, vector<1x1x8x32xf32>
    %99 = vector.shape_cast %98 : vector<1x1x8x32xf32> to vector<8x32xf32>
    %cst_72 = arith.constant dense<0.000000e+00> : vector<16x32xf32>
    %100 = tpu.matmul %97, %99, %cst_72 {dimension_numbers = #tpu.dot_dimension_numbers<[1], [0], [0], [1], [0, 0, 1, 1], [], []>} : vector<16x8xf32>, vector<8x32xf32>, vector<16x32xf32> -> vector<16x32xf32>
    %101 = arith.addf %67, %100 : vector<16x32xf32>
    %c0_73 = arith.constant 0 : index
    %c2 = arith.constant 2 : index
    %c0_74 = arith.constant 0 : index
    %c0_75 = arith.constant 0 : index
    %102 = vector.load %arg4[%c0_73, %c2, %c0_74, %c0_75] : memref<2x4x32x8xf32, #tpu.memory_space<vmem>>, vector<1x1x32x8xf32>
    %103 = vector.shape_cast %102 : vector<1x1x32x8xf32> to vector<32x8xf32>
    %cst_76 = arith.constant dense<0.000000e+00> : vector<16x8xf32>
    %104 = tpu.matmul %34, %103, %cst_76 {dimension_numbers = #tpu.dot_dimension_numbers<[1], [0], [0], [1], [0, 0, 1, 1], [], []>} : vector<16x32xf32>, vector<32x8xf32>, vector<16x8xf32> -> vector<16x8xf32>
    %c0_77 = arith.constant 0 : index
    %c2_78 = arith.constant 2 : index
    %c0_79 = arith.constant 0 : index
    %c0_80 = arith.constant 0 : index
    %105 = vector.load %arg5[%c0_77, %c2_78, %c0_79, %c0_80] : memref<2x4x32x8xf32, #tpu.memory_space<vmem>>, vector<1x1x32x8xf32>
    %106 = vector.shape_cast %105 : vector<1x1x32x8xf32> to vector<32x8xf32>
    %cst_81 = arith.constant dense<0.000000e+00> : vector<16x8xf32>
    %107 = tpu.matmul %34, %106, %cst_81 {dimension_numbers = #tpu.dot_dimension_numbers<[1], [0], [0], [1], [0, 0, 1, 1], [], []>} : vector<16x32xf32>, vector<32x8xf32>, vector<16x8xf32> -> vector<16x8xf32>
    %c0_82 = arith.constant 0 : index
    %c2_83 = arith.constant 2 : index
    %c0_84 = arith.constant 0 : index
    %c0_85 = arith.constant 0 : index
    %108 = vector.load %arg6[%c0_82, %c2_83, %c0_84, %c0_85] : memref<2x4x32x8xf32, #tpu.memory_space<vmem>>, vector<1x1x32x8xf32>
    %109 = vector.shape_cast %108 : vector<1x1x32x8xf32> to vector<32x8xf32>
    %cst_86 = arith.constant dense<0.000000e+00> : vector<16x8xf32>
    %110 = tpu.matmul %34, %109, %cst_86 {dimension_numbers = #tpu.dot_dimension_numbers<[1], [0], [0], [1], [0, 0, 1, 1], [], []>} : vector<16x32xf32>, vector<32x8xf32>, vector<16x8xf32> -> vector<16x8xf32>
    %111 = vector.shape_cast %104 : vector<16x8xf32> to vector<1x16x8xf32>
    %112 = vector.shape_cast %107 : vector<16x8xf32> to vector<1x16x8xf32>
    %113 = vector.shape_cast %110 : vector<16x8xf32> to vector<1x16x8xf32>
    "tpu.trace_start"() <{level = 10 : i32, message = "bqd,bkd->bqk"}> : () -> ()
    %cst_87 = arith.constant dense<0.000000e+00> : vector<1x16x16xf32>
    %114 = tpu.matmul %111, %112, %cst_87 {dimension_numbers = #tpu.dot_dimension_numbers<[2], [2], [1], [1], [0, 0, 0, 1, 1, 1], [0], [0]>} : vector<1x16x8xf32>, vector<1x16x8xf32>, vector<1x16x16xf32> -> vector<1x16x16xf32>
    "tpu.trace_stop"() : () -> ()
    %115 = vector.broadcast %10 : vector<1x1x16xf32> to vector<1x16x16xf32>
    %116 = arith.addf %114, %115 : vector<1x16x16xf32>
    %cst_88 = arith.constant dense<0xFF800000> : vector<1x16xf32>
    %117 = vector.multi_reduction <maximumf>, %116, %cst_88 [2] : vector<1x16x16xf32> to vector<1x16xf32>
    %118 = vector.shape_cast %117 : vector<1x16xf32> to vector<1x16x1xf32>
    %119 = vector.broadcast %118 : vector<1x16x1xf32> to vector<1x16x16xf32>
    %120 = arith.subf %116, %119 : vector<1x16x16xf32>
    %121 = math.exp %120 : vector<1x16x16xf32>
    %cst_89 = arith.constant dense<0.000000e+00> : vector<1x16xf32>
    %122 = vector.multi_reduction <add>, %121, %cst_89 [2] : vector<1x16x16xf32> to vector<1x16xf32>
    %123 = vector.shape_cast %122 : vector<1x16xf32> to vector<1x16x1xf32>
    %124 = tpu.reciprocal %123 {approx = true} : vector<1x16x1xf32> -> vector<1x16x1xf32>
    %125 = vector.broadcast %124 : vector<1x16x1xf32> to vector<1x16x16xf32>
    %126 = arith.mulf %121, %125 : vector<1x16x16xf32>
    %c0_90 = arith.constant 0 : index
    %c2_91 = arith.constant 2 : index
    %c0_92 = arith.constant 0 : index
    %c0_93 = arith.constant 0 : index
    %c0_94 = arith.constant 0 : index
    %127 = vector.load %arg23[%c0_90, %c2_91, %c0_92, %c0_93, %c0_94] : memref<2x4x1x16x16xf32, #tpu.memory_space<vmem>>, vector<1x1x1x16x16xf32>
    %128 = vector.shape_cast %127 : vector<1x1x1x16x16xf32> to vector<1x16x16xf32>
    %129 = vector.shape_cast %126 : vector<1x16x16xf32> to vector<1x1x1x16x16xf32>
    tpu.vector_store %arg23[%c0_90, %c2_91, %c0_92, %c0_93, %c0_94], %129 {strides = array<i32>} : memref<2x4x1x16x16xf32, #tpu.memory_space<vmem>>, vector<1x1x1x16x16xf32>,
    "tpu.trace_start"() <{level = 10 : i32, message = "bqk,bkd->bqd"}> : () -> ()
    %cst_95 = arith.constant dense<0.000000e+00> : vector<1x16x8xf32>
    %130 = tpu.matmul %126, %113, %cst_95 {dimension_numbers = #tpu.dot_dimension_numbers<[2], [1], [1], [2], [0, 0, 0, 1, 1, 2], [0], [0]>} : vector<1x16x16xf32>, vector<1x16x8xf32>, vector<1x16x8xf32> -> vector<1x16x8xf32>
    "tpu.trace_stop"() : () -> ()
    %131 = vector.shape_cast %130 : vector<1x16x8xf32> to vector<16x8xf32>
    %c0_96 = arith.constant 0 : index
    %c2_97 = arith.constant 2 : index
    %c0_98 = arith.constant 0 : index
    %c0_99 = arith.constant 0 : index
    %132 = vector.load %arg7[%c0_96, %c2_97, %c0_98, %c0_99] : memref<2x4x8x32xf32, #tpu.memory_space<vmem>>, vector<1x1x8x32xf32>
    %133 = vector.shape_cast %132 : vector<1x1x8x32xf32> to vector<8x32xf32>
    %cst_100 = arith.constant dense<0.000000e+00> : vector<16x32xf32>
    %134 = tpu.matmul %131, %133, %cst_100 {dimension_numbers = #tpu.dot_dimension_numbers<[1], [0], [0], [1], [0, 0, 1, 1], [], []>} : vector<16x8xf32>, vector<8x32xf32>, vector<16x32xf32> -> vector<16x32xf32>
    %135 = arith.addf %101, %134 : vector<16x32xf32>
    %c0_101 = arith.constant 0 : index
    %c3 = arith.constant 3 : index
    %c0_102 = arith.constant 0 : index
    %c0_103 = arith.constant 0 : index
    %136 = vector.load %arg4[%c0_101, %c3, %c0_102, %c0_103] : memref<2x4x32x8xf32, #tpu.memory_space<vmem>>, vector<1x1x32x8xf32>
    %137 = vector.shape_cast %136 : vector<1x1x32x8xf32> to vector<32x8xf32>
    %cst_104 = arith.constant dense<0.000000e+00> : vector<16x8xf32>
    %138 = tpu.matmul %34, %137, %cst_104 {dimension_numbers = #tpu.dot_dimension_numbers<[1], [0], [0], [1], [0, 0, 1, 1], [], []>} : vector<16x32xf32>, vector<32x8xf32>, vector<16x8xf32> -> vector<16x8xf32>
    %c0_105 = arith.constant 0 : index
    %c3_106 = arith.constant 3 : index
    %c0_107 = arith.constant 0 : index
    %c0_108 = arith.constant 0 : index
    %139 = vector.load %arg5[%c0_105, %c3_106, %c0_107, %c0_108] : memref<2x4x32x8xf32, #tpu.memory_space<vmem>>, vector<1x1x32x8xf32>
    %140 = vector.shape_cast %139 : vector<1x1x32x8xf32> to vector<32x8xf32>
    %cst_109 = arith.constant dense<0.000000e+00> : vector<16x8xf32>
    %141 = tpu.matmul %34, %140, %cst_109 {dimension_numbers = #tpu.dot_dimension_numbers<[1], [0], [0], [1], [0, 0, 1, 1], [], []>} : vector<16x32xf32>, vector<32x8xf32>, vector<16x8xf32> -> vector<16x8xf32>
    %c0_110 = arith.constant 0 : index
    %c3_111 = arith.constant 3 : index
    %c0_112 = arith.constant 0 : index
    %c0_113 = arith.constant 0 : index
    %142 = vector.load %arg6[%c0_110, %c3_111, %c0_112, %c0_113] : memref<2x4x32x8xf32, #tpu.memory_space<vmem>>, vector<1x1x32x8xf32>
    %143 = vector.shape_cast %142 : vector<1x1x32x8xf32> to vector<32x8xf32>
    %cst_114 = arith.constant dense<0.000000e+00> : vector<16x8xf32>
    %144 = tpu.matmul %34, %143, %cst_114 {dimension_numbers = #tpu.dot_dimension_numbers<[1], [0], [0], [1], [0, 0, 1, 1], [], []>} : vector<16x32xf32>, vector<32x8xf32>, vector<16x8xf32> -> vector<16x8xf32>
    %145 = vector.shape_cast %138 : vector<16x8xf32> to vector<1x16x8xf32>
    %146 = vector.shape_cast %141 : vector<16x8xf32> to vector<1x16x8xf32>
    %147 = vector.shape_cast %144 : vector<16x8xf32> to vector<1x16x8xf32>
    "tpu.trace_start"() <{level = 10 : i32, message = "bqd,bkd->bqk"}> : () -> ()
    %cst_115 = arith.constant dense<0.000000e+00> : vector<1x16x16xf32>
    %148 = tpu.matmul %145, %146, %cst_115 {dimension_numbers = #tpu.dot_dimension_numbers<[2], [2], [1], [1], [0, 0, 0, 1, 1, 1], [0], [0]>} : vector<1x16x8xf32>, vector<1x16x8xf32>, vector<1x16x16xf32> -> vector<1x16x16xf32>
    "tpu.trace_stop"() : () -> ()
    %149 = vector.broadcast %10 : vector<1x1x16xf32> to vector<1x16x16xf32>
    %150 = arith.addf %148, %149 : vector<1x16x16xf32>
    %cst_116 = arith.constant dense<0xFF800000> : vector<1x16xf32>
    %151 = vector.multi_reduction <maximumf>, %150, %cst_116 [2] : vector<1x16x16xf32> to vector<1x16xf32>
    %152 = vector.shape_cast %151 : vector<1x16xf32> to vector<1x16x1xf32>
    %153 = vector.broadcast %152 : vector<1x16x1xf32> to vector<1x16x16xf32>
    %154 = arith.subf %150, %153 : vector<1x16x16xf32>
    %155 = math.exp %154 : vector<1x16x16xf32>
    %cst_117 = arith.constant dense<0.000000e+00> : vector<1x16xf32>
    %156 = vector.multi_reduction <add>, %155, %cst_117 [2] : vector<1x16x16xf32> to vector<1x16xf32>
    %157 = vector.shape_cast %156 : vector<1x16xf32> to vector<1x16x1xf32>
    %158 = tpu.reciprocal %157 {approx = true} : vector<1x16x1xf32> -> vector<1x16x1xf32>
    %159 = vector.broadcast %158 : vector<1x16x1xf32> to vector<1x16x16xf32>
    %160 = arith.mulf %155, %159 : vector<1x16x16xf32>
    %c0_118 = arith.constant 0 : index
    %c3_119 = arith.constant 3 : index
    %c0_120 = arith.constant 0 : index
    %c0_121 = arith.constant 0 : index
    %c0_122 = arith.constant 0 : index
    %161 = vector.load %arg23[%c0_118, %c3_119, %c0_120, %c0_121, %c0_122] : memref<2x4x1x16x16xf32, #tpu.memory_space<vmem>>, vector<1x1x1x16x16xf32>
    %162 = vector.shape_cast %161 : vector<1x1x1x16x16xf32> to vector<1x16x16xf32>
    %163 = vector.shape_cast %160 : vector<1x16x16xf32> to vector<1x1x1x16x16xf32>
    tpu.vector_store %arg23[%c0_118, %c3_119, %c0_120, %c0_121, %c0_122], %163 {strides = array<i32>} : memref<2x4x1x16x16xf32, #tpu.memory_space<vmem>>, vector<1x1x1x16x16xf32>,
    "tpu.trace_start"() <{level = 10 : i32, message = "bqk,bkd->bqd"}> : () -> ()
    %cst_123 = arith.constant dense<0.000000e+00> : vector<1x16x8xf32>
    %164 = tpu.matmul %160, %147, %cst_123 {dimension_numbers = #tpu.dot_dimension_numbers<[2], [1], [1], [2], [0, 0, 0, 1, 1, 2], [0], [0]>} : vector<1x16x16xf32>, vector<1x16x8xf32>, vector<1x16x8xf32> -> vector<1x16x8xf32>
    "tpu.trace_stop"() : () -> ()
    %165 = vector.shape_cast %164 : vector<1x16x8xf32> to vector<16x8xf32>
    %c0_124 = arith.constant 0 : index
    %c3_125 = arith.constant 3 : index
    %c0_126 = arith.constant 0 : index
    %c0_127 = arith.constant 0 : index
    %166 = vector.load %arg7[%c0_124, %c3_125, %c0_126, %c0_127] : memref<2x4x8x32xf32, #tpu.memory_space<vmem>>, vector<1x1x8x32xf32>
    %167 = vector.shape_cast %166 : vector<1x1x8x32xf32> to vector<8x32xf32>
    %cst_128 = arith.constant dense<0.000000e+00> : vector<16x32xf32>
    %168 = tpu.matmul %165, %167, %cst_128 {dimension_numbers = #tpu.dot_dimension_numbers<[1], [0], [0], [1], [0, 0, 1, 1], [], []>} : vector<16x8xf32>, vector<8x32xf32>, vector<16x32xf32> -> vector<16x32xf32>
    %169 = arith.addf %135, %168 : vector<16x32xf32>
    %c0_129 = arith.constant 0 : index
    %c0_130 = arith.constant 0 : index
    %170 = vector.load %arg8[%c0_129, %c0_130] : memref<2x32xf32, #tpu.memory_space<vmem>>, vector<1x32xf32>
    %171 = vector.broadcast %170 : vector<1x32xf32> to vector<16x32xf32>
    %172 = arith.addf %169, %171 : vector<16x32xf32>
    %173 = arith.addf %172, %4 : vector<16x32xf32>
    %c0_131 = arith.constant 0 : index
    %c0_132 = arith.constant 0 : index
    %174 = vector.load %arg11[%c0_131, %c0_132] : memref<2x32xf32, #tpu.memory_space<vmem>>, vector<1x32xf32>
    %c0_133 = arith.constant 0 : index
    %c0_134 = arith.constant 0 : index
    %175 = vector.load %arg12[%c0_133, %c0_134] : memref<2x32xf32, #tpu.memory_space<vmem>>, vector<1x32xf32>
    %cst_135 = arith.constant dense<0.000000e+00> : vector<16xf32>
    %176 = vector.multi_reduction <add>, %173, %cst_135 [1] : vector<16x32xf32> to vector<16xf32>
    %177 = vector.shape_cast %176 : vector<16xf32> to vector<16x1xf32>
    %cst_136 = arith.constant 3.200000e+01 : f32
    %178 = vector.broadcast %cst_136 : f32 to vector<16x1xf32>
    %179 = arith.divf %177, %178 : vector<16x1xf32>
    %180 = vector.broadcast %179 : vector<16x1xf32> to vector<16x32xf32>
    %181 = arith.subf %173, %180 : vector<16x32xf32>
    %182 = arith.mulf %181, %181 : vector<16x32xf32>
    %cst_137 = arith.constant dense<0.000000e+00> : vector<16xf32>
    %183 = vector.multi_reduction <add>, %182, %cst_137 [1] : vector<16x32xf32> to vector<16xf32>
    %184 = vector.shape_cast %183 : vector<16xf32> to vector<16x1xf32>
    %cst_138 = arith.constant 3.200000e+01 : f32
    %185 = vector.broadcast %cst_138 : f32 to vector<16x1xf32>
    %186 = arith.divf %184, %185 : vector<16x1xf32>
    %187 = vector.broadcast %179 : vector<16x1xf32> to vector<16x32xf32>
    %188 = arith.subf %173, %187 : vector<16x32xf32>
    %cst_139 = arith.constant 9.99999974E-6 : f32
    %189 = vector.broadcast %cst_139 : f32 to vector<16x1xf32>
    %190 = arith.addf %186, %189 : vector<16x1xf32>
    %191 = math.rsqrt %190 : vector<16x1xf32>
    %192 = vector.broadcast %191 : vector<16x1xf32> to vector<16x32xf32>
    %193 = arith.mulf %188, %192 : vector<16x32xf32>
    %194 = vector.broadcast %174 : vector<1x32xf32> to vector<16x32xf32>
    %195 = arith.mulf %193, %194 : vector<16x32xf32>
    %196 = vector.broadcast %175 : vector<1x32xf32> to vector<16x32xf32>
    %197 = arith.addf %195, %196 : vector<16x32xf32>
    %c0_140 = arith.constant 0 : index
    %c0_141 = arith.constant 0 : index
    %c0_142 = arith.constant 0 : index
    %198 = vector.load %arg13[%c0_140, %c0_141, %c0_142] : memref<2x32x64xf32, #tpu.memory_space<vmem>>, vector<1x32x64xf32>
    %199 = vector.shape_cast %198 : vector<1x32x64xf32> to vector<32x64xf32>
    %cst_143 = arith.constant dense<0.000000e+00> : vector<16x64xf32>
    %200 = tpu.matmul %197, %199, %cst_143 {dimension_numbers = #tpu.dot_dimension_numbers<[1], [0], [0], [1], [0, 0, 1, 1], [], []>} : vector<16x32xf32>, vector<32x64xf32>, vector<16x64xf32> -> vector<16x64xf32>
    %c0_144 = arith.constant 0 : index
    %c0_145 = arith.constant 0 : index
    %201 = vector.load %arg14[%c0_144, %c0_145] : memref<2x64xf32, #tpu.memory_space<vmem>>, vector<1x64xf32>
    %202 = vector.broadcast %201 : vector<1x64xf32> to vector<16x64xf32>
    %203 = arith.addf %200, %202 : vector<16x64xf32>
    %cst_146 = arith.constant 5.000000e-01 : f32
    %204 = vector.broadcast %cst_146 : f32 to vector<16x64xf32>
    %205 = arith.mulf %204, %203 : vector<16x64xf32>
    %cst_147 = arith.constant 4.471500e-02 : f32
    %206 = vector.broadcast %cst_147 : f32 to vector<16x64xf32>
    %207 = arith.mulf %206, %203 : vector<16x64xf32>
    %208 = arith.mulf %207, %203 : vector<16x64xf32>
    %209 = arith.mulf %208, %203 : vector<16x64xf32>
    %210 = arith.addf %203, %209 : vector<16x64xf32>
    %cst_148 = arith.constant 0.797884583 : f32
    %211 = vector.broadcast %cst_148 : f32 to vector<16x64xf32>
    %212 = arith.mulf %211, %210 : vector<16x64xf32>
    %213 = math.tanh %212 : vector<16x64xf32>
    %cst_149 = arith.constant 1.000000e+00 : f32
    %214 = vector.broadcast %cst_149 : f32 to vector<16x64xf32>
    %215 = arith.addf %214, %213 : vector<16x64xf32>
    %216 = arith.mulf %205, %215 : vector<16x64xf32>
    %c0_150 = arith.constant 0 : index
    %c0_151 = arith.constant 0 : index
    %c0_152 = arith.constant 0 : index
    %217 = vector.load %arg15[%c0_150, %c0_151, %c0_152] : memref<2x64x32xf32, #tpu.memory_space<vmem>>, vector<1x64x32xf32>
    %218 = vector.shape_cast %217 : vector<1x64x32xf32> to vector<64x32xf32>
    %cst_153 = arith.constant dense<0.000000e+00> : vector<16x32xf32>
    %219 = tpu.matmul %216, %218, %cst_153 {dimension_numbers = #tpu.dot_dimension_numbers<[1], [0], [0], [1], [0, 0, 1, 1], [], []>} : vector<16x64xf32>, vector<64x32xf32>, vector<16x32xf32> -> vector<16x32xf32>
    %c0_154 = arith.constant 0 : index
    %c0_155 = arith.constant 0 : index
    %220 = vector.load %arg16[%c0_154, %c0_155] : memref<2x32xf32, #tpu.memory_space<vmem>>, vector<1x32xf32>
    %221 = vector.broadcast %220 : vector<1x32xf32> to vector<16x32xf32>
    %222 = arith.addf %219, %221 : vector<16x32xf32>
    %223 = arith.addf %222, %173 : vector<16x32xf32>
    %c1_156 = arith.constant 1 : index
    %c0_157 = arith.constant 0 : index
    %224 = vector.load %arg9[%c1_156, %c0_157] : memref<2x32xf32, #tpu.memory_space<vmem>>, vector<1x32xf32>
    %c1_158 = arith.constant 1 : index
    %c0_159 = arith.constant 0 : index
    %225 = vector.load %arg10[%c1_158, %c0_159] : memref<2x32xf32, #tpu.memory_space<vmem>>, vector<1x32xf32>
    %cst_160 = arith.constant dense<0.000000e+00> : vector<16xf32>
    %226 = vector.multi_reduction <add>, %223, %cst_160 [1] : vector<16x32xf32> to vector<16xf32>
    %227 = vector.shape_cast %226 : vector<16xf32> to vector<16x1xf32>
    %cst_161 = arith.constant 3.200000e+01 : f32
    %228 = vector.broadcast %cst_161 : f32 to vector<16x1xf32>
    %229 = arith.divf %227, %228 : vector<16x1xf32>
    %230 = vector.broadcast %229 : vector<16x1xf32> to vector<16x32xf32>
    %231 = arith.subf %223, %230 : vector<16x32xf32>
    %232 = arith.mulf %231, %231 : vector<16x32xf32>
    %cst_162 = arith.constant dense<0.000000e+00> : vector<16xf32>
    %233 = vector.multi_reduction <add>, %232, %cst_162 [1] : vector<16x32xf32> to vector<16xf32>
    %234 = vector.shape_cast %233 : vector<16xf32> to vector<16x1xf32>
    %cst_163 = arith.constant 3.200000e+01 : f32
    %235 = vector.broadcast %cst_163 : f32 to vector<16x1xf32>
    %236 = arith.divf %234, %235 : vector<16x1xf32>
    %237 = vector.broadcast %229 : vector<16x1xf32> to vector<16x32xf32>
    %238 = arith.subf %223, %237 : vector<16x32xf32>
    %cst_164 = arith.constant 9.99999974E-6 : f32
    %239 = vector.broadcast %cst_164 : f32 to vector<16x1xf32>
    %240 = arith.addf %236, %239 : vector<16x1xf32>
    %241 = math.rsqrt %240 : vector<16x1xf32>
    %242 = vector.broadcast %241 : vector<16x1xf32> to vector<16x32xf32>
    %243 = arith.mulf %238, %242 : vector<16x32xf32>
    %244 = vector.broadcast %224 : vector<1x32xf32> to vector<16x32xf32>
    %245 = arith.mulf %243, %244 : vector<16x32xf32>
    %246 = vector.broadcast %225 : vector<1x32xf32> to vector<16x32xf32>
    %247 = arith.addf %245, %246 : vector<16x32xf32>
    %c1_165 = arith.constant 1 : index
    %c0_166 = arith.constant 0 : index
    %c0_167 = arith.constant 0 : index
    %c0_168 = arith.constant 0 : index
    %248 = vector.load %arg4[%c1_165, %c0_166, %c0_167, %c0_168] : memref<2x4x32x8xf32, #tpu.memory_space<vmem>>, vector<1x1x32x8xf32>
    %249 = vector.shape_cast %248 : vector<1x1x32x8xf32> to vector<32x8xf32>
    %cst_169 = arith.constant dense<0.000000e+00> : vector<16x8xf32>
    %250 = tpu.matmul %247, %249, %cst_169 {dimension_numbers = #tpu.dot_dimension_numbers<[1], [0], [0], [1], [0, 0, 1, 1], [], []>} : vector<16x32xf32>, vector<32x8xf32>, vector<16x8xf32> -> vector<16x8xf32>
    %c1_170 = arith.constant 1 : index
    %c0_171 = arith.constant 0 : index
    %c0_172 = arith.constant 0 : index
    %c0_173 = arith.constant 0 : index
    %251 = vector.load %arg5[%c1_170, %c0_171, %c0_172, %c0_173] : memref<2x4x32x8xf32, #tpu.memory_space<vmem>>, vector<1x1x32x8xf32>
    %252 = vector.shape_cast %251 : vector<1x1x32x8xf32> to vector<32x8xf32>
    %cst_174 = arith.constant dense<0.000000e+00> : vector<16x8xf32>
    %253 = tpu.matmul %247, %252, %cst_174 {dimension_numbers = #tpu.dot_dimension_numbers<[1], [0], [0], [1], [0, 0, 1, 1], [], []>} : vector<16x32xf32>, vector<32x8xf32>, vector<16x8xf32> -> vector<16x8xf32>
    %c1_175 = arith.constant 1 : index
    %c0_176 = arith.constant 0 : index
    %c0_177 = arith.constant 0 : index
    %c0_178 = arith.constant 0 : index
    %254 = vector.load %arg6[%c1_175, %c0_176, %c0_177, %c0_178] : memref<2x4x32x8xf32, #tpu.memory_space<vmem>>, vector<1x1x32x8xf32>
    %255 = vector.shape_cast %254 : vector<1x1x32x8xf32> to vector<32x8xf32>
    %cst_179 = arith.constant dense<0.000000e+00> : vector<16x8xf32>
    %256 = tpu.matmul %247, %255, %cst_179 {dimension_numbers = #tpu.dot_dimension_numbers<[1], [0], [0], [1], [0, 0, 1, 1], [], []>} : vector<16x32xf32>, vector<32x8xf32>, vector<16x8xf32> -> vector<16x8xf32>
    %257 = vector.shape_cast %250 : vector<16x8xf32> to vector<1x16x8xf32>
    %258 = vector.shape_cast %253 : vector<16x8xf32> to vector<1x16x8xf32>
    %259 = vector.shape_cast %256 : vector<16x8xf32> to vector<1x16x8xf32>
    "tpu.trace_start"() <{level = 10 : i32, message = "bqd,bkd->bqk"}> : () -> ()
    %cst_180 = arith.constant dense<0.000000e+00> : vector<1x16x16xf32>
    %260 = tpu.matmul %257, %258, %cst_180 {dimension_numbers = #tpu.dot_dimension_numbers<[2], [2], [1], [1], [0, 0, 0, 1, 1, 1], [0], [0]>} : vector<1x16x8xf32>, vector<1x16x8xf32>, vector<1x16x16xf32> -> vector<1x16x16xf32>
    "tpu.trace_stop"() : () -> ()
    %261 = vector.broadcast %10 : vector<1x1x16xf32> to vector<1x16x16xf32>
    %262 = arith.addf %260, %261 : vector<1x16x16xf32>
    %cst_181 = arith.constant dense<0xFF800000> : vector<1x16xf32>
    %263 = vector.multi_reduction <maximumf>, %262, %cst_181 [2] : vector<1x16x16xf32> to vector<1x16xf32>
    %264 = vector.shape_cast %263 : vector<1x16xf32> to vector<1x16x1xf32>
    %265 = vector.broadcast %264 : vector<1x16x1xf32> to vector<1x16x16xf32>
    %266 = arith.subf %262, %265 : vector<1x16x16xf32>
    %267 = math.exp %266 : vector<1x16x16xf32>
    %cst_182 = arith.constant dense<0.000000e+00> : vector<1x16xf32>
    %268 = vector.multi_reduction <add>, %267, %cst_182 [2] : vector<1x16x16xf32> to vector<1x16xf32>
    %269 = vector.shape_cast %268 : vector<1x16xf32> to vector<1x16x1xf32>
    %270 = tpu.reciprocal %269 {approx = true} : vector<1x16x1xf32> -> vector<1x16x1xf32>
    %271 = vector.broadcast %270 : vector<1x16x1xf32> to vector<1x16x16xf32>
    %272 = arith.mulf %267, %271 : vector<1x16x16xf32>
    %c1_183 = arith.constant 1 : index
    %c0_184 = arith.constant 0 : index
    %c0_185 = arith.constant 0 : index
    %c0_186 = arith.constant 0 : index
    %c0_187 = arith.constant 0 : index
    %273 = vector.load %arg23[%c1_183, %c0_184, %c0_185, %c0_186, %c0_187] : memref<2x4x1x16x16xf32, #tpu.memory_space<vmem>>, vector<1x1x1x16x16xf32>
    %274 = vector.shape_cast %273 : vector<1x1x1x16x16xf32> to vector<1x16x16xf32>
    %275 = vector.shape_cast %272 : vector<1x16x16xf32> to vector<1x1x1x16x16xf32>
    tpu.vector_store %arg23[%c1_183, %c0_184, %c0_185, %c0_186, %c0_187], %275 {strides = array<i32>} : memref<2x4x1x16x16xf32, #tpu.memory_space<vmem>>, vector<1x1x1x16x16xf32>,
    "tpu.trace_start"() <{level = 10 : i32, message = "bqk,bkd->bqd"}> : () -> ()
    %cst_188 = arith.constant dense<0.000000e+00> : vector<1x16x8xf32>
    %276 = tpu.matmul %272, %259, %cst_188 {dimension_numbers = #tpu.dot_dimension_numbers<[2], [1], [1], [2], [0, 0, 0, 1, 1, 2], [0], [0]>} : vector<1x16x16xf32>, vector<1x16x8xf32>, vector<1x16x8xf32> -> vector<1x16x8xf32>
    "tpu.trace_stop"() : () -> ()
    %277 = vector.shape_cast %276 : vector<1x16x8xf32> to vector<16x8xf32>
    %c1_189 = arith.constant 1 : index
    %c0_190 = arith.constant 0 : index
    %c0_191 = arith.constant 0 : index
    %c0_192 = arith.constant 0 : index
    %278 = vector.load %arg7[%c1_189, %c0_190, %c0_191, %c0_192] : memref<2x4x8x32xf32, #tpu.memory_space<vmem>>, vector<1x1x8x32xf32>
    %279 = vector.shape_cast %278 : vector<1x1x8x32xf32> to vector<8x32xf32>
    %cst_193 = arith.constant dense<0.000000e+00> : vector<16x32xf32>
    %280 = tpu.matmul %277, %279, %cst_193 {dimension_numbers = #tpu.dot_dimension_numbers<[1], [0], [0], [1], [0, 0, 1, 1], [], []>} : vector<16x8xf32>, vector<8x32xf32>, vector<16x32xf32> -> vector<16x32xf32>
    %c1_194 = arith.constant 1 : index
    %c1_195 = arith.constant 1 : index
    %c0_196 = arith.constant 0 : index
    %c0_197 = arith.constant 0 : index
    %281 = vector.load %arg4[%c1_194, %c1_195, %c0_196, %c0_197] : memref<2x4x32x8xf32, #tpu.memory_space<vmem>>, vector<1x1x32x8xf32>
    %282 = vector.shape_cast %281 : vector<1x1x32x8xf32> to vector<32x8xf32>
    %cst_198 = arith.constant dense<0.000000e+00> : vector<16x8xf32>
    %283 = tpu.matmul %247, %282, %cst_198 {dimension_numbers = #tpu.dot_dimension_numbers<[1], [0], [0], [1], [0, 0, 1, 1], [], []>} : vector<16x32xf32>, vector<32x8xf32>, vector<16x8xf32> -> vector<16x8xf32>
    %c1_199 = arith.constant 1 : index
    %c1_200 = arith.constant 1 : index
    %c0_201 = arith.constant 0 : index
    %c0_202 = arith.constant 0 : index
    %284 = vector.load %arg5[%c1_199, %c1_200, %c0_201, %c0_202] : memref<2x4x32x8xf32, #tpu.memory_space<vmem>>, vector<1x1x32x8xf32>
    %285 = vector.shape_cast %284 : vector<1x1x32x8xf32> to vector<32x8xf32>
    %cst_203 = arith.constant dense<0.000000e+00> : vector<16x8xf32>
    %286 = tpu.matmul %247, %285, %cst_203 {dimension_numbers = #tpu.dot_dimension_numbers<[1], [0], [0], [1], [0, 0, 1, 1], [], []>} : vector<16x32xf32>, vector<32x8xf32>, vector<16x8xf32> -> vector<16x8xf32>
    %c1_204 = arith.constant 1 : index
    %c1_205 = arith.constant 1 : index
    %c0_206 = arith.constant 0 : index
    %c0_207 = arith.constant 0 : index
    %287 = vector.load %arg6[%c1_204, %c1_205, %c0_206, %c0_207] : memref<2x4x32x8xf32, #tpu.memory_space<vmem>>, vector<1x1x32x8xf32>
    %288 = vector.shape_cast %287 : vector<1x1x32x8xf32> to vector<32x8xf32>
    %cst_208 = arith.constant dense<0.000000e+00> : vector<16x8xf32>
    %289 = tpu.matmul %247, %288, %cst_208 {dimension_numbers = #tpu.dot_dimension_numbers<[1], [0], [0], [1], [0, 0, 1, 1], [], []>} : vector<16x32xf32>, vector<32x8xf32>, vector<16x8xf32> -> vector<16x8xf32>
    %290 = vector.shape_cast %283 : vector<16x8xf32> to vector<1x16x8xf32>
    %291 = vector.shape_cast %286 : vector<16x8xf32> to vector<1x16x8xf32>
    %292 = vector.shape_cast %289 : vector<16x8xf32> to vector<1x16x8xf32>
    "tpu.trace_start"() <{level = 10 : i32, message = "bqd,bkd->bqk"}> : () -> ()
    %cst_209 = arith.constant dense<0.000000e+00> : vector<1x16x16xf32>
    %293 = tpu.matmul %290, %291, %cst_209 {dimension_numbers = #tpu.dot_dimension_numbers<[2], [2], [1], [1], [0, 0, 0, 1, 1, 1], [0], [0]>} : vector<1x16x8xf32>, vector<1x16x8xf32>, vector<1x16x16xf32> -> vector<1x16x16xf32>
    "tpu.trace_stop"() : () -> ()
    %294 = vector.broadcast %10 : vector<1x1x16xf32> to vector<1x16x16xf32>
    %295 = arith.addf %293, %294 : vector<1x16x16xf32>
    %cst_210 = arith.constant dense<0xFF800000> : vector<1x16xf32>
    %296 = vector.multi_reduction <maximumf>, %295, %cst_210 [2] : vector<1x16x16xf32> to vector<1x16xf32>
    %297 = vector.shape_cast %296 : vector<1x16xf32> to vector<1x16x1xf32>
    %298 = vector.broadcast %297 : vector<1x16x1xf32> to vector<1x16x16xf32>
    %299 = arith.subf %295, %298 : vector<1x16x16xf32>
    %300 = math.exp %299 : vector<1x16x16xf32>
    %cst_211 = arith.constant dense<0.000000e+00> : vector<1x16xf32>
    %301 = vector.multi_reduction <add>, %300, %cst_211 [2] : vector<1x16x16xf32> to vector<1x16xf32>
    %302 = vector.shape_cast %301 : vector<1x16xf32> to vector<1x16x1xf32>
    %303 = tpu.reciprocal %302 {approx = true} : vector<1x16x1xf32> -> vector<1x16x1xf32>
    %304 = vector.broadcast %303 : vector<1x16x1xf32> to vector<1x16x16xf32>
    %305 = arith.mulf %300, %304 : vector<1x16x16xf32>
    %c1_212 = arith.constant 1 : index
    %c1_213 = arith.constant 1 : index
    %c0_214 = arith.constant 0 : index
    %c0_215 = arith.constant 0 : index
    %c0_216 = arith.constant 0 : index
    %306 = vector.load %arg23[%c1_212, %c1_213, %c0_214, %c0_215, %c0_216] : memref<2x4x1x16x16xf32, #tpu.memory_space<vmem>>, vector<1x1x1x16x16xf32>
    %307 = vector.shape_cast %306 : vector<1x1x1x16x16xf32> to vector<1x16x16xf32>
    %308 = vector.shape_cast %305 : vector<1x16x16xf32> to vector<1x1x1x16x16xf32>
    tpu.vector_store %arg23[%c1_212, %c1_213, %c0_214, %c0_215, %c0_216], %308 {strides = array<i32>} : memref<2x4x1x16x16xf32, #tpu.memory_space<vmem>>, vector<1x1x1x16x16xf32>,
    "tpu.trace_start"() <{level = 10 : i32, message = "bqk,bkd->bqd"}> : () -> ()
    %cst_217 = arith.constant dense<0.000000e+00> : vector<1x16x8xf32>
    %309 = tpu.matmul %305, %292, %cst_217 {dimension_numbers = #tpu.dot_dimension_numbers<[2], [1], [1], [2], [0, 0, 0, 1, 1, 2], [0], [0]>} : vector<1x16x16xf32>, vector<1x16x8xf32>, vector<1x16x8xf32> -> vector<1x16x8xf32>
    "tpu.trace_stop"() : () -> ()
    %310 = vector.shape_cast %309 : vector<1x16x8xf32> to vector<16x8xf32>
    %c1_218 = arith.constant 1 : index
    %c1_219 = arith.constant 1 : index
    %c0_220 = arith.constant 0 : index
    %c0_221 = arith.constant 0 : index
    %311 = vector.load %arg7[%c1_218, %c1_219, %c0_220, %c0_221] : memref<2x4x8x32xf32, #tpu.memory_space<vmem>>, vector<1x1x8x32xf32>
    %312 = vector.shape_cast %311 : vector<1x1x8x32xf32> to vector<8x32xf32>
    %cst_222 = arith.constant dense<0.000000e+00> : vector<16x32xf32>
    %313 = tpu.matmul %310, %312, %cst_222 {dimension_numbers = #tpu.dot_dimension_numbers<[1], [0], [0], [1], [0, 0, 1, 1], [], []>} : vector<16x8xf32>, vector<8x32xf32>, vector<16x32xf32> -> vector<16x32xf32>
    %314 = arith.addf %280, %313 : vector<16x32xf32>
    %c1_223 = arith.constant 1 : index
    %c2_224 = arith.constant 2 : index
    %c0_225 = arith.constant 0 : index
    %c0_226 = arith.constant 0 : index
    %315 = vector.load %arg4[%c1_223, %c2_224, %c0_225, %c0_226] : memref<2x4x32x8xf32, #tpu.memory_space<vmem>>, vector<1x1x32x8xf32>
    %316 = vector.shape_cast %315 : vector<1x1x32x8xf32> to vector<32x8xf32>
    %cst_227 = arith.constant dense<0.000000e+00> : vector<16x8xf32>
    %317 = tpu.matmul %247, %316, %cst_227 {dimension_numbers = #tpu.dot_dimension_numbers<[1], [0], [0], [1], [0, 0, 1, 1], [], []>} : vector<16x32xf32>, vector<32x8xf32>, vector<16x8xf32> -> vector<16x8xf32>
    %c1_228 = arith.constant 1 : index
    %c2_229 = arith.constant 2 : index
    %c0_230 = arith.constant 0 : index
    %c0_231 = arith.constant 0 : index
    %318 = vector.load %arg5[%c1_228, %c2_229, %c0_230, %c0_231] : memref<2x4x32x8xf32, #tpu.memory_space<vmem>>, vector<1x1x32x8xf32>
    %319 = vector.shape_cast %318 : vector<1x1x32x8xf32> to vector<32x8xf32>
    %cst_232 = arith.constant dense<0.000000e+00> : vector<16x8xf32>
    %320 = tpu.matmul %247, %319, %cst_232 {dimension_numbers = #tpu.dot_dimension_numbers<[1], [0], [0], [1], [0, 0, 1, 1], [], []>} : vector<16x32xf32>, vector<32x8xf32>, vector<16x8xf32> -> vector<16x8xf32>
    %c1_233 = arith.constant 1 : index
    %c2_234 = arith.constant 2 : index
    %c0_235 = arith.constant 0 : index
    %c0_236 = arith.constant 0 : index
    %321 = vector.load %arg6[%c1_233, %c2_234, %c0_235, %c0_236] : memref<2x4x32x8xf32, #tpu.memory_space<vmem>>, vector<1x1x32x8xf32>
    %322 = vector.shape_cast %321 : vector<1x1x32x8xf32> to vector<32x8xf32>
    %cst_237 = arith.constant dense<0.000000e+00> : vector<16x8xf32>
    %323 = tpu.matmul %247, %322, %cst_237 {dimension_numbers = #tpu.dot_dimension_numbers<[1], [0], [0], [1], [0, 0, 1, 1], [], []>} : vector<16x32xf32>, vector<32x8xf32>, vector<16x8xf32> -> vector<16x8xf32>
    %324 = vector.shape_cast %317 : vector<16x8xf32> to vector<1x16x8xf32>
    %325 = vector.shape_cast %320 : vector<16x8xf32> to vector<1x16x8xf32>
    %326 = vector.shape_cast %323 : vector<16x8xf32> to vector<1x16x8xf32>
    "tpu.trace_start"() <{level = 10 : i32, message = "bqd,bkd->bqk"}> : () -> ()
    %cst_238 = arith.constant dense<0.000000e+00> : vector<1x16x16xf32>
    %327 = tpu.matmul %324, %325, %cst_238 {dimension_numbers = #tpu.dot_dimension_numbers<[2], [2], [1], [1], [0, 0, 0, 1, 1, 1], [0], [0]>} : vector<1x16x8xf32>, vector<1x16x8xf32>, vector<1x16x16xf32> -> vector<1x16x16xf32>
    "tpu.trace_stop"() : () -> ()
    %328 = vector.broadcast %10 : vector<1x1x16xf32> to vector<1x16x16xf32>
    %329 = arith.addf %327, %328 : vector<1x16x16xf32>
    %cst_239 = arith.constant dense<0xFF800000> : vector<1x16xf32>
    %330 = vector.multi_reduction <maximumf>, %329, %cst_239 [2] : vector<1x16x16xf32> to vector<1x16xf32>
    %331 = vector.shape_cast %330 : vector<1x16xf32> to vector<1x16x1xf32>
    %332 = vector.broadcast %331 : vector<1x16x1xf32> to vector<1x16x16xf32>
    %333 = arith.subf %329, %332 : vector<1x16x16xf32>
    %334 = math.exp %333 : vector<1x16x16xf32>
    %cst_240 = arith.constant dense<0.000000e+00> : vector<1x16xf32>
    %335 = vector.multi_reduction <add>, %334, %cst_240 [2] : vector<1x16x16xf32> to vector<1x16xf32>
    %336 = vector.shape_cast %335 : vector<1x16xf32> to vector<1x16x1xf32>
    %337 = tpu.reciprocal %336 {approx = true} : vector<1x16x1xf32> -> vector<1x16x1xf32>
    %338 = vector.broadcast %337 : vector<1x16x1xf32> to vector<1x16x16xf32>
    %339 = arith.mulf %334, %338 : vector<1x16x16xf32>
    %c1_241 = arith.constant 1 : index
    %c2_242 = arith.constant 2 : index
    %c0_243 = arith.constant 0 : index
    %c0_244 = arith.constant 0 : index
    %c0_245 = arith.constant 0 : index
    %340 = vector.load %arg23[%c1_241, %c2_242, %c0_243, %c0_244, %c0_245] : memref<2x4x1x16x16xf32, #tpu.memory_space<vmem>>, vector<1x1x1x16x16xf32>
    %341 = vector.shape_cast %340 : vector<1x1x1x16x16xf32> to vector<1x16x16xf32>
    %342 = vector.shape_cast %339 : vector<1x16x16xf32> to vector<1x1x1x16x16xf32>
    tpu.vector_store %arg23[%c1_241, %c2_242, %c0_243, %c0_244, %c0_245], %342 {strides = array<i32>} : memref<2x4x1x16x16xf32, #tpu.memory_space<vmem>>, vector<1x1x1x16x16xf32>,
    "tpu.trace_start"() <{level = 10 : i32, message = "bqk,bkd->bqd"}> : () -> ()
    %cst_246 = arith.constant dense<0.000000e+00> : vector<1x16x8xf32>
    %343 = tpu.matmul %339, %326, %cst_246 {dimension_numbers = #tpu.dot_dimension_numbers<[2], [1], [1], [2], [0, 0, 0, 1, 1, 2], [0], [0]>} : vector<1x16x16xf32>, vector<1x16x8xf32>, vector<1x16x8xf32> -> vector<1x16x8xf32>
    "tpu.trace_stop"() : () -> ()
    %344 = vector.shape_cast %343 : vector<1x16x8xf32> to vector<16x8xf32>
    %c1_247 = arith.constant 1 : index
    %c2_248 = arith.constant 2 : index
    %c0_249 = arith.constant 0 : index
    %c0_250 = arith.constant 0 : index
    %345 = vector.load %arg7[%c1_247, %c2_248, %c0_249, %c0_250] : memref<2x4x8x32xf32, #tpu.memory_space<vmem>>, vector<1x1x8x32xf32>
    %346 = vector.shape_cast %345 : vector<1x1x8x32xf32> to vector<8x32xf32>
    %cst_251 = arith.constant dense<0.000000e+00> : vector<16x32xf32>
    %347 = tpu.matmul %344, %346, %cst_251 {dimension_numbers = #tpu.dot_dimension_numbers<[1], [0], [0], [1], [0, 0, 1, 1], [], []>} : vector<16x8xf32>, vector<8x32xf32>, vector<16x32xf32> -> vector<16x32xf32>
    %348 = arith.addf %314, %347 : vector<16x32xf32>
    %c1_252 = arith.constant 1 : index
    %c3_253 = arith.constant 3 : index
    %c0_254 = arith.constant 0 : index
    %c0_255 = arith.constant 0 : index
    %349 = vector.load %arg4[%c1_252, %c3_253, %c0_254, %c0_255] : memref<2x4x32x8xf32, #tpu.memory_space<vmem>>, vector<1x1x32x8xf32>
    %350 = vector.shape_cast %349 : vector<1x1x32x8xf32> to vector<32x8xf32>
    %cst_256 = arith.constant dense<0.000000e+00> : vector<16x8xf32>
    %351 = tpu.matmul %247, %350, %cst_256 {dimension_numbers = #tpu.dot_dimension_numbers<[1], [0], [0], [1], [0, 0, 1, 1], [], []>} : vector<16x32xf32>, vector<32x8xf32>, vector<16x8xf32> -> vector<16x8xf32>
    %c1_257 = arith.constant 1 : index
    %c3_258 = arith.constant 3 : index
    %c0_259 = arith.constant 0 : index
    %c0_260 = arith.constant 0 : index
    %352 = vector.load %arg5[%c1_257, %c3_258, %c0_259, %c0_260] : memref<2x4x32x8xf32, #tpu.memory_space<vmem>>, vector<1x1x32x8xf32>
    %353 = vector.shape_cast %352 : vector<1x1x32x8xf32> to vector<32x8xf32>
    %cst_261 = arith.constant dense<0.000000e+00> : vector<16x8xf32>
    %354 = tpu.matmul %247, %353, %cst_261 {dimension_numbers = #tpu.dot_dimension_numbers<[1], [0], [0], [1], [0, 0, 1, 1], [], []>} : vector<16x32xf32>, vector<32x8xf32>, vector<16x8xf32> -> vector<16x8xf32>
    %c1_262 = arith.constant 1 : index
    %c3_263 = arith.constant 3 : index
    %c0_264 = arith.constant 0 : index
    %c0_265 = arith.constant 0 : index
    %355 = vector.load %arg6[%c1_262, %c3_263, %c0_264, %c0_265] : memref<2x4x32x8xf32, #tpu.memory_space<vmem>>, vector<1x1x32x8xf32>
    %356 = vector.shape_cast %355 : vector<1x1x32x8xf32> to vector<32x8xf32>
    %cst_266 = arith.constant dense<0.000000e+00> : vector<16x8xf32>
    %357 = tpu.matmul %247, %356, %cst_266 {dimension_numbers = #tpu.dot_dimension_numbers<[1], [0], [0], [1], [0, 0, 1, 1], [], []>} : vector<16x32xf32>, vector<32x8xf32>, vector<16x8xf32> -> vector<16x8xf32>
    %358 = vector.shape_cast %351 : vector<16x8xf32> to vector<1x16x8xf32>
    %359 = vector.shape_cast %354 : vector<16x8xf32> to vector<1x16x8xf32>
    %360 = vector.shape_cast %357 : vector<16x8xf32> to vector<1x16x8xf32>
    "tpu.trace_start"() <{level = 10 : i32, message = "bqd,bkd->bqk"}> : () -> ()
    %cst_267 = arith.constant dense<0.000000e+00> : vector<1x16x16xf32>
    %361 = tpu.matmul %358, %359, %cst_267 {dimension_numbers = #tpu.dot_dimension_numbers<[2], [2], [1], [1], [0, 0, 0, 1, 1, 1], [0], [0]>} : vector<1x16x8xf32>, vector<1x16x8xf32>, vector<1x16x16xf32> -> vector<1x16x16xf32>
    "tpu.trace_stop"() : () -> ()
    %362 = vector.broadcast %10 : vector<1x1x16xf32> to vector<1x16x16xf32>
    %363 = arith.addf %361, %362 : vector<1x16x16xf32>
    %cst_268 = arith.constant dense<0xFF800000> : vector<1x16xf32>
    %364 = vector.multi_reduction <maximumf>, %363, %cst_268 [2] : vector<1x16x16xf32> to vector<1x16xf32>
    %365 = vector.shape_cast %364 : vector<1x16xf32> to vector<1x16x1xf32>
    %366 = vector.broadcast %365 : vector<1x16x1xf32> to vector<1x16x16xf32>
    %367 = arith.subf %363, %366 : vector<1x16x16xf32>
    %368 = math.exp %367 : vector<1x16x16xf32>
    %cst_269 = arith.constant dense<0.000000e+00> : vector<1x16xf32>
    %369 = vector.multi_reduction <add>, %368, %cst_269 [2] : vector<1x16x16xf32> to vector<1x16xf32>
    %370 = vector.shape_cast %369 : vector<1x16xf32> to vector<1x16x1xf32>
    %371 = tpu.reciprocal %370 {approx = true} : vector<1x16x1xf32> -> vector<1x16x1xf32>
    %372 = vector.broadcast %371 : vector<1x16x1xf32> to vector<1x16x16xf32>
    %373 = arith.mulf %368, %372 : vector<1x16x16xf32>
    %c1_270 = arith.constant 1 : index
    %c3_271 = arith.constant 3 : index
    %c0_272 = arith.constant 0 : index
    %c0_273 = arith.constant 0 : index
    %c0_274 = arith.constant 0 : index
    %374 = vector.load %arg23[%c1_270, %c3_271, %c0_272, %c0_273, %c0_274] : memref<2x4x1x16x16xf32, #tpu.memory_space<vmem>>, vector<1x1x1x16x16xf32>
    %375 = vector.shape_cast %374 : vector<1x1x1x16x16xf32> to vector<1x16x16xf32>
    %376 = vector.shape_cast %373 : vector<1x16x16xf32> to vector<1x1x1x16x16xf32>
    tpu.vector_store %arg23[%c1_270, %c3_271, %c0_272, %c0_273, %c0_274], %376 {strides = array<i32>} : memref<2x4x1x16x16xf32, #tpu.memory_space<vmem>>, vector<1x1x1x16x16xf32>,
    "tpu.trace_start"() <{level = 10 : i32, message = "bqk,bkd->bqd"}> : () -> ()
    %cst_275 = arith.constant dense<0.000000e+00> : vector<1x16x8xf32>
    %377 = tpu.matmul %373, %360, %cst_275 {dimension_numbers = #tpu.dot_dimension_numbers<[2], [1], [1], [2], [0, 0, 0, 1, 1, 2], [0], [0]>} : vector<1x16x16xf32>, vector<1x16x8xf32>, vector<1x16x8xf32> -> vector<1x16x8xf32>
    "tpu.trace_stop"() : () -> ()
    %378 = vector.shape_cast %377 : vector<1x16x8xf32> to vector<16x8xf32>
    %c1_276 = arith.constant 1 : index
    %c3_277 = arith.constant 3 : index
    %c0_278 = arith.constant 0 : index
    %c0_279 = arith.constant 0 : index
    %379 = vector.load %arg7[%c1_276, %c3_277, %c0_278, %c0_279] : memref<2x4x8x32xf32, #tpu.memory_space<vmem>>, vector<1x1x8x32xf32>
    %380 = vector.shape_cast %379 : vector<1x1x8x32xf32> to vector<8x32xf32>
    %cst_280 = arith.constant dense<0.000000e+00> : vector<16x32xf32>
    %381 = tpu.matmul %378, %380, %cst_280 {dimension_numbers = #tpu.dot_dimension_numbers<[1], [0], [0], [1], [0, 0, 1, 1], [], []>} : vector<16x8xf32>, vector<8x32xf32>, vector<16x32xf32> -> vector<16x32xf32>
    %382 = arith.addf %348, %381 : vector<16x32xf32>
    %c1_281 = arith.constant 1 : index
    %c0_282 = arith.constant 0 : index
    %383 = vector.load %arg8[%c1_281, %c0_282] : memref<2x32xf32, #tpu.memory_space<vmem>>, vector<1x32xf32>
    %384 = vector.broadcast %383 : vector<1x32xf32> to vector<16x32xf32>
    %385 = arith.addf %382, %384 : vector<16x32xf32>
    %386 = arith.addf %385, %223 : vector<16x32xf32>
    %c1_283 = arith.constant 1 : index
    %c0_284 = arith.constant 0 : index
    %387 = vector.load %arg11[%c1_283, %c0_284] : memref<2x32xf32, #tpu.memory_space<vmem>>, vector<1x32xf32>
    %c1_285 = arith.constant 1 : index
    %c0_286 = arith.constant 0 : index
    %388 = vector.load %arg12[%c1_285, %c0_286] : memref<2x32xf32, #tpu.memory_space<vmem>>, vector<1x32xf32>
    %cst_287 = arith.constant dense<0.000000e+00> : vector<16xf32>
    %389 = vector.multi_reduction <add>, %386, %cst_287 [1] : vector<16x32xf32> to vector<16xf32>
    %390 = vector.shape_cast %389 : vector<16xf32> to vector<16x1xf32>
    %cst_288 = arith.constant 3.200000e+01 : f32
    %391 = vector.broadcast %cst_288 : f32 to vector<16x1xf32>
    %392 = arith.divf %390, %391 : vector<16x1xf32>
    %393 = vector.broadcast %392 : vector<16x1xf32> to vector<16x32xf32>
    %394 = arith.subf %386, %393 : vector<16x32xf32>
    %395 = arith.mulf %394, %394 : vector<16x32xf32>
    %cst_289 = arith.constant dense<0.000000e+00> : vector<16xf32>
    %396 = vector.multi_reduction <add>, %395, %cst_289 [1] : vector<16x32xf32> to vector<16xf32>
    %397 = vector.shape_cast %396 : vector<16xf32> to vector<16x1xf32>
    %cst_290 = arith.constant 3.200000e+01 : f32
    %398 = vector.broadcast %cst_290 : f32 to vector<16x1xf32>
    %399 = arith.divf %397, %398 : vector<16x1xf32>
    %400 = vector.broadcast %392 : vector<16x1xf32> to vector<16x32xf32>
    %401 = arith.subf %386, %400 : vector<16x32xf32>
    %cst_291 = arith.constant 9.99999974E-6 : f32
    %402 = vector.broadcast %cst_291 : f32 to vector<16x1xf32>
    %403 = arith.addf %399, %402 : vector<16x1xf32>
    %404 = math.rsqrt %403 : vector<16x1xf32>
    %405 = vector.broadcast %404 : vector<16x1xf32> to vector<16x32xf32>
    %406 = arith.mulf %401, %405 : vector<16x32xf32>
    %407 = vector.broadcast %387 : vector<1x32xf32> to vector<16x32xf32>
    %408 = arith.mulf %406, %407 : vector<16x32xf32>
    %409 = vector.broadcast %388 : vector<1x32xf32> to vector<16x32xf32>
    %410 = arith.addf %408, %409 : vector<16x32xf32>
    %c1_292 = arith.constant 1 : index
    %c0_293 = arith.constant 0 : index
    %c0_294 = arith.constant 0 : index
    %411 = vector.load %arg13[%c1_292, %c0_293, %c0_294] : memref<2x32x64xf32, #tpu.memory_space<vmem>>, vector<1x32x64xf32>
    %412 = vector.shape_cast %411 : vector<1x32x64xf32> to vector<32x64xf32>
    %cst_295 = arith.constant dense<0.000000e+00> : vector<16x64xf32>
    %413 = tpu.matmul %410, %412, %cst_295 {dimension_numbers = #tpu.dot_dimension_numbers<[1], [0], [0], [1], [0, 0, 1, 1], [], []>} : vector<16x32xf32>, vector<32x64xf32>, vector<16x64xf32> -> vector<16x64xf32>
    %c1_296 = arith.constant 1 : index
    %c0_297 = arith.constant 0 : index
    %414 = vector.load %arg14[%c1_296, %c0_297] : memref<2x64xf32, #tpu.memory_space<vmem>>, vector<1x64xf32>
    %415 = vector.broadcast %414 : vector<1x64xf32> to vector<16x64xf32>
    %416 = arith.addf %413, %415 : vector<16x64xf32>
    %cst_298 = arith.constant 5.000000e-01 : f32
    %417 = vector.broadcast %cst_298 : f32 to vector<16x64xf32>
    %418 = arith.mulf %417, %416 : vector<16x64xf32>
    %cst_299 = arith.constant 4.471500e-02 : f32
    %419 = vector.broadcast %cst_299 : f32 to vector<16x64xf32>
    %420 = arith.mulf %419, %416 : vector<16x64xf32>
    %421 = arith.mulf %420, %416 : vector<16x64xf32>
    %422 = arith.mulf %421, %416 : vector<16x64xf32>
    %423 = arith.addf %416, %422 : vector<16x64xf32>
    %cst_300 = arith.constant 0.797884583 : f32
    %424 = vector.broadcast %cst_300 : f32 to vector<16x64xf32>
    %425 = arith.mulf %424, %423 : vector<16x64xf32>
    %426 = math.tanh %425 : vector<16x64xf32>
    %cst_301 = arith.constant 1.000000e+00 : f32
    %427 = vector.broadcast %cst_301 : f32 to vector<16x64xf32>
    %428 = arith.addf %427, %426 : vector<16x64xf32>
    %429 = arith.mulf %418, %428 : vector<16x64xf32>
    %c1_302 = arith.constant 1 : index
    %c0_303 = arith.constant 0 : index
    %c0_304 = arith.constant 0 : index
    %430 = vector.load %arg15[%c1_302, %c0_303, %c0_304] : memref<2x64x32xf32, #tpu.memory_space<vmem>>, vector<1x64x32xf32>
    %431 = vector.shape_cast %430 : vector<1x64x32xf32> to vector<64x32xf32>
    %cst_305 = arith.constant dense<0.000000e+00> : vector<16x32xf32>
    %432 = tpu.matmul %429, %431, %cst_305 {dimension_numbers = #tpu.dot_dimension_numbers<[1], [0], [0], [1], [0, 0, 1, 1], [], []>} : vector<16x64xf32>, vector<64x32xf32>, vector<16x32xf32> -> vector<16x32xf32>
    %c1_306 = arith.constant 1 : index
    %c0_307 = arith.constant 0 : index
    %433 = vector.load %arg16[%c1_306, %c0_307] : memref<2x32xf32, #tpu.memory_space<vmem>>, vector<1x32xf32>
    %434 = vector.broadcast %433 : vector<1x32xf32> to vector<16x32xf32>
    %435 = arith.addf %432, %434 : vector<16x32xf32>
    %436 = arith.addf %435, %386 : vector<16x32xf32>
    %c0_308 = arith.constant 0 : index
    %c0_309 = arith.constant 0 : index
    %437 = vector.load %arg21[%c0_308, %c0_309] : memref<1x16xf32, #tpu.memory_space<vmem>>, vector<1x16xf32>
    %cst_310 = arith.constant dense<0.000000e+00> : vector<1x32xf32>
    %438 = tpu.matmul %437, %436, %cst_310 {dimension_numbers = #tpu.dot_dimension_numbers<[1], [0], [0], [1], [0, 0, 1, 1], [], []>} : vector<1x16xf32>, vector<16x32xf32>, vector<1x32xf32> -> vector<1x32xf32>
    %c0_311 = arith.constant 0 : index
    %c0_312 = arith.constant 0 : index
    %439 = vector.load %arg17[%c0_311, %c0_312] : memref<1x32xf32, #tpu.memory_space<vmem>>, vector<1x32xf32>
    %c0_313 = arith.constant 0 : index
    %c0_314 = arith.constant 0 : index
    %440 = vector.load %arg18[%c0_313, %c0_314] : memref<1x32xf32, #tpu.memory_space<vmem>>, vector<1x32xf32>
    %cst_315 = arith.constant dense<0.000000e+00> : vector<1xf32>
    %441 = vector.multi_reduction <add>, %438, %cst_315 [1] : vector<1x32xf32> to vector<1xf32>
    %442 = vector.shape_cast %441 : vector<1xf32> to vector<1x1xf32>
    %cst_316 = arith.constant 3.200000e+01 : f32
    %443 = vector.broadcast %cst_316 : f32 to vector<1x1xf32>
    %444 = arith.divf %442, %443 : vector<1x1xf32>
    %445 = vector.broadcast %444 : vector<1x1xf32> to vector<1x32xf32>
    %446 = arith.subf %438, %445 : vector<1x32xf32>
    %447 = arith.mulf %446, %446 : vector<1x32xf32>
    %cst_317 = arith.constant dense<0.000000e+00> : vector<1xf32>
    %448 = vector.multi_reduction <add>, %447, %cst_317 [1] : vector<1x32xf32> to vector<1xf32>
    %449 = vector.shape_cast %448 : vector<1xf32> to vector<1x1xf32>
    %cst_318 = arith.constant 3.200000e+01 : f32
    %450 = vector.broadcast %cst_318 : f32 to vector<1x1xf32>
    %451 = arith.divf %449, %450 : vector<1x1xf32>
    %452 = vector.broadcast %444 : vector<1x1xf32> to vector<1x32xf32>
    %453 = arith.subf %438, %452 : vector<1x32xf32>
    %cst_319 = arith.constant 9.99999974E-6 : f32
    %454 = vector.broadcast %cst_319 : f32 to vector<1x1xf32>
    %455 = arith.addf %451, %454 : vector<1x1xf32>
    %456 = math.rsqrt %455 : vector<1x1xf32>
    %457 = vector.broadcast %456 : vector<1x1xf32> to vector<1x32xf32>
    %458 = arith.mulf %453, %457 : vector<1x32xf32>
    %459 = arith.mulf %458, %439 : vector<1x32xf32>
    %460 = arith.addf %459, %440 : vector<1x32xf32>
    %c0_320 = arith.constant 0 : index
    %c0_321 = arith.constant 0 : index
    %461 = vector.load %arg19[%c0_320, %c0_321] : memref<32x6xf32, #tpu.memory_space<vmem>>, vector<32x6xf32>
    %cst_322 = arith.constant dense<0.000000e+00> : vector<1x6xf32>
    %462 = tpu.matmul %460, %461, %cst_322 {dimension_numbers = #tpu.dot_dimension_numbers<[1], [0], [0], [1], [0, 0, 1, 1], [], []>} : vector<1x32xf32>, vector<32x6xf32>, vector<1x6xf32> -> vector<1x6xf32>
    %c0_323 = arith.constant 0 : index
    %c0_324 = arith.constant 0 : index
    %463 = vector.load %arg20[%c0_323, %c0_324] : memref<1x6xf32, #tpu.memory_space<vmem>>, vector<1x6xf32>
    %464 = arith.addf %462, %463 : vector<1x6xf32>
    %c0_325 = arith.constant 0 : index
    %c0_326 = arith.constant 0 : index
    %c0_327 = arith.constant 0 : index
    %465 = vector.load %arg22[%c0_325, %c0_326, %c0_327] : memref<1x1x6xf32, #tpu.memory_space<vmem>>, vector<1x1x6xf32>
    %466 = vector.shape_cast %465 : vector<1x1x6xf32> to vector<1x6xf32>
    %467 = vector.shape_cast %464 : vector<1x6xf32> to vector<1x1x6xf32>
    tpu.vector_store %arg22[%c0_325, %c0_326, %c0_327], %467 {strides = array<i32>} : memref<1x1x6xf32, #tpu.memory_space<vmem>>, vector<1x1x6xf32>,
    return
  }
  func.func @transform_0(%arg0: i32) -> (i32, i32) {
    %c0_i32 = arith.constant 0 : i32
    %c0_i32_0 = arith.constant 0 : i32
    return %arg0, %c0_i32 : i32, i32
  }
  func.func @transform_1(%arg0: i32) -> (i32, i32) {
    %c0_i32 = arith.constant 0 : i32
    %c0_i32_0 = arith.constant 0 : i32
    %c0_i32_1 = arith.constant 0 : i32
    return %c0_i32, %c0_i32_0 : i32, i32
  }
  func.func @transform_2(%arg0: i32) -> (i32, i32) {
    %c0_i32 = arith.constant 0 : i32
    %c0_i32_0 = arith.constant 0 : i32
    %c0_i32_1 = arith.constant 0 : i32
    return %c0_i32, %c0_i32_0 : i32, i32
  }
  func.func @transform_3(%arg0: i32) -> (i32, i32, i32, i32) {
    %c0_i32 = arith.constant 0 : i32
    %c0_i32_0 = arith.constant 0 : i32
    %c0_i32_1 = arith.constant 0 : i32
    %c0_i32_2 = arith.constant 0 : i32
    %c0_i32_3 = arith.constant 0 : i32
    return %c0_i32, %c0_i32_0, %c0_i32_1, %c0_i32_2 : i32, i32, i32, i32
  }
  func.func @transform_4(%arg0: i32) -> (i32, i32, i32, i32) {
    %c0_i32 = arith.constant 0 : i32
    %c0_i32_0 = arith.constant 0 : i32
    %c0_i32_1 = arith.constant 0 : i32
    %c0_i32_2 = arith.constant 0 : i32
    %c0_i32_3 = arith.constant 0 : i32
    return %c0_i32, %c0_i32_0, %c0_i32_1, %c0_i32_2 : i32, i32, i32, i32
  }
  func.func @transform_5(%arg0: i32) -> (i32, i32, i32, i32) {
    %c0_i32 = arith.constant 0 : i32
    %c0_i32_0 = arith.constant 0 : i32
    %c0_i32_1 = arith.constant 0 : i32
    %c0_i32_2 = arith.constant 0 : i32
    %c0_i32_3 = arith.constant 0 : i32
    return %c0_i32, %c0_i32_0, %c0_i32_1, %c0_i32_2 : i32, i32, i32, i32
  }
  func.func @transform_6(%arg0: i32) -> (i32, i32, i32, i32) {
    %c0_i32 = arith.constant 0 : i32
    %c0_i32_0 = arith.constant 0 : i32
    %c0_i32_1 = arith.constant 0 : i32
    %c0_i32_2 = arith.constant 0 : i32
    %c0_i32_3 = arith.constant 0 : i32
    return %c0_i32, %c0_i32_0, %c0_i32_1, %c0_i32_2 : i32, i32, i32, i32
  }
  func.func @transform_7(%arg0: i32) -> (i32, i32) {
    %c0_i32 = arith.constant 0 : i32
    %c0_i32_0 = arith.constant 0 : i32
    %c0_i32_1 = arith.constant 0 : i32
    return %c0_i32, %c0_i32_0 : i32, i32
  }
  func.func @transform_8(%arg0: i32) -> (i32, i32) {
    %c0_i32 = arith.constant 0 : i32
    %c0_i32_0 = arith.constant 0 : i32
    %c0_i32_1 = arith.constant 0 : i32
    return %c0_i32, %c0_i32_0 : i32, i32
  }
  func.func @transform_9(%arg0: i32) -> (i32, i32) {
    %c0_i32 = arith.constant 0 : i32
    %c0_i32_0 = arith.constant 0 : i32
    %c0_i32_1 = arith.constant 0 : i32
    return %c0_i32, %c0_i32_0 : i32, i32
  }
  func.func @transform_10(%arg0: i32) -> (i32, i32) {
    %c0_i32 = arith.constant 0 : i32
    %c0_i32_0 = arith.constant 0 : i32
    %c0_i32_1 = arith.constant 0 : i32
    return %c0_i32, %c0_i32_0 : i32, i32
  }
  func.func @transform_11(%arg0: i32) -> (i32, i32) {
    %c0_i32 = arith.constant 0 : i32
    %c0_i32_0 = arith.constant 0 : i32
    %c0_i32_1 = arith.constant 0 : i32
    return %c0_i32, %c0_i32_0 : i32, i32
  }
  func.func @transform_12(%arg0: i32) -> (i32, i32, i32) {
    %c0_i32 = arith.constant 0 : i32
    %c0_i32_0 = arith.constant 0 : i32
    %c0_i32_1 = arith.constant 0 : i32
    %c0_i32_2 = arith.constant 0 : i32
    return %c0_i32, %c0_i32_0, %c0_i32_1 : i32, i32, i32
  }
  func.func @transform_13(%arg0: i32) -> (i32, i32) {
    %c0_i32 = arith.constant 0 : i32
    %c0_i32_0 = arith.constant 0 : i32
    %c0_i32_1 = arith.constant 0 : i32
    return %c0_i32, %c0_i32_0 : i32, i32
  }
  func.func @transform_14(%arg0: i32) -> (i32, i32, i32) {
    %c0_i32 = arith.constant 0 : i32
    %c0_i32_0 = arith.constant 0 : i32
    %c0_i32_1 = arith.constant 0 : i32
    %c0_i32_2 = arith.constant 0 : i32
    return %c0_i32, %c0_i32_0, %c0_i32_1 : i32, i32, i32
  }
  func.func @transform_15(%arg0: i32) -> (i32, i32) {
    %c0_i32 = arith.constant 0 : i32
    %c0_i32_0 = arith.constant 0 : i32
    %c0_i32_1 = arith.constant 0 : i32
    return %c0_i32, %c0_i32_0 : i32, i32
  }
  func.func @transform_16(%arg0: i32) -> (i32, i32) {
    %c0_i32 = arith.constant 0 : i32
    %c0_i32_0 = arith.constant 0 : i32
    %c0_i32_1 = arith.constant 0 : i32
    return %c0_i32, %c0_i32_0 : i32, i32
  }
  func.func @transform_17(%arg0: i32) -> (i32, i32) {
    %c0_i32 = arith.constant 0 : i32
    %c0_i32_0 = arith.constant 0 : i32
    %c0_i32_1 = arith.constant 0 : i32
    return %c0_i32, %c0_i32_0 : i32, i32
  }
  func.func @transform_18(%arg0: i32) -> (i32, i32) {
    %c0_i32 = arith.constant 0 : i32
    %c0_i32_0 = arith.constant 0 : i32
    %c0_i32_1 = arith.constant 0 : i32
    return %c0_i32, %c0_i32_0 : i32, i32
  }
  func.func @transform_19(%arg0: i32) -> (i32, i32) {
    %c0_i32 = arith.constant 0 : i32
    %c0_i32_0 = arith.constant 0 : i32
    %c0_i32_1 = arith.constant 0 : i32
    return %c0_i32, %c0_i32_0 : i32, i32
  }
  func.func @transform_20(%arg0: i32) -> (i32, i32) {
    %c0_i32 = arith.constant 0 : i32
    %c0_i32_0 = arith.constant 0 : i32
    %c0_i32_1 = arith.constant 0 : i32
    return %c0_i32, %c0_i32_0 : i32, i32
  }
  func.func @transform_21(%arg0: i32) -> (i32, i32, i32) {
    %c0_i32 = arith.constant 0 : i32
    %c0_i32_0 = arith.constant 0 : i32
    %c0_i32_1 = arith.constant 0 : i32
    return %arg0, %c0_i32, %c0_i32_0 : i32, i32, i32
  }
  func.func @transform_22(%arg0: i32) -> (i32, i32, i32, i32, i32) {
    %c0_i32 = arith.constant 0 : i32
    %c0_i32_0 = arith.constant 0 : i32
    %c0_i32_1 = arith.constant 0 : i32
    %c0_i32_2 = arith.constant 0 : i32
    %c0_i32_3 = arith.constant 0 : i32
    return %c0_i32, %c0_i32_0, %arg0, %c0_i32_1, %c0_i32_2 : i32, i32, i32, i32, i32
  }
}

</mosaic_0001>

<llo_original>
// kernel: tpu_custom_call.1
$region0: #{tpu_custom_call.1}
  #allocation0 [shape = 'u32[]', space=smem, size = 0x4, offset = 0x4, fixed_abs, tag = 'smem constant byte address 0x4 - core index']
  #allocation1 [shape = 'u32[144,128]{1,0:T(1,128)}', space=vmem, size = 0x12000, scoped, tag = 'internal scratch']
  #allocation6 [shape = 's32[]', space=sflag, size = 0x4, offset = 0, fixed_abs, tag = 'sflag constant byte address 0x0 - dummy sync flag']
  %s0 = inlined_call_operand.vmem [shape: f32[32,12], index: 0, kind: input, shape index: {}]
  %s1 = inlined_call_operand.vmem [shape: f32[16,32], index: 1, kind: input, shape index: {}]
  %s2 = inlined_call_operand.vmem [shape: f32[12,32], index: 2, kind: input, shape index: {}]
  %s3 = inlined_call_operand.vmem [shape: f32[2,4,32,8], index: 3, kind: input, shape index: {}]
  %s4 = inlined_call_operand.vmem [shape: f32[2,4,32,8], index: 4, kind: input, shape index: {}]
  %s5 = inlined_call_operand.vmem [shape: f32[2,4,32,8], index: 5, kind: input, shape index: {}]
  %s6 = inlined_call_operand.vmem [shape: f32[2,4,8,32], index: 6, kind: input, shape index: {}]
  %s7 = inlined_call_operand.vmem [shape: f32[2,32], index: 7, kind: input, shape index: {}]
  %s8 = inlined_call_operand.vmem [shape: f32[2,32], index: 8, kind: input, shape index: {}]
  %s9 = inlined_call_operand.vmem [shape: f32[2,32], index: 9, kind: input, shape index: {}]
  %s10 = inlined_call_operand.vmem [shape: f32[2,32], index: 10, kind: input, shape index: {}]
  %s11 = inlined_call_operand.vmem [shape: f32[2,32], index: 11, kind: input, shape index: {}]
  %s12 = inlined_call_operand.vmem [shape: f32[2,32,64], index: 12, kind: input, shape index: {}]
  %s13 = inlined_call_operand.vmem [shape: f32[2,64], index: 13, kind: input, shape index: {}]
  %s14 = inlined_call_operand.vmem [shape: f32[2,64,32], index: 14, kind: input, shape index: {}]
  %s15 = inlined_call_operand.vmem [shape: f32[2,32], index: 15, kind: input, shape index: {}]
  %s16 = inlined_call_operand.vmem [shape: f32[1,32], index: 16, kind: input, shape index: {}]
  %s17 = inlined_call_operand.vmem [shape: f32[1,32], index: 17, kind: input, shape index: {}]
  %s18 = inlined_call_operand.vmem [shape: f32[32,6], index: 18, kind: input, shape index: {}]
  %s19 = inlined_call_operand.vmem [shape: f32[1,6], index: 19, kind: input, shape index: {}]
  %s20 = inlined_call_operand.vmem [shape: f32[1,16], index: 20, kind: input, shape index: {}]
  %s21 = inlined_call_operand.hbm [shape: f32[2,1,6], index: 21, kind: output, shape index: {0}]
  %s22 = inlined_call_operand.hbm [shape: f32[2,4,2,16,16], index: 22, kind: output, shape index: {1}]
  %23 = xla_tuple %s21, %s22
  %s24 = sld [smem:[#allocation0]]
  $region125: #{tpu_custom_call.1} parent=0
    _
  %s26 = ssub.s32 1, %s24
  %s27 = scalar_select 0, %s26, %s24
  $region1: #{tpu_custom_call.1} parent=0
    #allocation2 [shape = 'u8[1024]{0}', space=vmem, size = 0x400, scoped, tag = 'output window, operand 0']
    #allocation3 [shape = 's32[2]{0}', space=sflag, size = 0x8, scoped, tag = 'scoped memory for tpu_custom_call.1']
    #allocation4 [shape = 'u8[131072]{0}', space=vmem, size = 0x20000, scoped, tag = 'output window, operand 1']
    #allocation5 [shape = 's32[2]{0}', space=sflag, size = 0x8, scoped, tag = 'scoped memory for tpu_custom_call.1']
    %28 = vsyncpa [#allocation3], 0
    %s29 = scalar_lea.sflag [#allocation3], 1
    %30 = vsyncpa %s29, 0
    %31 = vsyncpa [#allocation5], 0
    %s32 = scalar_lea.sflag [#allocation5], 1
    %33 = vsyncpa %s32, 0
    loop: start=0, step=1, limit=4
    $region2: #{tpu_custom_call.1} parent=1 // loop_pre_header
      _
    $region3: #{tpu_custom_call.1} parent=1 // loop_header
      %s35 = sphi 0, %s39
      %p36 = scmp.ge.s32.totalorder %s35, 4
      %s45 = sphi 0, %s47
      %s48 = sphi 0, %s45
      %s49 = sphi 0, %s48
      %s65 = sphi 0, %s49
      %s69 = sphi 0, %s69
      %s71 = sphi 0, %s69
      %s72 = sphi 0, %s71
      %s86 = sphi 0, %s72
      %s90 = sphi 0, %s90
      %s92 = sphi 0, %s90
      %s93 = sphi 0, %s92
      %s107 = sphi 0, %s93
      %s111 = sphi 0, %s111
      %s113 = sphi 0, %s111
      %s114 = sphi 0, %s113
      %s128 = sphi 0, %s114
      %s132 = sphi 0, %s132
      %s134 = sphi 0, %s132
      %s135 = sphi 0, %s134
      %s149 = sphi 0, %s135
      %s153 = sphi 0, %s153
      %s155 = sphi 0, %s153
      %s156 = sphi 0, %s155
      %s170 = sphi 0, %s156
      %s174 = sphi 0, %s174
      %s176 = sphi 0, %s174
      %s177 = sphi 0, %s176
      %s191 = sphi 0, %s177
      %s195 = sphi 0, %s195
      %s197 = sphi 0, %s195
      %s198 = sphi 0, %s197
      %s212 = sphi 0, %s198
      %s216 = sphi 0, %s216
      %s218 = sphi 0, %s216
      %s219 = sphi 0, %s218
      %s233 = sphi 0, %s219
      %s237 = sphi 0, %s237
      %s239 = sphi 0, %s237
      %s240 = sphi 0, %s239
      %s254 = sphi 0, %s240
      %s258 = sphi 0, %s258
      %s260 = sphi 0, %s258
      %s261 = sphi 0, %s260
      %s275 = sphi 0, %s261
      %s279 = sphi 0, %s279
      %s281 = sphi 0, %s279
      %s282 = sphi 0, %s281
      %s296 = sphi 0, %s282
      %s300 = sphi 0, %s300
      %s302 = sphi 0, %s300
      %s303 = sphi 0, %s302
      %s317 = sphi 0, %s303
      %s321 = sphi 0, %s321
      %s323 = sphi 0, %s321
      %s324 = sphi 0, %s323
      %s338 = sphi 0, %s324
      %s342 = sphi 0, %s342
      %s344 = sphi 0, %s342
      %s345 = sphi 0, %s344
      %s359 = sphi 0, %s345
      %s363 = sphi 0, %s363
      %s365 = sphi 0, %s363
      %s366 = sphi 0, %s365
      %s380 = sphi 0, %s366
      %s384 = sphi 0, %s384
      %s386 = sphi 0, %s384
      %s387 = sphi 0, %s386
      %s401 = sphi 0, %s387
      %s405 = sphi 0, %s405
      %s407 = sphi 0, %s405
      %s408 = sphi 0, %s407
      %s422 = sphi 0, %s408
      %s426 = sphi 0, %s426
      %s428 = sphi 0, %s426
      %s429 = sphi 0, %s428
      %s443 = sphi 0, %s429
      %s447 = sphi 0, %s447
      %s449 = sphi 0, %s447
      %s450 = sphi 0, %s449
      %s464 = sphi 0, %s450
      %s468 = sphi 0, %s468
      %s470 = sphi 0, %s468
      %s471 = sphi 0, %s470
      %s485 = sphi 0, %s471
      %s491 = sphi 0, %s493
      %s494 = sphi 0, %s491
      %s495 = sphi 0, %s494
      %s511 = sphi 0, %s495
      %s517 = sphi 0, %s519
      %s520 = sphi 0, %s517
      %s521 = sphi 0, %s520
      %s537 = sphi 0, %s521
    $region4: #{tpu_custom_call.1} parent=1 // loop_header_branch
      %38 = sbr.rel (%p36) target = $region8
    $region5: #{tpu_custom_call.1} parent=1 // loop_body
      %s40 = ssub.s32 %s35, 1
      %s41 = ssub.s32 %s35, 2
      %s42 = sadd.s32 %s35, 1
      %s43 = ssub.s32 %s35, %s42
      %p44 = scmp.eq.s32.totalorder %s43, 0
      %s46 = sadd.s32 %s45, 1
      %s47 = scalar_select %p44, %s45, %s46
      %p50 = pneg %p44
      %p51 = scmp.eq.s32.totalorder %s35, 1
      %p52 = por %p50, %p51
      %p53 = scmp.ne.s32.totalorder %s45, %s48
      %p54 = scmp.eq.s32.totalorder %s35, 0
      %p55 = por %p53, %p54
      %p56 = scmp.ne.s32.totalorder %s45, %s48
      %p57 = scmp.eq.s32.totalorder %s40, 1
      %p58 = por %p56, %p57
      %p59 = scmp.ne.s32.totalorder %s48, %s49
      %p60 = scmp.eq.s32.totalorder %s40, 0
      %p61 = por %p59, %p60
      %p62 = scmp.ne.s32.totalorder %s48, %s49
      %p63 = scmp.eq.s32.totalorder %s41, 1
      %p64 = por %p62, %p63
      %p66 = scmp.ne.s32.totalorder %s49, %s65
      %p67 = scmp.eq.s32.totalorder %s41, 0
      %p68 = por %p66, %p67
      %s70 = sadd.s32 %s69, 1
      %p73 = scmp.eq.s32.totalorder %s35, 1
      %p74 = scmp.ne.s32.totalorder %s69, %s71
      %p75 = scmp.eq.s32.totalorder %s35, 0
      %p76 = por %p74, %p75
      %p77 = scmp.ne.s32.totalorder %s69, %s71
      %p78 = scmp.eq.s32.totalorder %s40, 1
      %p79 = por %p77, %p78
      %p80 = scmp.ne.s32.totalorder %s71, %s72
      %p81 = scmp.eq.s32.totalorder %s40, 0
      %p82 = por %p80, %p81
      %p83 = scmp.ne.s32.totalorder %s71, %s72
      %p84 = scmp.eq.s32.totalorder %s41, 1
      %p85 = por %p83, %p84
      %p87 = scmp.ne.s32.totalorder %s72, %s86
      %p88 = scmp.eq.s32.totalorder %s41, 0
      %p89 = por %p87, %p88
      %s91 = sadd.s32 %s90, 1
      %p94 = scmp.eq.s32.totalorder %s35, 1
      %p95 = scmp.ne.s32.totalorder %s90, %s92
      %p96 = scmp.eq.s32.totalorder %s35, 0
      %p97 = por %p95, %p96
      %p98 = scmp.ne.s32.totalorder %s90, %s92
      %p99 = scmp.eq.s32.totalorder %s40, 1
      %p100 = por %p98, %p99
      %p101 = scmp.ne.s32.totalorder %s92, %s93
      %p102 = scmp.eq.s32.totalorder %s40, 0
      %p103 = por %p101, %p102
      %p104 = scmp.ne.s32.totalorder %s92, %s93
      %p105 = scmp.eq.s32.totalorder %s41, 1
      %p106 = por %p104, %p105
      %p108 = scmp.ne.s32.totalorder %s93, %s107
      %p109 = scmp.eq.s32.totalorder %s41, 0
      %p110 = por %p108, %p109
      %s112 = sadd.s32 %s111, 1
      %p115 = scmp.eq.s32.totalorder %s35, 1
      %p116 = scmp.ne.s32.totalorder %s111, %s113
      %p117 = scmp.eq.s32.totalorder %s35, 0
      %p118 = por %p116, %p117
      %p119 = scmp.ne.s32.totalorder %s111, %s113
      %p120 = scmp.eq.s32.totalorder %s40, 1
      %p121 = por %p119, %p120
      %p122 = scmp.ne.s32.totalorder %s113, %s114
      %p123 = scmp.eq.s32.totalorder %s40, 0
      %p124 = por %p122, %p123
      %p125 = scmp.ne.s32.totalorder %s113, %s114
      %p126 = scmp.eq.s32.totalorder %s41, 1
      %p127 = por %p125, %p126
      %p129 = scmp.ne.s32.totalorder %s114, %s128
      %p130 = scmp.eq.s32.totalorder %s41, 0
      %p131 = por %p129, %p130
      %s133 = sadd.s32 %s132, 1
      %p136 = scmp.eq.s32.totalorder %s35, 1
      %p137 = scmp.ne.s32.totalorder %s132, %s134
      %p138 = scmp.eq.s32.totalorder %s35, 0
      %p139 = por %p137, %p138
      %p140 = scmp.ne.s32.totalorder %s132, %s134
      %p141 = scmp.eq.s32.totalorder %s40, 1
      %p142 = por %p140, %p141
      %p143 = scmp.ne.s32.totalorder %s134, %s135
      %p144 = scmp.eq.s32.totalorder %s40, 0
      %p145 = por %p143, %p144
      %p146 = scmp.ne.s32.totalorder %s134, %s135
      %p147 = scmp.eq.s32.totalorder %s41, 1
      %p148 = por %p146, %p147
      %p150 = scmp.ne.s32.totalorder %s135, %s149
      %p151 = scmp.eq.s32.totalorder %s41, 0
      %p152 = por %p150, %p151
      %s154 = sadd.s32 %s153, 1
      %p157 = scmp.eq.s32.totalorder %s35, 1
      %p158 = scmp.ne.s32.totalorder %s153, %s155
      %p159 = scmp.eq.s32.totalorder %s35, 0
      %p160 = por %p158, %p159
      %p161 = scmp.ne.s32.totalorder %s153, %s155
      %p162 = scmp.eq.s32.totalorder %s40, 1
      %p163 = por %p161, %p162
      %p164 = scmp.ne.s32.totalorder %s155, %s156
      %p165 = scmp.eq.s32.totalorder %s40, 0
      %p166 = por %p164, %p165
      %p167 = scmp.ne.s32.totalorder %s155, %s156
      %p168 = scmp.eq.s32.totalorder %s41, 1
      %p169 = por %p167, %p168
      %p171 = scmp.ne.s32.totalorder %s156, %s170
      %p172 = scmp.eq.s32.totalorder %s41, 0
      %p173 = por %p171, %p172
      %s175 = sadd.s32 %s174, 1
      %p178 = scmp.eq.s32.totalorder %s35, 1
      %p179 = scmp.ne.s32.totalorder %s174, %s176
      %p180 = scmp.eq.s32.totalorder %s35, 0
      %p181 = por %p179, %p180
      %p182 = scmp.ne.s32.totalorder %s174, %s176
      %p183 = scmp.eq.s32.totalorder %s40, 1
      %p184 = por %p182, %p183
      %p185 = scmp.ne.s32.totalorder %s176, %s177
      %p186 = scmp.eq.s32.totalorder %s40, 0
      %p187 = por %p185, %p186
      %p188 = scmp.ne.s32.totalorder %s176, %s177
      %p189 = scmp.eq.s32.totalorder %s41, 1
      %p190 = por %p188, %p189
      %p192 = scmp.ne.s32.totalorder %s177, %s191
      %p193 = scmp.eq.s32.totalorder %s41, 0
      %p194 = por %p192, %p193
      %s196 = sadd.s32 %s195, 1
      %p199 = scmp.eq.s32.totalorder %s35, 1
      %p200 = scmp.ne.s32.totalorder %s195, %s197
      %p201 = scmp.eq.s32.totalorder %s35, 0
      %p202 = por %p200, %p201
      %p203 = scmp.ne.s32.totalorder %s195, %s197
      %p204 = scmp.eq.s32.totalorder %s40, 1
      %p205 = por %p203, %p204
      %p206 = scmp.ne.s32.totalorder %s197, %s198
      %p207 = scmp.eq.s32.totalorder %s40, 0
      %p208 = por %p206, %p207
      %p209 = scmp.ne.s32.totalorder %s197, %s198
      %p210 = scmp.eq.s32.totalorder %s41, 1
      %p211 = por %p209, %p210
      %p213 = scmp.ne.s32.totalorder %s198, %s212
      %p214 = scmp.eq.s32.totalorder %s41, 0
      %p215 = por %p213, %p214
      %s217 = sadd.s32 %s216, 1
      %p220 = scmp.eq.s32.totalorder %s35, 1
      %p221 = scmp.ne.s32.totalorder %s216, %s218
      %p222 = scmp.eq.s32.totalorder %s35, 0
      %p223 = por %p221, %p222
      %p224 = scmp.ne.s32.totalorder %s216, %s218
      %p225 = scmp.eq.s32.totalorder %s40, 1
      %p226 = por %p224, %p225
      %p227 = scmp.ne.s32.totalorder %s218, %s219
      %p228 = scmp.eq.s32.totalorder %s40, 0
      %p229 = por %p227, %p228
      %p230 = scmp.ne.s32.totalorder %s218, %s219
      %p231 = scmp.eq.s32.totalorder %s41, 1
      %p232 = por %p230, %p231
      %p234 = scmp.ne.s32.totalorder %s219, %s233
      %p235 = scmp.eq.s32.totalorder %s41, 0
      %p236 = por %p234, %p235
      %s238 = sadd.s32 %s237, 1
      %p241 = scmp.eq.s32.totalorder %s35, 1
      %p242 = scmp.ne.s32.totalorder %s237, %s239
      %p243 = scmp.eq.s32.totalorder %s35, 0
      %p244 = por %p242, %p243
      %p245 = scmp.ne.s32.totalorder %s237, %s239
      %p246 = scmp.eq.s32.totalorder %s40, 1
      %p247 = por %p245, %p246
      %p248 = scmp.ne.s32.totalorder %s239, %s240
      %p249 = scmp.eq.s32.totalorder %s40, 0
      %p250 = por %p248, %p249
      %p251 = scmp.ne.s32.totalorder %s239, %s240
      %p252 = scmp.eq.s32.totalorder %s41, 1
      %p253 = por %p251, %p252
      %p255 = scmp.ne.s32.totalorder %s240, %s254
      %p256 = scmp.eq.s32.totalorder %s41, 0
      %p257 = por %p255, %p256
      %s259 = sadd.s32 %s258, 1
      %p262 = scmp.eq.s32.totalorder %s35, 1
      %p263 = scmp.ne.s32.totalorder %s258, %s260
      %p264 = scmp.eq.s32.totalorder %s35, 0
      %p265 = por %p263, %p264
      %p266 = scmp.ne.s32.totalorder %s258, %s260
      %p267 = scmp.eq.s32.totalorder %s40, 1
      %p268 = por %p266, %p267
      %p269 = scmp.ne.s32.totalorder %s260, %s261
      %p270 = scmp.eq.s32.totalorder %s40, 0
      %p271 = por %p269, %p270
      %p272 = scmp.ne.s32.totalorder %s260, %s261
      %p273 = scmp.eq.s32.totalorder %s41, 1
      %p274 = por %p272, %p273
      %p276 = scmp.ne.s32.totalorder %s261, %s275
      %p277 = scmp.eq.s32.totalorder %s41, 0
      %p278 = por %p276, %p277
      %s280 = sadd.s32 %s279, 1
      %p283 = scmp.eq.s32.totalorder %s35, 1
      %p284 = scmp.ne.s32.totalorder %s279, %s281
      %p285 = scmp.eq.s32.totalorder %s35, 0
      %p286 = por %p284, %p285
      %p287 = scmp.ne.s32.totalorder %s279, %s281
      %p288 = scmp.eq.s32.totalorder %s40, 1
      %p289 = por %p287, %p288
      %p290 = scmp.ne.s32.totalorder %s281, %s282
      %p291 = scmp.eq.s32.totalorder %s40, 0
      %p292 = por %p290, %p291
      %p293 = scmp.ne.s32.totalorder %s281, %s282
      %p294 = scmp.eq.s32.totalorder %s41, 1
      %p295 = por %p293, %p294
      %p297 = scmp.ne.s32.totalorder %s282, %s296
      %p298 = scmp.eq.s32.totalorder %s41, 0
      %p299 = por %p297, %p298
      %s301 = sadd.s32 %s300, 1
      %p304 = scmp.eq.s32.totalorder %s35, 1
      %p305 = scmp.ne.s32.totalorder %s300, %s302
      %p306 = scmp.eq.s32.totalorder %s35, 0
      %p307 = por %p305, %p306
      %p308 = scmp.ne.s32.totalorder %s300, %s302
      %p309 = scmp.eq.s32.totalorder %s40, 1
      %p310 = por %p308, %p309
      %p311 = scmp.ne.s32.totalorder %s302, %s303
      %p312 = scmp.eq.s32.totalorder %s40, 0
      %p313 = por %p311, %p312
      %p314 = scmp.ne.s32.totalorder %s302, %s303
      %p315 = scmp.eq.s32.totalorder %s41, 1
      %p316 = por %p314, %p315
      %p318 = scmp.ne.s32.totalorder %s303, %s317
      %p319 = scmp.eq.s32.totalorder %s41, 0
      %p320 = por %p318, %p319
      %s322 = sadd.s32 %s321, 1
      %p325 = scmp.eq.s32.totalorder %s35, 1
      %p326 = scmp.ne.s32.totalorder %s321, %s323
      %p327 = scmp.eq.s32.totalorder %s35, 0
      %p328 = por %p326, %p327
      %p329 = scmp.ne.s32.totalorder %s321, %s323
      %p330 = scmp.eq.s32.totalorder %s40, 1
      %p331 = por %p329, %p330
      %p332 = scmp.ne.s32.totalorder %s323, %s324
      %p333 = scmp.eq.s32.totalorder %s40, 0
      %p334 = por %p332, %p333
      %p335 = scmp.ne.s32.totalorder %s323, %s324
      %p336 = scmp.eq.s32.totalorder %s41, 1
      %p337 = por %p335, %p336
      %p339 = scmp.ne.s32.totalorder %s324, %s338
      %p340 = scmp.eq.s32.totalorder %s41, 0
      %p341 = por %p339, %p340
      %s343 = sadd.s32 %s342, 1
      %p346 = scmp.eq.s32.totalorder %s35, 1
      %p347 = scmp.ne.s32.totalorder %s342, %s344
      %p348 = scmp.eq.s32.totalorder %s35, 0
      %p349 = por %p347, %p348
      %p350 = scmp.ne.s32.totalorder %s342, %s344
      %p351 = scmp.eq.s32.totalorder %s40, 1
      %p352 = por %p350, %p351
      %p353 = scmp.ne.s32.totalorder %s344, %s345
      %p354 = scmp.eq.s32.totalorder %s40, 0
      %p355 = por %p353, %p354
      %p356 = scmp.ne.s32.totalorder %s344, %s345
      %p357 = scmp.eq.s32.totalorder %s41, 1
      %p358 = por %p356, %p357
      %p360 = scmp.ne.s32.totalorder %s345, %s359
      %p361 = scmp.eq.s32.totalorder %s41, 0
      %p362 = por %p360, %p361
      %s364 = sadd.s32 %s363, 1
      %p367 = scmp.eq.s32.totalorder %s35, 1
      %p368 = scmp.ne.s32.totalorder %s363, %s365
      %p369 = scmp.eq.s32.totalorder %s35, 0
      %p370 = por %p368, %p369
      %p371 = scmp.ne.s32.totalorder %s363, %s365
      %p372 = scmp.eq.s32.totalorder %s40, 1
      %p373 = por %p371, %p372
      %p374 = scmp.ne.s32.totalorder %s365, %s366
      %p375 = scmp.eq.s32.totalorder %s40, 0
      %p376 = por %p374, %p375
      %p377 = scmp.ne.s32.totalorder %s365, %s366
      %p378 = scmp.eq.s32.totalorder %s41, 1
      %p379 = por %p377, %p378
      %p381 = scmp.ne.s32.totalorder %s366, %s380
      %p382 = scmp.eq.s32.totalorder %s41, 0
      %p383 = por %p381, %p382
      %s385 = sadd.s32 %s384, 1
      %p388 = scmp.eq.s32.totalorder %s35, 1
      %p389 = scmp.ne.s32.totalorder %s384, %s386
      %p390 = scmp.eq.s32.totalorder %s35, 0
      %p391 = por %p389, %p390
      %p392 = scmp.ne.s32.totalorder %s384, %s386
      %p393 = scmp.eq.s32.totalorder %s40, 1
      %p394 = por %p392, %p393
      %p395 = scmp.ne.s32.totalorder %s386, %s387
      %p396 = scmp.eq.s32.totalorder %s40, 0
      %p397 = por %p395, %p396
      %p398 = scmp.ne.s32.totalorder %s386, %s387
      %p399 = scmp.eq.s32.totalorder %s41, 1
      %p400 = por %p398, %p399
      %p402 = scmp.ne.s32.totalorder %s387, %s401
      %p403 = scmp.eq.s32.totalorder %s41, 0
      %p404 = por %p402, %p403
      %s406 = sadd.s32 %s405, 1
      %p409 = scmp.eq.s32.totalorder %s35, 1
      %p410 = scmp.ne.s32.totalorder %s405, %s407
      %p411 = scmp.eq.s32.totalorder %s35, 0
      %p412 = por %p410, %p411
      %p413 = scmp.ne.s32.totalorder %s405, %s407
      %p414 = scmp.eq.s32.totalorder %s40, 1
      %p415 = por %p413, %p414
      %p416 = scmp.ne.s32.totalorder %s407, %s408
      %p417 = scmp.eq.s32.totalorder %s40, 0
      %p418 = por %p416, %p417
      %p419 = scmp.ne.s32.totalorder %s407, %s408
      %p420 = scmp.eq.s32.totalorder %s41, 1
      %p421 = por %p419, %p420
      %p423 = scmp.ne.s32.totalorder %s408, %s422
      %p424 = scmp.eq.s32.totalorder %s41, 0
      %p425 = por %p423, %p424
      %s427 = sadd.s32 %s426, 1
      %p430 = scmp.eq.s32.totalorder %s35, 1
      %p431 = scmp.ne.s32.totalorder %s426, %s428
      %p432 = scmp.eq.s32.totalorder %s35, 0
      %p433 = por %p431, %p432
      %p434 = scmp.ne.s32.totalorder %s426, %s428
      %p435 = scmp.eq.s32.totalorder %s40, 1
      %p436 = por %p434, %p435
      %p437 = scmp.ne.s32.totalorder %s428, %s429
      %p438 = scmp.eq.s32.totalorder %s40, 0
      %p439 = por %p437, %p438
      %p440 = scmp.ne.s32.totalorder %s428, %s429
      %p441 = scmp.eq.s32.totalorder %s41, 1
      %p442 = por %p440, %p441
      %p444 = scmp.ne.s32.totalorder %s429, %s443
      %p445 = scmp.eq.s32.totalorder %s41, 0
      %p446 = por %p444, %p445
      %s448 = sadd.s32 %s447, 1
      %p451 = scmp.eq.s32.totalorder %s35, 1
      %p452 = scmp.ne.s32.totalorder %s447, %s449
      %p453 = scmp.eq.s32.totalorder %s35, 0
      %p454 = por %p452, %p453
      %p455 = scmp.ne.s32.totalorder %s447, %s449
      %p456 = scmp.eq.s32.totalorder %s40, 1
      %p457 = por %p455, %p456
      %p458 = scmp.ne.s32.totalorder %s449, %s450
      %p459 = scmp.eq.s32.totalorder %s40, 0
      %p460 = por %p458, %p459
      %p461 = scmp.ne.s32.totalorder %s449, %s450
      %p462 = scmp.eq.s32.totalorder %s41, 1
      %p463 = por %p461, %p462
      %p465 = scmp.ne.s32.totalorder %s450, %s464
      %p466 = scmp.eq.s32.totalorder %s41, 0
      %p467 = por %p465, %p466
      %s469 = sadd.s32 %s468, 1
      %p472 = scmp.eq.s32.totalorder %s35, 1
      %p473 = scmp.ne.s32.totalorder %s468, %s470
      %p474 = scmp.eq.s32.totalorder %s35, 0
      %p475 = por %p473, %p474
      %p476 = scmp.ne.s32.totalorder %s468, %s470
      %p477 = scmp.eq.s32.totalorder %s40, 1
      %p478 = por %p476, %p477
      %p479 = scmp.ne.s32.totalorder %s470, %s471
      %p480 = scmp.eq.s32.totalorder %s40, 0
      %p481 = por %p479, %p480
      %p482 = scmp.ne.s32.totalorder %s470, %s471
      %p483 = scmp.eq.s32.totalorder %s41, 1
      %p484 = por %p482, %p483
      %p486 = scmp.ne.s32.totalorder %s471, %s485
      %p487 = scmp.eq.s32.totalorder %s41, 0
      %p488 = por %p486, %p487
      %s489 = ssub.s32 %s35, %s42
      %p490 = scmp.eq.s32.totalorder %s489, 0
      %s492 = sadd.s32 %s491, 1
      %s493 = scalar_select %p490, %s491, %s492
      %p496 = pneg %p490
      %p497 = scmp.eq.s32.totalorder %s35, 1
      %p498 = por %p496, %p497
      %p499 = scmp.ne.s32.totalorder %s491, %s494
      %p500 = scmp.eq.s32.totalorder %s35, 0
      %p501 = por %p499, %p500
      %p502 = scmp.ne.s32.totalorder %s491, %s494
      %p503 = scmp.eq.s32.totalorder %s40, 1
      %p504 = por %p502, %p503
      %p505 = scmp.ne.s32.totalorder %s494, %s495
      %p506 = scmp.eq.s32.totalorder %s40, 0
      %p507 = por %p505, %p506
      %p508 = scmp.ne.s32.totalorder %s494, %s495
      %p509 = scmp.eq.s32.totalorder %s41, 1
      %p510 = por %p508, %p509
      %p512 = scmp.ne.s32.totalorder %s495, %s511
      %p513 = scmp.eq.s32.totalorder %s41, 0
      %p514 = por %p512, %p513
      %s515 = ssub.s32 %s35, %s42
      %p516 = scmp.eq.s32.totalorder %s515, 0
      %s518 = sadd.s32 %s517, 1
      %s519 = scalar_select %p516, %s517, %s518
      %p522 = pneg %p516
      %p523 = scmp.eq.s32.totalorder %s35, 1
      %p524 = por %p522, %p523
      %p525 = scmp.ne.s32.totalorder %s517, %s520
      %p526 = scmp.eq.s32.totalorder %s35, 0
      %p527 = por %p525, %p526
      %p528 = scmp.ne.s32.totalorder %s517, %s520
      %p529 = scmp.eq.s32.totalorder %s40, 1
      %p530 = por %p528, %p529
      %p531 = scmp.ne.s32.totalorder %s520, %s521
      %p532 = scmp.eq.s32.totalorder %s40, 0
      %p533 = por %p531, %p532
      %p534 = scmp.ne.s32.totalorder %s520, %s521
      %p535 = scmp.eq.s32.totalorder %s41, 1
      %p536 = por %p534, %p535
      %p538 = scmp.ne.s32.totalorder %s521, %s537
      %p539 = scmp.eq.s32.totalorder %s41, 0
      %p540 = por %p538, %p539
      %p541 = scmp.le.s32.totalorder 1, %s35
      %p542 = scmp.lt.s32.totalorder %s35, 3
      %p543 = pnand %p541, %p542
      %p544 = pneg %p543
      // Predicated region
      $region9: #{tpu_custom_call.1} parent=5 // pred_check
        _
      $region10: #{tpu_custom_call.1} parent=5 // pred_check_branch
        %546 = sbr.rel (%p543) target = $region12
      $region11: #{tpu_custom_call.1} parent=5 // pred_region
        %s547 = ssub.s32 %s35, 1
        // Predicated region
        $region13: #{tpu_custom_call.1} parent=11 // pred_check
          %p548 = pneg %p82
        $region14: #{tpu_custom_call.1} parent=11 // pred_check_branch
          %550 = sbr.rel (%p548) target = $region16
        $region15: #{tpu_custom_call.1} parent=11 // pred_region
          _
        $region16: #{tpu_custom_call.1} parent=11 // pred_fallthru
          _
        // Predicated region
        $region17: #{tpu_custom_call.1} parent=11 // pred_check
          %p551 = pneg %p103
        $region18: #{tpu_custom_call.1} parent=11 // pred_check_branch
          %553 = sbr.rel (%p551) target = $region20
        $region19: #{tpu_custom_call.1} parent=11 // pred_region
          _
        $region20: #{tpu_custom_call.1} parent=11 // pred_fallthru
          _
        // Predicated region
        $region21: #{tpu_custom_call.1} parent=11 // pred_check
          %p554 = pneg %p124
        $region22: #{tpu_custom_call.1} parent=11 // pred_check_branch
          %556 = sbr.rel (%p554) target = $region24
        $region23: #{tpu_custom_call.1} parent=11 // pred_region
          _
        $region24: #{tpu_custom_call.1} parent=11 // pred_fallthru
          _
        // Predicated region
        $region25: #{tpu_custom_call.1} parent=11 // pred_check
          %p557 = pneg %p145
        $region26: #{tpu_custom_call.1} parent=11 // pred_check_branch
          %559 = sbr.rel (%p557) target = $region28
        $region27: #{tpu_custom_call.1} parent=11 // pred_region
          _
        $region28: #{tpu_custom_call.1} parent=11 // pred_fallthru
          _
        // Predicated region
        $region29: #{tpu_custom_call.1} parent=11 // pred_check
          %p560 = pneg %p166
        $region30: #{tpu_custom_call.1} parent=11 // pred_check_branch
          %562 = sbr.rel (%p560) target = $region32
        $region31: #{tpu_custom_call.1} parent=11 // pred_region
          _
        $region32: #{tpu_custom_call.1} parent=11 // pred_fallthru
          _
        // Predicated region
        $region33: #{tpu_custom_call.1} parent=11 // pred_check
          %p563 = pneg %p187
        $region34: #{tpu_custom_call.1} parent=11 // pred_check_branch
          %565 = sbr.rel (%p563) target = $region36
        $region35: #{tpu_custom_call.1} parent=11 // pred_region
          _
        $region36: #{tpu_custom_call.1} parent=11 // pred_fallthru
          _
        // Predicated region
        $region37: #{tpu_custom_call.1} parent=11 // pred_check
          %p566 = pneg %p208
        $region38: #{tpu_custom_call.1} parent=11 // pred_check_branch
          %568 = sbr.rel (%p566) target = $region40
        $region39: #{tpu_custom_call.1} parent=11 // pred_region
          _
        $region40: #{tpu_custom_call.1} parent=11 // pred_fallthru
          _
        // Predicated region
        $region41: #{tpu_custom_call.1} parent=11 // pred_check
          %p569 = pneg %p229
        $region42: #{tpu_custom_call.1} parent=11 // pred_check_branch
          %571 = sbr.rel (%p569) target = $region44
        $region43: #{tpu_custom_call.1} parent=11 // pred_region
          _
        $region44: #{tpu_custom_call.1} parent=11 // pred_fallthru
          _
        // Predicated region
        $region45: #{tpu_custom_call.1} parent=11 // pred_check
          %p572 = pneg %p250
        $region46: #{tpu_custom_call.1} parent=11 // pred_check_branch
          %574 = sbr.rel (%p572) target = $region48
        $region47: #{tpu_custom_call.1} parent=11 // pred_region
          _
        $region48: #{tpu_custom_call.1} parent=11 // pred_fallthru
          _
        // Predicated region
        $region49: #{tpu_custom_call.1} parent=11 // pred_check
          %p575 = pneg %p271
        $region50: #{tpu_custom_call.1} parent=11 // pred_check_branch
          %577 = sbr.rel (%p575) target = $region52
        $region51: #{tpu_custom_call.1} parent=11 // pred_region
          _
        $region52: #{tpu_custom_call.1} parent=11 // pred_fallthru
          _
        // Predicated region
        $region53: #{tpu_custom_call.1} parent=11 // pred_check
          %p578 = pneg %p292
        $region54: #{tpu_custom_call.1} parent=11 // pred_check_branch
          %580 = sbr.rel (%p578) target = $region56
        $region55: #{tpu_custom_call.1} parent=11 // pred_region
          _
        $region56: #{tpu_custom_call.1} parent=11 // pred_fallthru
          _
        // Predicated region
        $region57: #{tpu_custom_call.1} parent=11 // pred_check
          %p581 = pneg %p313
        $region58: #{tpu_custom_call.1} parent=11 // pred_check_branch
          %583 = sbr.rel (%p581) target = $region60
        $region59: #{tpu_custom_call.1} parent=11 // pred_region
          _
        $region60: #{tpu_custom_call.1} parent=11 // pred_fallthru
          _
        // Predicated region
        $region61: #{tpu_custom_call.1} parent=11 // pred_check
          %p584 = pneg %p334
        $region62: #{tpu_custom_call.1} parent=11 // pred_check_branch
          %586 = sbr.rel (%p584) target = $region64
        $region63: #{tpu_custom_call.1} parent=11 // pred_region
          _
        $region64: #{tpu_custom_call.1} parent=11 // pred_fallthru
          _
        // Predicated region
        $region65: #{tpu_custom_call.1} parent=11 // pred_check
          %p587 = pneg %p355
        $region66: #{tpu_custom_call.1} parent=11 // pred_check_branch
          %589 = sbr.rel (%p587) target = $region68
        $region67: #{tpu_custom_call.1} parent=11 // pred_region
          _
        $region68: #{tpu_custom_call.1} parent=11 // pred_fallthru
          _
        // Predicated region
        $region69: #{tpu_custom_call.1} parent=11 // pred_check
          %p590 = pneg %p376
        $region70: #{tpu_custom_call.1} parent=11 // pred_check_branch
          %592 = sbr.rel (%p590) target = $region72
        $region71: #{tpu_custom_call.1} parent=11 // pred_region
          _
        $region72: #{tpu_custom_call.1} parent=11 // pred_fallthru
          _
        // Predicated region
        $region73: #{tpu_custom_call.1} parent=11 // pred_check
          %p593 = pneg %p397
        $region74: #{tpu_custom_call.1} parent=11 // pred_check_branch
          %595 = sbr.rel (%p593) target = $region76
        $region75: #{tpu_custom_call.1} parent=11 // pred_region
          _
        $region76: #{tpu_custom_call.1} parent=11 // pred_fallthru
          _
        // Predicated region
        $region77: #{tpu_custom_call.1} parent=11 // pred_check
          %p596 = pneg %p418
        $region78: #{tpu_custom_call.1} parent=11 // pred_check_branch
          %598 = sbr.rel (%p596) target = $region80
        $region79: #{tpu_custom_call.1} parent=11 // pred_region
          _
        $region80: #{tpu_custom_call.1} parent=11 // pred_fallthru
          _
        // Predicated region
        $region81: #{tpu_custom_call.1} parent=11 // pred_check
          %p599 = pneg %p439
        $region82: #{tpu_custom_call.1} parent=11 // pred_check_branch
          %601 = sbr.rel (%p599) target = $region84
        $region83: #{tpu_custom_call.1} parent=11 // pred_region
          _
        $region84: #{tpu_custom_call.1} parent=11 // pred_fallthru
          _
        // Predicated region
        $region85: #{tpu_custom_call.1} parent=11 // pred_check
          %p602 = pneg %p460
        $region86: #{tpu_custom_call.1} parent=11 // pred_check_branch
          %604 = sbr.rel (%p602) target = $region88
        $region87: #{tpu_custom_call.1} parent=11 // pred_region
          _
        $region88: #{tpu_custom_call.1} parent=11 // pred_fallthru
          _
        // Predicated region
        $region89: #{tpu_custom_call.1} parent=11 // pred_check
          %p605 = pneg %p481
        $region90: #{tpu_custom_call.1} parent=11 // pred_check_branch
          %607 = sbr.rel (%p605) target = $region92
        $region91: #{tpu_custom_call.1} parent=11 // pred_region
          _
        $region92: #{tpu_custom_call.1} parent=11 // pred_fallthru
          _
      $region12: #{tpu_custom_call.1} parent=5 // pred_fallthru
        _
      %p608 = scmp.lt.s32.totalorder %s35, 2
      // Predicated region
      $region93: #{tpu_custom_call.1} parent=5 // pred_check
        %p609 = pneg %p608
      $region94: #{tpu_custom_call.1} parent=5 // pred_check_branch
        %611 = sbr.rel (%p609) target = $region96
      $region95: #{tpu_custom_call.1} parent=5 // pred_region
        // Predicated region
        $region97: #{tpu_custom_call.1} parent=95 // pred_check
          %p612 = pneg %p55
        $region98: #{tpu_custom_call.1} parent=95 // pred_check_branch
          %614 = sbr.rel (%p612) target = $region100
        $region99: #{tpu_custom_call.1} parent=95 // pred_region
          %s615 = smul.u32 2, %s35
          %p616 = scmp.lt.s32.totalorder %s615, 3
          %s617 = scalar_select %p616, %s615, 3
          %s618 = smul.addr %s617, 8
          %s619 = scalar_lea.vmem %s0, %s618
          %s620 = smul.u32 2, %s35
        $region100: #{tpu_custom_call.1} parent=95 // pred_fallthru
          _
      $region96: #{tpu_custom_call.1} parent=5 // pred_fallthru
        _
      %p621 = scmp.le.s32.totalorder 1, %s35
      %p622 = scmp.lt.s32.totalorder %s35, 3
      %p623 = pnand %p621, %p622
      %p624 = pneg %p623
      // Predicated region
      $region101: #{tpu_custom_call.1} parent=5 // pred_check
        _
      $region102: #{tpu_custom_call.1} parent=5 // pred_check_branch
        %626 = sbr.rel (%p623) target = $region104
      $region103: #{tpu_custom_call.1} parent=5 // pred_region
        %s627 = ssub.s32 %s35, 1
        %s628 = smul.u32 2, %s40
        %p629 = scmp.lt.s32.totalorder %s628, 3
        %s630 = scalar_select %p629, %s628, 3
        %s631 = smul.addr %s630, 8
        %s632 = scalar_lea.vmem %s0, %s631
        %p633 = pneg %p61
        %p634 = pneg %p58
        %p635 = pneg %p82
        %p636 = pneg %p79
        %p637 = pneg %p103
        %p638 = pneg %p100
        %p639 = pneg %p124
        %p640 = pneg %p121
        %p641 = pneg %p145
        %p642 = pneg %p142
        %p643 = pneg %p166
        %p644 = pneg %p163
        %p645 = pneg %p187
        %p646 = pneg %p184
        %p647 = pneg %p208
        %p648 = pneg %p205
        %p649 = pneg %p229
        %p650 = pneg %p226
        %p651 = pneg %p250
        %p652 = pneg %p247
        %p653 = pneg %p271
        %p654 = pneg %p268
        %p655 = pneg %p292
        %p656 = pneg %p289
        %p657 = pneg %p313
        %p658 = pneg %p310
        %p659 = pneg %p334
        %p660 = pneg %p331
        %p661 = pneg %p355
        %p662 = pneg %p352
        %p663 = pneg %p376
        %p664 = pneg %p373
        %p665 = pneg %p397
        %p666 = pneg %p394
        %p667 = pneg %p418
        %p668 = pneg %p415
        %p669 = pneg %p439
        %p670 = pneg %p436
        %p671 = pneg %p460
        %p672 = pneg %p457
        %p673 = pneg %p481
        %p674 = pneg %p478
        %p675 = pneg %p507
        %p676 = pneg %p504
        %s677 = sand.u32 %s494, 1
        %s678 = scalar_lea.sflag [#allocation3], %s677
        %s679 = sand.u32 %s494, 1
        %s680 = scalar_lea.vmem [#allocation2], %s679
        %p681 = pneg %p533
        %p682 = pneg %p530
        %s683 = sand.u32 %s520, 1
        %s684 = scalar_lea.sflag [#allocation5], %s683
        %s685 = sand.u32 %s520, 1
        %s686 = smul.addr %s685, 128
        %s687 = scalar_lea.vmem [#allocation4], %s686
        %s688 = smul.u32 2, %s40
        %p689 = scmp.lt.s32.totalorder %s688, 3
        %s690 = scalar_select %p689, %s688, 3
        %s691 = smul.addr %s690, 8
        %s692 = scalar_lea.vmem %s0, %s691
        %s693 = smul.u32 2, %s40
        %v694 = vld [vmem:[%s692] sm:$0xff]
        %v695 = vld [vmem:[%s692 + $0x8] sm:$0xff]
        %v696 = vld [vmem:[%s2] sm:$0xff]
        %v697 = vld [vmem:[%s2 + $0x8] sm:$0xf]
        %v698 = vld [vmem:[%s1] sm:$0xff]
        %v699 = vld [vmem:[%s1 + $0x8] sm:$0xff]
        %vm700 = vcmask 97280
        %v702 = vsel %vm700, %v694, 0
        %v705 = vsel %vm700, %v695, 0
        %vm707 = vcmask 1043456
        %v709 = vsel %vm707, %v697, 0
        %711 = vmatprep.subr.mxu0 0.0
        %712 = vmatpush1.msra.mxu0 %v696
        %713 = vmatprep.subr.mxu0 0.0
        %714 = vmatpush1.msra.mxu0 %v709
        %715 = vmatprep.subr.mxu0 0.0
        %716 = vmatpush1.msra.mxu0 0.0
        %717 = vmatprep.subr.mxu0 0.0
        %718 = vmatpush1.msra.mxu0 0.0
        %719 = vmatprep.subr.mxu0 0.0
        %720 = vmatpush1.msra.mxu0 0.0
        %721 = vmatprep.subr.mxu0 0.0
        %722 = vmatpush1.msra.mxu0 0.0
        %723 = vmatprep.subr.mxu0 0.0
        %724 = vmatpush1.msra.mxu0 0.0
        %725 = vmatprep.subr.mxu0 0.0
        %726 = vmatpush1.msra.mxu0 0.0
        %727 = vmatprep.subr.mxu0 0.0
        %728 = vmatpush1.msra.mxu0 0.0
        %729 = vmatprep.subr.mxu0 0.0
        %730 = vmatpush1.msra.mxu0 0.0
        %731 = vmatprep.subr.mxu0 0.0
        %732 = vmatpush1.msra.mxu0 0.0
        %733 = vmatprep.subr.mxu0 0.0
        %734 = vmatpush1.msra.mxu0 0.0
        %735 = vmatprep.subr.mxu0 0.0
        %736 = vmatpush1.msra.mxu0 0.0
        %737 = vmatprep.subr.mxu0 0.0
        %738 = vmatpush1.msra.mxu0 0.0
        %739 = vmatprep.subr.mxu0 0.0
        %740 = vmatpush1.msra.mxu0 0.0
        %741 = vmatprep.subr.mxu0 0.0
        %742 = vmatpush1.msra.mxu0 0.0
        %743 = vmatprep.subr.mxu0 0.0
        %744 = vmatpush1.msra.mxu0 0.0
        %745 = vmatprep.subr.mxu0 0.0
        %746 = vmatpush1.msra.mxu0 0.0
        %747 = vmatprep.subr.mxu0 0.0
        %748 = vmatpush1.msra.mxu0 0.0
        %749 = vmatprep.subr.mxu0 0.0
        %750 = vmatpush1.msra.mxu0 0.0
        %751 = vmatprep.subr.mxu0 0.0
        %752 = vmatpush1.msra.mxu0 0.0
        %753 = vmatprep.subr.mxu0 0.0
        %754 = vmatpush1.msra.mxu0 0.0
        %755 = vmatprep.subr.mxu0 0.0
        %756 = vmatpush1.msra.mxu0 0.0
        %757 = vmatprep.subr.mxu0 0.0
        %758 = vmatpush1.msra.mxu0 0.0
        %759 = vmatprep.subr.mxu0 0.0
        %760 = vmatpush1.msra.mxu0 0.0
        %761 = vmatprep.subr.mxu0 0.0
        %762 = vmatpush1.msra.mxu0 0.0
        %763 = vmatprep.subr.mxu0 0.0
        %764 = vmatpush1.msra.mxu0 0.0
        %765 = vmatprep.subr.mxu0 0.0
        %766 = vmatpush1.msra.mxu0 0.0
        %767 = vmatprep.subr.mxu0 0.0
        %768 = vmatpush1.msra.mxu0 0.0
        %769 = vmatprep.subr.mxu0 0.0
        %770 = vmatpush1.msra.mxu0 0.0
        %771 = vmatprep.subr.mxu0 0.0
        %772 = vmatpush1.msra.mxu0 0.0
        %773 = vmatprep.subr.mxu0 0.0
        %774 = vmatpush1.msra.mxu0 0.0
        %775 = vmatprep.mubr.f32.mxu0 0.0
        %776 = vmatmul.mubr.f32.gmra.mrb[0].mxu0 %v702
        %v777 = vpop.f32.mrb[0].mxu0
        %v778 = vadd.f32 %v698, %v777
        %v779 = vpop.f32.mrb[0].mxu0
        %780 = vmatprep.mubr.f32.mxu0 0.0
        %781 = vmatmul.mubr.f32.gmra.mrb[0].mxu0 %v705
        %v782 = vpop.f32.mrb[0].mxu0
        %v783 = vadd.f32 %v699, %v782
        %v784 = vpop.f32.mrb[0].mxu0
        %785 = vdwg.mxu0
        %v786 = vlaneseq
        %v787 = vand.u32 %v786, 127
        %vm788 = vcmp.lt.s32.totalorder %v787, 14
        %v789 = vsel %vm788, 0.0, -1e+30
        %v790 = vld [vmem:[%s8] sm:$0x1]
        %v791 = vld [vmem:[%s9] sm:$0x1]
        %vm792 = vcmask 261120
        %v793 = vsel %vm792, %v778, 0.0
        %794 = vadd.xlane.f32.xlu0 %v793
        %v795 = vpop.xlane.xlu0 %794
        %v796 = vsel %vm792, %v783, 0.0
        %797 = vadd.xlane.f32.xlu0 %v796
        %v798 = vpop.xlane.xlu0 %797
        %v799 = vrcp.pop 32.0
        %v800 = vmul.f32 %v795, %v799
        %v801 = vmul.f32 %v798, %v799
        %v802 = vsub.f32 %v778, %v800
        %v803 = vsub.f32 %v783, %v801
        %v804 = vmul.f32 %v802, %v802
        %v805 = vmul.f32 %v803, %v803
        %v806 = vsel %vm792, %v804, 0.0
        %807 = vadd.xlane.f32.xlu0 %v806
        %v808 = vpop.xlane.xlu0 %807
        %v809 = vsel %vm792, %v805, 0.0
        %810 = vadd.xlane.f32.xlu0 %v809
        %v811 = vpop.xlane.xlu0 %810
        %v812 = vmul.f32 %v808, %v799
        %v813 = vmul.f32 %v811, %v799
        %v814 = vadd.f32 %v812, 1e-05
        %v815 = vadd.f32 %v813, 1e-05
        %v816 = vrsqrt.pop %v814
        %v817 = vrsqrt.pop %v815
        %v818 = vmul.f32 %v802, %v816
        %v819 = vmul.f32 %v803, %v817
        %v820 = vlaneseq
        %v821 = vshrl.u32 %v820, 7
        %v822 = vsub.s32 0, %v821
        %v823 = vrot.slane %v790, %v822
        %v824 = vmul.f32 %v818, %v823
        %v825 = vmul.f32 %v819, %v823
        %v826 = vlaneseq
        %v827 = vshrl.u32 %v826, 7
        %v828 = vsub.s32 0, %v827
        %v829 = vrot.slane %v791, %v828
        %v830 = vadd.f32 %v824, %v829
        %v831 = vadd.f32 %v825, %v829
        %v832 = vld [vmem:[%s3] sm:$0xff]
        %v833 = vld [vmem:[%s3 + $0x8] sm:$0xff]
        %v834 = vld [vmem:[%s3 + $0x10] sm:$0xff]
        %v835 = vld [vmem:[%s3 + $0x18] sm:$0xff]
        %v837 = vsel %vm792, %v830, 0
        %v840 = vsel %vm792, %v831, 0
        %842 = vmatprep.subr.mxu0 0.0
        %843 = vmatpush1.msra.mxu0 %v832
        %844 = vmatprep.subr.mxu0 0.0
        %845 = vmatpush1.msra.mxu0 %v833
        %846 = vmatprep.subr.mxu0 0.0
        %847 = vmatpush1.msra.mxu0 %v834
        %848 = vmatprep.subr.mxu0 0.0
        %849 = vmatpush1.msra.mxu0 %v835
        %850 = vmatprep.subr.mxu0 0.0
        %851 = vmatpush1.msra.mxu0 0.0
        %852 = vmatprep.subr.mxu0 0.0
        %853 = vmatpush1.msra.mxu0 0.0
        %854 = vmatprep.subr.mxu0 0.0
        %855 = vmatpush1.msra.mxu0 0.0
        %856 = vmatprep.subr.mxu0 0.0
        %857 = vmatpush1.msra.mxu0 0.0
        %858 = vmatprep.subr.mxu0 0.0
        %859 = vmatpush1.msra.mxu0 0.0
        %860 = vmatprep.subr.mxu0 0.0
        %861 = vmatpush1.msra.mxu0 0.0
        %862 = vmatprep.subr.mxu0 0.0
        %863 = vmatpush1.msra.mxu0 0.0
        %864 = vmatprep.subr.mxu0 0.0
        %865 = vmatpush1.msra.mxu0 0.0
        %866 = vmatprep.subr.mxu0 0.0
        %867 = vmatpush1.msra.mxu0 0.0
        %868 = vmatprep.subr.mxu0 0.0
        %869 = vmatpush1.msra.mxu0 0.0
        %870 = vmatprep.subr.mxu0 0.0
        %871 = vmatpush1.msra.mxu0 0.0
        %872 = vmatprep.subr.mxu0 0.0
        %873 = vmatpush1.msra.mxu0 0.0
        %874 = vmatprep.subr.mxu0 0.0
        %875 = vmatpush1.msra.mxu0 0.0
        %876 = vmatprep.subr.mxu0 0.0
        %877 = vmatpush1.msra.mxu0 0.0
        %878 = vmatprep.subr.mxu0 0.0
        %879 = vmatpush1.msra.mxu0 0.0
        %880 = vmatprep.subr.mxu0 0.0
        %881 = vmatpush1.msra.mxu0 0.0
        %882 = vmatprep.subr.mxu0 0.0
        %883 = vmatpush1.msra.mxu0 0.0
        %884 = vmatprep.subr.mxu0 0.0
        %885 = vmatpush1.msra.mxu0 0.0
        %886 = vmatprep.subr.mxu0 0.0
        %887 = vmatpush1.msra.mxu0 0.0
        %888 = vmatprep.subr.mxu0 0.0
        %889 = vmatpush1.msra.mxu0 0.0
        %890 = vmatprep.subr.mxu0 0.0
        %891 = vmatpush1.msra.mxu0 0.0
        %892 = vmatprep.subr.mxu0 0.0
        %893 = vmatpush1.msra.mxu0 0.0
        %894 = vmatprep.subr.mxu0 0.0
        %895 = vmatpush1.msra.mxu0 0.0
        %896 = vmatprep.subr.mxu0 0.0
        %897 = vmatpush1.msra.mxu0 0.0
        %898 = vmatprep.subr.mxu0 0.0
        %899 = vmatpush1.msra.mxu0 0.0
        %900 = vmatprep.subr.mxu0 0.0
        %901 = vmatpush1.msra.mxu0 0.0
        %902 = vmatprep.subr.mxu0 0.0
        %903 = vmatpush1.msra.mxu0 0.0
        %904 = vmatprep.subr.mxu0 0.0
        %905 = vmatpush1.msra.mxu0 0.0
        %906 = vmatprep.mubr.f32.mxu0 0.0
        %907 = vmatmul.mubr.f32.gmra.mrb[0].mxu0 %v837
        %v908 = vpop.f32.mrb[0].mxu0
        %v909 = vadd.f32 0.0, %v908
        %v910 = vpop.f32.mrb[0].mxu0
        %911 = vmatprep.mubr.f32.mxu0 0.0
        %912 = vmatmul.mubr.f32.gmra.mrb[0].mxu0 %v840
        %v913 = vpop.f32.mrb[0].mxu0
        %v914 = vadd.f32 0.0, %v913
        %v915 = vpop.f32.mrb[0].mxu0
        %916 = vdwg.mxu0
        %v917 = vld [vmem:[%s4] sm:$0xff]
        %v918 = vld [vmem:[%s4 + $0x8] sm:$0xff]
        %v919 = vld [vmem:[%s4 + $0x10] sm:$0xff]
        %v920 = vld [vmem:[%s4 + $0x18] sm:$0xff]
        %921 = vmatprep.subr.mxu0 0.0
        %922 = vmatpush1.msra.mxu0 %v917
        %923 = vmatprep.subr.mxu0 0.0
        %924 = vmatpush1.msra.mxu0 %v918
        %925 = vmatprep.subr.mxu0 0.0
        %926 = vmatpush1.msra.mxu0 %v919
        %927 = vmatprep.subr.mxu0 0.0
        %928 = vmatpush1.msra.mxu0 %v920
        %929 = vmatprep.subr.mxu0 0.0
        %930 = vmatpush1.msra.mxu0 0.0
        %931 = vmatprep.subr.mxu0 0.0
        %932 = vmatpush1.msra.mxu0 0.0
        %933 = vmatprep.subr.mxu0 0.0
        %934 = vmatpush1.msra.mxu0 0.0
        %935 = vmatprep.subr.mxu0 0.0
        %936 = vmatpush1.msra.mxu0 0.0
        %937 = vmatprep.subr.mxu0 0.0
        %938 = vmatpush1.msra.mxu0 0.0
        %939 = vmatprep.subr.mxu0 0.0
        %940 = vmatpush1.msra.mxu0 0.0
        %941 = vmatprep.subr.mxu0 0.0
        %942 = vmatpush1.msra.mxu0 0.0
        %943 = vmatprep.subr.mxu0 0.0
        %944 = vmatpush1.msra.mxu0 0.0
        %945 = vmatprep.subr.mxu0 0.0
        %946 = vmatpush1.msra.mxu0 0.0
        %947 = vmatprep.subr.mxu0 0.0
        %948 = vmatpush1.msra.mxu0 0.0
        %949 = vmatprep.subr.mxu0 0.0
        %950 = vmatpush1.msra.mxu0 0.0
        %951 = vmatprep.subr.mxu0 0.0
        %952 = vmatpush1.msra.mxu0 0.0
        %953 = vmatprep.subr.mxu0 0.0
        %954 = vmatpush1.msra.mxu0 0.0
        %955 = vmatprep.subr.mxu0 0.0
        %956 = vmatpush1.msra.mxu0 0.0
        %957 = vmatprep.subr.mxu0 0.0
        %958 = vmatpush1.msra.mxu0 0.0
        %959 = vmatprep.subr.mxu0 0.0
        %960 = vmatpush1.msra.mxu0 0.0
        %961 = vmatprep.subr.mxu0 0.0
        %962 = vmatpush1.msra.mxu0 0.0
        %963 = vmatprep.subr.mxu0 0.0
        %964 = vmatpush1.msra.mxu0 0.0
        %965 = vmatprep.subr.mxu0 0.0
        %966 = vmatpush1.msra.mxu0 0.0
        %967 = vmatprep.subr.mxu0 0.0
        %968 = vmatpush1.msra.mxu0 0.0
        %969 = vmatprep.subr.mxu0 0.0
        %970 = vmatpush1.msra.mxu0 0.0
        %971 = vmatprep.subr.mxu0 0.0
        %972 = vmatpush1.msra.mxu0 0.0
        %973 = vmatprep.subr.mxu0 0.0
        %974 = vmatpush1.msra.mxu0 0.0
        %975 = vmatprep.subr.mxu0 0.0
        %976 = vmatpush1.msra.mxu0 0.0
        %977 = vmatprep.subr.mxu0 0.0
        %978 = vmatpush1.msra.mxu0 0.0
        %979 = vmatprep.subr.mxu0 0.0
        %980 = vmatpush1.msra.mxu0 0.0
        %981 = vmatprep.subr.mxu0 0.0
        %982 = vmatpush1.msra.mxu0 0.0
        %983 = vmatprep.subr.mxu0 0.0
        %984 = vmatpush1.msra.mxu0 0.0
        %985 = vmatprep.mubr.f32.mxu0 0.0
        %986 = vmatmul.mubr.f32.gmra.mrb[0].mxu0 %v837
        %v987 = vpop.f32.mrb[0].mxu0
        %v988 = vadd.f32 0.0, %v987
        %v989 = vpop.f32.mrb[0].mxu0
        %990 = vmatprep.mubr.f32.mxu0 0.0
        %991 = vmatmul.mubr.f32.gmra.mrb[0].mxu0 %v840
        %v992 = vpop.f32.mrb[0].mxu0
        %v993 = vadd.f32 0.0, %v992
        %v994 = vpop.f32.mrb[0].mxu0
        %995 = vdwg.mxu0
        %v996 = vld [vmem:[%s5] sm:$0xff]
        %v997 = vld [vmem:[%s5 + $0x8] sm:$0xff]
        %v998 = vld [vmem:[%s5 + $0x10] sm:$0xff]
        %v999 = vld [vmem:[%s5 + $0x18] sm:$0xff]
        %1000 = vmatprep.subr.mxu0 0.0
        %1001 = vmatpush1.msra.mxu0 %v996
        %1002 = vmatprep.subr.mxu0 0.0
        %1003 = vmatpush1.msra.mxu0 %v997
        %1004 = vmatprep.subr.mxu0 0.0
        %1005 = vmatpush1.msra.mxu0 %v998
        %1006 = vmatprep.subr.mxu0 0.0
        %1007 = vmatpush1.msra.mxu0 %v999
        %1008 = vmatprep.subr.mxu0 0.0
        %1009 = vmatpush1.msra.mxu0 0.0
        %1010 = vmatprep.subr.mxu0 0.0
        %1011 = vmatpush1.msra.mxu0 0.0
        %1012 = vmatprep.subr.mxu0 0.0
        %1013 = vmatpush1.msra.mxu0 0.0
        %1014 = vmatprep.subr.mxu0 0.0
        %1015 = vmatpush1.msra.mxu0 0.0
        %1016 = vmatprep.subr.mxu0 0.0
        %1017 = vmatpush1.msra.mxu0 0.0
        %1018 = vmatprep.subr.mxu0 0.0
        %1019 = vmatpush1.msra.mxu0 0.0
        %1020 = vmatprep.subr.mxu0 0.0
        %1021 = vmatpush1.msra.mxu0 0.0
        %1022 = vmatprep.subr.mxu0 0.0
        %1023 = vmatpush1.msra.mxu0 0.0
        %1024 = vmatprep.subr.mxu0 0.0
        %1025 = vmatpush1.msra.mxu0 0.0
        %1026 = vmatprep.subr.mxu0 0.0
        %1027 = vmatpush1.msra.mxu0 0.0
        %1028 = vmatprep.subr.mxu0 0.0
        %1029 = vmatpush1.msra.mxu0 0.0
        %1030 = vmatprep.subr.mxu0 0.0
        %1031 = vmatpush1.msra.mxu0 0.0
        %1032 = vmatprep.subr.mxu0 0.0
        %1033 = vmatpush1.msra.mxu0 0.0
        %1034 = vmatprep.subr.mxu0 0.0
        %1035 = vmatpush1.msra.mxu0 0.0
        %1036 = vmatprep.subr.mxu0 0.0
        %1037 = vmatpush1.msra.mxu0 0.0
        %1038 = vmatprep.subr.mxu0 0.0
        %1039 = vmatpush1.msra.mxu0 0.0
        %1040 = vmatprep.subr.mxu0 0.0
        %1041 = vmatpush1.msra.mxu0 0.0
        %1042 = vmatprep.subr.mxu0 0.0
        %1043 = vmatpush1.msra.mxu0 0.0
        %1044 = vmatprep.subr.mxu0 0.0
        %1045 = vmatpush1.msra.mxu0 0.0
        %1046 = vmatprep.subr.mxu0 0.0
        %1047 = vmatpush1.msra.mxu0 0.0
        %1048 = vmatprep.subr.mxu0 0.0
        %1049 = vmatpush1.msra.mxu0 0.0
        %1050 = vmatprep.subr.mxu0 0.0
        %1051 = vmatpush1.msra.mxu0 0.0
        %1052 = vmatprep.subr.mxu0 0.0
        %1053 = vmatpush1.msra.mxu0 0.0
        %1054 = vmatprep.subr.mxu0 0.0
        %1055 = vmatpush1.msra.mxu0 0.0
        %1056 = vmatprep.subr.mxu0 0.0
        %1057 = vmatpush1.msra.mxu0 0.0
        %1058 = vmatprep.subr.mxu0 0.0
        %1059 = vmatpush1.msra.mxu0 0.0
        %1060 = vmatprep.subr.mxu0 0.0
        %1061 = vmatpush1.msra.mxu0 0.0
        %1062 = vmatprep.subr.mxu0 0.0
        %1063 = vmatpush1.msra.mxu0 0.0
        %1064 = vmatprep.mubr.f32.mxu0 0.0
        %1065 = vmatmul.mubr.f32.gmra.mrb[0].mxu0 %v837
        %v1066 = vpop.f32.mrb[0].mxu0
        %v1067 = vadd.f32 0.0, %v1066
        %v1068 = vpop.f32.mrb[0].mxu0
        %1069 = vmatprep.mubr.f32.mxu0 0.0
        %1070 = vmatmul.mubr.f32.gmra.mrb[0].mxu0 %v840
        %v1071 = vpop.f32.mrb[0].mxu0
        %v1072 = vadd.f32 0.0, %v1071
        %v1073 = vpop.f32.mrb[0].mxu0
        %1074 = vdwg.mxu0
        %vm1075 = vcmask 64512
        %v1077 = vsel %vm1075, %v909, 0
        %v1080 = vsel %vm1075, %v914, 0
        %v1083 = vsel %vm1075, %v988, 0
        %v1086 = vsel %vm1075, %v993, 0
        %1088 = vmatprep.subr.mxu0 0.0
        %1089 = vmatpush1.xpose.msra.mxu0 %v1083
        %1090 = vmatprep.subr.mxu0 0.0
        %1091 = vmatpush1.xpose.msra.mxu0 %v1086
        %1092 = vmatprep.subr.mxu0 0.0
        %1093 = vmatpush1.xpose.msra.mxu0 0.0
        %1094 = vmatprep.subr.mxu0 0.0
        %1095 = vmatpush1.xpose.msra.mxu0 0.0
        %1096 = vmatprep.subr.mxu0 0.0
        %1097 = vmatpush1.xpose.msra.mxu0 0.0
        %1098 = vmatprep.subr.mxu0 0.0
        %1099 = vmatpush1.xpose.msra.mxu0 0.0
        %1100 = vmatprep.subr.mxu0 0.0
        %1101 = vmatpush1.xpose.msra.mxu0 0.0
        %1102 = vmatprep.subr.mxu0 0.0
        %1103 = vmatpush1.xpose.msra.mxu0 0.0
        %1104 = vmatprep.subr.mxu0 0.0
        %1105 = vmatpush1.xpose.msra.mxu0 0.0
        %1106 = vmatprep.subr.mxu0 0.0
        %1107 = vmatpush1.xpose.msra.mxu0 0.0
        %1108 = vmatprep.subr.mxu0 0.0
        %1109 = vmatpush1.xpose.msra.mxu0 0.0
        %1110 = vmatprep.subr.mxu0 0.0
        %1111 = vmatpush1.xpose.msra.mxu0 0.0
        %1112 = vmatprep.subr.mxu0 0.0
        %1113 = vmatpush1.xpose.msra.mxu0 0.0
        %1114 = vmatprep.subr.mxu0 0.0
        %1115 = vmatpush1.xpose.msra.mxu0 0.0
        %1116 = vmatprep.subr.mxu0 0.0
        %1117 = vmatpush1.xpose.msra.mxu0 0.0
        %1118 = vmatprep.subr.mxu0 0.0
        %1119 = vmatpush1.xpose.msra.mxu0 0.0
        %1120 = vmatprep.subr.mxu0 0.0
        %1121 = vmatpush1.xpose.msra.mxu0 0.0
        %1122 = vmatprep.subr.mxu0 0.0
        %1123 = vmatpush1.xpose.msra.mxu0 0.0
        %1124 = vmatprep.subr.mxu0 0.0
        %1125 = vmatpush1.xpose.msra.mxu0 0.0
        %1126 = vmatprep.subr.mxu0 0.0
        %1127 = vmatpush1.xpose.msra.mxu0 0.0
        %1128 = vmatprep.subr.mxu0 0.0
        %1129 = vmatpush1.xpose.msra.mxu0 0.0
        %1130 = vmatprep.subr.mxu0 0.0
        %1131 = vmatpush1.xpose.msra.mxu0 0.0
        %1132 = vmatprep.subr.mxu0 0.0
        %1133 = vmatpush1.xpose.msra.mxu0 0.0
        %1134 = vmatprep.subr.mxu0 0.0
        %1135 = vmatpush1.xpose.msra.mxu0 0.0
        %1136 = vmatprep.subr.mxu0 0.0
        %1137 = vmatpush1.xpose.msra.mxu0 0.0
        %1138 = vmatprep.subr.mxu0 0.0
        %1139 = vmatpush1.xpose.msra.mxu0 0.0
        %1140 = vmatprep.subr.mxu0 0.0
        %1141 = vmatpush1.xpose.msra.mxu0 0.0
        %1142 = vmatprep.subr.mxu0 0.0
        %1143 = vmatpush1.xpose.msra.mxu0 0.0
        %1144 = vmatprep.subr.mxu0 0.0
        %1145 = vmatpush1.xpose.msra.mxu0 0.0
        %1146 = vmatprep.subr.mxu0 0.0
        %1147 = vmatpush1.xpose.msra.mxu0 0.0
        %1148 = vmatprep.subr.mxu0 0.0
        %1149 = vmatpush1.xpose.msra.mxu0 0.0
        %1150 = vmatprep.subr.mxu0 0.0
        %1151 = vmatpush1.xpose.msra.mxu0 0.0
        %1152 = vmatprep.mubr.f32.mxu0 0.0
        %1153 = vmatmul.mubr.f32.gmra.mrb[0].mxu0 %v1077
        %v1154 = vpop.f32.mrb[0].mxu0
        %v1155 = vadd.f32 %v789, %v1154
        %v1156 = vpop.f32.mrb[0].mxu0
        %1157 = vmatprep.mubr.f32.mxu0 0.0
        %1158 = vmatmul.mubr.f32.gmra.mrb[0].mxu0 %v1080
        %v1159 = vpop.f32.mrb[0].mxu0
        %v1160 = vadd.f32 %v789, %v1159
        %v1161 = vpop.f32.mrb[0].mxu0
        %1162 = vdwg.mxu0
        %vm1163 = vcmask 130048
        %v1164 = vsel %vm1163, %v1155, -inf
        %1165 = vmax.xlane.f32.xlu0 %v1164
        %v1166 = vpop.xlane.xlu0 %1165
        %v1167 = vsel %vm1163, %v1160, -inf
        %1168 = vmax.xlane.f32.xlu0 %v1167
        %v1169 = vpop.xlane.xlu0 %1168
        %v1170 = vsub.f32 %v1155, %v1166
        %v1171 = vsub.f32 %v1160, %v1169
        %v1172 = vmul.f32 %v1170, 1.442695
        %v1173 = vpow.pop %v1172
        %v1174 = vmul.f32 %v1171, 1.442695
        %v1175 = vpow.pop %v1174
        %v1176 = vsel %vm1163, %v1173, 0.0
        %1177 = vadd.xlane.f32.xlu0 %v1176
        %v1178 = vpop.xlane.xlu0 %1177
        %v1179 = vsel %vm1163, %v1175, 0.0
        %1180 = vadd.xlane.f32.xlu0 %v1179
        %v1181 = vpop.xlane.xlu0 %1180
        %v1182 = vrcp.pop %v1178
        %v1183 = vrcp.pop %v1181
        %v1184 = vmul.f32 %v1173, %v1182
        %v1185 = vmul.f32 %v1175, %v1183
        %1186 = vst.msk [vmem:[%s687] sm:$0xff] %vm1163, %v1184
        %1187 = vst.msk [vmem:[%s687 + $0x8] sm:$0xff] %vm1163, %v1185
        %v1189 = vsel %vm1163, %v1184, 0
        %v1192 = vsel %vm1163, %v1185, 0
        %1194 = vmatprep.subr.mxu0 0.0
        %1195 = vmatpush1.msra.mxu0 %v1067
        %1196 = vmatprep.subr.mxu0 0.0
        %1197 = vmatpush1.msra.mxu0 %v1072
        %1198 = vmatprep.subr.mxu0 0.0
        %1199 = vmatpush1.msra.mxu0 0.0
        %1200 = vmatprep.subr.mxu0 0.0
        %1201 = vmatpush1.msra.mxu0 0.0
        %1202 = vmatprep.subr.mxu0 0.0
        %1203 = vmatpush1.msra.mxu0 0.0
        %1204 = vmatprep.subr.mxu0 0.0
        %1205 = vmatpush1.msra.mxu0 0.0
        %1206 = vmatprep.subr.mxu0 0.0
        %1207 = vmatpush1.msra.mxu0 0.0
        %1208 = vmatprep.subr.mxu0 0.0
        %1209 = vmatpush1.msra.mxu0 0.0
        %1210 = vmatprep.subr.mxu0 0.0
        %1211 = vmatpush1.msra.mxu0 0.0
        %1212 = vmatprep.subr.mxu0 0.0
        %1213 = vmatpush1.msra.mxu0 0.0
        %1214 = vmatprep.subr.mxu0 0.0
        %1215 = vmatpush1.msra.mxu0 0.0
        %1216 = vmatprep.subr.mxu0 0.0
        %1217 = vmatpush1.msra.mxu0 0.0
        %1218 = vmatprep.subr.mxu0 0.0
        %1219 = vmatpush1.msra.mxu0 0.0
        %1220 = vmatprep.subr.mxu0 0.0
        %1221 = vmatpush1.msra.mxu0 0.0
        %1222 = vmatprep.subr.mxu0 0.0
        %1223 = vmatpush1.msra.mxu0 0.0
        %1224 = vmatprep.subr.mxu0 0.0
        %1225 = vmatpush1.msra.mxu0 0.0
        %1226 = vmatprep.subr.mxu0 0.0
        %1227 = vmatpush1.msra.mxu0 0.0
        %1228 = vmatprep.subr.mxu0 0.0
        %1229 = vmatpush1.msra.mxu0 0.0
        %1230 = vmatprep.subr.mxu0 0.0
        %1231 = vmatpush1.msra.mxu0 0.0
        %1232 = vmatprep.subr.mxu0 0.0
        %1233 = vmatpush1.msra.mxu0 0.0
        %1234 = vmatprep.subr.mxu0 0.0
        %1235 = vmatpush1.msra.mxu0 0.0
        %1236 = vmatprep.subr.mxu0 0.0
        %1237 = vmatpush1.msra.mxu0 0.0
        %1238 = vmatprep.subr.mxu0 0.0
        %1239 = vmatpush1.msra.mxu0 0.0
        %1240 = vmatprep.subr.mxu0 0.0
        %1241 = vmatpush1.msra.mxu0 0.0
        %1242 = vmatprep.subr.mxu0 0.0
        %1243 = vmatpush1.msra.mxu0 0.0
        %1244 = vmatprep.subr.mxu0 0.0
        %1245 = vmatpush1.msra.mxu0 0.0
        %1246 = vmatprep.subr.mxu0 0.0
        %1247 = vmatpush1.msra.mxu0 0.0
        %1248 = vmatprep.subr.mxu0 0.0
        %1249 = vmatpush1.msra.mxu0 0.0
        %1250 = vmatprep.subr.mxu0 0.0
        %1251 = vmatpush1.msra.mxu0 0.0
        %1252 = vmatprep.subr.mxu0 0.0
        %1253 = vmatpush1.msra.mxu0 0.0
        %1254 = vmatprep.subr.mxu0 0.0
        %1255 = vmatpush1.msra.mxu0 0.0
        %1256 = vmatprep.subr.mxu0 0.0
        %1257 = vmatpush1.msra.mxu0 0.0
        %1258 = vmatprep.mubr.f32.mxu0 0.0
        %1259 = vmatmul.mubr.f32.gmra.mrb[0].mxu0 %v1189
        %v1260 = vpop.f32.mrb[0].mxu0
        %v1261 = vadd.f32 0.0, %v1260
        %v1262 = vpop.f32.mrb[0].mxu0
        %1263 = vmatprep.mubr.f32.mxu0 0.0
        %1264 = vmatmul.mubr.f32.gmra.mrb[0].mxu0 %v1192
        %v1265 = vpop.f32.mrb[0].mxu0
        %v1266 = vadd.f32 0.0, %v1265
        %v1267 = vpop.f32.mrb[0].mxu0
        %1268 = vdwg.mxu0
        %v1269 = vld [vmem:[%s6] sm:$0xff]
        %s1270 = scalar_lea.vmem %s3, 32
        %v1271 = vld [vmem:[%s1270] sm:$0xff]
        %v1272 = vld [vmem:[%s1270 + $0x8] sm:$0xff]
        %v1273 = vld [vmem:[%s1270 + $0x10] sm:$0xff]
        %v1274 = vld [vmem:[%s1270 + $0x18] sm:$0xff]
        %1275 = vmatprep.subr.mxu0 0.0
        %1276 = vmatpush1.msra.mxu0 %v1271
        %1277 = vmatprep.subr.mxu0 0.0
        %1278 = vmatpush1.msra.mxu0 %v1272
        %1279 = vmatprep.subr.mxu0 0.0
        %1280 = vmatpush1.msra.mxu0 %v1273
        %1281 = vmatprep.subr.mxu0 0.0
        %1282 = vmatpush1.msra.mxu0 %v1274
        %1283 = vmatprep.subr.mxu0 0.0
        %1284 = vmatpush1.msra.mxu0 0.0
        %1285 = vmatprep.subr.mxu0 0.0
        %1286 = vmatpush1.msra.mxu0 0.0
        %1287 = vmatprep.subr.mxu0 0.0
        %1288 = vmatpush1.msra.mxu0 0.0
        %1289 = vmatprep.subr.mxu0 0.0
        %1290 = vmatpush1.msra.mxu0 0.0
        %1291 = vmatprep.subr.mxu0 0.0
        %1292 = vmatpush1.msra.mxu0 0.0
        %1293 = vmatprep.subr.mxu0 0.0
        %1294 = vmatpush1.msra.mxu0 0.0
        %1295 = vmatprep.subr.mxu0 0.0
        %1296 = vmatpush1.msra.mxu0 0.0
        %1297 = vmatprep.subr.mxu0 0.0
        %1298 = vmatpush1.msra.mxu0 0.0
        %1299 = vmatprep.subr.mxu0 0.0
        %1300 = vmatpush1.msra.mxu0 0.0
        %1301 = vmatprep.subr.mxu0 0.0
        %1302 = vmatpush1.msra.mxu0 0.0
        %1303 = vmatprep.subr.mxu0 0.0
        %1304 = vmatpush1.msra.mxu0 0.0
        %1305 = vmatprep.subr.mxu0 0.0
        %1306 = vmatpush1.msra.mxu0 0.0
        %1307 = vmatprep.subr.mxu0 0.0
        %1308 = vmatpush1.msra.mxu0 0.0
        %1309 = vmatprep.subr.mxu0 0.0
        %1310 = vmatpush1.msra.mxu0 0.0
        %1311 = vmatprep.subr.mxu0 0.0
        %1312 = vmatpush1.msra.mxu0 0.0
        %1313 = vmatprep.subr.mxu0 0.0
        %1314 = vmatpush1.msra.mxu0 0.0
        %1315 = vmatprep.subr.mxu0 0.0
        %1316 = vmatpush1.msra.mxu0 0.0
        %1317 = vmatprep.subr.mxu0 0.0
        %1318 = vmatpush1.msra.mxu0 0.0
        %1319 = vmatprep.subr.mxu0 0.0
        %1320 = vmatpush1.msra.mxu0 0.0
        %1321 = vmatprep.subr.mxu0 0.0
        %1322 = vmatpush1.msra.mxu0 0.0
        %1323 = vmatprep.subr.mxu0 0.0
        %1324 = vmatpush1.msra.mxu0 0.0
        %1325 = vmatprep.subr.mxu0 0.0
        %1326 = vmatpush1.msra.mxu0 0.0
        %1327 = vmatprep.subr.mxu0 0.0
        %1328 = vmatpush1.msra.mxu0 0.0
        %1329 = vmatprep.subr.mxu0 0.0
        %1330 = vmatpush1.msra.mxu0 0.0
        %1331 = vmatprep.subr.mxu0 0.0
        %1332 = vmatpush1.msra.mxu0 0.0
        %1333 = vmatprep.subr.mxu0 0.0
        %1334 = vmatpush1.msra.mxu0 0.0
        %1335 = vmatprep.subr.mxu0 0.0
        %1336 = vmatpush1.msra.mxu0 0.0
        %1337 = vmatprep.subr.mxu0 0.0
        %1338 = vmatpush1.msra.mxu0 0.0
        %1339 = vmatprep.mubr.f32.mxu0 0.0
        %1340 = vmatmul.mubr.f32.gmra.mrb[0].mxu0 %v837
        %v1341 = vpop.f32.mrb[0].mxu0
        %v1342 = vadd.f32 0.0, %v1341
        %v1343 = vpop.f32.mrb[0].mxu0
        %1344 = vmatprep.mubr.f32.mxu0 0.0
        %1345 = vmatmul.mubr.f32.gmra.mrb[0].mxu0 %v840
        %v1346 = vpop.f32.mrb[0].mxu0
        %v1347 = vadd.f32 0.0, %v1346
        %v1348 = vpop.f32.mrb[0].mxu0
        %1349 = vdwg.mxu0
        %s1350 = scalar_lea.vmem %s4, 32
        %v1351 = vld [vmem:[%s1350] sm:$0xff]
        %v1352 = vld [vmem:[%s1350 + $0x8] sm:$0xff]
        %v1353 = vld [vmem:[%s1350 + $0x10] sm:$0xff]
        %v1354 = vld [vmem:[%s1350 + $0x18] sm:$0xff]
        %1355 = vmatprep.subr.mxu0 0.0
        %1356 = vmatpush1.msra.mxu0 %v1351
        %1357 = vmatprep.subr.mxu0 0.0
        %1358 = vmatpush1.msra.mxu0 %v1352
        %1359 = vmatprep.subr.mxu0 0.0
        %1360 = vmatpush1.msra.mxu0 %v1353
        %1361 = vmatprep.subr.mxu0 0.0
        %1362 = vmatpush1.msra.mxu0 %v1354
        %1363 = vmatprep.subr.mxu0 0.0
        %1364 = vmatpush1.msra.mxu0 0.0
        %1365 = vmatprep.subr.mxu0 0.0
        %1366 = vmatpush1.msra.mxu0 0.0
        %1367 = vmatprep.subr.mxu0 0.0
        %1368 = vmatpush1.msra.mxu0 0.0
        %1369 = vmatprep.subr.mxu0 0.0
        %1370 = vmatpush1.msra.mxu0 0.0
        %1371 = vmatprep.subr.mxu0 0.0
        %1372 = vmatpush1.msra.mxu0 0.0
        %1373 = vmatprep.subr.mxu0 0.0
        %1374 = vmatpush1.msra.mxu0 0.0
        %1375 = vmatprep.subr.mxu0 0.0
        %1376 = vmatpush1.msra.mxu0 0.0
        %1377 = vmatprep.subr.mxu0 0.0
        %1378 = vmatpush1.msra.mxu0 0.0
        %1379 = vmatprep.subr.mxu0 0.0
        %1380 = vmatpush1.msra.mxu0 0.0
        %1381 = vmatprep.subr.mxu0 0.0
        %1382 = vmatpush1.msra.mxu0 0.0
        %1383 = vmatprep.subr.mxu0 0.0
        %1384 = vmatpush1.msra.mxu0 0.0
        %1385 = vmatprep.subr.mxu0 0.0
        %1386 = vmatpush1.msra.mxu0 0.0
        %1387 = vmatprep.subr.mxu0 0.0
        %1388 = vmatpush1.msra.mxu0 0.0
        %1389 = vmatprep.subr.mxu0 0.0
        %1390 = vmatpush1.msra.mxu0 0.0
        %1391 = vmatprep.subr.mxu0 0.0
        %1392 = vmatpush1.msra.mxu0 0.0
        %1393 = vmatprep.subr.mxu0 0.0
        %1394 = vmatpush1.msra.mxu0 0.0
        %1395 = vmatprep.subr.mxu0 0.0
        %1396 = vmatpush1.msra.mxu0 0.0
        %1397 = vmatprep.subr.mxu0 0.0
        %1398 = vmatpush1.msra.mxu0 0.0
        %1399 = vmatprep.subr.mxu0 0.0
        %1400 = vmatpush1.msra.mxu0 0.0
        %1401 = vmatprep.subr.mxu0 0.0
        %1402 = vmatpush1.msra.mxu0 0.0
        %1403 = vmatprep.subr.mxu0 0.0
        %1404 = vmatpush1.msra.mxu0 0.0
        %1405 = vmatprep.subr.mxu0 0.0
        %1406 = vmatpush1.msra.mxu0 0.0
        %1407 = vmatprep.subr.mxu0 0.0
        %1408 = vmatpush1.msra.mxu0 0.0
        %1409 = vmatprep.subr.mxu0 0.0
        %1410 = vmatpush1.msra.mxu0 0.0
        %1411 = vmatprep.subr.mxu0 0.0
        %1412 = vmatpush1.msra.mxu0 0.0
        %1413 = vmatprep.subr.mxu0 0.0
        %1414 = vmatpush1.msra.mxu0 0.0
        %1415 = vmatprep.subr.mxu0 0.0
        %1416 = vmatpush1.msra.mxu0 0.0
        %1417 = vmatprep.subr.mxu0 0.0
        %1418 = vmatpush1.msra.mxu0 0.0
        %1419 = vmatprep.mubr.f32.mxu0 0.0
        %1420 = vmatmul.mubr.f32.gmra.mrb[0].mxu0 %v837
        %v1421 = vpop.f32.mrb[0].mxu0
        %v1422 = vadd.f32 0.0, %v1421
        %v1423 = vpop.f32.mrb[0].mxu0
        %1424 = vmatprep.mubr.f32.mxu0 0.0
        %1425 = vmatmul.mubr.f32.gmra.mrb[0].mxu0 %v840
        %v1426 = vpop.f32.mrb[0].mxu0
        %v1427 = vadd.f32 0.0, %v1426
        %v1428 = vpop.f32.mrb[0].mxu0
        %1429 = vdwg.mxu0
        %s1430 = scalar_lea.vmem %s5, 32
        %v1431 = vld [vmem:[%s1430] sm:$0xff]
        %v1432 = vld [vmem:[%s1430 + $0x8] sm:$0xff]
        %v1433 = vld [vmem:[%s1430 + $0x10] sm:$0xff]
        %v1434 = vld [vmem:[%s1430 + $0x18] sm:$0xff]
        %1435 = vmatprep.subr.mxu0 0.0
        %1436 = vmatpush1.msra.mxu0 %v1431
        %1437 = vmatprep.subr.mxu0 0.0
        %1438 = vmatpush1.msra.mxu0 %v1432
        %1439 = vmatprep.subr.mxu0 0.0
        %1440 = vmatpush1.msra.mxu0 %v1433
        %1441 = vmatprep.subr.mxu0 0.0
        %1442 = vmatpush1.msra.mxu0 %v1434
        %1443 = vmatprep.subr.mxu0 0.0
        %1444 = vmatpush1.msra.mxu0 0.0
        %1445 = vmatprep.subr.mxu0 0.0
        %1446 = vmatpush1.msra.mxu0 0.0
        %1447 = vmatprep.subr.mxu0 0.0
        %1448 = vmatpush1.msra.mxu0 0.0
        %1449 = vmatprep.subr.mxu0 0.0
        %1450 = vmatpush1.msra.mxu0 0.0
        %1451 = vmatprep.subr.mxu0 0.0
        %1452 = vmatpush1.msra.mxu0 0.0
        %1453 = vmatprep.subr.mxu0 0.0
        %1454 = vmatpush1.msra.mxu0 0.0
        %1455 = vmatprep.subr.mxu0 0.0
        %1456 = vmatpush1.msra.mxu0 0.0
        %1457 = vmatprep.subr.mxu0 0.0
        %1458 = vmatpush1.msra.mxu0 0.0
        %1459 = vmatprep.subr.mxu0 0.0
        %1460 = vmatpush1.msra.mxu0 0.0
        %1461 = vmatprep.subr.mxu0 0.0
        %1462 = vmatpush1.msra.mxu0 0.0
        %1463 = vmatprep.subr.mxu0 0.0
        %1464 = vmatpush1.msra.mxu0 0.0
        %1465 = vmatprep.subr.mxu0 0.0
        %1466 = vmatpush1.msra.mxu0 0.0
        %1467 = vmatprep.subr.mxu0 0.0
        %1468 = vmatpush1.msra.mxu0 0.0
        %1469 = vmatprep.subr.mxu0 0.0
        %1470 = vmatpush1.msra.mxu0 0.0
        %1471 = vmatprep.subr.mxu0 0.0
        %1472 = vmatpush1.msra.mxu0 0.0
        %1473 = vmatprep.subr.mxu0 0.0
        %1474 = vmatpush1.msra.mxu0 0.0
        %1475 = vmatprep.subr.mxu0 0.0
        %1476 = vmatpush1.msra.mxu0 0.0
        %1477 = vmatprep.subr.mxu0 0.0
        %1478 = vmatpush1.msra.mxu0 0.0
        %1479 = vmatprep.subr.mxu0 0.0
        %1480 = vmatpush1.msra.mxu0 0.0
        %1481 = vmatprep.subr.mxu0 0.0
        %1482 = vmatpush1.msra.mxu0 0.0
        %1483 = vmatprep.subr.mxu0 0.0
        %1484 = vmatpush1.msra.mxu0 0.0
        %1485 = vmatprep.subr.mxu0 0.0
        %1486 = vmatpush1.msra.mxu0 0.0
        %1487 = vmatprep.subr.mxu0 0.0
        %1488 = vmatpush1.msra.mxu0 0.0
        %1489 = vmatprep.subr.mxu0 0.0
        %1490 = vmatpush1.msra.mxu0 0.0
        %1491 = vmatprep.subr.mxu0 0.0
        %1492 = vmatpush1.msra.mxu0 0.0
        %1493 = vmatprep.subr.mxu0 0.0
        %1494 = vmatpush1.msra.mxu0 0.0
        %1495 = vmatprep.subr.mxu0 0.0
        %1496 = vmatpush1.msra.mxu0 0.0
        %1497 = vmatprep.subr.mxu0 0.0
        %1498 = vmatpush1.msra.mxu0 0.0
        %1499 = vmatprep.mubr.f32.mxu0 0.0
        %1500 = vmatmul.mubr.f32.gmra.mrb[0].mxu0 %v837
        %v1501 = vpop.f32.mrb[0].mxu0
        %v1502 = vadd.f32 0.0, %v1501
        %v1503 = vpop.f32.mrb[0].mxu0
        %1504 = vmatprep.mubr.f32.mxu0 0.0
        %1505 = vmatmul.mubr.f32.gmra.mrb[0].mxu0 %v840
        %v1506 = vpop.f32.mrb[0].mxu0
        %v1507 = vadd.f32 0.0, %v1506
        %v1508 = vpop.f32.mrb[0].mxu0
        %1509 = vdwg.mxu0
        %v1511 = vsel %vm1075, %v1342, 0
        %v1514 = vsel %vm1075, %v1347, 0
        %v1517 = vsel %vm1075, %v1422, 0
        %v1520 = vsel %vm1075, %v1427, 0
        %1522 = vmatprep.subr.mxu0 0.0
        %1523 = vmatpush1.xpose.msra.mxu0 %v1517
        %1524 = vmatprep.subr.mxu0 0.0
        %1525 = vmatpush1.xpose.msra.mxu0 %v1520
        %1526 = vmatprep.subr.mxu0 0.0
        %1527 = vmatpush1.xpose.msra.mxu0 0.0
        %1528 = vmatprep.subr.mxu0 0.0
        %1529 = vmatpush1.xpose.msra.mxu0 0.0
        %1530 = vmatprep.subr.mxu0 0.0
        %1531 = vmatpush1.xpose.msra.mxu0 0.0
        %1532 = vmatprep.subr.mxu0 0.0
        %1533 = vmatpush1.xpose.msra.mxu0 0.0
        %1534 = vmatprep.subr.mxu0 0.0
        %1535 = vmatpush1.xpose.msra.mxu0 0.0
        %1536 = vmatprep.subr.mxu0 0.0
        %1537 = vmatpush1.xpose.msra.mxu0 0.0
        %1538 = vmatprep.subr.mxu0 0.0
        %1539 = vmatpush1.xpose.msra.mxu0 0.0
        %1540 = vmatprep.subr.mxu0 0.0
        %1541 = vmatpush1.xpose.msra.mxu0 0.0
        %1542 = vmatprep.subr.mxu0 0.0
        %1543 = vmatpush1.xpose.msra.mxu0 0.0
        %1544 = vmatprep.subr.mxu0 0.0
        %1545 = vmatpush1.xpose.msra.mxu0 0.0
        %1546 = vmatprep.subr.mxu0 0.0
        %1547 = vmatpush1.xpose.msra.mxu0 0.0
        %1548 = vmatprep.subr.mxu0 0.0
        %1549 = vmatpush1.xpose.msra.mxu0 0.0
        %1550 = vmatprep.subr.mxu0 0.0
        %1551 = vmatpush1.xpose.msra.mxu0 0.0
        %1552 = vmatprep.subr.mxu0 0.0
        %1553 = vmatpush1.xpose.msra.mxu0 0.0
        %1554 = vmatprep.subr.mxu0 0.0
        %1555 = vmatpush1.xpose.msra.mxu0 0.0
        %1556 = vmatprep.subr.mxu0 0.0
        %1557 = vmatpush1.xpose.msra.mxu0 0.0
        %1558 = vmatprep.subr.mxu0 0.0
        %1559 = vmatpush1.xpose.msra.mxu0 0.0
        %1560 = vmatprep.subr.mxu0 0.0
        %1561 = vmatpush1.xpose.msra.mxu0 0.0
        %1562 = vmatprep.subr.mxu0 0.0
        %1563 = vmatpush1.xpose.msra.mxu0 0.0
        %1564 = vmatprep.subr.mxu0 0.0
        %1565 = vmatpush1.xpose.msra.mxu0 0.0
        %1566 = vmatprep.subr.mxu0 0.0
        %1567 = vmatpush1.xpose.msra.mxu0 0.0
        %1568 = vmatprep.subr.mxu0 0.0
        %1569 = vmatpush1.xpose.msra.mxu0 0.0
        %1570 = vmatprep.subr.mxu0 0.0
        %1571 = vmatpush1.xpose.msra.mxu0 0.0
        %1572 = vmatprep.subr.mxu0 0.0
        %1573 = vmatpush1.xpose.msra.mxu0 0.0
        %1574 = vmatprep.subr.mxu0 0.0
        %1575 = vmatpush1.xpose.msra.mxu0 0.0
        %1576 = vmatprep.subr.mxu0 0.0
        %1577 = vmatpush1.xpose.msra.mxu0 0.0
        %1578 = vmatprep.subr.mxu0 0.0
        %1579 = vmatpush1.xpose.msra.mxu0 0.0
        %1580 = vmatprep.subr.mxu0 0.0
        %1581 = vmatpush1.xpose.msra.mxu0 0.0
        %1582 = vmatprep.subr.mxu0 0.0
        %1583 = vmatpush1.xpose.msra.mxu0 0.0
        %1584 = vmatprep.subr.mxu0 0.0
        %1585 = vmatpush1.xpose.msra.mxu0 0.0
        %1586 = vmatprep.mubr.f32.mxu0 0.0
        %1587 = vmatmul.mubr.f32.gmra.mrb[0].mxu0 %v1511
        %v1588 = vpop.f32.mrb[0].mxu0
        %v1589 = vadd.f32 %v789, %v1588
        %v1590 = vpop.f32.mrb[0].mxu0
        %1591 = vmatprep.mubr.f32.mxu0 0.0
        %1592 = vmatmul.mubr.f32.gmra.mrb[0].mxu0 %v1514
        %v1593 = vpop.f32.mrb[0].mxu0
        %v1594 = vadd.f32 %v789, %v1593
        %v1595 = vpop.f32.mrb[0].mxu0
        %1596 = vdwg.mxu0
        %v1597 = vsel %vm1163, %v1589, -inf
        %1598 = vmax.xlane.f32.xlu0 %v1597
        %v1599 = vpop.xlane.xlu0 %1598
        %v1600 = vsel %vm1163, %v1594, -inf
        %1601 = vmax.xlane.f32.xlu0 %v1600
        %v1602 = vpop.xlane.xlu0 %1601
        %v1603 = vsub.f32 %v1589, %v1599
        %v1604 = vsub.f32 %v1594, %v1602
        %v1605 = vmul.f32 %v1603, 1.442695
        %v1606 = vpow.pop %v1605
        %v1607 = vmul.f32 %v1604, 1.442695
        %v1608 = vpow.pop %v1607
        %v1609 = vsel %vm1163, %v1606, 0.0
        %1610 = vadd.xlane.f32.xlu0 %v1609
        %v1611 = vpop.xlane.xlu0 %1610
        %v1612 = vsel %vm1163, %v1608, 0.0
        %1613 = vadd.xlane.f32.xlu0 %v1612
        %v1614 = vpop.xlane.xlu0 %1613
        %v1615 = vrcp.pop %v1611
        %v1616 = vrcp.pop %v1614
        %v1617 = vmul.f32 %v1606, %v1615
        %v1618 = vmul.f32 %v1608, %v1616
        %s1619 = scalar_lea.vmem %s687, 16 [#allocation4]
        %1620 = vst.msk [vmem:[%s1619] sm:$0xff] %vm1163, %v1617
        %1621 = vst.msk [vmem:[%s1619 + $0x8] sm:$0xff] %vm1163, %v1618
        %v1623 = vsel %vm1163, %v1617, 0
        %v1626 = vsel %vm1163, %v1618, 0
        %1628 = vmatprep.subr.mxu0 0.0
        %1629 = vmatpush1.msra.mxu0 %v1502
        %1630 = vmatprep.subr.mxu0 0.0
        %1631 = vmatpush1.msra.mxu0 %v1507
        %1632 = vmatprep.subr.mxu0 0.0
        %1633 = vmatpush1.msra.mxu0 0.0
        %1634 = vmatprep.subr.mxu0 0.0
        %1635 = vmatpush1.msra.mxu0 0.0
        %1636 = vmatprep.subr.mxu0 0.0
        %1637 = vmatpush1.msra.mxu0 0.0
        %1638 = vmatprep.subr.mxu0 0.0
        %1639 = vmatpush1.msra.mxu0 0.0
        %1640 = vmatprep.subr.mxu0 0.0
        %1641 = vmatpush1.msra.mxu0 0.0
        %1642 = vmatprep.subr.mxu0 0.0
        %1643 = vmatpush1.msra.mxu0 0.0
        %1644 = vmatprep.subr.mxu0 0.0
        %1645 = vmatpush1.msra.mxu0 0.0
        %1646 = vmatprep.subr.mxu0 0.0
        %1647 = vmatpush1.msra.mxu0 0.0
        %1648 = vmatprep.subr.mxu0 0.0
        %1649 = vmatpush1.msra.mxu0 0.0
        %1650 = vmatprep.subr.mxu0 0.0
        %1651 = vmatpush1.msra.mxu0 0.0
        %1652 = vmatprep.subr.mxu0 0.0
        %1653 = vmatpush1.msra.mxu0 0.0
        %1654 = vmatprep.subr.mxu0 0.0
        %1655 = vmatpush1.msra.mxu0 0.0
        %1656 = vmatprep.subr.mxu0 0.0
        %1657 = vmatpush1.msra.mxu0 0.0
        %1658 = vmatprep.subr.mxu0 0.0
        %1659 = vmatpush1.msra.mxu0 0.0
        %1660 = vmatprep.subr.mxu0 0.0
        %1661 = vmatpush1.msra.mxu0 0.0
        %1662 = vmatprep.subr.mxu0 0.0
        %1663 = vmatpush1.msra.mxu0 0.0
        %1664 = vmatprep.subr.mxu0 0.0
        %1665 = vmatpush1.msra.mxu0 0.0
        %1666 = vmatprep.subr.mxu0 0.0
        %1667 = vmatpush1.msra.mxu0 0.0
        %1668 = vmatprep.subr.mxu0 0.0
        %1669 = vmatpush1.msra.mxu0 0.0
        %1670 = vmatprep.subr.mxu0 0.0
        %1671 = vmatpush1.msra.mxu0 0.0
        %1672 = vmatprep.subr.mxu0 0.0
        %1673 = vmatpush1.msra.mxu0 0.0
        %1674 = vmatprep.subr.mxu0 0.0
        %1675 = vmatpush1.msra.mxu0 0.0
        %1676 = vmatprep.subr.mxu0 0.0
        %1677 = vmatpush1.msra.mxu0 0.0
        %1678 = vmatprep.subr.mxu0 0.0
        %1679 = vmatpush1.msra.mxu0 0.0
        %1680 = vmatprep.subr.mxu0 0.0
        %1681 = vmatpush1.msra.mxu0 0.0
        %1682 = vmatprep.subr.mxu0 0.0
        %1683 = vmatpush1.msra.mxu0 0.0
        %1684 = vmatprep.subr.mxu0 0.0
        %1685 = vmatpush1.msra.mxu0 0.0
        %1686 = vmatprep.subr.mxu0 0.0
        %1687 = vmatpush1.msra.mxu0 0.0
        %1688 = vmatprep.subr.mxu0 0.0
        %1689 = vmatpush1.msra.mxu0 0.0
        %1690 = vmatprep.subr.mxu0 0.0
        %1691 = vmatpush1.msra.mxu0 0.0
        %1692 = vmatprep.mubr.f32.mxu0 0.0
        %1693 = vmatmul.mubr.f32.gmra.mrb[0].mxu0 %v1623
        %v1694 = vpop.f32.mrb[0].mxu0
        %v1695 = vadd.f32 0.0, %v1694
        %v1696 = vpop.f32.mrb[0].mxu0
        %1697 = vmatprep.mubr.f32.mxu0 0.0
        %1698 = vmatmul.mubr.f32.gmra.mrb[0].mxu0 %v1626
        %v1699 = vpop.f32.mrb[0].mxu0
        %v1700 = vadd.f32 0.0, %v1699
        %v1701 = vpop.f32.mrb[0].mxu0
        %1702 = vdwg.mxu0
        %s1703 = scalar_lea.vmem %s6, 8
        %v1704 = vld [vmem:[%s1703] sm:$0xff]
        %v1706 = vsel %vm1075, %v1695, 0
        %v1709 = vsel %vm1075, %v1700, 0
        %1711 = vmatprep.subr.mxu0 0.0
        %1712 = vmatpush1.msra.mxu0 %v1704
        %1713 = vmatprep.subr.mxu0 0.0
        %1714 = vmatpush1.msra.mxu0 0.0
        %1715 = vmatprep.subr.mxu0 0.0
        %1716 = vmatpush1.msra.mxu0 0.0
        %1717 = vmatprep.subr.mxu0 0.0
        %1718 = vmatpush1.msra.mxu0 0.0
        %1719 = vmatprep.subr.mxu0 0.0
        %1720 = vmatpush1.msra.mxu0 0.0
        %1721 = vmatprep.subr.mxu0 0.0
        %1722 = vmatpush1.msra.mxu0 0.0
        %1723 = vmatprep.subr.mxu0 0.0
        %1724 = vmatpush1.msra.mxu0 0.0
        %1725 = vmatprep.subr.mxu0 0.0
        %1726 = vmatpush1.msra.mxu0 0.0
        %1727 = vmatprep.subr.mxu0 0.0
        %1728 = vmatpush1.msra.mxu0 0.0
        %1729 = vmatprep.subr.mxu0 0.0
        %1730 = vmatpush1.msra.mxu0 0.0
        %1731 = vmatprep.subr.mxu0 0.0
        %1732 = vmatpush1.msra.mxu0 0.0
        %1733 = vmatprep.subr.mxu0 0.0
        %1734 = vmatpush1.msra.mxu0 0.0
        %1735 = vmatprep.subr.mxu0 0.0
        %1736 = vmatpush1.msra.mxu0 0.0
        %1737 = vmatprep.subr.mxu0 0.0
        %1738 = vmatpush1.msra.mxu0 0.0
        %1739 = vmatprep.subr.mxu0 0.0
        %1740 = vmatpush1.msra.mxu0 0.0
        %1741 = vmatprep.subr.mxu0 0.0
        %1742 = vmatpush1.msra.mxu0 0.0
        %1743 = vmatprep.subr.mxu0 0.0
        %1744 = vmatpush1.msra.mxu0 0.0
        %1745 = vmatprep.subr.mxu0 0.0
        %1746 = vmatpush1.msra.mxu0 0.0
        %1747 = vmatprep.subr.mxu0 0.0
        %1748 = vmatpush1.msra.mxu0 0.0
        %1749 = vmatprep.subr.mxu0 0.0
        %1750 = vmatpush1.msra.mxu0 0.0
        %1751 = vmatprep.subr.mxu0 0.0
        %1752 = vmatpush1.msra.mxu0 0.0
        %1753 = vmatprep.subr.mxu0 0.0
        %1754 = vmatpush1.msra.mxu0 0.0
        %1755 = vmatprep.subr.mxu0 0.0
        %1756 = vmatpush1.msra.mxu0 0.0
        %1757 = vmatprep.subr.mxu0 0.0
        %1758 = vmatpush1.msra.mxu0 0.0
        %1759 = vmatprep.subr.mxu0 0.0
        %1760 = vmatpush1.msra.mxu0 0.0
        %1761 = vmatprep.subr.mxu0 0.0
        %1762 = vmatpush1.msra.mxu0 0.0
        %1763 = vmatprep.subr.mxu0 0.0
        %1764 = vmatpush1.msra.mxu0 0.0
        %1765 = vmatprep.subr.mxu0 0.0
        %1766 = vmatpush1.msra.mxu0 0.0
        %1767 = vmatprep.subr.mxu0 0.0
        %1768 = vmatpush1.msra.mxu0 0.0
        %1769 = vmatprep.subr.mxu0 0.0
        %1770 = vmatpush1.msra.mxu0 0.0
        %1771 = vmatprep.subr.mxu0 0.0
        %1772 = vmatpush1.msra.mxu0 0.0
        %1773 = vmatprep.subr.mxu0 0.0
        %1774 = vmatpush1.msra.mxu0 0.0
        %1775 = vmatprep.mubr.f32.mxu0 0.0
        %1776 = vmatmul.mubr.f32.gmra.mrb[0].mxu0 %v1706
        %v1777 = vpop.f32.mrb[0].mxu0
        %v1778 = vadd.f32 0.0, %v1777
        %v1779 = vpop.f32.mrb[0].mxu0
        %1780 = vmatprep.mubr.f32.mxu0 0.0
        %1781 = vmatmul.mubr.f32.gmra.mrb[0].mxu0 %v1709
        %v1782 = vpop.f32.mrb[0].mxu0
        %v1783 = vadd.f32 0.0, %v1782
        %v1784 = vpop.f32.mrb[0].mxu0
        %1785 = vdwg.mxu0
        %v1787 = vsel %vm1075, %v1261, 0
        %v1790 = vsel %vm1075, %v1266, 0
        %1792 = vmatprep.subr.mxu0 0.0
        %1793 = vmatpush1.msra.mxu0 %v1269
        %1794 = vmatprep.subr.mxu0 0.0
        %1795 = vmatpush1.msra.mxu0 0.0
        %1796 = vmatprep.subr.mxu0 0.0
        %1797 = vmatpush1.msra.mxu0 0.0
        %1798 = vmatprep.subr.mxu0 0.0
        %1799 = vmatpush1.msra.mxu0 0.0
        %1800 = vmatprep.subr.mxu0 0.0
        %1801 = vmatpush1.msra.mxu0 0.0
        %1802 = vmatprep.subr.mxu0 0.0
        %1803 = vmatpush1.msra.mxu0 0.0
        %1804 = vmatprep.subr.mxu0 0.0
        %1805 = vmatpush1.msra.mxu0 0.0
        %1806 = vmatprep.subr.mxu0 0.0
        %1807 = vmatpush1.msra.mxu0 0.0
        %1808 = vmatprep.subr.mxu0 0.0
        %1809 = vmatpush1.msra.mxu0 0.0
        %1810 = vmatprep.subr.mxu0 0.0
        %1811 = vmatpush1.msra.mxu0 0.0
        %1812 = vmatprep.subr.mxu0 0.0
        %1813 = vmatpush1.msra.mxu0 0.0
        %1814 = vmatprep.subr.mxu0 0.0
        %1815 = vmatpush1.msra.mxu0 0.0
        %1816 = vmatprep.subr.mxu0 0.0
        %1817 = vmatpush1.msra.mxu0 0.0
        %1818 = vmatprep.subr.mxu0 0.0
        %1819 = vmatpush1.msra.mxu0 0.0
        %1820 = vmatprep.subr.mxu0 0.0
        %1821 = vmatpush1.msra.mxu0 0.0
        %1822 = vmatprep.subr.mxu0 0.0
        %1823 = vmatpush1.msra.mxu0 0.0
        %1824 = vmatprep.subr.mxu0 0.0
        %1825 = vmatpush1.msra.mxu0 0.0
        %1826 = vmatprep.subr.mxu0 0.0
        %1827 = vmatpush1.msra.mxu0 0.0
        %1828 = vmatprep.subr.mxu0 0.0
        %1829 = vmatpush1.msra.mxu0 0.0
        %1830 = vmatprep.subr.mxu0 0.0
        %1831 = vmatpush1.msra.mxu0 0.0
        %1832 = vmatprep.subr.mxu0 0.0
        %1833 = vmatpush1.msra.mxu0 0.0
        %1834 = vmatprep.subr.mxu0 0.0
        %1835 = vmatpush1.msra.mxu0 0.0
        %1836 = vmatprep.subr.mxu0 0.0
        %1837 = vmatpush1.msra.mxu0 0.0
        %1838 = vmatprep.subr.mxu0 0.0
        %1839 = vmatpush1.msra.mxu0 0.0
        %1840 = vmatprep.subr.mxu0 0.0
        %1841 = vmatpush1.msra.mxu0 0.0
        %1842 = vmatprep.subr.mxu0 0.0
        %1843 = vmatpush1.msra.mxu0 0.0
        %1844 = vmatprep.subr.mxu0 0.0
        %1845 = vmatpush1.msra.mxu0 0.0
        %1846 = vmatprep.subr.mxu0 0.0
        %1847 = vmatpush1.msra.mxu0 0.0
        %1848 = vmatprep.subr.mxu0 0.0
        %1849 = vmatpush1.msra.mxu0 0.0
        %1850 = vmatprep.subr.mxu0 0.0
        %1851 = vmatpush1.msra.mxu0 0.0
        %1852 = vmatprep.subr.mxu0 0.0
        %1853 = vmatpush1.msra.mxu0 0.0
        %1854 = vmatprep.subr.mxu0 0.0
        %1855 = vmatpush1.msra.mxu0 0.0
        %1856 = vmatprep.mubr.f32.mxu0 0.0
        %1857 = vmatmul.mubr.f32.gmra.mrb[0].mxu0 %v1787
        %v1858 = vpop.f32.mrb[0].mxu0
        %v1859 = vadd.f32 %v1778, %v1858
        %v1860 = vpop.f32.mrb[0].mxu0
        %1861 = vmatprep.mubr.f32.mxu0 0.0
        %1862 = vmatmul.mubr.f32.gmra.mrb[0].mxu0 %v1790
        %v1863 = vpop.f32.mrb[0].mxu0
        %v1864 = vadd.f32 %v1783, %v1863
        %v1865 = vpop.f32.mrb[0].mxu0
        %1866 = vdwg.mxu0
        %s1867 = scalar_lea.vmem %s3, 64
        %v1868 = vld [vmem:[%s1867] sm:$0xff]
        %v1869 = vld [vmem:[%s1867 + $0x8] sm:$0xff]
        %v1870 = vld [vmem:[%s1867 + $0x10] sm:$0xff]
        %v1871 = vld [vmem:[%s1867 + $0x18] sm:$0xff]
        %1872 = vmatprep.subr.mxu0 0.0
        %1873 = vmatpush1.msra.mxu0 %v1868
        %1874 = vmatprep.subr.mxu0 0.0
        %1875 = vmatpush1.msra.mxu0 %v1869
        %1876 = vmatprep.subr.mxu0 0.0
        %1877 = vmatpush1.msra.mxu0 %v1870
        %1878 = vmatprep.subr.mxu0 0.0
        %1879 = vmatpush1.msra.mxu0 %v1871
        %1880 = vmatprep.subr.mxu0 0.0
        %1881 = vmatpush1.msra.mxu0 0.0
        %1882 = vmatprep.subr.mxu0 0.0
        %1883 = vmatpush1.msra.mxu0 0.0
        %1884 = vmatprep.subr.mxu0 0.0
        %1885 = vmatpush1.msra.mxu0 0.0
        %1886 = vmatprep.subr.mxu0 0.0
        %1887 = vmatpush1.msra.mxu0 0.0
        %1888 = vmatprep.subr.mxu0 0.0
        %1889 = vmatpush1.msra.mxu0 0.0
        %1890 = vmatprep.subr.mxu0 0.0
        %1891 = vmatpush1.msra.mxu0 0.0
        %1892 = vmatprep.subr.mxu0 0.0
        %1893 = vmatpush1.msra.mxu0 0.0
        %1894 = vmatprep.subr.mxu0 0.0
        %1895 = vmatpush1.msra.mxu0 0.0
        %1896 = vmatprep.subr.mxu0 0.0
        %1897 = vmatpush1.msra.mxu0 0.0
        %1898 = vmatprep.subr.mxu0 0.0
        %1899 = vmatpush1.msra.mxu0 0.0
        %1900 = vmatprep.subr.mxu0 0.0
        %1901 = vmatpush1.msra.mxu0 0.0
        %1902 = vmatprep.subr.mxu0 0.0
        %1903 = vmatpush1.msra.mxu0 0.0
        %1904 = vmatprep.subr.mxu0 0.0
        %1905 = vmatpush1.msra.mxu0 0.0
        %1906 = vmatprep.subr.mxu0 0.0
        %1907 = vmatpush1.msra.mxu0 0.0
        %1908 = vmatprep.subr.mxu0 0.0
        %1909 = vmatpush1.msra.mxu0 0.0
        %1910 = vmatprep.subr.mxu0 0.0
        %1911 = vmatpush1.msra.mxu0 0.0
        %1912 = vmatprep.subr.mxu0 0.0
        %1913 = vmatpush1.msra.mxu0 0.0
        %1914 = vmatprep.subr.mxu0 0.0
        %1915 = vmatpush1.msra.mxu0 0.0
        %1916 = vmatprep.subr.mxu0 0.0
        %1917 = vmatpush1.msra.mxu0 0.0
        %1918 = vmatprep.subr.mxu0 0.0
        %1919 = vmatpush1.msra.mxu0 0.0
        %1920 = vmatprep.subr.mxu0 0.0
        %1921 = vmatpush1.msra.mxu0 0.0
        %1922 = vmatprep.subr.mxu0 0.0
        %1923 = vmatpush1.msra.mxu0 0.0
        %1924 = vmatprep.subr.mxu0 0.0
        %1925 = vmatpush1.msra.mxu0 0.0
        %1926 = vmatprep.subr.mxu0 0.0
        %1927 = vmatpush1.msra.mxu0 0.0
        %1928 = vmatprep.subr.mxu0 0.0
        %1929 = vmatpush1.msra.mxu0 0.0
        %1930 = vmatprep.subr.mxu0 0.0
        %1931 = vmatpush1.msra.mxu0 0.0
        %1932 = vmatprep.subr.mxu0 0.0
        %1933 = vmatpush1.msra.mxu0 0.0
        %1934 = vmatprep.subr.mxu0 0.0
        %1935 = vmatpush1.msra.mxu0 0.0
        %1936 = vmatprep.mubr.f32.mxu0 0.0
        %1937 = vmatmul.mubr.f32.gmra.mrb[0].mxu0 %v837
        %v1938 = vpop.f32.mrb[0].mxu0
        %v1939 = vadd.f32 0.0, %v1938
        %v1940 = vpop.f32.mrb[0].mxu0
        %1941 = vmatprep.mubr.f32.mxu0 0.0
        %1942 = vmatmul.mubr.f32.gmra.mrb[0].mxu0 %v840
        %v1943 = vpop.f32.mrb[0].mxu0
        %v1944 = vadd.f32 0.0, %v1943
        %v1945 = vpop.f32.mrb[0].mxu0
        %1946 = vdwg.mxu0
        %s1947 = scalar_lea.vmem %s4, 64
        %v1948 = vld [vmem:[%s1947] sm:$0xff]
        %v1949 = vld [vmem:[%s1947 + $0x8] sm:$0xff]
        %v1950 = vld [vmem:[%s1947 + $0x10] sm:$0xff]
        %v1951 = vld [vmem:[%s1947 + $0x18] sm:$0xff]
        %1952 = vmatprep.subr.mxu0 0.0
        %1953 = vmatpush1.msra.mxu0 %v1948
        %1954 = vmatprep.subr.mxu0 0.0
        %1955 = vmatpush1.msra.mxu0 %v1949
        %1956 = vmatprep.subr.mxu0 0.0
        %1957 = vmatpush1.msra.mxu0 %v1950
        %1958 = vmatprep.subr.mxu0 0.0
        %1959 = vmatpush1.msra.mxu0 %v1951
        %1960 = vmatprep.subr.mxu0 0.0
        %1961 = vmatpush1.msra.mxu0 0.0
        %1962 = vmatprep.subr.mxu0 0.0
        %1963 = vmatpush1.msra.mxu0 0.0
        %1964 = vmatprep.subr.mxu0 0.0
        %1965 = vmatpush1.msra.mxu0 0.0
        %1966 = vmatprep.subr.mxu0 0.0
        %1967 = vmatpush1.msra.mxu0 0.0
        %1968 = vmatprep.subr.mxu0 0.0
        %1969 = vmatpush1.msra.mxu0 0.0
        %1970 = vmatprep.subr.mxu0 0.0
        %1971 = vmatpush1.msra.mxu0 0.0
        %1972 = vmatprep.subr.mxu0 0.0
        %1973 = vmatpush1.msra.mxu0 0.0
        %1974 = vmatprep.subr.mxu0 0.0
        %1975 = vmatpush1.msra.mxu0 0.0
        %1976 = vmatprep.subr.mxu0 0.0
        %1977 = vmatpush1.msra.mxu0 0.0
        %1978 = vmatprep.subr.mxu0 0.0
        %1979 = vmatpush1.msra.mxu0 0.0
        %1980 = vmatprep.subr.mxu0 0.0
        %1981 = vmatpush1.msra.mxu0 0.0
        %1982 = vmatprep.subr.mxu0 0.0
        %1983 = vmatpush1.msra.mxu0 0.0
        %1984 = vmatprep.subr.mxu0 0.0
        %1985 = vmatpush1.msra.mxu0 0.0
        %1986 = vmatprep.subr.mxu0 0.0
        %1987 = vmatpush1.msra.mxu0 0.0
        %1988 = vmatprep.subr.mxu0 0.0
        %1989 = vmatpush1.msra.mxu0 0.0
        %1990 = vmatprep.subr.mxu0 0.0
        %1991 = vmatpush1.msra.mxu0 0.0
        %1992 = vmatprep.subr.mxu0 0.0
        %1993 = vmatpush1.msra.mxu0 0.0
        %1994 = vmatprep.subr.mxu0 0.0
        %1995 = vmatpush1.msra.mxu0 0.0
        %1996 = vmatprep.subr.mxu0 0.0
        %1997 = vmatpush1.msra.mxu0 0.0
        %1998 = vmatprep.subr.mxu0 0.0
        %1999 = vmatpush1.msra.mxu0 0.0
        %2000 = vmatprep.subr.mxu0 0.0
        %2001 = vmatpush1.msra.mxu0 0.0
        %2002 = vmatprep.subr.mxu0 0.0
        %2003 = vmatpush1.msra.mxu0 0.0
        %2004 = vmatprep.subr.mxu0 0.0
        %2005 = vmatpush1.msra.mxu0 0.0
        %2006 = vmatprep.subr.mxu0 0.0
        %2007 = vmatpush1.msra.mxu0 0.0
        %2008 = vmatprep.subr.mxu0 0.0
        %2009 = vmatpush1.msra.mxu0 0.0
        %2010 = vmatprep.subr.mxu0 0.0
        %2011 = vmatpush1.msra.mxu0 0.0
        %2012 = vmatprep.subr.mxu0 0.0
        %2013 = vmatpush1.msra.mxu0 0.0
        %2014 = vmatprep.subr.mxu0 0.0
        %2015 = vmatpush1.msra.mxu0 0.0
        %2016 = vmatprep.mubr.f32.mxu0 0.0
        %2017 = vmatmul.mubr.f32.gmra.mrb[0].mxu0 %v837
        %v2018 = vpop.f32.mrb[0].mxu0
        %v2019 = vadd.f32 0.0, %v2018
        %v2020 = vpop.f32.mrb[0].mxu0
        %2021 = vmatprep.mubr.f32.mxu0 0.0
        %2022 = vmatmul.mubr.f32.gmra.mrb[0].mxu0 %v840
        %v2023 = vpop.f32.mrb[0].mxu0
        %v2024 = vadd.f32 0.0, %v2023
        %v2025 = vpop.f32.mrb[0].mxu0
        %2026 = vdwg.mxu0
        %s2027 = scalar_lea.vmem %s5, 64
        %v2028 = vld [vmem:[%s2027] sm:$0xff]
        %v2029 = vld [vmem:[%s2027 + $0x8] sm:$0xff]
        %v2030 = vld [vmem:[%s2027 + $0x10] sm:$0xff]
        %v2031 = vld [vmem:[%s2027 + $0x18] sm:$0xff]
        %2032 = vmatprep.subr.mxu0 0.0
        %2033 = vmatpush1.msra.mxu0 %v2028
        %2034 = vmatprep.subr.mxu0 0.0
        %2035 = vmatpush1.msra.mxu0 %v2029
        %2036 = vmatprep.subr.mxu0 0.0
        %2037 = vmatpush1.msra.mxu0 %v2030
        %2038 = vmatprep.subr.mxu0 0.0
        %2039 = vmatpush1.msra.mxu0 %v2031
        %2040 = vmatprep.subr.mxu0 0.0
        %2041 = vmatpush1.msra.mxu0 0.0
        %2042 = vmatprep.subr.mxu0 0.0
        %2043 = vmatpush1.msra.mxu0 0.0
        %2044 = vmatprep.subr.mxu0 0.0
        %2045 = vmatpush1.msra.mxu0 0.0
        %2046 = vmatprep.subr.mxu0 0.0
        %2047 = vmatpush1.msra.mxu0 0.0
        %2048 = vmatprep.subr.mxu0 0.0
        %2049 = vmatpush1.msra.mxu0 0.0
        %2050 = vmatprep.subr.mxu0 0.0
        %2051 = vmatpush1.msra.mxu0 0.0
        %2052 = vmatprep.subr.mxu0 0.0
        %2053 = vmatpush1.msra.mxu0 0.0
        %2054 = vmatprep.subr.mxu0 0.0
        %2055 = vmatpush1.msra.mxu0 0.0
        %2056 = vmatprep.subr.mxu0 0.0
        %2057 = vmatpush1.msra.mxu0 0.0
        %2058 = vmatprep.subr.mxu0 0.0
        %2059 = vmatpush1.msra.mxu0 0.0
        %2060 = vmatprep.subr.mxu0 0.0
        %2061 = vmatpush1.msra.mxu0 0.0
        %2062 = vmatprep.subr.mxu0 0.0
        %2063 = vmatpush1.msra.mxu0 0.0
        %2064 = vmatprep.subr.mxu0 0.0
        %2065 = vmatpush1.msra.mxu0 0.0
        %2066 = vmatprep.subr.mxu0 0.0
        %2067 = vmatpush1.msra.mxu0 0.0
        %2068 = vmatprep.subr.mxu0 0.0
        %2069 = vmatpush1.msra.mxu0 0.0
        %2070 = vmatprep.subr.mxu0 0.0
        %2071 = vmatpush1.msra.mxu0 0.0
        %2072 = vmatprep.subr.mxu0 0.0
        %2073 = vmatpush1.msra.mxu0 0.0
        %2074 = vmatprep.subr.mxu0 0.0
        %2075 = vmatpush1.msra.mxu0 0.0
        %2076 = vmatprep.subr.mxu0 0.0
        %2077 = vmatpush1.msra.mxu0 0.0
        %2078 = vmatprep.subr.mxu0 0.0
        %2079 = vmatpush1.msra.mxu0 0.0
        %2080 = vmatprep.subr.mxu0 0.0
        %2081 = vmatpush1.msra.mxu0 0.0
        %2082 = vmatprep.subr.mxu0 0.0
        %2083 = vmatpush1.msra.mxu0 0.0
        %2084 = vmatprep.subr.mxu0 0.0
        %2085 = vmatpush1.msra.mxu0 0.0
        %2086 = vmatprep.subr.mxu0 0.0
        %2087 = vmatpush1.msra.mxu0 0.0
        %2088 = vmatprep.subr.mxu0 0.0
        %2089 = vmatpush1.msra.mxu0 0.0
        %2090 = vmatprep.subr.mxu0 0.0
        %2091 = vmatpush1.msra.mxu0 0.0
        %2092 = vmatprep.subr.mxu0 0.0
        %2093 = vmatpush1.msra.mxu0 0.0
        %2094 = vmatprep.subr.mxu0 0.0
        %2095 = vmatpush1.msra.mxu0 0.0
        %2096 = vmatprep.mubr.f32.mxu0 0.0
        %2097 = vmatmul.mubr.f32.gmra.mrb[0].mxu0 %v837
        %v2098 = vpop.f32.mrb[0].mxu0
        %v2099 = vadd.f32 0.0, %v2098
        %v2100 = vpop.f32.mrb[0].mxu0
        %2101 = vmatprep.mubr.f32.mxu0 0.0
        %2102 = vmatmul.mubr.f32.gmra.mrb[0].mxu0 %v840
        %v2103 = vpop.f32.mrb[0].mxu0
        %v2104 = vadd.f32 0.0, %v2103
        %v2105 = vpop.f32.mrb[0].mxu0
        %2106 = vdwg.mxu0
        %v2108 = vsel %vm1075, %v1939, 0
        %v2111 = vsel %vm1075, %v1944, 0
        %v2114 = vsel %vm1075, %v2019, 0
        %v2117 = vsel %vm1075, %v2024, 0
        %2119 = vmatprep.subr.mxu0 0.0
        %2120 = vmatpush1.xpose.msra.mxu0 %v2114
        %2121 = vmatprep.subr.mxu0 0.0
        %2122 = vmatpush1.xpose.msra.mxu0 %v2117
        %2123 = vmatprep.subr.mxu0 0.0
        %2124 = vmatpush1.xpose.msra.mxu0 0.0
        %2125 = vmatprep.subr.mxu0 0.0
        %2126 = vmatpush1.xpose.msra.mxu0 0.0
        %2127 = vmatprep.subr.mxu0 0.0
        %2128 = vmatpush1.xpose.msra.mxu0 0.0
        %2129 = vmatprep.subr.mxu0 0.0
        %2130 = vmatpush1.xpose.msra.mxu0 0.0
        %2131 = vmatprep.subr.mxu0 0.0
        %2132 = vmatpush1.xpose.msra.mxu0 0.0
        %2133 = vmatprep.subr.mxu0 0.0
        %2134 = vmatpush1.xpose.msra.mxu0 0.0
        %2135 = vmatprep.subr.mxu0 0.0
        %2136 = vmatpush1.xpose.msra.mxu0 0.0
        %2137 = vmatprep.subr.mxu0 0.0
        %2138 = vmatpush1.xpose.msra.mxu0 0.0
        %2139 = vmatprep.subr.mxu0 0.0
        %2140 = vmatpush1.xpose.msra.mxu0 0.0
        %2141 = vmatprep.subr.mxu0 0.0
        %2142 = vmatpush1.xpose.msra.mxu0 0.0
        %2143 = vmatprep.subr.mxu0 0.0
        %2144 = vmatpush1.xpose.msra.mxu0 0.0
        %2145 = vmatprep.subr.mxu0 0.0
        %2146 = vmatpush1.xpose.msra.mxu0 0.0
        %2147 = vmatprep.subr.mxu0 0.0
        %2148 = vmatpush1.xpose.msra.mxu0 0.0
        %2149 = vmatprep.subr.mxu0 0.0
        %2150 = vmatpush1.xpose.msra.mxu0 0.0
        %2151 = vmatprep.subr.mxu0 0.0
        %2152 = vmatpush1.xpose.msra.mxu0 0.0
        %2153 = vmatprep.subr.mxu0 0.0
        %2154 = vmatpush1.xpose.msra.mxu0 0.0
        %2155 = vmatprep.subr.mxu0 0.0
        %2156 = vmatpush1.xpose.msra.mxu0 0.0
        %2157 = vmatprep.subr.mxu0 0.0
        %2158 = vmatpush1.xpose.msra.mxu0 0.0
        %2159 = vmatprep.subr.mxu0 0.0
        %2160 = vmatpush1.xpose.msra.mxu0 0.0
        %2161 = vmatprep.subr.mxu0 0.0
        %2162 = vmatpush1.xpose.msra.mxu0 0.0
        %2163 = vmatprep.subr.mxu0 0.0
        %2164 = vmatpush1.xpose.msra.mxu0 0.0
        %2165 = vmatprep.subr.mxu0 0.0
        %2166 = vmatpush1.xpose.msra.mxu0 0.0
        %2167 = vmatprep.subr.mxu0 0.0
        %2168 = vmatpush1.xpose.msra.mxu0 0.0
        %2169 = vmatprep.subr.mxu0 0.0
        %2170 = vmatpush1.xpose.msra.mxu0 0.0
        %2171 = vmatprep.subr.mxu0 0.0
        %2172 = vmatpush1.xpose.msra.mxu0 0.0
        %2173 = vmatprep.subr.mxu0 0.0
        %2174 = vmatpush1.xpose.msra.mxu0 0.0
        %2175 = vmatprep.subr.mxu0 0.0
        %2176 = vmatpush1.xpose.msra.mxu0 0.0
        %2177 = vmatprep.subr.mxu0 0.0
        %2178 = vmatpush1.xpose.msra.mxu0 0.0
        %2179 = vmatprep.subr.mxu0 0.0
        %2180 = vmatpush1.xpose.msra.mxu0 0.0
        %2181 = vmatprep.subr.mxu0 0.0
        %2182 = vmatpush1.xpose.msra.mxu0 0.0
        %2183 = vmatprep.mubr.f32.mxu0 0.0
        %2184 = vmatmul.mubr.f32.gmra.mrb[0].mxu0 %v2108
        %v2185 = vpop.f32.mrb[0].mxu0
        %v2186 = vadd.f32 %v789, %v2185
        %v2187 = vpop.f32.mrb[0].mxu0
        %2188 = vmatprep.mubr.f32.mxu0 0.0
        %2189 = vmatmul.mubr.f32.gmra.mrb[0].mxu0 %v2111
        %v2190 = vpop.f32.mrb[0].mxu0
        %v2191 = vadd.f32 %v789, %v2190
        %v2192 = vpop.f32.mrb[0].mxu0
        %2193 = vdwg.mxu0
        %v2194 = vsel %vm1163, %v2186, -inf
        %2195 = vmax.xlane.f32.xlu0 %v2194
        %v2196 = vpop.xlane.xlu0 %2195
        %v2197 = vsel %vm1163, %v2191, -inf
        %2198 = vmax.xlane.f32.xlu0 %v2197
        %v2199 = vpop.xlane.xlu0 %2198
        %v2200 = vsub.f32 %v2186, %v2196
        %v2201 = vsub.f32 %v2191, %v2199
        %v2202 = vmul.f32 %v2200, 1.442695
        %v2203 = vpow.pop %v2202
        %v2204 = vmul.f32 %v2201, 1.442695
        %v2205 = vpow.pop %v2204
        %v2206 = vsel %vm1163, %v2203, 0.0
        %2207 = vadd.xlane.f32.xlu0 %v2206
        %v2208 = vpop.xlane.xlu0 %2207
        %v2209 = vsel %vm1163, %v2205, 0.0
        %2210 = vadd.xlane.f32.xlu0 %v2209
        %v2211 = vpop.xlane.xlu0 %2210
        %v2212 = vrcp.pop %v2208
        %v2213 = vrcp.pop %v2211
        %v2214 = vmul.f32 %v2203, %v2212
        %v2215 = vmul.f32 %v2205, %v2213
        %s2216 = scalar_lea.vmem %s687, 32 [#allocation4]
        %2217 = vst.msk [vmem:[%s2216] sm:$0xff] %vm1163, %v2214
        %2218 = vst.msk [vmem:[%s2216 + $0x8] sm:$0xff] %vm1163, %v2215
        %v2220 = vsel %vm1163, %v2214, 0
        %v2223 = vsel %vm1163, %v2215, 0
        %2225 = vmatprep.subr.mxu0 0.0
        %2226 = vmatpush1.msra.mxu0 %v2099
        %2227 = vmatprep.subr.mxu0 0.0
        %2228 = vmatpush1.msra.mxu0 %v2104
        %2229 = vmatprep.subr.mxu0 0.0
        %2230 = vmatpush1.msra.mxu0 0.0
        %2231 = vmatprep.subr.mxu0 0.0
        %2232 = vmatpush1.msra.mxu0 0.0
        %2233 = vmatprep.subr.mxu0 0.0
        %2234 = vmatpush1.msra.mxu0 0.0
        %2235 = vmatprep.subr.mxu0 0.0
        %2236 = vmatpush1.msra.mxu0 0.0
        %2237 = vmatprep.subr.mxu0 0.0
        %2238 = vmatpush1.msra.mxu0 0.0
        %2239 = vmatprep.subr.mxu0 0.0
        %2240 = vmatpush1.msra.mxu0 0.0
        %2241 = vmatprep.subr.mxu0 0.0
        %2242 = vmatpush1.msra.mxu0 0.0
        %2243 = vmatprep.subr.mxu0 0.0
        %2244 = vmatpush1.msra.mxu0 0.0
        %2245 = vmatprep.subr.mxu0 0.0
        %2246 = vmatpush1.msra.mxu0 0.0
        %2247 = vmatprep.subr.mxu0 0.0
        %2248 = vmatpush1.msra.mxu0 0.0
        %2249 = vmatprep.subr.mxu0 0.0
        %2250 = vmatpush1.msra.mxu0 0.0
        %2251 = vmatprep.subr.mxu0 0.0
        %2252 = vmatpush1.msra.mxu0 0.0
        %2253 = vmatprep.subr.mxu0 0.0
        %2254 = vmatpush1.msra.mxu0 0.0
        %2255 = vmatprep.subr.mxu0 0.0
        %2256 = vmatpush1.msra.mxu0 0.0
        %2257 = vmatprep.subr.mxu0 0.0
        %2258 = vmatpush1.msra.mxu0 0.0
        %2259 = vmatprep.subr.mxu0 0.0
        %2260 = vmatpush1.msra.mxu0 0.0
        %2261 = vmatprep.subr.mxu0 0.0
        %2262 = vmatpush1.msra.mxu0 0.0
        %2263 = vmatprep.subr.mxu0 0.0
        %2264 = vmatpush1.msra.mxu0 0.0
        %2265 = vmatprep.subr.mxu0 0.0
        %2266 = vmatpush1.msra.mxu0 0.0
        %2267 = vmatprep.subr.mxu0 0.0
        %2268 = vmatpush1.msra.mxu0 0.0
        %2269 = vmatprep.subr.mxu0 0.0
        %2270 = vmatpush1.msra.mxu0 0.0
        %2271 = vmatprep.subr.mxu0 0.0
        %2272 = vmatpush1.msra.mxu0 0.0
        %2273 = vmatprep.subr.mxu0 0.0
        %2274 = vmatpush1.msra.mxu0 0.0
        %2275 = vmatprep.subr.mxu0 0.0
        %2276 = vmatpush1.msra.mxu0 0.0
        %2277 = vmatprep.subr.mxu0 0.0
        %2278 = vmatpush1.msra.mxu0 0.0
        %2279 = vmatprep.subr.mxu0 0.0
        %2280 = vmatpush1.msra.mxu0 0.0
        %2281 = vmatprep.subr.mxu0 0.0
        %2282 = vmatpush1.msra.mxu0 0.0
        %2283 = vmatprep.subr.mxu0 0.0
        %2284 = vmatpush1.msra.mxu0 0.0
        %2285 = vmatprep.subr.mxu0 0.0
        %2286 = vmatpush1.msra.mxu0 0.0
        %2287 = vmatprep.subr.mxu0 0.0
        %2288 = vmatpush1.msra.mxu0 0.0
        %2289 = vmatprep.mubr.f32.mxu0 0.0
        %2290 = vmatmul.mubr.f32.gmra.mrb[0].mxu0 %v2220
        %v2291 = vpop.f32.mrb[0].mxu0
        %v2292 = vadd.f32 0.0, %v2291
        %v2293 = vpop.f32.mrb[0].mxu0
        %2294 = vmatprep.mubr.f32.mxu0 0.0
        %2295 = vmatmul.mubr.f32.gmra.mrb[0].mxu0 %v2223
        %v2296 = vpop.f32.mrb[0].mxu0
        %v2297 = vadd.f32 0.0, %v2296
        %v2298 = vpop.f32.mrb[0].mxu0
        %2299 = vdwg.mxu0
        %s2300 = scalar_lea.vmem %s6, 16
        %v2301 = vld [vmem:[%s2300] sm:$0xff]
        %v2303 = vsel %vm1075, %v2292, 0
        %v2306 = vsel %vm1075, %v2297, 0
        %2308 = vmatprep.subr.mxu0 0.0
        %2309 = vmatpush1.msra.mxu0 %v2301
        %2310 = vmatprep.subr.mxu0 0.0
        %2311 = vmatpush1.msra.mxu0 0.0
        %2312 = vmatprep.subr.mxu0 0.0
        %2313 = vmatpush1.msra.mxu0 0.0
        %2314 = vmatprep.subr.mxu0 0.0
        %2315 = vmatpush1.msra.mxu0 0.0
        %2316 = vmatprep.subr.mxu0 0.0
        %2317 = vmatpush1.msra.mxu0 0.0
        %2318 = vmatprep.subr.mxu0 0.0
        %2319 = vmatpush1.msra.mxu0 0.0
        %2320 = vmatprep.subr.mxu0 0.0
        %2321 = vmatpush1.msra.mxu0 0.0
        %2322 = vmatprep.subr.mxu0 0.0
        %2323 = vmatpush1.msra.mxu0 0.0
        %2324 = vmatprep.subr.mxu0 0.0
        %2325 = vmatpush1.msra.mxu0 0.0
        %2326 = vmatprep.subr.mxu0 0.0
        %2327 = vmatpush1.msra.mxu0 0.0
        %2328 = vmatprep.subr.mxu0 0.0
        %2329 = vmatpush1.msra.mxu0 0.0
        %2330 = vmatprep.subr.mxu0 0.0
        %2331 = vmatpush1.msra.mxu0 0.0
        %2332 = vmatprep.subr.mxu0 0.0
        %2333 = vmatpush1.msra.mxu0 0.0
        %2334 = vmatprep.subr.mxu0 0.0
        %2335 = vmatpush1.msra.mxu0 0.0
        %2336 = vmatprep.subr.mxu0 0.0
        %2337 = vmatpush1.msra.mxu0 0.0
        %2338 = vmatprep.subr.mxu0 0.0
        %2339 = vmatpush1.msra.mxu0 0.0
        %2340 = vmatprep.subr.mxu0 0.0
        %2341 = vmatpush1.msra.mxu0 0.0
        %2342 = vmatprep.subr.mxu0 0.0
        %2343 = vmatpush1.msra.mxu0 0.0
        %2344 = vmatprep.subr.mxu0 0.0
        %2345 = vmatpush1.msra.mxu0 0.0
        %2346 = vmatprep.subr.mxu0 0.0
        %2347 = vmatpush1.msra.mxu0 0.0
        %2348 = vmatprep.subr.mxu0 0.0
        %2349 = vmatpush1.msra.mxu0 0.0
        %2350 = vmatprep.subr.mxu0 0.0
        %2351 = vmatpush1.msra.mxu0 0.0
        %2352 = vmatprep.subr.mxu0 0.0
        %2353 = vmatpush1.msra.mxu0 0.0
        %2354 = vmatprep.subr.mxu0 0.0
        %2355 = vmatpush1.msra.mxu0 0.0
        %2356 = vmatprep.subr.mxu0 0.0
        %2357 = vmatpush1.msra.mxu0 0.0
        %2358 = vmatprep.subr.mxu0 0.0
        %2359 = vmatpush1.msra.mxu0 0.0
        %2360 = vmatprep.subr.mxu0 0.0
        %2361 = vmatpush1.msra.mxu0 0.0
        %2362 = vmatprep.subr.mxu0 0.0
        %2363 = vmatpush1.msra.mxu0 0.0
        %2364 = vmatprep.subr.mxu0 0.0
        %2365 = vmatpush1.msra.mxu0 0.0
        %2366 = vmatprep.subr.mxu0 0.0
        %2367 = vmatpush1.msra.mxu0 0.0
        %2368 = vmatprep.subr.mxu0 0.0
        %2369 = vmatpush1.msra.mxu0 0.0
        %2370 = vmatprep.subr.mxu0 0.0
        %2371 = vmatpush1.msra.mxu0 0.0
        %2372 = vmatprep.mubr.f32.mxu0 0.0
        %2373 = vmatmul.mubr.f32.gmra.mrb[0].mxu0 %v2303
        %v2374 = vpop.f32.mrb[0].mxu0
        %v2375 = vadd.f32 0.0, %v2374
        %v2376 = vpop.f32.mrb[0].mxu0
        %2377 = vmatprep.mubr.f32.mxu0 0.0
        %2378 = vmatmul.mubr.f32.gmra.mrb[0].mxu0 %v2306
        %v2379 = vpop.f32.mrb[0].mxu0
        %v2380 = vadd.f32 0.0, %v2379
        %v2381 = vpop.f32.mrb[0].mxu0
        %2382 = vdwg.mxu0
        %v2383 = vadd.f32 %v1859, %v2375
        %v2384 = vadd.f32 %v1864, %v2380
        %s2385 = scalar_lea.vmem %s3, 96
        %v2386 = vld [vmem:[%s2385] sm:$0xff]
        %v2387 = vld [vmem:[%s2385 + $0x8] sm:$0xff]
        %v2388 = vld [vmem:[%s2385 + $0x10] sm:$0xff]
        %v2389 = vld [vmem:[%s2385 + $0x18] sm:$0xff]
        %2390 = vmatprep.subr.mxu0 0.0
        %2391 = vmatpush1.msra.mxu0 %v2386
        %2392 = vmatprep.subr.mxu0 0.0
        %2393 = vmatpush1.msra.mxu0 %v2387
        %2394 = vmatprep.subr.mxu0 0.0
        %2395 = vmatpush1.msra.mxu0 %v2388
        %2396 = vmatprep.subr.mxu0 0.0
        %2397 = vmatpush1.msra.mxu0 %v2389
        %2398 = vmatprep.subr.mxu0 0.0
        %2399 = vmatpush1.msra.mxu0 0.0
        %2400 = vmatprep.subr.mxu0 0.0
        %2401 = vmatpush1.msra.mxu0 0.0
        %2402 = vmatprep.subr.mxu0 0.0
        %2403 = vmatpush1.msra.mxu0 0.0
        %2404 = vmatprep.subr.mxu0 0.0
        %2405 = vmatpush1.msra.mxu0 0.0
        %2406 = vmatprep.subr.mxu0 0.0
        %2407 = vmatpush1.msra.mxu0 0.0
        %2408 = vmatprep.subr.mxu0 0.0
        %2409 = vmatpush1.msra.mxu0 0.0
        %2410 = vmatprep.subr.mxu0 0.0
        %2411 = vmatpush1.msra.mxu0 0.0
        %2412 = vmatprep.subr.mxu0 0.0
        %2413 = vmatpush1.msra.mxu0 0.0
        %2414 = vmatprep.subr.mxu0 0.0
        %2415 = vmatpush1.msra.mxu0 0.0
        %2416 = vmatprep.subr.mxu0 0.0
        %2417 = vmatpush1.msra.mxu0 0.0
        %2418 = vmatprep.subr.mxu0 0.0
        %2419 = vmatpush1.msra.mxu0 0.0
        %2420 = vmatprep.subr.mxu0 0.0
        %2421 = vmatpush1.msra.mxu0 0.0
        %2422 = vmatprep.subr.mxu0 0.0
        %2423 = vmatpush1.msra.mxu0 0.0
        %2424 = vmatprep.subr.mxu0 0.0
        %2425 = vmatpush1.msra.mxu0 0.0
        %2426 = vmatprep.subr.mxu0 0.0
        %2427 = vmatpush1.msra.mxu0 0.0
        %2428 = vmatprep.subr.mxu0 0.0
        %2429 = vmatpush1.msra.mxu0 0.0
        %2430 = vmatprep.subr.mxu0 0.0
        %2431 = vmatpush1.msra.mxu0 0.0
        %2432 = vmatprep.subr.mxu0 0.0
        %2433 = vmatpush1.msra.mxu0 0.0
        %2434 = vmatprep.subr.mxu0 0.0
        %2435 = vmatpush1.msra.mxu0 0.0
        %2436 = vmatprep.subr.mxu0 0.0
        %2437 = vmatpush1.msra.mxu0 0.0
        %2438 = vmatprep.subr.mxu0 0.0
        %2439 = vmatpush1.msra.mxu0 0.0
        %2440 = vmatprep.subr.mxu0 0.0
        %2441 = vmatpush1.msra.mxu0 0.0
        %2442 = vmatprep.subr.mxu0 0.0
        %2443 = vmatpush1.msra.mxu0 0.0
        %2444 = vmatprep.subr.mxu0 0.0
        %2445 = vmatpush1.msra.mxu0 0.0
        %2446 = vmatprep.subr.mxu0 0.0
        %2447 = vmatpush1.msra.mxu0 0.0
        %2448 = vmatprep.subr.mxu0 0.0
        %2449 = vmatpush1.msra.mxu0 0.0
        %2450 = vmatprep.subr.mxu0 0.0
        %2451 = vmatpush1.msra.mxu0 0.0
        %2452 = vmatprep.subr.mxu0 0.0
        %2453 = vmatpush1.msra.mxu0 0.0
        %2454 = vmatprep.mubr.f32.mxu0 0.0
        %2455 = vmatmul.mubr.f32.gmra.mrb[0].mxu0 %v837
        %v2456 = vpop.f32.mrb[0].mxu0
        %v2457 = vadd.f32 0.0, %v2456
        %v2458 = vpop.f32.mrb[0].mxu0
        %2459 = vmatprep.mubr.f32.mxu0 0.0
        %2460 = vmatmul.mubr.f32.gmra.mrb[0].mxu0 %v840
        %v2461 = vpop.f32.mrb[0].mxu0
        %v2462 = vadd.f32 0.0, %v2461
        %v2463 = vpop.f32.mrb[0].mxu0
        %2464 = vdwg.mxu0
        %s2465 = scalar_lea.vmem %s4, 96
        %v2466 = vld [vmem:[%s2465] sm:$0xff]
        %v2467 = vld [vmem:[%s2465 + $0x8] sm:$0xff]
        %v2468 = vld [vmem:[%s2465 + $0x10] sm:$0xff]
        %v2469 = vld [vmem:[%s2465 + $0x18] sm:$0xff]
        %2470 = vmatprep.subr.mxu0 0.0
        %2471 = vmatpush1.msra.mxu0 %v2466
        %2472 = vmatprep.subr.mxu0 0.0
        %2473 = vmatpush1.msra.mxu0 %v2467
        %2474 = vmatprep.subr.mxu0 0.0
        %2475 = vmatpush1.msra.mxu0 %v2468
        %2476 = vmatprep.subr.mxu0 0.0
        %2477 = vmatpush1.msra.mxu0 %v2469
        %2478 = vmatprep.subr.mxu0 0.0
        %2479 = vmatpush1.msra.mxu0 0.0
        %2480 = vmatprep.subr.mxu0 0.0
        %2481 = vmatpush1.msra.mxu0 0.0
        %2482 = vmatprep.subr.mxu0 0.0
        %2483 = vmatpush1.msra.mxu0 0.0
        %2484 = vmatprep.subr.mxu0 0.0
        %2485 = vmatpush1.msra.mxu0 0.0
        %2486 = vmatprep.subr.mxu0 0.0
        %2487 = vmatpush1.msra.mxu0 0.0
        %2488 = vmatprep.subr.mxu0 0.0
        %2489 = vmatpush1.msra.mxu0 0.0
        %2490 = vmatprep.subr.mxu0 0.0
        %2491 = vmatpush1.msra.mxu0 0.0
        %2492 = vmatprep.subr.mxu0 0.0
        %2493 = vmatpush1.msra.mxu0 0.0
        %2494 = vmatprep.subr.mxu0 0.0
        %2495 = vmatpush1.msra.mxu0 0.0
        %2496 = vmatprep.subr.mxu0 0.0
        %2497 = vmatpush1.msra.mxu0 0.0
        %2498 = vmatprep.subr.mxu0 0.0
        %2499 = vmatpush1.msra.mxu0 0.0
        %2500 = vmatprep.subr.mxu0 0.0
        %2501 = vmatpush1.msra.mxu0 0.0
        %2502 = vmatprep.subr.mxu0 0.0
        %2503 = vmatpush1.msra.mxu0 0.0
        %2504 = vmatprep.subr.mxu0 0.0
        %2505 = vmatpush1.msra.mxu0 0.0
        %2506 = vmatprep.subr.mxu0 0.0
        %2507 = vmatpush1.msra.mxu0 0.0
        %2508 = vmatprep.subr.mxu0 0.0
        %2509 = vmatpush1.msra.mxu0 0.0
        %2510 = vmatprep.subr.mxu0 0.0
        %2511 = vmatpush1.msra.mxu0 0.0
        %2512 = vmatprep.subr.mxu0 0.0
        %2513 = vmatpush1.msra.mxu0 0.0
        %2514 = vmatprep.subr.mxu0 0.0
        %2515 = vmatpush1.msra.mxu0 0.0
        %2516 = vmatprep.subr.mxu0 0.0
        %2517 = vmatpush1.msra.mxu0 0.0
        %2518 = vmatprep.subr.mxu0 0.0
        %2519 = vmatpush1.msra.mxu0 0.0
        %2520 = vmatprep.subr.mxu0 0.0
        %2521 = vmatpush1.msra.mxu0 0.0
        %2522 = vmatprep.subr.mxu0 0.0
        %2523 = vmatpush1.msra.mxu0 0.0
        %2524 = vmatprep.subr.mxu0 0.0
        %2525 = vmatpush1.msra.mxu0 0.0
        %2526 = vmatprep.subr.mxu0 0.0
        %2527 = vmatpush1.msra.mxu0 0.0
        %2528 = vmatprep.subr.mxu0 0.0
        %2529 = vmatpush1.msra.mxu0 0.0
        %2530 = vmatprep.subr.mxu0 0.0
        %2531 = vmatpush1.msra.mxu0 0.0
        %2532 = vmatprep.subr.mxu0 0.0
        %2533 = vmatpush1.msra.mxu0 0.0
        %2534 = vmatprep.mubr.f32.mxu0 0.0
        %2535 = vmatmul.mubr.f32.gmra.mrb[0].mxu0 %v837
        %v2536 = vpop.f32.mrb[0].mxu0
        %v2537 = vadd.f32 0.0, %v2536
        %v2538 = vpop.f32.mrb[0].mxu0
        %2539 = vmatprep.mubr.f32.mxu0 0.0
        %2540 = vmatmul.mubr.f32.gmra.mrb[0].mxu0 %v840
        %v2541 = vpop.f32.mrb[0].mxu0
        %v2542 = vadd.f32 0.0, %v2541
        %v2543 = vpop.f32.mrb[0].mxu0
        %2544 = vdwg.mxu0
        %s2545 = scalar_lea.vmem %s5, 96
        %v2546 = vld [vmem:[%s2545] sm:$0xff]
        %v2547 = vld [vmem:[%s2545 + $0x8] sm:$0xff]
        %v2548 = vld [vmem:[%s2545 + $0x10] sm:$0xff]
        %v2549 = vld [vmem:[%s2545 + $0x18] sm:$0xff]
        %2550 = vmatprep.subr.mxu0 0.0
        %2551 = vmatpush1.msra.mxu0 %v2546
        %2552 = vmatprep.subr.mxu0 0.0
        %2553 = vmatpush1.msra.mxu0 %v2547
        %2554 = vmatprep.subr.mxu0 0.0
        %2555 = vmatpush1.msra.mxu0 %v2548
        %2556 = vmatprep.subr.mxu0 0.0
        %2557 = vmatpush1.msra.mxu0 %v2549
        %2558 = vmatprep.subr.mxu0 0.0
        %2559 = vmatpush1.msra.mxu0 0.0
        %2560 = vmatprep.subr.mxu0 0.0
        %2561 = vmatpush1.msra.mxu0 0.0
        %2562 = vmatprep.subr.mxu0 0.0
        %2563 = vmatpush1.msra.mxu0 0.0
        %2564 = vmatprep.subr.mxu0 0.0
        %2565 = vmatpush1.msra.mxu0 0.0
        %2566 = vmatprep.subr.mxu0 0.0
        %2567 = vmatpush1.msra.mxu0 0.0
        %2568 = vmatprep.subr.mxu0 0.0
        %2569 = vmatpush1.msra.mxu0 0.0
        %2570 = vmatprep.subr.mxu0 0.0
        %2571 = vmatpush1.msra.mxu0 0.0
        %2572 = vmatprep.subr.mxu0 0.0
        %2573 = vmatpush1.msra.mxu0 0.0
        %2574 = vmatprep.subr.mxu0 0.0
        %2575 = vmatpush1.msra.mxu0 0.0
        %2576 = vmatprep.subr.mxu0 0.0
        %2577 = vmatpush1.msra.mxu0 0.0
        %2578 = vmatprep.subr.mxu0 0.0
        %2579 = vmatpush1.msra.mxu0 0.0
        %2580 = vmatprep.subr.mxu0 0.0
        %2581 = vmatpush1.msra.mxu0 0.0
        %2582 = vmatprep.subr.mxu0 0.0
        %2583 = vmatpush1.msra.mxu0 0.0
        %2584 = vmatprep.subr.mxu0 0.0
        %2585 = vmatpush1.msra.mxu0 0.0
        %2586 = vmatprep.subr.mxu0 0.0
        %2587 = vmatpush1.msra.mxu0 0.0
        %2588 = vmatprep.subr.mxu0 0.0
        %2589 = vmatpush1.msra.mxu0 0.0
        %2590 = vmatprep.subr.mxu0 0.0
        %2591 = vmatpush1.msra.mxu0 0.0
        %2592 = vmatprep.subr.mxu0 0.0
        %2593 = vmatpush1.msra.mxu0 0.0
        %2594 = vmatprep.subr.mxu0 0.0
        %2595 = vmatpush1.msra.mxu0 0.0
        %2596 = vmatprep.subr.mxu0 0.0
        %2597 = vmatpush1.msra.mxu0 0.0
        %2598 = vmatprep.subr.mxu0 0.0
        %2599 = vmatpush1.msra.mxu0 0.0
        %2600 = vmatprep.subr.mxu0 0.0
        %2601 = vmatpush1.msra.mxu0 0.0
        %2602 = vmatprep.subr.mxu0 0.0
        %2603 = vmatpush1.msra.mxu0 0.0
        %2604 = vmatprep.subr.mxu0 0.0
        %2605 = vmatpush1.msra.mxu0 0.0
        %2606 = vmatprep.subr.mxu0 0.0
        %2607 = vmatpush1.msra.mxu0 0.0
        %2608 = vmatprep.subr.mxu0 0.0
        %2609 = vmatpush1.msra.mxu0 0.0
        %2610 = vmatprep.subr.mxu0 0.0
        %2611 = vmatpush1.msra.mxu0 0.0
        %2612 = vmatprep.subr.mxu0 0.0
        %2613 = vmatpush1.msra.mxu0 0.0
        %2614 = vmatprep.mubr.f32.mxu0 0.0
        %2615 = vmatmul.mubr.f32.gmra.mrb[0].mxu0 %v837
        %v2616 = vpop.f32.mrb[0].mxu0
        %v2617 = vadd.f32 0.0, %v2616
        %v2618 = vpop.f32.mrb[0].mxu0
        %2619 = vmatprep.mubr.f32.mxu0 0.0
        %2620 = vmatmul.mubr.f32.gmra.mrb[0].mxu0 %v840
        %v2621 = vpop.f32.mrb[0].mxu0
        %v2622 = vadd.f32 0.0, %v2621
        %v2623 = vpop.f32.mrb[0].mxu0
        %2624 = vdwg.mxu0
        %v2626 = vsel %vm1075, %v2457, 0
        %v2629 = vsel %vm1075, %v2462, 0
        %v2632 = vsel %vm1075, %v2537, 0
        %v2635 = vsel %vm1075, %v2542, 0
        %2637 = vmatprep.subr.mxu0 0.0
        %2638 = vmatpush1.xpose.msra.mxu0 %v2632
        %2639 = vmatprep.subr.mxu0 0.0
        %2640 = vmatpush1.xpose.msra.mxu0 %v2635
        %2641 = vmatprep.subr.mxu0 0.0
        %2642 = vmatpush1.xpose.msra.mxu0 0.0
        %2643 = vmatprep.subr.mxu0 0.0
        %2644 = vmatpush1.xpose.msra.mxu0 0.0
        %2645 = vmatprep.subr.mxu0 0.0
        %2646 = vmatpush1.xpose.msra.mxu0 0.0
        %2647 = vmatprep.subr.mxu0 0.0
        %2648 = vmatpush1.xpose.msra.mxu0 0.0
        %2649 = vmatprep.subr.mxu0 0.0
        %2650 = vmatpush1.xpose.msra.mxu0 0.0
        %2651 = vmatprep.subr.mxu0 0.0
        %2652 = vmatpush1.xpose.msra.mxu0 0.0
        %2653 = vmatprep.subr.mxu0 0.0
        %2654 = vmatpush1.xpose.msra.mxu0 0.0
        %2655 = vmatprep.subr.mxu0 0.0
        %2656 = vmatpush1.xpose.msra.mxu0 0.0
        %2657 = vmatprep.subr.mxu0 0.0
        %2658 = vmatpush1.xpose.msra.mxu0 0.0
        %2659 = vmatprep.subr.mxu0 0.0
        %2660 = vmatpush1.xpose.msra.mxu0 0.0
        %2661 = vmatprep.subr.mxu0 0.0
        %2662 = vmatpush1.xpose.msra.mxu0 0.0
        %2663 = vmatprep.subr.mxu0 0.0
        %2664 = vmatpush1.xpose.msra.mxu0 0.0
        %2665 = vmatprep.subr.mxu0 0.0
        %2666 = vmatpush1.xpose.msra.mxu0 0.0
        %2667 = vmatprep.subr.mxu0 0.0
        %2668 = vmatpush1.xpose.msra.mxu0 0.0
        %2669 = vmatprep.subr.mxu0 0.0
        %2670 = vmatpush1.xpose.msra.mxu0 0.0
        %2671 = vmatprep.subr.mxu0 0.0
        %2672 = vmatpush1.xpose.msra.mxu0 0.0
        %2673 = vmatprep.subr.mxu0 0.0
        %2674 = vmatpush1.xpose.msra.mxu0 0.0
        %2675 = vmatprep.subr.mxu0 0.0
        %2676 = vmatpush1.xpose.msra.mxu0 0.0
        %2677 = vmatprep.subr.mxu0 0.0
        %2678 = vmatpush1.xpose.msra.mxu0 0.0
        %2679 = vmatprep.subr.mxu0 0.0
        %2680 = vmatpush1.xpose.msra.mxu0 0.0
        %2681 = vmatprep.subr.mxu0 0.0
        %2682 = vmatpush1.xpose.msra.mxu0 0.0
        %2683 = vmatprep.subr.mxu0 0.0
        %2684 = vmatpush1.xpose.msra.mxu0 0.0
        %2685 = vmatprep.subr.mxu0 0.0
        %2686 = vmatpush1.xpose.msra.mxu0 0.0
        %2687 = vmatprep.subr.mxu0 0.0
        %2688 = vmatpush1.xpose.msra.mxu0 0.0
        %2689 = vmatprep.subr.mxu0 0.0
        %2690 = vmatpush1.xpose.msra.mxu0 0.0
        %2691 = vmatprep.subr.mxu0 0.0
        %2692 = vmatpush1.xpose.msra.mxu0 0.0
        %2693 = vmatprep.subr.mxu0 0.0
        %2694 = vmatpush1.xpose.msra.mxu0 0.0
        %2695 = vmatprep.subr.mxu0 0.0
        %2696 = vmatpush1.xpose.msra.mxu0 0.0
        %2697 = vmatprep.subr.mxu0 0.0
        %2698 = vmatpush1.xpose.msra.mxu0 0.0
        %2699 = vmatprep.subr.mxu0 0.0
        %2700 = vmatpush1.xpose.msra.mxu0 0.0
        %2701 = vmatprep.mubr.f32.mxu0 0.0
        %2702 = vmatmul.mubr.f32.gmra.mrb[0].mxu0 %v2626
        %v2703 = vpop.f32.mrb[0].mxu0
        %v2704 = vadd.f32 %v789, %v2703
        %v2705 = vpop.f32.mrb[0].mxu0
        %2706 = vmatprep.mubr.f32.mxu0 0.0
        %2707 = vmatmul.mubr.f32.gmra.mrb[0].mxu0 %v2629
        %v2708 = vpop.f32.mrb[0].mxu0
        %v2709 = vadd.f32 %v789, %v2708
        %v2710 = vpop.f32.mrb[0].mxu0
        %2711 = vdwg.mxu0
        %v2712 = vsel %vm1163, %v2704, -inf
        %2713 = vmax.xlane.f32.xlu0 %v2712
        %v2714 = vpop.xlane.xlu0 %2713
        %v2715 = vsel %vm1163, %v2709, -inf
        %2716 = vmax.xlane.f32.xlu0 %v2715
        %v2717 = vpop.xlane.xlu0 %2716
        %v2718 = vsub.f32 %v2704, %v2714
        %v2719 = vsub.f32 %v2709, %v2717
        %v2720 = vmul.f32 %v2718, 1.442695
        %v2721 = vpow.pop %v2720
        %v2722 = vmul.f32 %v2719, 1.442695
        %v2723 = vpow.pop %v2722
        %v2724 = vsel %vm1163, %v2721, 0.0
        %2725 = vadd.xlane.f32.xlu0 %v2724
        %v2726 = vpop.xlane.xlu0 %2725
        %v2727 = vsel %vm1163, %v2723, 0.0
        %2728 = vadd.xlane.f32.xlu0 %v2727
        %v2729 = vpop.xlane.xlu0 %2728
        %v2730 = vrcp.pop %v2726
        %v2731 = vrcp.pop %v2729
        %v2732 = vmul.f32 %v2721, %v2730
        %v2733 = vmul.f32 %v2723, %v2731
        %s2734 = scalar_lea.vmem %s687, 48 [#allocation4]
        %2735 = vst.msk [vmem:[%s2734] sm:$0xff] %vm1163, %v2732
        %2736 = vst.msk [vmem:[%s2734 + $0x8] sm:$0xff] %vm1163, %v2733
        %v2738 = vsel %vm1163, %v2732, 0
        %v2741 = vsel %vm1163, %v2733, 0
        %2743 = vmatprep.subr.mxu0 0.0
        %2744 = vmatpush1.msra.mxu0 %v2617
        %2745 = vmatprep.subr.mxu0 0.0
        %2746 = vmatpush1.msra.mxu0 %v2622
        %2747 = vmatprep.subr.mxu0 0.0
        %2748 = vmatpush1.msra.mxu0 0.0
        %2749 = vmatprep.subr.mxu0 0.0
        %2750 = vmatpush1.msra.mxu0 0.0
        %2751 = vmatprep.subr.mxu0 0.0
        %2752 = vmatpush1.msra.mxu0 0.0
        %2753 = vmatprep.subr.mxu0 0.0
        %2754 = vmatpush1.msra.mxu0 0.0
        %2755 = vmatprep.subr.mxu0 0.0
        %2756 = vmatpush1.msra.mxu0 0.0
        %2757 = vmatprep.subr.mxu0 0.0
        %2758 = vmatpush1.msra.mxu0 0.0
        %2759 = vmatprep.subr.mxu0 0.0
        %2760 = vmatpush1.msra.mxu0 0.0
        %2761 = vmatprep.subr.mxu0 0.0
        %2762 = vmatpush1.msra.mxu0 0.0
        %2763 = vmatprep.subr.mxu0 0.0
        %2764 = vmatpush1.msra.mxu0 0.0
        %2765 = vmatprep.subr.mxu0 0.0
        %2766 = vmatpush1.msra.mxu0 0.0
        %2767 = vmatprep.subr.mxu0 0.0
        %2768 = vmatpush1.msra.mxu0 0.0
        %2769 = vmatprep.subr.mxu0 0.0
        %2770 = vmatpush1.msra.mxu0 0.0
        %2771 = vmatprep.subr.mxu0 0.0
        %2772 = vmatpush1.msra.mxu0 0.0
        %2773 = vmatprep.subr.mxu0 0.0
        %2774 = vmatpush1.msra.mxu0 0.0
        %2775 = vmatprep.subr.mxu0 0.0
        %2776 = vmatpush1.msra.mxu0 0.0
        %2777 = vmatprep.subr.mxu0 0.0
        %2778 = vmatpush1.msra.mxu0 0.0
        %2779 = vmatprep.subr.mxu0 0.0
        %2780 = vmatpush1.msra.mxu0 0.0
        %2781 = vmatprep.subr.mxu0 0.0
        %2782 = vmatpush1.msra.mxu0 0.0
        %2783 = vmatprep.subr.mxu0 0.0
        %2784 = vmatpush1.msra.mxu0 0.0
        %2785 = vmatprep.subr.mxu0 0.0
        %2786 = vmatpush1.msra.mxu0 0.0
        %2787 = vmatprep.subr.mxu0 0.0
        %2788 = vmatpush1.msra.mxu0 0.0
        %2789 = vmatprep.subr.mxu0 0.0
        %2790 = vmatpush1.msra.mxu0 0.0
        %2791 = vmatprep.subr.mxu0 0.0
        %2792 = vmatpush1.msra.mxu0 0.0
        %2793 = vmatprep.subr.mxu0 0.0
        %2794 = vmatpush1.msra.mxu0 0.0
        %2795 = vmatprep.subr.mxu0 0.0
        %2796 = vmatpush1.msra.mxu0 0.0
        %2797 = vmatprep.subr.mxu0 0.0
        %2798 = vmatpush1.msra.mxu0 0.0
        %2799 = vmatprep.subr.mxu0 0.0
        %2800 = vmatpush1.msra.mxu0 0.0
        %2801 = vmatprep.subr.mxu0 0.0
        %2802 = vmatpush1.msra.mxu0 0.0
        %2803 = vmatprep.subr.mxu0 0.0
        %2804 = vmatpush1.msra.mxu0 0.0
        %2805 = vmatprep.subr.mxu0 0.0
        %2806 = vmatpush1.msra.mxu0 0.0
        %2807 = vmatprep.mubr.f32.mxu0 0.0
        %2808 = vmatmul.mubr.f32.gmra.mrb[0].mxu0 %v2738
        %v2809 = vpop.f32.mrb[0].mxu0
        %v2810 = vadd.f32 0.0, %v2809
        %v2811 = vpop.f32.mrb[0].mxu0
        %2812 = vmatprep.mubr.f32.mxu0 0.0
        %2813 = vmatmul.mubr.f32.gmra.mrb[0].mxu0 %v2741
        %v2814 = vpop.f32.mrb[0].mxu0
        %v2815 = vadd.f32 0.0, %v2814
        %v2816 = vpop.f32.mrb[0].mxu0
        %2817 = vdwg.mxu0
        %s2818 = scalar_lea.vmem %s6, 24
        %v2819 = vld [vmem:[%s2818] sm:$0xff]
        %v2821 = vsel %vm1075, %v2810, 0
        %v2824 = vsel %vm1075, %v2815, 0
        %2826 = vmatprep.subr.mxu0 0.0
        %2827 = vmatpush1.msra.mxu0 %v2819
        %2828 = vmatprep.subr.mxu0 0.0
        %2829 = vmatpush1.msra.mxu0 0.0
        %2830 = vmatprep.subr.mxu0 0.0
        %2831 = vmatpush1.msra.mxu0 0.0
        %2832 = vmatprep.subr.mxu0 0.0
        %2833 = vmatpush1.msra.mxu0 0.0
        %2834 = vmatprep.subr.mxu0 0.0
        %2835 = vmatpush1.msra.mxu0 0.0
        %2836 = vmatprep.subr.mxu0 0.0
        %2837 = vmatpush1.msra.mxu0 0.0
        %2838 = vmatprep.subr.mxu0 0.0
        %2839 = vmatpush1.msra.mxu0 0.0
        %2840 = vmatprep.subr.mxu0 0.0
        %2841 = vmatpush1.msra.mxu0 0.0
        %2842 = vmatprep.subr.mxu0 0.0
        %2843 = vmatpush1.msra.mxu0 0.0
        %2844 = vmatprep.subr.mxu0 0.0
        %2845 = vmatpush1.msra.mxu0 0.0
        %2846 = vmatprep.subr.mxu0 0.0
        %2847 = vmatpush1.msra.mxu0 0.0
        %2848 = vmatprep.subr.mxu0 0.0
        %2849 = vmatpush1.msra.mxu0 0.0
        %2850 = vmatprep.subr.mxu0 0.0
        %2851 = vmatpush1.msra.mxu0 0.0
        %2852 = vmatprep.subr.mxu0 0.0
        %2853 = vmatpush1.msra.mxu0 0.0
        %2854 = vmatprep.subr.mxu0 0.0
        %2855 = vmatpush1.msra.mxu0 0.0
        %2856 = vmatprep.subr.mxu0 0.0
        %2857 = vmatpush1.msra.mxu0 0.0
        %2858 = vmatprep.subr.mxu0 0.0
        %2859 = vmatpush1.msra.mxu0 0.0
        %2860 = vmatprep.subr.mxu0 0.0
        %2861 = vmatpush1.msra.mxu0 0.0
        %2862 = vmatprep.subr.mxu0 0.0
        %2863 = vmatpush1.msra.mxu0 0.0
        %2864 = vmatprep.subr.mxu0 0.0
        %2865 = vmatpush1.msra.mxu0 0.0
        %2866 = vmatprep.subr.mxu0 0.0
        %2867 = vmatpush1.msra.mxu0 0.0
        %2868 = vmatprep.subr.mxu0 0.0
        %2869 = vmatpush1.msra.mxu0 0.0
        %2870 = vmatprep.subr.mxu0 0.0
        %2871 = vmatpush1.msra.mxu0 0.0
        %2872 = vmatprep.subr.mxu0 0.0
        %2873 = vmatpush1.msra.mxu0 0.0
        %2874 = vmatprep.subr.mxu0 0.0
        %2875 = vmatpush1.msra.mxu0 0.0
        %2876 = vmatprep.subr.mxu0 0.0
        %2877 = vmatpush1.msra.mxu0 0.0
        %2878 = vmatprep.subr.mxu0 0.0
        %2879 = vmatpush1.msra.mxu0 0.0
        %2880 = vmatprep.subr.mxu0 0.0
        %2881 = vmatpush1.msra.mxu0 0.0
        %2882 = vmatprep.subr.mxu0 0.0
        %2883 = vmatpush1.msra.mxu0 0.0
        %2884 = vmatprep.subr.mxu0 0.0
        %2885 = vmatpush1.msra.mxu0 0.0
        %2886 = vmatprep.subr.mxu0 0.0
        %2887 = vmatpush1.msra.mxu0 0.0
        %2888 = vmatprep.subr.mxu0 0.0
        %2889 = vmatpush1.msra.mxu0 0.0
        %2890 = vmatprep.mubr.f32.mxu0 0.0
        %2891 = vmatmul.mubr.f32.gmra.mrb[0].mxu0 %v2821
        %v2892 = vpop.f32.mrb[0].mxu0
        %v2893 = vadd.f32 0.0, %v2892
        %v2894 = vpop.f32.mrb[0].mxu0
        %2895 = vmatprep.mubr.f32.mxu0 0.0
        %2896 = vmatmul.mubr.f32.gmra.mrb[0].mxu0 %v2824
        %v2897 = vpop.f32.mrb[0].mxu0
        %v2898 = vadd.f32 0.0, %v2897
        %v2899 = vpop.f32.mrb[0].mxu0
        %2900 = vdwg.mxu0
        %v2901 = vadd.f32 %v2383, %v2893
        %v2902 = vadd.f32 %v2384, %v2898
        %v2903 = vld [vmem:[%s7] sm:$0x1]
        %v2904 = vlaneseq
        %v2905 = vshrl.u32 %v2904, 7
        %v2906 = vsub.s32 0, %v2905
        %v2907 = vrot.slane %v2903, %v2906
        %v2908 = vadd.f32 %v2901, %v2907
        %v2909 = vadd.f32 %v2902, %v2907
        %v2910 = vadd.f32 %v2908, %v778
        %v2911 = vadd.f32 %v2909, %v783
        %v2912 = vld [vmem:[%s10] sm:$0x1]
        %v2913 = vld [vmem:[%s11] sm:$0x1]
        %v2914 = vsel %vm792, %v2910, 0.0
        %2915 = vadd.xlane.f32.xlu0 %v2914
        %v2916 = vpop.xlane.xlu0 %2915
        %v2917 = vsel %vm792, %v2911, 0.0
        %2918 = vadd.xlane.f32.xlu0 %v2917
        %v2919 = vpop.xlane.xlu0 %2918
        %v2920 = vmul.f32 %v2916, %v799
        %v2921 = vmul.f32 %v2919, %v799
        %v2922 = vsub.f32 %v2910, %v2920
        %v2923 = vsub.f32 %v2911, %v2921
        %v2924 = vmul.f32 %v2922, %v2922
        %v2925 = vmul.f32 %v2923, %v2923
        %v2926 = vsel %vm792, %v2924, 0.0
        %2927 = vadd.xlane.f32.xlu0 %v2926
        %v2928 = vpop.xlane.xlu0 %2927
        %v2929 = vsel %vm792, %v2925, 0.0
        %2930 = vadd.xlane.f32.xlu0 %v2929
        %v2931 = vpop.xlane.xlu0 %2930
        %v2932 = vmul.f32 %v2928, %v799
        %v2933 = vmul.f32 %v2931, %v799
        %v2934 = vadd.f32 %v2932, 1e-05
        %v2935 = vadd.f32 %v2933, 1e-05
        %v2936 = vrsqrt.pop %v2934
        %v2937 = vrsqrt.pop %v2935
        %v2938 = vmul.f32 %v2922, %v2936
        %v2939 = vmul.f32 %v2923, %v2937
        %v2940 = vlaneseq
        %v2941 = vshrl.u32 %v2940, 7
        %v2942 = vsub.s32 0, %v2941
        %v2943 = vrot.slane %v2912, %v2942
        %v2944 = vmul.f32 %v2938, %v2943
        %v2945 = vmul.f32 %v2939, %v2943
        %v2946 = vlaneseq
        %v2947 = vshrl.u32 %v2946, 7
        %v2948 = vsub.s32 0, %v2947
        %v2949 = vrot.slane %v2913, %v2948
        %v2950 = vadd.f32 %v2944, %v2949
        %v2951 = vadd.f32 %v2945, %v2949
        %v2952 = vld [vmem:[%s12] sm:$0xff]
        %v2953 = vld [vmem:[%s12 + $0x8] sm:$0xff]
        %v2954 = vld [vmem:[%s12 + $0x10] sm:$0xff]
        %v2955 = vld [vmem:[%s12 + $0x18] sm:$0xff]
        %v2956 = vld [vmem:[%s13] sm:$0x1]
        %v2957 = vlaneseq
        %v2958 = vshrl.u32 %v2957, 7
        %v2959 = vsub.s32 0, %v2958
        %v2960 = vrot.slane %v2956, %v2959
        %v2962 = vsel %vm792, %v2950, 0
        %v2965 = vsel %vm792, %v2951, 0
        %2967 = vmatprep.subr.mxu0 0.0
        %2968 = vmatpush1.msra.mxu0 %v2952
        %2969 = vmatprep.subr.mxu0 0.0
        %2970 = vmatpush1.msra.mxu0 %v2953
        %2971 = vmatprep.subr.mxu0 0.0
        %2972 = vmatpush1.msra.mxu0 %v2954
        %2973 = vmatprep.subr.mxu0 0.0
        %2974 = vmatpush1.msra.mxu0 %v2955
        %2975 = vmatprep.subr.mxu0 0.0
        %2976 = vmatpush1.msra.mxu0 0.0
        %2977 = vmatprep.subr.mxu0 0.0
        %2978 = vmatpush1.msra.mxu0 0.0
        %2979 = vmatprep.subr.mxu0 0.0
        %2980 = vmatpush1.msra.mxu0 0.0
        %2981 = vmatprep.subr.mxu0 0.0
        %2982 = vmatpush1.msra.mxu0 0.0
        %2983 = vmatprep.subr.mxu0 0.0
        %2984 = vmatpush1.msra.mxu0 0.0
        %2985 = vmatprep.subr.mxu0 0.0
        %2986 = vmatpush1.msra.mxu0 0.0
        %2987 = vmatprep.subr.mxu0 0.0
        %2988 = vmatpush1.msra.mxu0 0.0
        %2989 = vmatprep.subr.mxu0 0.0
        %2990 = vmatpush1.msra.mxu0 0.0
        %2991 = vmatprep.subr.mxu0 0.0
        %2992 = vmatpush1.msra.mxu0 0.0
        %2993 = vmatprep.subr.mxu0 0.0
        %2994 = vmatpush1.msra.mxu0 0.0
        %2995 = vmatprep.subr.mxu0 0.0
        %2996 = vmatpush1.msra.mxu0 0.0
        %2997 = vmatprep.subr.mxu0 0.0
        %2998 = vmatpush1.msra.mxu0 0.0
        %2999 = vmatprep.subr.mxu0 0.0
        %3000 = vmatpush1.msra.mxu0 0.0
        %3001 = vmatprep.subr.mxu0 0.0
        %3002 = vmatpush1.msra.mxu0 0.0
        %3003 = vmatprep.subr.mxu0 0.0
        %3004 = vmatpush1.msra.mxu0 0.0
        %3005 = vmatprep.subr.mxu0 0.0
        %3006 = vmatpush1.msra.mxu0 0.0
        %3007 = vmatprep.subr.mxu0 0.0
        %3008 = vmatpush1.msra.mxu0 0.0
        %3009 = vmatprep.subr.mxu0 0.0
        %3010 = vmatpush1.msra.mxu0 0.0
        %3011 = vmatprep.subr.mxu0 0.0
        %3012 = vmatpush1.msra.mxu0 0.0
        %3013 = vmatprep.subr.mxu0 0.0
        %3014 = vmatpush1.msra.mxu0 0.0
        %3015 = vmatprep.subr.mxu0 0.0
        %3016 = vmatpush1.msra.mxu0 0.0
        %3017 = vmatprep.subr.mxu0 0.0
        %3018 = vmatpush1.msra.mxu0 0.0
        %3019 = vmatprep.subr.mxu0 0.0
        %3020 = vmatpush1.msra.mxu0 0.0
        %3021 = vmatprep.subr.mxu0 0.0
        %3022 = vmatpush1.msra.mxu0 0.0
        %3023 = vmatprep.subr.mxu0 0.0
        %3024 = vmatpush1.msra.mxu0 0.0
        %3025 = vmatprep.subr.mxu0 0.0
        %3026 = vmatpush1.msra.mxu0 0.0
        %3027 = vmatprep.subr.mxu0 0.0
        %3028 = vmatpush1.msra.mxu0 0.0
        %3029 = vmatprep.subr.mxu0 0.0
        %3030 = vmatpush1.msra.mxu0 0.0
        %3031 = vmatprep.mubr.f32.mxu0 0.0
        %3032 = vmatmul.mubr.f32.gmra.mrb[0].mxu0 %v2962
        %v3033 = vpop.f32.mrb[0].mxu0
        %v3034 = vadd.f32 %v2960, %v3033
        %v3035 = vpop.f32.mrb[0].mxu0
        %3036 = vmatprep.mubr.f32.mxu0 0.0
        %3037 = vmatmul.mubr.f32.gmra.mrb[0].mxu0 %v2965
        %v3038 = vpop.f32.mrb[0].mxu0
        %v3039 = vadd.f32 %v2960, %v3038
        %v3040 = vpop.f32.mrb[0].mxu0
        %3041 = vdwg.mxu0
        %v3042 = vmul.f32 %v3034, 0.5
        %v3043 = vmul.f32 %v3039, 0.5
        %v3044 = vmul.f32 %v3034, 0.044715
        %v3045 = vmul.f32 %v3039, 0.044715
        %v3046 = vmul.f32 %v3044, %v3034
        %v3047 = vmul.f32 %v3045, %v3039
        %v3048 = vmul.f32 %v3046, %v3034
        %v3049 = vmul.f32 %v3047, %v3039
        %v3050 = vadd.f32 %v3034, %v3048
        %v3051 = vadd.f32 %v3039, %v3049
        %v3052 = vmul.f32 %v3050, 0.7978846
        %v3053 = vmul.f32 %v3051, 0.7978846
        %v3054 = vtanh.pop %v3052
        %v3055 = vtanh.pop %v3053
        %v3056 = vadd.f32 %v3054, 1.0
        %v3057 = vadd.f32 %v3055, 1.0
        %v3058 = vmul.f32 %v3042, %v3056
        %v3059 = vmul.f32 %v3043, %v3057
        %v3060 = vld [vmem:[%s14] sm:$0xff]
        %v3061 = vld [vmem:[%s14 + $0x8] sm:$0xff]
        %v3062 = vld [vmem:[%s14 + $0x10] sm:$0xff]
        %v3063 = vld [vmem:[%s14 + $0x18] sm:$0xff]
        %v3064 = vld [vmem:[%s14 + $0x20] sm:$0xff]
        %v3065 = vld [vmem:[%s14 + $0x28] sm:$0xff]
        %v3066 = vld [vmem:[%s14 + $0x30] sm:$0xff]
        %v3067 = vld [vmem:[%s14 + $0x38] sm:$0xff]
        %v3068 = vld [vmem:[%s15] sm:$0x1]
        %v3069 = vlaneseq
        %v3070 = vshrl.u32 %v3069, 7
        %v3071 = vsub.s32 0, %v3070
        %v3072 = vrot.slane %v3068, %v3071
        %vm3073 = vcmask 523264
        %v3075 = vsel %vm3073, %v3058, 0
        %v3078 = vsel %vm3073, %v3059, 0
        %3080 = vmatprep.subr.mxu0 0.0
        %3081 = vmatpush1.msra.mxu0 %v3060
        %3082 = vmatprep.subr.mxu0 0.0
        %3083 = vmatpush1.msra.mxu0 %v3061
        %3084 = vmatprep.subr.mxu0 0.0
        %3085 = vmatpush1.msra.mxu0 %v3062
        %3086 = vmatprep.subr.mxu0 0.0
        %3087 = vmatpush1.msra.mxu0 %v3063
        %3088 = vmatprep.subr.mxu0 0.0
        %3089 = vmatpush1.msra.mxu0 %v3064
        %3090 = vmatprep.subr.mxu0 0.0
        %3091 = vmatpush1.msra.mxu0 %v3065
        %3092 = vmatprep.subr.mxu0 0.0
        %3093 = vmatpush1.msra.mxu0 %v3066
        %3094 = vmatprep.subr.mxu0 0.0
        %3095 = vmatpush1.msra.mxu0 %v3067
        %3096 = vmatprep.subr.mxu0 0.0
        %3097 = vmatpush1.msra.mxu0 0.0
        %3098 = vmatprep.subr.mxu0 0.0
        %3099 = vmatpush1.msra.mxu0 0.0
        %3100 = vmatprep.subr.mxu0 0.0
        %3101 = vmatpush1.msra.mxu0 0.0
        %3102 = vmatprep.subr.mxu0 0.0
        %3103 = vmatpush1.msra.mxu0 0.0
        %3104 = vmatprep.subr.mxu0 0.0
        %3105 = vmatpush1.msra.mxu0 0.0
        %3106 = vmatprep.subr.mxu0 0.0
        %3107 = vmatpush1.msra.mxu0 0.0
        %3108 = vmatprep.subr.mxu0 0.0
        %3109 = vmatpush1.msra.mxu0 0.0
        %3110 = vmatprep.subr.mxu0 0.0
        %3111 = vmatpush1.msra.mxu0 0.0
        %3112 = vmatprep.subr.mxu0 0.0
        %3113 = vmatpush1.msra.mxu0 0.0
        %3114 = vmatprep.subr.mxu0 0.0
        %3115 = vmatpush1.msra.mxu0 0.0
        %3116 = vmatprep.subr.mxu0 0.0
        %3117 = vmatpush1.msra.mxu0 0.0
        %3118 = vmatprep.subr.mxu0 0.0
        %3119 = vmatpush1.msra.mxu0 0.0
        %3120 = vmatprep.subr.mxu0 0.0
        %3121 = vmatpush1.msra.mxu0 0.0
        %3122 = vmatprep.subr.mxu0 0.0
        %3123 = vmatpush1.msra.mxu0 0.0
        %3124 = vmatprep.subr.mxu0 0.0
        %3125 = vmatpush1.msra.mxu0 0.0
        %3126 = vmatprep.subr.mxu0 0.0
        %3127 = vmatpush1.msra.mxu0 0.0
        %3128 = vmatprep.subr.mxu0 0.0
        %3129 = vmatpush1.msra.mxu0 0.0
        %3130 = vmatprep.subr.mxu0 0.0
        %3131 = vmatpush1.msra.mxu0 0.0
        %3132 = vmatprep.subr.mxu0 0.0
        %3133 = vmatpush1.msra.mxu0 0.0
        %3134 = vmatprep.subr.mxu0 0.0
        %3135 = vmatpush1.msra.mxu0 0.0
        %3136 = vmatprep.subr.mxu0 0.0
        %3137 = vmatpush1.msra.mxu0 0.0
        %3138 = vmatprep.subr.mxu0 0.0
        %3139 = vmatpush1.msra.mxu0 0.0
        %3140 = vmatprep.subr.mxu0 0.0
        %3141 = vmatpush1.msra.mxu0 0.0
        %3142 = vmatprep.subr.mxu0 0.0
        %3143 = vmatpush1.msra.mxu0 0.0
        %3144 = vmatprep.mubr.f32.mxu0 0.0
        %3145 = vmatmul.mubr.f32.gmra.mrb[0].mxu0 %v3075
        %v3146 = vpop.f32.mrb[0].mxu0
        %v3147 = vadd.f32 %v3072, %v3146
        %v3148 = vpop.f32.mrb[0].mxu0
        %3149 = vmatprep.mubr.f32.mxu0 0.0
        %3150 = vmatmul.mubr.f32.gmra.mrb[0].mxu0 %v3078
        %v3151 = vpop.f32.mrb[0].mxu0
        %v3152 = vadd.f32 %v3072, %v3151
        %v3153 = vpop.f32.mrb[0].mxu0
        %3154 = vdwg.mxu0
        %v3155 = vadd.f32 %v3147, %v2910
        %v3156 = vadd.f32 %v3152, %v2911
        %v3157 = vld [vmem:[%s8 + $0x1] sm:$0x1]
        %v3158 = vld [vmem:[%s9 + $0x1] sm:$0x1]
        %v3159 = vsel %vm792, %v3155, 0.0
        %3160 = vadd.xlane.f32.xlu0 %v3159
        %v3161 = vpop.xlane.xlu0 %3160
        %v3162 = vsel %vm792, %v3156, 0.0
        %3163 = vadd.xlane.f32.xlu0 %v3162
        %v3164 = vpop.xlane.xlu0 %3163
        %v3165 = vmul.f32 %v3161, %v799
        %v3166 = vmul.f32 %v3164, %v799
        %v3167 = vsub.f32 %v3155, %v3165
        %v3168 = vsub.f32 %v3156, %v3166
        %v3169 = vmul.f32 %v3167, %v3167
        %v3170 = vmul.f32 %v3168, %v3168
        %v3171 = vsel %vm792, %v3169, 0.0
        %3172 = vadd.xlane.f32.xlu0 %v3171
        %v3173 = vpop.xlane.xlu0 %3172
        %v3174 = vsel %vm792, %v3170, 0.0
        %3175 = vadd.xlane.f32.xlu0 %v3174
        %v3176 = vpop.xlane.xlu0 %3175
        %v3177 = vmul.f32 %v3173, %v799
        %v3178 = vmul.f32 %v3176, %v799
        %v3179 = vadd.f32 %v3177, 1e-05
        %v3180 = vadd.f32 %v3178, 1e-05
        %v3181 = vrsqrt.pop %v3179
        %v3182 = vrsqrt.pop %v3180
        %v3183 = vmul.f32 %v3167, %v3181
        %v3184 = vmul.f32 %v3168, %v3182
        %v3185 = vlaneseq
        %v3186 = vshrl.u32 %v3185, 7
        %v3187 = vsub.s32 0, %v3186
        %v3188 = vrot.slane %v3157, %v3187
        %v3189 = vmul.f32 %v3183, %v3188
        %v3190 = vmul.f32 %v3184, %v3188
        %v3191 = vlaneseq
        %v3192 = vshrl.u32 %v3191, 7
        %v3193 = vsub.s32 0, %v3192
        %v3194 = vrot.slane %v3158, %v3193
        %v3195 = vadd.f32 %v3189, %v3194
        %v3196 = vadd.f32 %v3190, %v3194
        %s3197 = scalar_lea.vmem %s3, 128
        %v3198 = vld [vmem:[%s3197] sm:$0xff]
        %v3199 = vld [vmem:[%s3197 + $0x8] sm:$0xff]
        %v3200 = vld [vmem:[%s3197 + $0x10] sm:$0xff]
        %v3201 = vld [vmem:[%s3197 + $0x18] sm:$0xff]
        %v3203 = vsel %vm792, %v3195, 0
        %v3206 = vsel %vm792, %v3196, 0
        %3208 = vmatprep.subr.mxu0 0.0
        %3209 = vmatpush1.msra.mxu0 %v3198
        %3210 = vmatprep.subr.mxu0 0.0
        %3211 = vmatpush1.msra.mxu0 %v3199
        %3212 = vmatprep.subr.mxu0 0.0
        %3213 = vmatpush1.msra.mxu0 %v3200
        %3214 = vmatprep.subr.mxu0 0.0
        %3215 = vmatpush1.msra.mxu0 %v3201
        %3216 = vmatprep.subr.mxu0 0.0
        %3217 = vmatpush1.msra.mxu0 0.0
        %3218 = vmatprep.subr.mxu0 0.0
        %3219 = vmatpush1.msra.mxu0 0.0
        %3220 = vmatprep.subr.mxu0 0.0
        %3221 = vmatpush1.msra.mxu0 0.0
        %3222 = vmatprep.subr.mxu0 0.0
        %3223 = vmatpush1.msra.mxu0 0.0
        %3224 = vmatprep.subr.mxu0 0.0
        %3225 = vmatpush1.msra.mxu0 0.0
        %3226 = vmatprep.subr.mxu0 0.0
        %3227 = vmatpush1.msra.mxu0 0.0
        %3228 = vmatprep.subr.mxu0 0.0
        %3229 = vmatpush1.msra.mxu0 0.0
        %3230 = vmatprep.subr.mxu0 0.0
        %3231 = vmatpush1.msra.mxu0 0.0
        %3232 = vmatprep.subr.mxu0 0.0
        %3233 = vmatpush1.msra.mxu0 0.0
        %3234 = vmatprep.subr.mxu0 0.0
        %3235 = vmatpush1.msra.mxu0 0.0
        %3236 = vmatprep.subr.mxu0 0.0
        %3237 = vmatpush1.msra.mxu0 0.0
        %3238 = vmatprep.subr.mxu0 0.0
        %3239 = vmatpush1.msra.mxu0 0.0
        %3240 = vmatprep.subr.mxu0 0.0
        %3241 = vmatpush1.msra.mxu0 0.0
        %3242 = vmatprep.subr.mxu0 0.0
        %3243 = vmatpush1.msra.mxu0 0.0
        %3244 = vmatprep.subr.mxu0 0.0
        %3245 = vmatpush1.msra.mxu0 0.0
        %3246 = vmatprep.subr.mxu0 0.0
        %3247 = vmatpush1.msra.mxu0 0.0
        %3248 = vmatprep.subr.mxu0 0.0
        %3249 = vmatpush1.msra.mxu0 0.0
        %3250 = vmatprep.subr.mxu0 0.0
        %3251 = vmatpush1.msra.mxu0 0.0
        %3252 = vmatprep.subr.mxu0 0.0
        %3253 = vmatpush1.msra.mxu0 0.0
        %3254 = vmatprep.subr.mxu0 0.0
        %3255 = vmatpush1.msra.mxu0 0.0
        %3256 = vmatprep.subr.mxu0 0.0
        %3257 = vmatpush1.msra.mxu0 0.0
        %3258 = vmatprep.subr.mxu0 0.0
        %3259 = vmatpush1.msra.mxu0 0.0
        %3260 = vmatprep.subr.mxu0 0.0
        %3261 = vmatpush1.msra.mxu0 0.0
        %3262 = vmatprep.subr.mxu0 0.0
        %3263 = vmatpush1.msra.mxu0 0.0
        %3264 = vmatprep.subr.mxu0 0.0
        %3265 = vmatpush1.msra.mxu0 0.0
        %3266 = vmatprep.subr.mxu0 0.0
        %3267 = vmatpush1.msra.mxu0 0.0
        %3268 = vmatprep.subr.mxu0 0.0
        %3269 = vmatpush1.msra.mxu0 0.0
        %3270 = vmatprep.subr.mxu0 0.0
        %3271 = vmatpush1.msra.mxu0 0.0
        %3272 = vmatprep.mubr.f32.mxu0 0.0
        %3273 = vmatmul.mubr.f32.gmra.mrb[0].mxu0 %v3203
        %v3274 = vpop.f32.mrb[0].mxu0
        %v3275 = vadd.f32 0.0, %v3274
        %v3276 = vpop.f32.mrb[0].mxu0
        %3277 = vmatprep.mubr.f32.mxu0 0.0
        %3278 = vmatmul.mubr.f32.gmra.mrb[0].mxu0 %v3206
        %v3279 = vpop.f32.mrb[0].mxu0
        %v3280 = vadd.f32 0.0, %v3279
        %v3281 = vpop.f32.mrb[0].mxu0
        %3282 = vdwg.mxu0
        %s3283 = scalar_lea.vmem %s4, 128
        %v3284 = vld [vmem:[%s3283] sm:$0xff]
        %v3285 = vld [vmem:[%s3283 + $0x8] sm:$0xff]
        %v3286 = vld [vmem:[%s3283 + $0x10] sm:$0xff]
        %v3287 = vld [vmem:[%s3283 + $0x18] sm:$0xff]
        %3288 = vmatprep.subr.mxu0 0.0
        %3289 = vmatpush1.msra.mxu0 %v3284
        %3290 = vmatprep.subr.mxu0 0.0
        %3291 = vmatpush1.msra.mxu0 %v3285
        %3292 = vmatprep.subr.mxu0 0.0
        %3293 = vmatpush1.msra.mxu0 %v3286
        %3294 = vmatprep.subr.mxu0 0.0
        %3295 = vmatpush1.msra.mxu0 %v3287
        %3296 = vmatprep.subr.mxu0 0.0
        %3297 = vmatpush1.msra.mxu0 0.0
        %3298 = vmatprep.subr.mxu0 0.0
        %3299 = vmatpush1.msra.mxu0 0.0
        %3300 = vmatprep.subr.mxu0 0.0
        %3301 = vmatpush1.msra.mxu0 0.0
        %3302 = vmatprep.subr.mxu0 0.0
        %3303 = vmatpush1.msra.mxu0 0.0
        %3304 = vmatprep.subr.mxu0 0.0
        %3305 = vmatpush1.msra.mxu0 0.0
        %3306 = vmatprep.subr.mxu0 0.0
        %3307 = vmatpush1.msra.mxu0 0.0
        %3308 = vmatprep.subr.mxu0 0.0
        %3309 = vmatpush1.msra.mxu0 0.0
        %3310 = vmatprep.subr.mxu0 0.0
        %3311 = vmatpush1.msra.mxu0 0.0
        %3312 = vmatprep.subr.mxu0 0.0
        %3313 = vmatpush1.msra.mxu0 0.0
        %3314 = vmatprep.subr.mxu0 0.0
        %3315 = vmatpush1.msra.mxu0 0.0
        %3316 = vmatprep.subr.mxu0 0.0
        %3317 = vmatpush1.msra.mxu0 0.0
        %3318 = vmatprep.subr.mxu0 0.0
        %3319 = vmatpush1.msra.mxu0 0.0
        %3320 = vmatprep.subr.mxu0 0.0
        %3321 = vmatpush1.msra.mxu0 0.0
        %3322 = vmatprep.subr.mxu0 0.0
        %3323 = vmatpush1.msra.mxu0 0.0
        %3324 = vmatprep.subr.mxu0 0.0
        %3325 = vmatpush1.msra.mxu0 0.0
        %3326 = vmatprep.subr.mxu0 0.0
        %3327 = vmatpush1.msra.mxu0 0.0
        %3328 = vmatprep.subr.mxu0 0.0
        %3329 = vmatpush1.msra.mxu0 0.0
        %3330 = vmatprep.subr.mxu0 0.0
        %3331 = vmatpush1.msra.mxu0 0.0
        %3332 = vmatprep.subr.mxu0 0.0
        %3333 = vmatpush1.msra.mxu0 0.0
        %3334 = vmatprep.subr.mxu0 0.0
        %3335 = vmatpush1.msra.mxu0 0.0
        %3336 = vmatprep.subr.mxu0 0.0
        %3337 = vmatpush1.msra.mxu0 0.0
        %3338 = vmatprep.subr.mxu0 0.0
        %3339 = vmatpush1.msra.mxu0 0.0
        %3340 = vmatprep.subr.mxu0 0.0
        %3341 = vmatpush1.msra.mxu0 0.0
        %3342 = vmatprep.subr.mxu0 0.0
        %3343 = vmatpush1.msra.mxu0 0.0
        %3344 = vmatprep.subr.mxu0 0.0
        %3345 = vmatpush1.msra.mxu0 0.0
        %3346 = vmatprep.subr.mxu0 0.0
        %3347 = vmatpush1.msra.mxu0 0.0
        %3348 = vmatprep.subr.mxu0 0.0
        %3349 = vmatpush1.msra.mxu0 0.0
        %3350 = vmatprep.subr.mxu0 0.0
        %3351 = vmatpush1.msra.mxu0 0.0
        %3352 = vmatprep.mubr.f32.mxu0 0.0
        %3353 = vmatmul.mubr.f32.gmra.mrb[0].mxu0 %v3203
        %v3354 = vpop.f32.mrb[0].mxu0
        %v3355 = vadd.f32 0.0, %v3354
        %v3356 = vpop.f32.mrb[0].mxu0
        %3357 = vmatprep.mubr.f32.mxu0 0.0
        %3358 = vmatmul.mubr.f32.gmra.mrb[0].mxu0 %v3206
        %v3359 = vpop.f32.mrb[0].mxu0
        %v3360 = vadd.f32 0.0, %v3359
        %v3361 = vpop.f32.mrb[0].mxu0
        %3362 = vdwg.mxu0
        %s3363 = scalar_lea.vmem %s5, 128
        %v3364 = vld [vmem:[%s3363] sm:$0xff]
        %v3365 = vld [vmem:[%s3363 + $0x8] sm:$0xff]
        %v3366 = vld [vmem:[%s3363 + $0x10] sm:$0xff]
        %v3367 = vld [vmem:[%s3363 + $0x18] sm:$0xff]
        %3368 = vmatprep.subr.mxu0 0.0
        %3369 = vmatpush1.msra.mxu0 %v3364
        %3370 = vmatprep.subr.mxu0 0.0
        %3371 = vmatpush1.msra.mxu0 %v3365
        %3372 = vmatprep.subr.mxu0 0.0
        %3373 = vmatpush1.msra.mxu0 %v3366
        %3374 = vmatprep.subr.mxu0 0.0
        %3375 = vmatpush1.msra.mxu0 %v3367
        %3376 = vmatprep.subr.mxu0 0.0
        %3377 = vmatpush1.msra.mxu0 0.0
        %3378 = vmatprep.subr.mxu0 0.0
        %3379 = vmatpush1.msra.mxu0 0.0
        %3380 = vmatprep.subr.mxu0 0.0
        %3381 = vmatpush1.msra.mxu0 0.0
        %3382 = vmatprep.subr.mxu0 0.0
        %3383 = vmatpush1.msra.mxu0 0.0
        %3384 = vmatprep.subr.mxu0 0.0
        %3385 = vmatpush1.msra.mxu0 0.0
        %3386 = vmatprep.subr.mxu0 0.0
        %3387 = vmatpush1.msra.mxu0 0.0
        %3388 = vmatprep.subr.mxu0 0.0
        %3389 = vmatpush1.msra.mxu0 0.0
        %3390 = vmatprep.subr.mxu0 0.0
        %3391 = vmatpush1.msra.mxu0 0.0
        %3392 = vmatprep.subr.mxu0 0.0
        %3393 = vmatpush1.msra.mxu0 0.0
        %3394 = vmatprep.subr.mxu0 0.0
        %3395 = vmatpush1.msra.mxu0 0.0
        %3396 = vmatprep.subr.mxu0 0.0
        %3397 = vmatpush1.msra.mxu0 0.0
        %3398 = vmatprep.subr.mxu0 0.0
        %3399 = vmatpush1.msra.mxu0 0.0
        %3400 = vmatprep.subr.mxu0 0.0
        %3401 = vmatpush1.msra.mxu0 0.0
        %3402 = vmatprep.subr.mxu0 0.0
        %3403 = vmatpush1.msra.mxu0 0.0
        %3404 = vmatprep.subr.mxu0 0.0
        %3405 = vmatpush1.msra.mxu0 0.0
        %3406 = vmatprep.subr.mxu0 0.0
        %3407 = vmatpush1.msra.mxu0 0.0
        %3408 = vmatprep.subr.mxu0 0.0
        %3409 = vmatpush1.msra.mxu0 0.0
        %3410 = vmatprep.subr.mxu0 0.0
        %3411 = vmatpush1.msra.mxu0 0.0
        %3412 = vmatprep.subr.mxu0 0.0
        %3413 = vmatpush1.msra.mxu0 0.0
        %3414 = vmatprep.subr.mxu0 0.0
        %3415 = vmatpush1.msra.mxu0 0.0
        %3416 = vmatprep.subr.mxu0 0.0
        %3417 = vmatpush1.msra.mxu0 0.0
        %3418 = vmatprep.subr.mxu0 0.0
        %3419 = vmatpush1.msra.mxu0 0.0
        %3420 = vmatprep.subr.mxu0 0.0
        %3421 = vmatpush1.msra.mxu0 0.0
        %3422 = vmatprep.subr.mxu0 0.0
        %3423 = vmatpush1.msra.mxu0 0.0
        %3424 = vmatprep.subr.mxu0 0.0
        %3425 = vmatpush1.msra.mxu0 0.0
        %3426 = vmatprep.subr.mxu0 0.0
        %3427 = vmatpush1.msra.mxu0 0.0
        %3428 = vmatprep.subr.mxu0 0.0
        %3429 = vmatpush1.msra.mxu0 0.0
        %3430 = vmatprep.subr.mxu0 0.0
        %3431 = vmatpush1.msra.mxu0 0.0
        %3432 = vmatprep.mubr.f32.mxu0 0.0
        %3433 = vmatmul.mubr.f32.gmra.mrb[0].mxu0 %v3203
        %v3434 = vpop.f32.mrb[0].mxu0
        %v3435 = vadd.f32 0.0, %v3434
        %v3436 = vpop.f32.mrb[0].mxu0
        %3437 = vmatprep.mubr.f32.mxu0 0.0
        %3438 = vmatmul.mubr.f32.gmra.mrb[0].mxu0 %v3206
        %v3439 = vpop.f32.mrb[0].mxu0
        %v3440 = vadd.f32 0.0, %v3439
        %v3441 = vpop.f32.mrb[0].mxu0
        %3442 = vdwg.mxu0
        %v3444 = vsel %vm1075, %v3275, 0
        %v3447 = vsel %vm1075, %v3280, 0
        %v3450 = vsel %vm1075, %v3355, 0
        %v3453 = vsel %vm1075, %v3360, 0
        %3455 = vmatprep.subr.mxu0 0.0
        %3456 = vmatpush1.xpose.msra.mxu0 %v3450
        %3457 = vmatprep.subr.mxu0 0.0
        %3458 = vmatpush1.xpose.msra.mxu0 %v3453
        %3459 = vmatprep.subr.mxu0 0.0
        %3460 = vmatpush1.xpose.msra.mxu0 0.0
        %3461 = vmatprep.subr.mxu0 0.0
        %3462 = vmatpush1.xpose.msra.mxu0 0.0
        %3463 = vmatprep.subr.mxu0 0.0
        %3464 = vmatpush1.xpose.msra.mxu0 0.0
        %3465 = vmatprep.subr.mxu0 0.0
        %3466 = vmatpush1.xpose.msra.mxu0 0.0
        %3467 = vmatprep.subr.mxu0 0.0
        %3468 = vmatpush1.xpose.msra.mxu0 0.0
        %3469 = vmatprep.subr.mxu0 0.0
        %3470 = vmatpush1.xpose.msra.mxu0 0.0
        %3471 = vmatprep.subr.mxu0 0.0
        %3472 = vmatpush1.xpose.msra.mxu0 0.0
        %3473 = vmatprep.subr.mxu0 0.0
        %3474 = vmatpush1.xpose.msra.mxu0 0.0
        %3475 = vmatprep.subr.mxu0 0.0
        %3476 = vmatpush1.xpose.msra.mxu0 0.0
        %3477 = vmatprep.subr.mxu0 0.0
        %3478 = vmatpush1.xpose.msra.mxu0 0.0
        %3479 = vmatprep.subr.mxu0 0.0
        %3480 = vmatpush1.xpose.msra.mxu0 0.0
        %3481 = vmatprep.subr.mxu0 0.0
        %3482 = vmatpush1.xpose.msra.mxu0 0.0
        %3483 = vmatprep.subr.mxu0 0.0
        %3484 = vmatpush1.xpose.msra.mxu0 0.0
        %3485 = vmatprep.subr.mxu0 0.0
        %3486 = vmatpush1.xpose.msra.mxu0 0.0
        %3487 = vmatprep.subr.mxu0 0.0
        %3488 = vmatpush1.xpose.msra.mxu0 0.0
        %3489 = vmatprep.subr.mxu0 0.0
        %3490 = vmatpush1.xpose.msra.mxu0 0.0
        %3491 = vmatprep.subr.mxu0 0.0
        %3492 = vmatpush1.xpose.msra.mxu0 0.0
        %3493 = vmatprep.subr.mxu0 0.0
        %3494 = vmatpush1.xpose.msra.mxu0 0.0
        %3495 = vmatprep.subr.mxu0 0.0
        %3496 = vmatpush1.xpose.msra.mxu0 0.0
        %3497 = vmatprep.subr.mxu0 0.0
        %3498 = vmatpush1.xpose.msra.mxu0 0.0
        %3499 = vmatprep.subr.mxu0 0.0
        %3500 = vmatpush1.xpose.msra.mxu0 0.0
        %3501 = vmatprep.subr.mxu0 0.0
        %3502 = vmatpush1.xpose.msra.mxu0 0.0
        %3503 = vmatprep.subr.mxu0 0.0
        %3504 = vmatpush1.xpose.msra.mxu0 0.0
        %3505 = vmatprep.subr.mxu0 0.0
        %3506 = vmatpush1.xpose.msra.mxu0 0.0
        %3507 = vmatprep.subr.mxu0 0.0
        %3508 = vmatpush1.xpose.msra.mxu0 0.0
        %3509 = vmatprep.subr.mxu0 0.0
        %3510 = vmatpush1.xpose.msra.mxu0 0.0
        %3511 = vmatprep.subr.mxu0 0.0
        %3512 = vmatpush1.xpose.msra.mxu0 0.0
        %3513 = vmatprep.subr.mxu0 0.0
        %3514 = vmatpush1.xpose.msra.mxu0 0.0
        %3515 = vmatprep.subr.mxu0 0.0
        %3516 = vmatpush1.xpose.msra.mxu0 0.0
        %3517 = vmatprep.subr.mxu0 0.0
        %3518 = vmatpush1.xpose.msra.mxu0 0.0
        %3519 = vmatprep.mubr.f32.mxu0 0.0
        %3520 = vmatmul.mubr.f32.gmra.mrb[0].mxu0 %v3444
        %v3521 = vpop.f32.mrb[0].mxu0
        %v3522 = vadd.f32 %v789, %v3521
        %v3523 = vpop.f32.mrb[0].mxu0
        %3524 = vmatprep.mubr.f32.mxu0 0.0
        %3525 = vmatmul.mubr.f32.gmra.mrb[0].mxu0 %v3447
        %v3526 = vpop.f32.mrb[0].mxu0
        %v3527 = vadd.f32 %v789, %v3526
        %v3528 = vpop.f32.mrb[0].mxu0
        %3529 = vdwg.mxu0
        %v3530 = vsel %vm1163, %v3522, -inf
        %3531 = vmax.xlane.f32.xlu0 %v3530
        %v3532 = vpop.xlane.xlu0 %3531
        %v3533 = vsel %vm1163, %v3527, -inf
        %3534 = vmax.xlane.f32.xlu0 %v3533
        %v3535 = vpop.xlane.xlu0 %3534
        %v3536 = vsub.f32 %v3522, %v3532
        %v3537 = vsub.f32 %v3527, %v3535
        %v3538 = vmul.f32 %v3536, 1.442695
        %v3539 = vpow.pop %v3538
        %v3540 = vmul.f32 %v3537, 1.442695
        %v3541 = vpow.pop %v3540
        %v3542 = vsel %vm1163, %v3539, 0.0
        %3543 = vadd.xlane.f32.xlu0 %v3542
        %v3544 = vpop.xlane.xlu0 %3543
        %v3545 = vsel %vm1163, %v3541, 0.0
        %3546 = vadd.xlane.f32.xlu0 %v3545
        %v3547 = vpop.xlane.xlu0 %3546
        %v3548 = vrcp.pop %v3544
        %v3549 = vrcp.pop %v3547
        %v3550 = vmul.f32 %v3539, %v3548
        %v3551 = vmul.f32 %v3541, %v3549
        %s3552 = scalar_lea.vmem %s687, 64 [#allocation4]
        %3553 = vst.msk [vmem:[%s3552] sm:$0xff] %vm1163, %v3550
        %3554 = vst.msk [vmem:[%s3552 + $0x8] sm:$0xff] %vm1163, %v3551
        %v3556 = vsel %vm1163, %v3550, 0
        %v3559 = vsel %vm1163, %v3551, 0
        %3561 = vmatprep.subr.mxu0 0.0
        %3562 = vmatpush1.msra.mxu0 %v3435
        %3563 = vmatprep.subr.mxu0 0.0
        %3564 = vmatpush1.msra.mxu0 %v3440
        %3565 = vmatprep.subr.mxu0 0.0
        %3566 = vmatpush1.msra.mxu0 0.0
        %3567 = vmatprep.subr.mxu0 0.0
        %3568 = vmatpush1.msra.mxu0 0.0
        %3569 = vmatprep.subr.mxu0 0.0
        %3570 = vmatpush1.msra.mxu0 0.0
        %3571 = vmatprep.subr.mxu0 0.0
        %3572 = vmatpush1.msra.mxu0 0.0
        %3573 = vmatprep.subr.mxu0 0.0
        %3574 = vmatpush1.msra.mxu0 0.0
        %3575 = vmatprep.subr.mxu0 0.0
        %3576 = vmatpush1.msra.mxu0 0.0
        %3577 = vmatprep.subr.mxu0 0.0
        %3578 = vmatpush1.msra.mxu0 0.0
        %3579 = vmatprep.subr.mxu0 0.0
        %3580 = vmatpush1.msra.mxu0 0.0
        %3581 = vmatprep.subr.mxu0 0.0
        %3582 = vmatpush1.msra.mxu0 0.0
        %3583 = vmatprep.subr.mxu0 0.0
        %3584 = vmatpush1.msra.mxu0 0.0
        %3585 = vmatprep.subr.mxu0 0.0
        %3586 = vmatpush1.msra.mxu0 0.0
        %3587 = vmatprep.subr.mxu0 0.0
        %3588 = vmatpush1.msra.mxu0 0.0
        %3589 = vmatprep.subr.mxu0 0.0
        %3590 = vmatpush1.msra.mxu0 0.0
        %3591 = vmatprep.subr.mxu0 0.0
        %3592 = vmatpush1.msra.mxu0 0.0
        %3593 = vmatprep.subr.mxu0 0.0
        %3594 = vmatpush1.msra.mxu0 0.0
        %3595 = vmatprep.subr.mxu0 0.0
        %3596 = vmatpush1.msra.mxu0 0.0
        %3597 = vmatprep.subr.mxu0 0.0
        %3598 = vmatpush1.msra.mxu0 0.0
        %3599 = vmatprep.subr.mxu0 0.0
        %3600 = vmatpush1.msra.mxu0 0.0
        %3601 = vmatprep.subr.mxu0 0.0
        %3602 = vmatpush1.msra.mxu0 0.0
        %3603 = vmatprep.subr.mxu0 0.0
        %3604 = vmatpush1.msra.mxu0 0.0
        %3605 = vmatprep.subr.mxu0 0.0
        %3606 = vmatpush1.msra.mxu0 0.0
        %3607 = vmatprep.subr.mxu0 0.0
        %3608 = vmatpush1.msra.mxu0 0.0
        %3609 = vmatprep.subr.mxu0 0.0
        %3610 = vmatpush1.msra.mxu0 0.0
        %3611 = vmatprep.subr.mxu0 0.0
        %3612 = vmatpush1.msra.mxu0 0.0
        %3613 = vmatprep.subr.mxu0 0.0
        %3614 = vmatpush1.msra.mxu0 0.0
        %3615 = vmatprep.subr.mxu0 0.0
        %3616 = vmatpush1.msra.mxu0 0.0
        %3617 = vmatprep.subr.mxu0 0.0
        %3618 = vmatpush1.msra.mxu0 0.0
        %3619 = vmatprep.subr.mxu0 0.0
        %3620 = vmatpush1.msra.mxu0 0.0
        %3621 = vmatprep.subr.mxu0 0.0
        %3622 = vmatpush1.msra.mxu0 0.0
        %3623 = vmatprep.subr.mxu0 0.0
        %3624 = vmatpush1.msra.mxu0 0.0
        %3625 = vmatprep.mubr.f32.mxu0 0.0
        %3626 = vmatmul.mubr.f32.gmra.mrb[0].mxu0 %v3556
        %v3627 = vpop.f32.mrb[0].mxu0
        %v3628 = vadd.f32 0.0, %v3627
        %v3629 = vpop.f32.mrb[0].mxu0
        %3630 = vmatprep.mubr.f32.mxu0 0.0
        %3631 = vmatmul.mubr.f32.gmra.mrb[0].mxu0 %v3559
        %v3632 = vpop.f32.mrb[0].mxu0
        %v3633 = vadd.f32 0.0, %v3632
        %v3634 = vpop.f32.mrb[0].mxu0
        %3635 = vdwg.mxu0
        %s3636 = scalar_lea.vmem %s6, 32
        %v3637 = vld [vmem:[%s3636] sm:$0xff]
        %s3638 = scalar_lea.vmem %s3, 160
        %v3639 = vld [vmem:[%s3638] sm:$0xff]
        %v3640 = vld [vmem:[%s3638 + $0x8] sm:$0xff]
        %v3641 = vld [vmem:[%s3638 + $0x10] sm:$0xff]
        %v3642 = vld [vmem:[%s3638 + $0x18] sm:$0xff]
        %3643 = vmatprep.subr.mxu0 0.0
        %3644 = vmatpush1.msra.mxu0 %v3639
        %3645 = vmatprep.subr.mxu0 0.0
        %3646 = vmatpush1.msra.mxu0 %v3640
        %3647 = vmatprep.subr.mxu0 0.0
        %3648 = vmatpush1.msra.mxu0 %v3641
        %3649 = vmatprep.subr.mxu0 0.0
        %3650 = vmatpush1.msra.mxu0 %v3642
        %3651 = vmatprep.subr.mxu0 0.0
        %3652 = vmatpush1.msra.mxu0 0.0
        %3653 = vmatprep.subr.mxu0 0.0
        %3654 = vmatpush1.msra.mxu0 0.0
        %3655 = vmatprep.subr.mxu0 0.0
        %3656 = vmatpush1.msra.mxu0 0.0
        %3657 = vmatprep.subr.mxu0 0.0
        %3658 = vmatpush1.msra.mxu0 0.0
        %3659 = vmatprep.subr.mxu0 0.0
        %3660 = vmatpush1.msra.mxu0 0.0
        %3661 = vmatprep.subr.mxu0 0.0
        %3662 = vmatpush1.msra.mxu0 0.0
        %3663 = vmatprep.subr.mxu0 0.0
        %3664 = vmatpush1.msra.mxu0 0.0
        %3665 = vmatprep.subr.mxu0 0.0
        %3666 = vmatpush1.msra.mxu0 0.0
        %3667 = vmatprep.subr.mxu0 0.0
        %3668 = vmatpush1.msra.mxu0 0.0
        %3669 = vmatprep.subr.mxu0 0.0
        %3670 = vmatpush1.msra.mxu0 0.0
        %3671 = vmatprep.subr.mxu0 0.0
        %3672 = vmatpush1.msra.mxu0 0.0
        %3673 = vmatprep.subr.mxu0 0.0
        %3674 = vmatpush1.msra.mxu0 0.0
        %3675 = vmatprep.subr.mxu0 0.0
        %3676 = vmatpush1.msra.mxu0 0.0
        %3677 = vmatprep.subr.mxu0 0.0
        %3678 = vmatpush1.msra.mxu0 0.0
        %3679 = vmatprep.subr.mxu0 0.0
        %3680 = vmatpush1.msra.mxu0 0.0
        %3681 = vmatprep.subr.mxu0 0.0
        %3682 = vmatpush1.msra.mxu0 0.0
        %3683 = vmatprep.subr.mxu0 0.0
        %3684 = vmatpush1.msra.mxu0 0.0
        %3685 = vmatprep.subr.mxu0 0.0
        %3686 = vmatpush1.msra.mxu0 0.0
        %3687 = vmatprep.subr.mxu0 0.0
        %3688 = vmatpush1.msra.mxu0 0.0
        %3689 = vmatprep.subr.mxu0 0.0
        %3690 = vmatpush1.msra.mxu0 0.0
        %3691 = vmatprep.subr.mxu0 0.0
        %3692 = vmatpush1.msra.mxu0 0.0
        %3693 = vmatprep.subr.mxu0 0.0
        %3694 = vmatpush1.msra.mxu0 0.0
        %3695 = vmatprep.subr.mxu0 0.0
        %3696 = vmatpush1.msra.mxu0 0.0
        %3697 = vmatprep.subr.mxu0 0.0
        %3698 = vmatpush1.msra.mxu0 0.0
        %3699 = vmatprep.subr.mxu0 0.0
        %3700 = vmatpush1.msra.mxu0 0.0
        %3701 = vmatprep.subr.mxu0 0.0
        %3702 = vmatpush1.msra.mxu0 0.0
        %3703 = vmatprep.subr.mxu0 0.0
        %3704 = vmatpush1.msra.mxu0 0.0
        %3705 = vmatprep.subr.mxu0 0.0
        %3706 = vmatpush1.msra.mxu0 0.0
        %3707 = vmatprep.mubr.f32.mxu0 0.0
        %3708 = vmatmul.mubr.f32.gmra.mrb[0].mxu0 %v3203
        %v3709 = vpop.f32.mrb[0].mxu0
        %v3710 = vadd.f32 0.0, %v3709
        %v3711 = vpop.f32.mrb[0].mxu0
        %3712 = vmatprep.mubr.f32.mxu0 0.0
        %3713 = vmatmul.mubr.f32.gmra.mrb[0].mxu0 %v3206
        %v3714 = vpop.f32.mrb[0].mxu0
        %v3715 = vadd.f32 0.0, %v3714
        %v3716 = vpop.f32.mrb[0].mxu0
        %3717 = vdwg.mxu0
        %s3718 = scalar_lea.vmem %s4, 160
        %v3719 = vld [vmem:[%s3718] sm:$0xff]
        %v3720 = vld [vmem:[%s3718 + $0x8] sm:$0xff]
        %v3721 = vld [vmem:[%s3718 + $0x10] sm:$0xff]
        %v3722 = vld [vmem:[%s3718 + $0x18] sm:$0xff]
        %3723 = vmatprep.subr.mxu0 0.0
        %3724 = vmatpush1.msra.mxu0 %v3719
        %3725 = vmatprep.subr.mxu0 0.0
        %3726 = vmatpush1.msra.mxu0 %v3720
        %3727 = vmatprep.subr.mxu0 0.0
        %3728 = vmatpush1.msra.mxu0 %v3721
        %3729 = vmatprep.subr.mxu0 0.0
        %3730 = vmatpush1.msra.mxu0 %v3722
        %3731 = vmatprep.subr.mxu0 0.0
        %3732 = vmatpush1.msra.mxu0 0.0
        %3733 = vmatprep.subr.mxu0 0.0
        %3734 = vmatpush1.msra.mxu0 0.0
        %3735 = vmatprep.subr.mxu0 0.0
        %3736 = vmatpush1.msra.mxu0 0.0
        %3737 = vmatprep.subr.mxu0 0.0
        %3738 = vmatpush1.msra.mxu0 0.0
        %3739 = vmatprep.subr.mxu0 0.0
        %3740 = vmatpush1.msra.mxu0 0.0
        %3741 = vmatprep.subr.mxu0 0.0
        %3742 = vmatpush1.msra.mxu0 0.0
        %3743 = vmatprep.subr.mxu0 0.0
        %3744 = vmatpush1.msra.mxu0 0.0
        %3745 = vmatprep.subr.mxu0 0.0
        %3746 = vmatpush1.msra.mxu0 0.0
        %3747 = vmatprep.subr.mxu0 0.0
        %3748 = vmatpush1.msra.mxu0 0.0
        %3749 = vmatprep.subr.mxu0 0.0
        %3750 = vmatpush1.msra.mxu0 0.0
        %3751 = vmatprep.subr.mxu0 0.0
        %3752 = vmatpush1.msra.mxu0 0.0
        %3753 = vmatprep.subr.mxu0 0.0
        %3754 = vmatpush1.msra.mxu0 0.0
        %3755 = vmatprep.subr.mxu0 0.0
        %3756 = vmatpush1.msra.mxu0 0.0
        %3757 = vmatprep.subr.mxu0 0.0
        %3758 = vmatpush1.msra.mxu0 0.0
        %3759 = vmatprep.subr.mxu0 0.0
        %3760 = vmatpush1.msra.mxu0 0.0
        %3761 = vmatprep.subr.mxu0 0.0
        %3762 = vmatpush1.msra.mxu0 0.0
        %3763 = vmatprep.subr.mxu0 0.0
        %3764 = vmatpush1.msra.mxu0 0.0
        %3765 = vmatprep.subr.mxu0 0.0
        %3766 = vmatpush1.msra.mxu0 0.0
        %3767 = vmatprep.subr.mxu0 0.0
        %3768 = vmatpush1.msra.mxu0 0.0
        %3769 = vmatprep.subr.mxu0 0.0
        %3770 = vmatpush1.msra.mxu0 0.0
        %3771 = vmatprep.subr.mxu0 0.0
        %3772 = vmatpush1.msra.mxu0 0.0
        %3773 = vmatprep.subr.mxu0 0.0
        %3774 = vmatpush1.msra.mxu0 0.0
        %3775 = vmatprep.subr.mxu0 0.0
        %3776 = vmatpush1.msra.mxu0 0.0
        %3777 = vmatprep.subr.mxu0 0.0
        %3778 = vmatpush1.msra.mxu0 0.0
        %3779 = vmatprep.subr.mxu0 0.0
        %3780 = vmatpush1.msra.mxu0 0.0
        %3781 = vmatprep.subr.mxu0 0.0
        %3782 = vmatpush1.msra.mxu0 0.0
        %3783 = vmatprep.subr.mxu0 0.0
        %3784 = vmatpush1.msra.mxu0 0.0
        %3785 = vmatprep.subr.mxu0 0.0
        %3786 = vmatpush1.msra.mxu0 0.0
        %3787 = vmatprep.mubr.f32.mxu0 0.0
        %3788 = vmatmul.mubr.f32.gmra.mrb[0].mxu0 %v3203
        %v3789 = vpop.f32.mrb[0].mxu0
        %v3790 = vadd.f32 0.0, %v3789
        %v3791 = vpop.f32.mrb[0].mxu0
        %3792 = vmatprep.mubr.f32.mxu0 0.0
        %3793 = vmatmul.mubr.f32.gmra.mrb[0].mxu0 %v3206
        %v3794 = vpop.f32.mrb[0].mxu0
        %v3795 = vadd.f32 0.0, %v3794
        %v3796 = vpop.f32.mrb[0].mxu0
        %3797 = vdwg.mxu0
        %s3798 = scalar_lea.vmem %s5, 160
        %v3799 = vld [vmem:[%s3798] sm:$0xff]
        %v3800 = vld [vmem:[%s3798 + $0x8] sm:$0xff]
        %v3801 = vld [vmem:[%s3798 + $0x10] sm:$0xff]
        %v3802 = vld [vmem:[%s3798 + $0x18] sm:$0xff]
        %3803 = vmatprep.subr.mxu0 0.0
        %3804 = vmatpush1.msra.mxu0 %v3799
        %3805 = vmatprep.subr.mxu0 0.0
        %3806 = vmatpush1.msra.mxu0 %v3800
        %3807 = vmatprep.subr.mxu0 0.0
        %3808 = vmatpush1.msra.mxu0 %v3801
        %3809 = vmatprep.subr.mxu0 0.0
        %3810 = vmatpush1.msra.mxu0 %v3802
        %3811 = vmatprep.subr.mxu0 0.0
        %3812 = vmatpush1.msra.mxu0 0.0
        %3813 = vmatprep.subr.mxu0 0.0
        %3814 = vmatpush1.msra.mxu0 0.0
        %3815 = vmatprep.subr.mxu0 0.0
        %3816 = vmatpush1.msra.mxu0 0.0
        %3817 = vmatprep.subr.mxu0 0.0
        %3818 = vmatpush1.msra.mxu0 0.0
        %3819 = vmatprep.subr.mxu0 0.0
        %3820 = vmatpush1.msra.mxu0 0.0
        %3821 = vmatprep.subr.mxu0 0.0
        %3822 = vmatpush1.msra.mxu0 0.0
        %3823 = vmatprep.subr.mxu0 0.0
        %3824 = vmatpush1.msra.mxu0 0.0
        %3825 = vmatprep.subr.mxu0 0.0
        %3826 = vmatpush1.msra.mxu0 0.0
        %3827 = vmatprep.subr.mxu0 0.0
        %3828 = vmatpush1.msra.mxu0 0.0
        %3829 = vmatprep.subr.mxu0 0.0
        %3830 = vmatpush1.msra.mxu0 0.0
        %3831 = vmatprep.subr.mxu0 0.0
        %3832 = vmatpush1.msra.mxu0 0.0
        %3833 = vmatprep.subr.mxu0 0.0
        %3834 = vmatpush1.msra.mxu0 0.0
        %3835 = vmatprep.subr.mxu0 0.0
        %3836 = vmatpush1.msra.mxu0 0.0
        %3837 = vmatprep.subr.mxu0 0.0
        %3838 = vmatpush1.msra.mxu0 0.0
        %3839 = vmatprep.subr.mxu0 0.0
        %3840 = vmatpush1.msra.mxu0 0.0
        %3841 = vmatprep.subr.mxu0 0.0
        %3842 = vmatpush1.msra.mxu0 0.0
        %3843 = vmatprep.subr.mxu0 0.0
        %3844 = vmatpush1.msra.mxu0 0.0
        %3845 = vmatprep.subr.mxu0 0.0
        %3846 = vmatpush1.msra.mxu0 0.0
        %3847 = vmatprep.subr.mxu0 0.0
        %3848 = vmatpush1.msra.mxu0 0.0
        %3849 = vmatprep.subr.mxu0 0.0
        %3850 = vmatpush1.msra.mxu0 0.0
        %3851 = vmatprep.subr.mxu0 0.0
        %3852 = vmatpush1.msra.mxu0 0.0
        %3853 = vmatprep.subr.mxu0 0.0
        %3854 = vmatpush1.msra.mxu0 0.0
        %3855 = vmatprep.subr.mxu0 0.0
        %3856 = vmatpush1.msra.mxu0 0.0
        %3857 = vmatprep.subr.mxu0 0.0
        %3858 = vmatpush1.msra.mxu0 0.0
        %3859 = vmatprep.subr.mxu0 0.0
        %3860 = vmatpush1.msra.mxu0 0.0
        %3861 = vmatprep.subr.mxu0 0.0
        %3862 = vmatpush1.msra.mxu0 0.0
        %3863 = vmatprep.subr.mxu0 0.0
        %3864 = vmatpush1.msra.mxu0 0.0
        %3865 = vmatprep.subr.mxu0 0.0
        %3866 = vmatpush1.msra.mxu0 0.0
        %3867 = vmatprep.mubr.f32.mxu0 0.0
        %3868 = vmatmul.mubr.f32.gmra.mrb[0].mxu0 %v3203
        %v3869 = vpop.f32.mrb[0].mxu0
        %v3870 = vadd.f32 0.0, %v3869
        %v3871 = vpop.f32.mrb[0].mxu0
        %3872 = vmatprep.mubr.f32.mxu0 0.0
        %3873 = vmatmul.mubr.f32.gmra.mrb[0].mxu0 %v3206
        %v3874 = vpop.f32.mrb[0].mxu0
        %v3875 = vadd.f32 0.0, %v3874
        %v3876 = vpop.f32.mrb[0].mxu0
        %3877 = vdwg.mxu0
        %v3879 = vsel %vm1075, %v3710, 0
        %v3882 = vsel %vm1075, %v3715, 0
        %v3885 = vsel %vm1075, %v3790, 0
        %v3888 = vsel %vm1075, %v3795, 0
        %3890 = vmatprep.subr.mxu0 0.0
        %3891 = vmatpush1.xpose.msra.mxu0 %v3885
        %3892 = vmatprep.subr.mxu0 0.0
        %3893 = vmatpush1.xpose.msra.mxu0 %v3888
        %3894 = vmatprep.subr.mxu0 0.0
        %3895 = vmatpush1.xpose.msra.mxu0 0.0
        %3896 = vmatprep.subr.mxu0 0.0
        %3897 = vmatpush1.xpose.msra.mxu0 0.0
        %3898 = vmatprep.subr.mxu0 0.0
        %3899 = vmatpush1.xpose.msra.mxu0 0.0
        %3900 = vmatprep.subr.mxu0 0.0
        %3901 = vmatpush1.xpose.msra.mxu0 0.0
        %3902 = vmatprep.subr.mxu0 0.0
        %3903 = vmatpush1.xpose.msra.mxu0 0.0
        %3904 = vmatprep.subr.mxu0 0.0
        %3905 = vmatpush1.xpose.msra.mxu0 0.0
        %3906 = vmatprep.subr.mxu0 0.0
        %3907 = vmatpush1.xpose.msra.mxu0 0.0
        %3908 = vmatprep.subr.mxu0 0.0
        %3909 = vmatpush1.xpose.msra.mxu0 0.0
        %3910 = vmatprep.subr.mxu0 0.0
        %3911 = vmatpush1.xpose.msra.mxu0 0.0
        %3912 = vmatprep.subr.mxu0 0.0
        %3913 = vmatpush1.xpose.msra.mxu0 0.0
        %3914 = vmatprep.subr.mxu0 0.0
        %3915 = vmatpush1.xpose.msra.mxu0 0.0
        %3916 = vmatprep.subr.mxu0 0.0
        %3917 = vmatpush1.xpose.msra.mxu0 0.0
        %3918 = vmatprep.subr.mxu0 0.0
        %3919 = vmatpush1.xpose.msra.mxu0 0.0
        %3920 = vmatprep.subr.mxu0 0.0
        %3921 = vmatpush1.xpose.msra.mxu0 0.0
        %3922 = vmatprep.subr.mxu0 0.0
        %3923 = vmatpush1.xpose.msra.mxu0 0.0
        %3924 = vmatprep.subr.mxu0 0.0
        %3925 = vmatpush1.xpose.msra.mxu0 0.0
        %3926 = vmatprep.subr.mxu0 0.0
        %3927 = vmatpush1.xpose.msra.mxu0 0.0
        %3928 = vmatprep.subr.mxu0 0.0
        %3929 = vmatpush1.xpose.msra.mxu0 0.0
        %3930 = vmatprep.subr.mxu0 0.0
        %3931 = vmatpush1.xpose.msra.mxu0 0.0
        %3932 = vmatprep.subr.mxu0 0.0
        %3933 = vmatpush1.xpose.msra.mxu0 0.0
        %3934 = vmatprep.subr.mxu0 0.0
        %3935 = vmatpush1.xpose.msra.mxu0 0.0
        %3936 = vmatprep.subr.mxu0 0.0
        %3937 = vmatpush1.xpose.msra.mxu0 0.0
        %3938 = vmatprep.subr.mxu0 0.0
        %3939 = vmatpush1.xpose.msra.mxu0 0.0
        %3940 = vmatprep.subr.mxu0 0.0
        %3941 = vmatpush1.xpose.msra.mxu0 0.0
        %3942 = vmatprep.subr.mxu0 0.0
        %3943 = vmatpush1.xpose.msra.mxu0 0.0
        %3944 = vmatprep.subr.mxu0 0.0
        %3945 = vmatpush1.xpose.msra.mxu0 0.0
        %3946 = vmatprep.subr.mxu0 0.0
        %3947 = vmatpush1.xpose.msra.mxu0 0.0
        %3948 = vmatprep.subr.mxu0 0.0
        %3949 = vmatpush1.xpose.msra.mxu0 0.0
        %3950 = vmatprep.subr.mxu0 0.0
        %3951 = vmatpush1.xpose.msra.mxu0 0.0
        %3952 = vmatprep.subr.mxu0 0.0
        %3953 = vmatpush1.xpose.msra.mxu0 0.0
        %3954 = vmatprep.mubr.f32.mxu0 0.0
        %3955 = vmatmul.mubr.f32.gmra.mrb[0].mxu0 %v3879
        %v3956 = vpop.f32.mrb[0].mxu0
        %v3957 = vadd.f32 %v789, %v3956
        %v3958 = vpop.f32.mrb[0].mxu0
        %3959 = vmatprep.mubr.f32.mxu0 0.0
        %3960 = vmatmul.mubr.f32.gmra.mrb[0].mxu0 %v3882
        %v3961 = vpop.f32.mrb[0].mxu0
        %v3962 = vadd.f32 %v789, %v3961
        %v3963 = vpop.f32.mrb[0].mxu0
        %3964 = vdwg.mxu0
        %v3965 = vsel %vm1163, %v3957, -inf
        %3966 = vmax.xlane.f32.xlu0 %v3965
        %v3967 = vpop.xlane.xlu0 %3966
        %v3968 = vsel %vm1163, %v3962, -inf
        %3969 = vmax.xlane.f32.xlu0 %v3968
        %v3970 = vpop.xlane.xlu0 %3969
        %v3971 = vsub.f32 %v3957, %v3967
        %v3972 = vsub.f32 %v3962, %v3970
        %v3973 = vmul.f32 %v3971, 1.442695
        %v3974 = vpow.pop %v3973
        %v3975 = vmul.f32 %v3972, 1.442695
        %v3976 = vpow.pop %v3975
        %v3977 = vsel %vm1163, %v3974, 0.0
        %3978 = vadd.xlane.f32.xlu0 %v3977
        %v3979 = vpop.xlane.xlu0 %3978
        %v3980 = vsel %vm1163, %v3976, 0.0
        %3981 = vadd.xlane.f32.xlu0 %v3980
        %v3982 = vpop.xlane.xlu0 %3981
        %v3983 = vrcp.pop %v3979
        %v3984 = vrcp.pop %v3982
        %v3985 = vmul.f32 %v3974, %v3983
        %v3986 = vmul.f32 %v3976, %v3984
        %s3987 = scalar_lea.vmem %s687, 80 [#allocation4]
        %3988 = vst.msk [vmem:[%s3987] sm:$0xff] %vm1163, %v3985
        %3989 = vst.msk [vmem:[%s3987 + $0x8] sm:$0xff] %vm1163, %v3986
        %v3991 = vsel %vm1163, %v3985, 0
        %v3994 = vsel %vm1163, %v3986, 0
        %3996 = vmatprep.subr.mxu0 0.0
        %3997 = vmatpush1.msra.mxu0 %v3870
        %3998 = vmatprep.subr.mxu0 0.0
        %3999 = vmatpush1.msra.mxu0 %v3875
        %4000 = vmatprep.subr.mxu0 0.0
        %4001 = vmatpush1.msra.mxu0 0.0
        %4002 = vmatprep.subr.mxu0 0.0
        %4003 = vmatpush1.msra.mxu0 0.0
        %4004 = vmatprep.subr.mxu0 0.0
        %4005 = vmatpush1.msra.mxu0 0.0
        %4006 = vmatprep.subr.mxu0 0.0
        %4007 = vmatpush1.msra.mxu0 0.0
        %4008 = vmatprep.subr.mxu0 0.0
        %4009 = vmatpush1.msra.mxu0 0.0
        %4010 = vmatprep.subr.mxu0 0.0
        %4011 = vmatpush1.msra.mxu0 0.0
        %4012 = vmatprep.subr.mxu0 0.0
        %4013 = vmatpush1.msra.mxu0 0.0
        %4014 = vmatprep.subr.mxu0 0.0
        %4015 = vmatpush1.msra.mxu0 0.0
        %4016 = vmatprep.subr.mxu0 0.0
        %4017 = vmatpush1.msra.mxu0 0.0
        %4018 = vmatprep.subr.mxu0 0.0
        %4019 = vmatpush1.msra.mxu0 0.0
        %4020 = vmatprep.subr.mxu0 0.0
        %4021 = vmatpush1.msra.mxu0 0.0
        %4022 = vmatprep.subr.mxu0 0.0
        %4023 = vmatpush1.msra.mxu0 0.0
        %4024 = vmatprep.subr.mxu0 0.0
        %4025 = vmatpush1.msra.mxu0 0.0
        %4026 = vmatprep.subr.mxu0 0.0
        %4027 = vmatpush1.msra.mxu0 0.0
        %4028 = vmatprep.subr.mxu0 0.0
        %4029 = vmatpush1.msra.mxu0 0.0
        %4030 = vmatprep.subr.mxu0 0.0
        %4031 = vmatpush1.msra.mxu0 0.0
        %4032 = vmatprep.subr.mxu0 0.0
        %4033 = vmatpush1.msra.mxu0 0.0
        %4034 = vmatprep.subr.mxu0 0.0
        %4035 = vmatpush1.msra.mxu0 0.0
        %4036 = vmatprep.subr.mxu0 0.0
        %4037 = vmatpush1.msra.mxu0 0.0
        %4038 = vmatprep.subr.mxu0 0.0
        %4039 = vmatpush1.msra.mxu0 0.0
        %4040 = vmatprep.subr.mxu0 0.0
        %4041 = vmatpush1.msra.mxu0 0.0
        %4042 = vmatprep.subr.mxu0 0.0
        %4043 = vmatpush1.msra.mxu0 0.0
        %4044 = vmatprep.subr.mxu0 0.0
        %4045 = vmatpush1.msra.mxu0 0.0
        %4046 = vmatprep.subr.mxu0 0.0
        %4047 = vmatpush1.msra.mxu0 0.0
        %4048 = vmatprep.subr.mxu0 0.0
        %4049 = vmatpush1.msra.mxu0 0.0
        %4050 = vmatprep.subr.mxu0 0.0
        %4051 = vmatpush1.msra.mxu0 0.0
        %4052 = vmatprep.subr.mxu0 0.0
        %4053 = vmatpush1.msra.mxu0 0.0
        %4054 = vmatprep.subr.mxu0 0.0
        %4055 = vmatpush1.msra.mxu0 0.0
        %4056 = vmatprep.subr.mxu0 0.0
        %4057 = vmatpush1.msra.mxu0 0.0
        %4058 = vmatprep.subr.mxu0 0.0
        %4059 = vmatpush1.msra.mxu0 0.0
        %4060 = vmatprep.mubr.f32.mxu0 0.0
        %4061 = vmatmul.mubr.f32.gmra.mrb[0].mxu0 %v3991
        %v4062 = vpop.f32.mrb[0].mxu0
        %v4063 = vadd.f32 0.0, %v4062
        %v4064 = vpop.f32.mrb[0].mxu0
        %4065 = vmatprep.mubr.f32.mxu0 0.0
        %4066 = vmatmul.mubr.f32.gmra.mrb[0].mxu0 %v3994
        %v4067 = vpop.f32.mrb[0].mxu0
        %v4068 = vadd.f32 0.0, %v4067
        %v4069 = vpop.f32.mrb[0].mxu0
        %4070 = vdwg.mxu0
        %s4071 = scalar_lea.vmem %s6, 40
        %v4072 = vld [vmem:[%s4071] sm:$0xff]
        %v4074 = vsel %vm1075, %v4063, 0
        %v4077 = vsel %vm1075, %v4068, 0
        %4079 = vmatprep.subr.mxu0 0.0
        %4080 = vmatpush1.msra.mxu0 %v4072
        %4081 = vmatprep.subr.mxu0 0.0
        %4082 = vmatpush1.msra.mxu0 0.0
        %4083 = vmatprep.subr.mxu0 0.0
        %4084 = vmatpush1.msra.mxu0 0.0
        %4085 = vmatprep.subr.mxu0 0.0
        %4086 = vmatpush1.msra.mxu0 0.0
        %4087 = vmatprep.subr.mxu0 0.0
        %4088 = vmatpush1.msra.mxu0 0.0
        %4089 = vmatprep.subr.mxu0 0.0
        %4090 = vmatpush1.msra.mxu0 0.0
        %4091 = vmatprep.subr.mxu0 0.0
        %4092 = vmatpush1.msra.mxu0 0.0
        %4093 = vmatprep.subr.mxu0 0.0
        %4094 = vmatpush1.msra.mxu0 0.0
        %4095 = vmatprep.subr.mxu0 0.0
        %4096 = vmatpush1.msra.mxu0 0.0
        %4097 = vmatprep.subr.mxu0 0.0
        %4098 = vmatpush1.msra.mxu0 0.0
        %4099 = vmatprep.subr.mxu0 0.0
        %4100 = vmatpush1.msra.mxu0 0.0
        %4101 = vmatprep.subr.mxu0 0.0
        %4102 = vmatpush1.msra.mxu0 0.0
        %4103 = vmatprep.subr.mxu0 0.0
        %4104 = vmatpush1.msra.mxu0 0.0
        %4105 = vmatprep.subr.mxu0 0.0
        %4106 = vmatpush1.msra.mxu0 0.0
        %4107 = vmatprep.subr.mxu0 0.0
        %4108 = vmatpush1.msra.mxu0 0.0
        %4109 = vmatprep.subr.mxu0 0.0
        %4110 = vmatpush1.msra.mxu0 0.0
        %4111 = vmatprep.subr.mxu0 0.0
        %4112 = vmatpush1.msra.mxu0 0.0
        %4113 = vmatprep.subr.mxu0 0.0
        %4114 = vmatpush1.msra.mxu0 0.0
        %4115 = vmatprep.subr.mxu0 0.0
        %4116 = vmatpush1.msra.mxu0 0.0
        %4117 = vmatprep.subr.mxu0 0.0
        %4118 = vmatpush1.msra.mxu0 0.0
        %4119 = vmatprep.subr.mxu0 0.0
        %4120 = vmatpush1.msra.mxu0 0.0
        %4121 = vmatprep.subr.mxu0 0.0
        %4122 = vmatpush1.msra.mxu0 0.0
        %4123 = vmatprep.subr.mxu0 0.0
        %4124 = vmatpush1.msra.mxu0 0.0
        %4125 = vmatprep.subr.mxu0 0.0
        %4126 = vmatpush1.msra.mxu0 0.0
        %4127 = vmatprep.subr.mxu0 0.0
        %4128 = vmatpush1.msra.mxu0 0.0
        %4129 = vmatprep.subr.mxu0 0.0
        %4130 = vmatpush1.msra.mxu0 0.0
        %4131 = vmatprep.subr.mxu0 0.0
        %4132 = vmatpush1.msra.mxu0 0.0
        %4133 = vmatprep.subr.mxu0 0.0
        %4134 = vmatpush1.msra.mxu0 0.0
        %4135 = vmatprep.subr.mxu0 0.0
        %4136 = vmatpush1.msra.mxu0 0.0
        %4137 = vmatprep.subr.mxu0 0.0
        %4138 = vmatpush1.msra.mxu0 0.0
        %4139 = vmatprep.subr.mxu0 0.0
        %4140 = vmatpush1.msra.mxu0 0.0
        %4141 = vmatprep.subr.mxu0 0.0
        %4142 = vmatpush1.msra.mxu0 0.0
        %4143 = vmatprep.mubr.f32.mxu0 0.0
        %4144 = vmatmul.mubr.f32.gmra.mrb[0].mxu0 %v4074
        %v4145 = vpop.f32.mrb[0].mxu0
        %v4146 = vadd.f32 0.0, %v4145
        %v4147 = vpop.f32.mrb[0].mxu0
        %4148 = vmatprep.mubr.f32.mxu0 0.0
        %4149 = vmatmul.mubr.f32.gmra.mrb[0].mxu0 %v4077
        %v4150 = vpop.f32.mrb[0].mxu0
        %v4151 = vadd.f32 0.0, %v4150
        %v4152 = vpop.f32.mrb[0].mxu0
        %4153 = vdwg.mxu0
        %v4155 = vsel %vm1075, %v3628, 0
        %v4158 = vsel %vm1075, %v3633, 0
        %4160 = vmatprep.subr.mxu0 0.0
        %4161 = vmatpush1.msra.mxu0 %v3637
        %4162 = vmatprep.subr.mxu0 0.0
        %4163 = vmatpush1.msra.mxu0 0.0
        %4164 = vmatprep.subr.mxu0 0.0
        %4165 = vmatpush1.msra.mxu0 0.0
        %4166 = vmatprep.subr.mxu0 0.0
        %4167 = vmatpush1.msra.mxu0 0.0
        %4168 = vmatprep.subr.mxu0 0.0
        %4169 = vmatpush1.msra.mxu0 0.0
        %4170 = vmatprep.subr.mxu0 0.0
        %4171 = vmatpush1.msra.mxu0 0.0
        %4172 = vmatprep.subr.mxu0 0.0
        %4173 = vmatpush1.msra.mxu0 0.0
        %4174 = vmatprep.subr.mxu0 0.0
        %4175 = vmatpush1.msra.mxu0 0.0
        %4176 = vmatprep.subr.mxu0 0.0
        %4177 = vmatpush1.msra.mxu0 0.0
        %4178 = vmatprep.subr.mxu0 0.0
        %4179 = vmatpush1.msra.mxu0 0.0
        %4180 = vmatprep.subr.mxu0 0.0
        %4181 = vmatpush1.msra.mxu0 0.0
        %4182 = vmatprep.subr.mxu0 0.0
        %4183 = vmatpush1.msra.mxu0 0.0
        %4184 = vmatprep.subr.mxu0 0.0
        %4185 = vmatpush1.msra.mxu0 0.0
        %4186 = vmatprep.subr.mxu0 0.0
        %4187 = vmatpush1.msra.mxu0 0.0
        %4188 = vmatprep.subr.mxu0 0.0
        %4189 = vmatpush1.msra.mxu0 0.0
        %4190 = vmatprep.subr.mxu0 0.0
        %4191 = vmatpush1.msra.mxu0 0.0
        %4192 = vmatprep.subr.mxu0 0.0
        %4193 = vmatpush1.msra.mxu0 0.0
        %4194 = vmatprep.subr.mxu0 0.0
        %4195 = vmatpush1.msra.mxu0 0.0
        %4196 = vmatprep.subr.mxu0 0.0
        %4197 = vmatpush1.msra.mxu0 0.0
        %4198 = vmatprep.subr.mxu0 0.0
        %4199 = vmatpush1.msra.mxu0 0.0
        %4200 = vmatprep.subr.mxu0 0.0
        %4201 = vmatpush1.msra.mxu0 0.0
        %4202 = vmatprep.subr.mxu0 0.0
        %4203 = vmatpush1.msra.mxu0 0.0
        %4204 = vmatprep.subr.mxu0 0.0
        %4205 = vmatpush1.msra.mxu0 0.0
        %4206 = vmatprep.subr.mxu0 0.0
        %4207 = vmatpush1.msra.mxu0 0.0
        %4208 = vmatprep.subr.mxu0 0.0
        %4209 = vmatpush1.msra.mxu0 0.0
        %4210 = vmatprep.subr.mxu0 0.0
        %4211 = vmatpush1.msra.mxu0 0.0
        %4212 = vmatprep.subr.mxu0 0.0
        %4213 = vmatpush1.msra.mxu0 0.0
        %4214 = vmatprep.subr.mxu0 0.0
        %4215 = vmatpush1.msra.mxu0 0.0
        %4216 = vmatprep.subr.mxu0 0.0
        %4217 = vmatpush1.msra.mxu0 0.0
        %4218 = vmatprep.subr.mxu0 0.0
        %4219 = vmatpush1.msra.mxu0 0.0
        %4220 = vmatprep.subr.mxu0 0.0
        %4221 = vmatpush1.msra.mxu0 0.0
        %4222 = vmatprep.subr.mxu0 0.0
        %4223 = vmatpush1.msra.mxu0 0.0
        %4224 = vmatprep.mubr.f32.mxu0 0.0
        %4225 = vmatmul.mubr.f32.gmra.mrb[0].mxu0 %v4155
        %v4226 = vpop.f32.mrb[0].mxu0
        %v4227 = vadd.f32 %v4146, %v4226
        %v4228 = vpop.f32.mrb[0].mxu0
        %4229 = vmatprep.mubr.f32.mxu0 0.0
        %4230 = vmatmul.mubr.f32.gmra.mrb[0].mxu0 %v4158
        %v4231 = vpop.f32.mrb[0].mxu0
        %v4232 = vadd.f32 %v4151, %v4231
        %v4233 = vpop.f32.mrb[0].mxu0
        %4234 = vdwg.mxu0
        %s4235 = scalar_lea.vmem %s3, 192
        %v4236 = vld [vmem:[%s4235] sm:$0xff]
        %v4237 = vld [vmem:[%s4235 + $0x8] sm:$0xff]
        %v4238 = vld [vmem:[%s4235 + $0x10] sm:$0xff]
        %v4239 = vld [vmem:[%s4235 + $0x18] sm:$0xff]
        %4240 = vmatprep.subr.mxu0 0.0
        %4241 = vmatpush1.msra.mxu0 %v4236
        %4242 = vmatprep.subr.mxu0 0.0
        %4243 = vmatpush1.msra.mxu0 %v4237
        %4244 = vmatprep.subr.mxu0 0.0
        %4245 = vmatpush1.msra.mxu0 %v4238
        %4246 = vmatprep.subr.mxu0 0.0
        %4247 = vmatpush1.msra.mxu0 %v4239
        %4248 = vmatprep.subr.mxu0 0.0
        %4249 = vmatpush1.msra.mxu0 0.0
        %4250 = vmatprep.subr.mxu0 0.0
        %4251 = vmatpush1.msra.mxu0 0.0
        %4252 = vmatprep.subr.mxu0 0.0
        %4253 = vmatpush1.msra.mxu0 0.0
        %4254 = vmatprep.subr.mxu0 0.0
        %4255 = vmatpush1.msra.mxu0 0.0
        %4256 = vmatprep.subr.mxu0 0.0
        %4257 = vmatpush1.msra.mxu0 0.0
        %4258 = vmatprep.subr.mxu0 0.0
        %4259 = vmatpush1.msra.mxu0 0.0
        %4260 = vmatprep.subr.mxu0 0.0
        %4261 = vmatpush1.msra.mxu0 0.0
        %4262 = vmatprep.subr.mxu0 0.0
        %4263 = vmatpush1.msra.mxu0 0.0
        %4264 = vmatprep.subr.mxu0 0.0
        %4265 = vmatpush1.msra.mxu0 0.0
        %4266 = vmatprep.subr.mxu0 0.0
        %4267 = vmatpush1.msra.mxu0 0.0
        %4268 = vmatprep.subr.mxu0 0.0
        %4269 = vmatpush1.msra.mxu0 0.0
        %4270 = vmatprep.subr.mxu0 0.0
        %4271 = vmatpush1.msra.mxu0 0.0
        %4272 = vmatprep.subr.mxu0 0.0
        %4273 = vmatpush1.msra.mxu0 0.0
        %4274 = vmatprep.subr.mxu0 0.0
        %4275 = vmatpush1.msra.mxu0 0.0
        %4276 = vmatprep.subr.mxu0 0.0
        %4277 = vmatpush1.msra.mxu0 0.0
        %4278 = vmatprep.subr.mxu0 0.0
        %4279 = vmatpush1.msra.mxu0 0.0
        %4280 = vmatprep.subr.mxu0 0.0
        %4281 = vmatpush1.msra.mxu0 0.0
        %4282 = vmatprep.subr.mxu0 0.0
        %4283 = vmatpush1.msra.mxu0 0.0
        %4284 = vmatprep.subr.mxu0 0.0
        %4285 = vmatpush1.msra.mxu0 0.0
        %4286 = vmatprep.subr.mxu0 0.0
        %4287 = vmatpush1.msra.mxu0 0.0
        %4288 = vmatprep.subr.mxu0 0.0
        %4289 = vmatpush1.msra.mxu0 0.0
        %4290 = vmatprep.subr.mxu0 0.0
        %4291 = vmatpush1.msra.mxu0 0.0
        %4292 = vmatprep.subr.mxu0 0.0
        %4293 = vmatpush1.msra.mxu0 0.0
        %4294 = vmatprep.subr.mxu0 0.0
        %4295 = vmatpush1.msra.mxu0 0.0
        %4296 = vmatprep.subr.mxu0 0.0
        %4297 = vmatpush1.msra.mxu0 0.0
        %4298 = vmatprep.subr.mxu0 0.0
        %4299 = vmatpush1.msra.mxu0 0.0
        %4300 = vmatprep.subr.mxu0 0.0
        %4301 = vmatpush1.msra.mxu0 0.0
        %4302 = vmatprep.subr.mxu0 0.0
        %4303 = vmatpush1.msra.mxu0 0.0
        %4304 = vmatprep.mubr.f32.mxu0 0.0
        %4305 = vmatmul.mubr.f32.gmra.mrb[0].mxu0 %v3203
        %v4306 = vpop.f32.mrb[0].mxu0
        %v4307 = vadd.f32 0.0, %v4306
        %v4308 = vpop.f32.mrb[0].mxu0
        %4309 = vmatprep.mubr.f32.mxu0 0.0
        %4310 = vmatmul.mubr.f32.gmra.mrb[0].mxu0 %v3206
        %v4311 = vpop.f32.mrb[0].mxu0
        %v4312 = vadd.f32 0.0, %v4311
        %v4313 = vpop.f32.mrb[0].mxu0
        %4314 = vdwg.mxu0
        %s4315 = scalar_lea.vmem %s4, 192
        %v4316 = vld [vmem:[%s4315] sm:$0xff]
        %v4317 = vld [vmem:[%s4315 + $0x8] sm:$0xff]
        %v4318 = vld [vmem:[%s4315 + $0x10] sm:$0xff]
        %v4319 = vld [vmem:[%s4315 + $0x18] sm:$0xff]
        %4320 = vmatprep.subr.mxu0 0.0
        %4321 = vmatpush1.msra.mxu0 %v4316
        %4322 = vmatprep.subr.mxu0 0.0
        %4323 = vmatpush1.msra.mxu0 %v4317
        %4324 = vmatprep.subr.mxu0 0.0
        %4325 = vmatpush1.msra.mxu0 %v4318
        %4326 = vmatprep.subr.mxu0 0.0
        %4327 = vmatpush1.msra.mxu0 %v4319
        %4328 = vmatprep.subr.mxu0 0.0
        %4329 = vmatpush1.msra.mxu0 0.0
        %4330 = vmatprep.subr.mxu0 0.0
        %4331 = vmatpush1.msra.mxu0 0.0
        %4332 = vmatprep.subr.mxu0 0.0
        %4333 = vmatpush1.msra.mxu0 0.0
        %4334 = vmatprep.subr.mxu0 0.0
        %4335 = vmatpush1.msra.mxu0 0.0
        %4336 = vmatprep.subr.mxu0 0.0
        %4337 = vmatpush1.msra.mxu0 0.0
        %4338 = vmatprep.subr.mxu0 0.0
        %4339 = vmatpush1.msra.mxu0 0.0
        %4340 = vmatprep.subr.mxu0 0.0
        %4341 = vmatpush1.msra.mxu0 0.0
        %4342 = vmatprep.subr.mxu0 0.0
        %4343 = vmatpush1.msra.mxu0 0.0
        %4344 = vmatprep.subr.mxu0 0.0
        %4345 = vmatpush1.msra.mxu0 0.0
        %4346 = vmatprep.subr.mxu0 0.0
        %4347 = vmatpush1.msra.mxu0 0.0
        %4348 = vmatprep.subr.mxu0 0.0
        %4349 = vmatpush1.msra.mxu0 0.0
        %4350 = vmatprep.subr.mxu0 0.0
        %4351 = vmatpush1.msra.mxu0 0.0
        %4352 = vmatprep.subr.mxu0 0.0
        %4353 = vmatpush1.msra.mxu0 0.0
        %4354 = vmatprep.subr.mxu0 0.0
        %4355 = vmatpush1.msra.mxu0 0.0
        %4356 = vmatprep.subr.mxu0 0.0
        %4357 = vmatpush1.msra.mxu0 0.0
        %4358 = vmatprep.subr.mxu0 0.0
        %4359 = vmatpush1.msra.mxu0 0.0
        %4360 = vmatprep.subr.mxu0 0.0
        %4361 = vmatpush1.msra.mxu0 0.0
        %4362 = vmatprep.subr.mxu0 0.0
        %4363 = vmatpush1.msra.mxu0 0.0
        %4364 = vmatprep.subr.mxu0 0.0
        %4365 = vmatpush1.msra.mxu0 0.0
        %4366 = vmatprep.subr.mxu0 0.0
        %4367 = vmatpush1.msra.mxu0 0.0
        %4368 = vmatprep.subr.mxu0 0.0
        %4369 = vmatpush1.msra.mxu0 0.0
        %4370 = vmatprep.subr.mxu0 0.0
        %4371 = vmatpush1.msra.mxu0 0.0
        %4372 = vmatprep.subr.mxu0 0.0
        %4373 = vmatpush1.msra.mxu0 0.0
        %4374 = vmatprep.subr.mxu0 0.0
        %4375 = vmatpush1.msra.mxu0 0.0
        %4376 = vmatprep.subr.mxu0 0.0
        %4377 = vmatpush1.msra.mxu0 0.0
        %4378 = vmatprep.subr.mxu0 0.0
        %4379 = vmatpush1.msra.mxu0 0.0
        %4380 = vmatprep.subr.mxu0 0.0
        %4381 = vmatpush1.msra.mxu0 0.0
        %4382 = vmatprep.subr.mxu0 0.0
        %4383 = vmatpush1.msra.mxu0 0.0
        %4384 = vmatprep.mubr.f32.mxu0 0.0
        %4385 = vmatmul.mubr.f32.gmra.mrb[0].mxu0 %v3203
        %v4386 = vpop.f32.mrb[0].mxu0
        %v4387 = vadd.f32 0.0, %v4386
        %v4388 = vpop.f32.mrb[0].mxu0
        %4389 = vmatprep.mubr.f32.mxu0 0.0
        %4390 = vmatmul.mubr.f32.gmra.mrb[0].mxu0 %v3206
        %v4391 = vpop.f32.mrb[0].mxu0
        %v4392 = vadd.f32 0.0, %v4391
        %v4393 = vpop.f32.mrb[0].mxu0
        %4394 = vdwg.mxu0
        %s4395 = scalar_lea.vmem %s5, 192
        %v4396 = vld [vmem:[%s4395] sm:$0xff]
        %v4397 = vld [vmem:[%s4395 + $0x8] sm:$0xff]
        %v4398 = vld [vmem:[%s4395 + $0x10] sm:$0xff]
        %v4399 = vld [vmem:[%s4395 + $0x18] sm:$0xff]
        %4400 = vmatprep.subr.mxu0 0.0
        %4401 = vmatpush1.msra.mxu0 %v4396
        %4402 = vmatprep.subr.mxu0 0.0
        %4403 = vmatpush1.msra.mxu0 %v4397
        %4404 = vmatprep.subr.mxu0 0.0
        %4405 = vmatpush1.msra.mxu0 %v4398
        %4406 = vmatprep.subr.mxu0 0.0
        %4407 = vmatpush1.msra.mxu0 %v4399
        %4408 = vmatprep.subr.mxu0 0.0
        %4409 = vmatpush1.msra.mxu0 0.0
        %4410 = vmatprep.subr.mxu0 0.0
        %4411 = vmatpush1.msra.mxu0 0.0
        %4412 = vmatprep.subr.mxu0 0.0
        %4413 = vmatpush1.msra.mxu0 0.0
        %4414 = vmatprep.subr.mxu0 0.0
        %4415 = vmatpush1.msra.mxu0 0.0
        %4416 = vmatprep.subr.mxu0 0.0
        %4417 = vmatpush1.msra.mxu0 0.0
        %4418 = vmatprep.subr.mxu0 0.0
        %4419 = vmatpush1.msra.mxu0 0.0
        %4420 = vmatprep.subr.mxu0 0.0
        %4421 = vmatpush1.msra.mxu0 0.0
        %4422 = vmatprep.subr.mxu0 0.0
        %4423 = vmatpush1.msra.mxu0 0.0
        %4424 = vmatprep.subr.mxu0 0.0
        %4425 = vmatpush1.msra.mxu0 0.0
        %4426 = vmatprep.subr.mxu0 0.0
        %4427 = vmatpush1.msra.mxu0 0.0
        %4428 = vmatprep.subr.mxu0 0.0
        %4429 = vmatpush1.msra.mxu0 0.0
        %4430 = vmatprep.subr.mxu0 0.0
        %4431 = vmatpush1.msra.mxu0 0.0
        %4432 = vmatprep.subr.mxu0 0.0
        %4433 = vmatpush1.msra.mxu0 0.0
        %4434 = vmatprep.subr.mxu0 0.0
        %4435 = vmatpush1.msra.mxu0 0.0
        %4436 = vmatprep.subr.mxu0 0.0
        %4437 = vmatpush1.msra.mxu0 0.0
        %4438 = vmatprep.subr.mxu0 0.0
        %4439 = vmatpush1.msra.mxu0 0.0
        %4440 = vmatprep.subr.mxu0 0.0
        %4441 = vmatpush1.msra.mxu0 0.0
        %4442 = vmatprep.subr.mxu0 0.0
        %4443 = vmatpush1.msra.mxu0 0.0
        %4444 = vmatprep.subr.mxu0 0.0
        %4445 = vmatpush1.msra.mxu0 0.0
        %4446 = vmatprep.subr.mxu0 0.0
        %4447 = vmatpush1.msra.mxu0 0.0
        %4448 = vmatprep.subr.mxu0 0.0
        %4449 = vmatpush1.msra.mxu0 0.0
        %4450 = vmatprep.subr.mxu0 0.0
        %4451 = vmatpush1.msra.mxu0 0.0
        %4452 = vmatprep.subr.mxu0 0.0
        %4453 = vmatpush1.msra.mxu0 0.0
        %4454 = vmatprep.subr.mxu0 0.0
        %4455 = vmatpush1.msra.mxu0 0.0
        %4456 = vmatprep.subr.mxu0 0.0
        %4457 = vmatpush1.msra.mxu0 0.0
        %4458 = vmatprep.subr.mxu0 0.0
        %4459 = vmatpush1.msra.mxu0 0.0
        %4460 = vmatprep.subr.mxu0 0.0
        %4461 = vmatpush1.msra.mxu0 0.0
        %4462 = vmatprep.subr.mxu0 0.0
        %4463 = vmatpush1.msra.mxu0 0.0
        %4464 = vmatprep.mubr.f32.mxu0 0.0
        %4465 = vmatmul.mubr.f32.gmra.mrb[0].mxu0 %v3203
        %v4466 = vpop.f32.mrb[0].mxu0
        %v4467 = vadd.f32 0.0, %v4466
        %v4468 = vpop.f32.mrb[0].mxu0
        %4469 = vmatprep.mubr.f32.mxu0 0.0
        %4470 = vmatmul.mubr.f32.gmra.mrb[0].mxu0 %v3206
        %v4471 = vpop.f32.mrb[0].mxu0
        %v4472 = vadd.f32 0.0, %v4471
        %v4473 = vpop.f32.mrb[0].mxu0
        %4474 = vdwg.mxu0
        %v4476 = vsel %vm1075, %v4307, 0
        %v4479 = vsel %vm1075, %v4312, 0
        %v4482 = vsel %vm1075, %v4387, 0
        %v4485 = vsel %vm1075, %v4392, 0
        %4487 = vmatprep.subr.mxu0 0.0
        %4488 = vmatpush1.xpose.msra.mxu0 %v4482
        %4489 = vmatprep.subr.mxu0 0.0
        %4490 = vmatpush1.xpose.msra.mxu0 %v4485
        %4491 = vmatprep.subr.mxu0 0.0
        %4492 = vmatpush1.xpose.msra.mxu0 0.0
        %4493 = vmatprep.subr.mxu0 0.0
        %4494 = vmatpush1.xpose.msra.mxu0 0.0
        %4495 = vmatprep.subr.mxu0 0.0
        %4496 = vmatpush1.xpose.msra.mxu0 0.0
        %4497 = vmatprep.subr.mxu0 0.0
        %4498 = vmatpush1.xpose.msra.mxu0 0.0
        %4499 = vmatprep.subr.mxu0 0.0
        %4500 = vmatpush1.xpose.msra.mxu0 0.0
        %4501 = vmatprep.subr.mxu0 0.0
        %4502 = vmatpush1.xpose.msra.mxu0 0.0
        %4503 = vmatprep.subr.mxu0 0.0
        %4504 = vmatpush1.xpose.msra.mxu0 0.0
        %4505 = vmatprep.subr.mxu0 0.0
        %4506 = vmatpush1.xpose.msra.mxu0 0.0
        %4507 = vmatprep.subr.mxu0 0.0
        %4508 = vmatpush1.xpose.msra.mxu0 0.0
        %4509 = vmatprep.subr.mxu0 0.0
        %4510 = vmatpush1.xpose.msra.mxu0 0.0
        %4511 = vmatprep.subr.mxu0 0.0
        %4512 = vmatpush1.xpose.msra.mxu0 0.0
        %4513 = vmatprep.subr.mxu0 0.0
        %4514 = vmatpush1.xpose.msra.mxu0 0.0
        %4515 = vmatprep.subr.mxu0 0.0
        %4516 = vmatpush1.xpose.msra.mxu0 0.0
        %4517 = vmatprep.subr.mxu0 0.0
        %4518 = vmatpush1.xpose.msra.mxu0 0.0
        %4519 = vmatprep.subr.mxu0 0.0
        %4520 = vmatpush1.xpose.msra.mxu0 0.0
        %4521 = vmatprep.subr.mxu0 0.0
        %4522 = vmatpush1.xpose.msra.mxu0 0.0
        %4523 = vmatprep.subr.mxu0 0.0
        %4524 = vmatpush1.xpose.msra.mxu0 0.0
        %4525 = vmatprep.subr.mxu0 0.0
        %4526 = vmatpush1.xpose.msra.mxu0 0.0
        %4527 = vmatprep.subr.mxu0 0.0
        %4528 = vmatpush1.xpose.msra.mxu0 0.0
        %4529 = vmatprep.subr.mxu0 0.0
        %4530 = vmatpush1.xpose.msra.mxu0 0.0
        %4531 = vmatprep.subr.mxu0 0.0
        %4532 = vmatpush1.xpose.msra.mxu0 0.0
        %4533 = vmatprep.subr.mxu0 0.0
        %4534 = vmatpush1.xpose.msra.mxu0 0.0
        %4535 = vmatprep.subr.mxu0 0.0
        %4536 = vmatpush1.xpose.msra.mxu0 0.0
        %4537 = vmatprep.subr.mxu0 0.0
        %4538 = vmatpush1.xpose.msra.mxu0 0.0
        %4539 = vmatprep.subr.mxu0 0.0
        %4540 = vmatpush1.xpose.msra.mxu0 0.0
        %4541 = vmatprep.subr.mxu0 0.0
        %4542 = vmatpush1.xpose.msra.mxu0 0.0
        %4543 = vmatprep.subr.mxu0 0.0
        %4544 = vmatpush1.xpose.msra.mxu0 0.0
        %4545 = vmatprep.subr.mxu0 0.0
        %4546 = vmatpush1.xpose.msra.mxu0 0.0
        %4547 = vmatprep.subr.mxu0 0.0
        %4548 = vmatpush1.xpose.msra.mxu0 0.0
        %4549 = vmatprep.subr.mxu0 0.0
        %4550 = vmatpush1.xpose.msra.mxu0 0.0
        %4551 = vmatprep.mubr.f32.mxu0 0.0
        %4552 = vmatmul.mubr.f32.gmra.mrb[0].mxu0 %v4476
        %v4553 = vpop.f32.mrb[0].mxu0
        %v4554 = vadd.f32 %v789, %v4553
        %v4555 = vpop.f32.mrb[0].mxu0
        %4556 = vmatprep.mubr.f32.mxu0 0.0
        %4557 = vmatmul.mubr.f32.gmra.mrb[0].mxu0 %v4479
        %v4558 = vpop.f32.mrb[0].mxu0
        %v4559 = vadd.f32 %v789, %v4558
        %v4560 = vpop.f32.mrb[0].mxu0
        %4561 = vdwg.mxu0
        %v4562 = vsel %vm1163, %v4554, -inf
        %4563 = vmax.xlane.f32.xlu0 %v4562
        %v4564 = vpop.xlane.xlu0 %4563
        %v4565 = vsel %vm1163, %v4559, -inf
        %4566 = vmax.xlane.f32.xlu0 %v4565
        %v4567 = vpop.xlane.xlu0 %4566
        %v4568 = vsub.f32 %v4554, %v4564
        %v4569 = vsub.f32 %v4559, %v4567
        %v4570 = vmul.f32 %v4568, 1.442695
        %v4571 = vpow.pop %v4570
        %v4572 = vmul.f32 %v4569, 1.442695
        %v4573 = vpow.pop %v4572
        %v4574 = vsel %vm1163, %v4571, 0.0
        %4575 = vadd.xlane.f32.xlu0 %v4574
        %v4576 = vpop.xlane.xlu0 %4575
        %v4577 = vsel %vm1163, %v4573, 0.0
        %4578 = vadd.xlane.f32.xlu0 %v4577
        %v4579 = vpop.xlane.xlu0 %4578
        %v4580 = vrcp.pop %v4576
        %v4581 = vrcp.pop %v4579
        %v4582 = vmul.f32 %v4571, %v4580
        %v4583 = vmul.f32 %v4573, %v4581
        %s4584 = scalar_lea.vmem %s687, 96 [#allocation4]
        %4585 = vst.msk [vmem:[%s4584] sm:$0xff] %vm1163, %v4582
        %4586 = vst.msk [vmem:[%s4584 + $0x8] sm:$0xff] %vm1163, %v4583
        %v4588 = vsel %vm1163, %v4582, 0
        %v4591 = vsel %vm1163, %v4583, 0
        %4593 = vmatprep.subr.mxu0 0.0
        %4594 = vmatpush1.msra.mxu0 %v4467
        %4595 = vmatprep.subr.mxu0 0.0
        %4596 = vmatpush1.msra.mxu0 %v4472
        %4597 = vmatprep.subr.mxu0 0.0
        %4598 = vmatpush1.msra.mxu0 0.0
        %4599 = vmatprep.subr.mxu0 0.0
        %4600 = vmatpush1.msra.mxu0 0.0
        %4601 = vmatprep.subr.mxu0 0.0
        %4602 = vmatpush1.msra.mxu0 0.0
        %4603 = vmatprep.subr.mxu0 0.0
        %4604 = vmatpush1.msra.mxu0 0.0
        %4605 = vmatprep.subr.mxu0 0.0
        %4606 = vmatpush1.msra.mxu0 0.0
        %4607 = vmatprep.subr.mxu0 0.0
        %4608 = vmatpush1.msra.mxu0 0.0
        %4609 = vmatprep.subr.mxu0 0.0
        %4610 = vmatpush1.msra.mxu0 0.0
        %4611 = vmatprep.subr.mxu0 0.0
        %4612 = vmatpush1.msra.mxu0 0.0
        %4613 = vmatprep.subr.mxu0 0.0
        %4614 = vmatpush1.msra.mxu0 0.0
        %4615 = vmatprep.subr.mxu0 0.0
        %4616 = vmatpush1.msra.mxu0 0.0
        %4617 = vmatprep.subr.mxu0 0.0
        %4618 = vmatpush1.msra.mxu0 0.0
        %4619 = vmatprep.subr.mxu0 0.0
        %4620 = vmatpush1.msra.mxu0 0.0
        %4621 = vmatprep.subr.mxu0 0.0
        %4622 = vmatpush1.msra.mxu0 0.0
        %4623 = vmatprep.subr.mxu0 0.0
        %4624 = vmatpush1.msra.mxu0 0.0
        %4625 = vmatprep.subr.mxu0 0.0
        %4626 = vmatpush1.msra.mxu0 0.0
        %4627 = vmatprep.subr.mxu0 0.0
        %4628 = vmatpush1.msra.mxu0 0.0
        %4629 = vmatprep.subr.mxu0 0.0
        %4630 = vmatpush1.msra.mxu0 0.0
        %4631 = vmatprep.subr.mxu0 0.0
        %4632 = vmatpush1.msra.mxu0 0.0
        %4633 = vmatprep.subr.mxu0 0.0
        %4634 = vmatpush1.msra.mxu0 0.0
        %4635 = vmatprep.subr.mxu0 0.0
        %4636 = vmatpush1.msra.mxu0 0.0
        %4637 = vmatprep.subr.mxu0 0.0
        %4638 = vmatpush1.msra.mxu0 0.0
        %4639 = vmatprep.subr.mxu0 0.0
        %4640 = vmatpush1.msra.mxu0 0.0
        %4641 = vmatprep.subr.mxu0 0.0
        %4642 = vmatpush1.msra.mxu0 0.0
        %4643 = vmatprep.subr.mxu0 0.0
        %4644 = vmatpush1.msra.mxu0 0.0
        %4645 = vmatprep.subr.mxu0 0.0
        %4646 = vmatpush1.msra.mxu0 0.0
        %4647 = vmatprep.subr.mxu0 0.0
        %4648 = vmatpush1.msra.mxu0 0.0
        %4649 = vmatprep.subr.mxu0 0.0
        %4650 = vmatpush1.msra.mxu0 0.0
        %4651 = vmatprep.subr.mxu0 0.0
        %4652 = vmatpush1.msra.mxu0 0.0
        %4653 = vmatprep.subr.mxu0 0.0
        %4654 = vmatpush1.msra.mxu0 0.0
        %4655 = vmatprep.subr.mxu0 0.0
        %4656 = vmatpush1.msra.mxu0 0.0
        %4657 = vmatprep.mubr.f32.mxu0 0.0
        %4658 = vmatmul.mubr.f32.gmra.mrb[0].mxu0 %v4588
        %v4659 = vpop.f32.mrb[0].mxu0
        %v4660 = vadd.f32 0.0, %v4659
        %v4661 = vpop.f32.mrb[0].mxu0
        %4662 = vmatprep.mubr.f32.mxu0 0.0
        %4663 = vmatmul.mubr.f32.gmra.mrb[0].mxu0 %v4591
        %v4664 = vpop.f32.mrb[0].mxu0
        %v4665 = vadd.f32 0.0, %v4664
        %v4666 = vpop.f32.mrb[0].mxu0
        %4667 = vdwg.mxu0
        %s4668 = scalar_lea.vmem %s6, 48
        %v4669 = vld [vmem:[%s4668] sm:$0xff]
        %v4671 = vsel %vm1075, %v4660, 0
        %v4674 = vsel %vm1075, %v4665, 0
        %4676 = vmatprep.subr.mxu0 0.0
        %4677 = vmatpush1.msra.mxu0 %v4669
        %4678 = vmatprep.subr.mxu0 0.0
        %4679 = vmatpush1.msra.mxu0 0.0
        %4680 = vmatprep.subr.mxu0 0.0
        %4681 = vmatpush1.msra.mxu0 0.0
        %4682 = vmatprep.subr.mxu0 0.0
        %4683 = vmatpush1.msra.mxu0 0.0
        %4684 = vmatprep.subr.mxu0 0.0
        %4685 = vmatpush1.msra.mxu0 0.0
        %4686 = vmatprep.subr.mxu0 0.0
        %4687 = vmatpush1.msra.mxu0 0.0
        %4688 = vmatprep.subr.mxu0 0.0
        %4689 = vmatpush1.msra.mxu0 0.0
        %4690 = vmatprep.subr.mxu0 0.0
        %4691 = vmatpush1.msra.mxu0 0.0
        %4692 = vmatprep.subr.mxu0 0.0
        %4693 = vmatpush1.msra.mxu0 0.0
        %4694 = vmatprep.subr.mxu0 0.0
        %4695 = vmatpush1.msra.mxu0 0.0
        %4696 = vmatprep.subr.mxu0 0.0
        %4697 = vmatpush1.msra.mxu0 0.0
        %4698 = vmatprep.subr.mxu0 0.0
        %4699 = vmatpush1.msra.mxu0 0.0
        %4700 = vmatprep.subr.mxu0 0.0
        %4701 = vmatpush1.msra.mxu0 0.0
        %4702 = vmatprep.subr.mxu0 0.0
        %4703 = vmatpush1.msra.mxu0 0.0
        %4704 = vmatprep.subr.mxu0 0.0
        %4705 = vmatpush1.msra.mxu0 0.0
        %4706 = vmatprep.subr.mxu0 0.0
        %4707 = vmatpush1.msra.mxu0 0.0
        %4708 = vmatprep.subr.mxu0 0.0
        %4709 = vmatpush1.msra.mxu0 0.0
        %4710 = vmatprep.subr.mxu0 0.0
        %4711 = vmatpush1.msra.mxu0 0.0
        %4712 = vmatprep.subr.mxu0 0.0
        %4713 = vmatpush1.msra.mxu0 0.0
        %4714 = vmatprep.subr.mxu0 0.0
        %4715 = vmatpush1.msra.mxu0 0.0
        %4716 = vmatprep.subr.mxu0 0.0
        %4717 = vmatpush1.msra.mxu0 0.0
        %4718 = vmatprep.subr.mxu0 0.0
        %4719 = vmatpush1.msra.mxu0 0.0
        %4720 = vmatprep.subr.mxu0 0.0
        %4721 = vmatpush1.msra.mxu0 0.0
        %4722 = vmatprep.subr.mxu0 0.0
        %4723 = vmatpush1.msra.mxu0 0.0
        %4724 = vmatprep.subr.mxu0 0.0
        %4725 = vmatpush1.msra.mxu0 0.0
        %4726 = vmatprep.subr.mxu0 0.0
        %4727 = vmatpush1.msra.mxu0 0.0
        %4728 = vmatprep.subr.mxu0 0.0
        %4729 = vmatpush1.msra.mxu0 0.0
        %4730 = vmatprep.subr.mxu0 0.0
        %4731 = vmatpush1.msra.mxu0 0.0
        %4732 = vmatprep.subr.mxu0 0.0
        %4733 = vmatpush1.msra.mxu0 0.0
        %4734 = vmatprep.subr.mxu0 0.0
        %4735 = vmatpush1.msra.mxu0 0.0
        %4736 = vmatprep.subr.mxu0 0.0
        %4737 = vmatpush1.msra.mxu0 0.0
        %4738 = vmatprep.subr.mxu0 0.0
        %4739 = vmatpush1.msra.mxu0 0.0
        %4740 = vmatprep.mubr.f32.mxu0 0.0
        %4741 = vmatmul.mubr.f32.gmra.mrb[0].mxu0 %v4671
        %v4742 = vpop.f32.mrb[0].mxu0
        %v4743 = vadd.f32 0.0, %v4742
        %v4744 = vpop.f32.mrb[0].mxu0
        %4745 = vmatprep.mubr.f32.mxu0 0.0
        %4746 = vmatmul.mubr.f32.gmra.mrb[0].mxu0 %v4674
        %v4747 = vpop.f32.mrb[0].mxu0
        %v4748 = vadd.f32 0.0, %v4747
        %v4749 = vpop.f32.mrb[0].mxu0
        %4750 = vdwg.mxu0
        %v4751 = vadd.f32 %v4227, %v4743
        %v4752 = vadd.f32 %v4232, %v4748
        %s4753 = scalar_lea.vmem %s3, 224
        %v4754 = vld [vmem:[%s4753] sm:$0xff]
        %v4755 = vld [vmem:[%s4753 + $0x8] sm:$0xff]
        %v4756 = vld [vmem:[%s4753 + $0x10] sm:$0xff]
        %v4757 = vld [vmem:[%s4753 + $0x18] sm:$0xff]
        %4758 = vmatprep.subr.mxu0 0.0
        %4759 = vmatpush1.msra.mxu0 %v4754
        %4760 = vmatprep.subr.mxu0 0.0
        %4761 = vmatpush1.msra.mxu0 %v4755
        %4762 = vmatprep.subr.mxu0 0.0
        %4763 = vmatpush1.msra.mxu0 %v4756
        %4764 = vmatprep.subr.mxu0 0.0
        %4765 = vmatpush1.msra.mxu0 %v4757
        %4766 = vmatprep.subr.mxu0 0.0
        %4767 = vmatpush1.msra.mxu0 0.0
        %4768 = vmatprep.subr.mxu0 0.0
        %4769 = vmatpush1.msra.mxu0 0.0
        %4770 = vmatprep.subr.mxu0 0.0
        %4771 = vmatpush1.msra.mxu0 0.0
        %4772 = vmatprep.subr.mxu0 0.0
        %4773 = vmatpush1.msra.mxu0 0.0
        %4774 = vmatprep.subr.mxu0 0.0
        %4775 = vmatpush1.msra.mxu0 0.0
        %4776 = vmatprep.subr.mxu0 0.0
        %4777 = vmatpush1.msra.mxu0 0.0
        %4778 = vmatprep.subr.mxu0 0.0
        %4779 = vmatpush1.msra.mxu0 0.0
        %4780 = vmatprep.subr.mxu0 0.0
        %4781 = vmatpush1.msra.mxu0 0.0
        %4782 = vmatprep.subr.mxu0 0.0
        %4783 = vmatpush1.msra.mxu0 0.0
        %4784 = vmatprep.subr.mxu0 0.0
        %4785 = vmatpush1.msra.mxu0 0.0
        %4786 = vmatprep.subr.mxu0 0.0
        %4787 = vmatpush1.msra.mxu0 0.0
        %4788 = vmatprep.subr.mxu0 0.0
        %4789 = vmatpush1.msra.mxu0 0.0
        %4790 = vmatprep.subr.mxu0 0.0
        %4791 = vmatpush1.msra.mxu0 0.0
        %4792 = vmatprep.subr.mxu0 0.0
        %4793 = vmatpush1.msra.mxu0 0.0
        %4794 = vmatprep.subr.mxu0 0.0
        %4795 = vmatpush1.msra.mxu0 0.0
        %4796 = vmatprep.subr.mxu0 0.0
        %4797 = vmatpush1.msra.mxu0 0.0
        %4798 = vmatprep.subr.mxu0 0.0
        %4799 = vmatpush1.msra.mxu0 0.0
        %4800 = vmatprep.subr.mxu0 0.0
        %4801 = vmatpush1.msra.mxu0 0.0
        %4802 = vmatprep.subr.mxu0 0.0
        %4803 = vmatpush1.msra.mxu0 0.0
        %4804 = vmatprep.subr.mxu0 0.0
        %4805 = vmatpush1.msra.mxu0 0.0
        %4806 = vmatprep.subr.mxu0 0.0
        %4807 = vmatpush1.msra.mxu0 0.0
        %4808 = vmatprep.subr.mxu0 0.0
        %4809 = vmatpush1.msra.mxu0 0.0
        %4810 = vmatprep.subr.mxu0 0.0
        %4811 = vmatpush1.msra.mxu0 0.0
        %4812 = vmatprep.subr.mxu0 0.0
        %4813 = vmatpush1.msra.mxu0 0.0
        %4814 = vmatprep.subr.mxu0 0.0
        %4815 = vmatpush1.msra.mxu0 0.0
        %4816 = vmatprep.subr.mxu0 0.0
        %4817 = vmatpush1.msra.mxu0 0.0
        %4818 = vmatprep.subr.mxu0 0.0
        %4819 = vmatpush1.msra.mxu0 0.0
        %4820 = vmatprep.subr.mxu0 0.0
        %4821 = vmatpush1.msra.mxu0 0.0
        %4822 = vmatprep.mubr.f32.mxu0 0.0
        %4823 = vmatmul.mubr.f32.gmra.mrb[0].mxu0 %v3203
        %v4824 = vpop.f32.mrb[0].mxu0
        %v4825 = vadd.f32 0.0, %v4824
        %v4826 = vpop.f32.mrb[0].mxu0
        %4827 = vmatprep.mubr.f32.mxu0 0.0
        %4828 = vmatmul.mubr.f32.gmra.mrb[0].mxu0 %v3206
        %v4829 = vpop.f32.mrb[0].mxu0
        %v4830 = vadd.f32 0.0, %v4829
        %v4831 = vpop.f32.mrb[0].mxu0
        %4832 = vdwg.mxu0
        %s4833 = scalar_lea.vmem %s4, 224
        %v4834 = vld [vmem:[%s4833] sm:$0xff]
        %v4835 = vld [vmem:[%s4833 + $0x8] sm:$0xff]
        %v4836 = vld [vmem:[%s4833 + $0x10] sm:$0xff]
        %v4837 = vld [vmem:[%s4833 + $0x18] sm:$0xff]
        %4838 = vmatprep.subr.mxu0 0.0
        %4839 = vmatpush1.msra.mxu0 %v4834
        %4840 = vmatprep.subr.mxu0 0.0
        %4841 = vmatpush1.msra.mxu0 %v4835
        %4842 = vmatprep.subr.mxu0 0.0
        %4843 = vmatpush1.msra.mxu0 %v4836
        %4844 = vmatprep.subr.mxu0 0.0
        %4845 = vmatpush1.msra.mxu0 %v4837
        %4846 = vmatprep.subr.mxu0 0.0
        %4847 = vmatpush1.msra.mxu0 0.0
        %4848 = vmatprep.subr.mxu0 0.0
        %4849 = vmatpush1.msra.mxu0 0.0
        %4850 = vmatprep.subr.mxu0 0.0
        %4851 = vmatpush1.msra.mxu0 0.0
        %4852 = vmatprep.subr.mxu0 0.0
        %4853 = vmatpush1.msra.mxu0 0.0
        %4854 = vmatprep.subr.mxu0 0.0
        %4855 = vmatpush1.msra.mxu0 0.0
        %4856 = vmatprep.subr.mxu0 0.0
        %4857 = vmatpush1.msra.mxu0 0.0
        %4858 = vmatprep.subr.mxu0 0.0
        %4859 = vmatpush1.msra.mxu0 0.0
        %4860 = vmatprep.subr.mxu0 0.0
        %4861 = vmatpush1.msra.mxu0 0.0
        %4862 = vmatprep.subr.mxu0 0.0
        %4863 = vmatpush1.msra.mxu0 0.0
        %4864 = vmatprep.subr.mxu0 0.0
        %4865 = vmatpush1.msra.mxu0 0.0
        %4866 = vmatprep.subr.mxu0 0.0
        %4867 = vmatpush1.msra.mxu0 0.0
        %4868 = vmatprep.subr.mxu0 0.0
        %4869 = vmatpush1.msra.mxu0 0.0
        %4870 = vmatprep.subr.mxu0 0.0
        %4871 = vmatpush1.msra.mxu0 0.0
        %4872 = vmatprep.subr.mxu0 0.0
        %4873 = vmatpush1.msra.mxu0 0.0
        %4874 = vmatprep.subr.mxu0 0.0
        %4875 = vmatpush1.msra.mxu0 0.0
        %4876 = vmatprep.subr.mxu0 0.0
        %4877 = vmatpush1.msra.mxu0 0.0
        %4878 = vmatprep.subr.mxu0 0.0
        %4879 = vmatpush1.msra.mxu0 0.0
        %4880 = vmatprep.subr.mxu0 0.0
        %4881 = vmatpush1.msra.mxu0 0.0
        %4882 = vmatprep.subr.mxu0 0.0
        %4883 = vmatpush1.msra.mxu0 0.0
        %4884 = vmatprep.subr.mxu0 0.0
        %4885 = vmatpush1.msra.mxu0 0.0
        %4886 = vmatprep.subr.mxu0 0.0
        %4887 = vmatpush1.msra.mxu0 0.0
        %4888 = vmatprep.subr.mxu0 0.0
        %4889 = vmatpush1.msra.mxu0 0.0
        %4890 = vmatprep.subr.mxu0 0.0
        %4891 = vmatpush1.msra.mxu0 0.0
        %4892 = vmatprep.subr.mxu0 0.0
        %4893 = vmatpush1.msra.mxu0 0.0
        %4894 = vmatprep.subr.mxu0 0.0
        %4895 = vmatpush1.msra.mxu0 0.0
        %4896 = vmatprep.subr.mxu0 0.0
        %4897 = vmatpush1.msra.mxu0 0.0
        %4898 = vmatprep.subr.mxu0 0.0
        %4899 = vmatpush1.msra.mxu0 0.0
        %4900 = vmatprep.subr.mxu0 0.0
        %4901 = vmatpush1.msra.mxu0 0.0
        %4902 = vmatprep.mubr.f32.mxu0 0.0
        %4903 = vmatmul.mubr.f32.gmra.mrb[0].mxu0 %v3203
        %v4904 = vpop.f32.mrb[0].mxu0
        %v4905 = vadd.f32 0.0, %v4904
        %v4906 = vpop.f32.mrb[0].mxu0
        %4907 = vmatprep.mubr.f32.mxu0 0.0
        %4908 = vmatmul.mubr.f32.gmra.mrb[0].mxu0 %v3206
        %v4909 = vpop.f32.mrb[0].mxu0
        %v4910 = vadd.f32 0.0, %v4909
        %v4911 = vpop.f32.mrb[0].mxu0
        %4912 = vdwg.mxu0
        %s4913 = scalar_lea.vmem %s5, 224
        %v4914 = vld [vmem:[%s4913] sm:$0xff]
        %v4915 = vld [vmem:[%s4913 + $0x8] sm:$0xff]
        %v4916 = vld [vmem:[%s4913 + $0x10] sm:$0xff]
        %v4917 = vld [vmem:[%s4913 + $0x18] sm:$0xff]
        %4918 = vmatprep.subr.mxu0 0.0
        %4919 = vmatpush1.msra.mxu0 %v4914
        %4920 = vmatprep.subr.mxu0 0.0
        %4921 = vmatpush1.msra.mxu0 %v4915
        %4922 = vmatprep.subr.mxu0 0.0
        %4923 = vmatpush1.msra.mxu0 %v4916
        %4924 = vmatprep.subr.mxu0 0.0
        %4925 = vmatpush1.msra.mxu0 %v4917
        %4926 = vmatprep.subr.mxu0 0.0
        %4927 = vmatpush1.msra.mxu0 0.0
        %4928 = vmatprep.subr.mxu0 0.0
        %4929 = vmatpush1.msra.mxu0 0.0
        %4930 = vmatprep.subr.mxu0 0.0
        %4931 = vmatpush1.msra.mxu0 0.0
        %4932 = vmatprep.subr.mxu0 0.0
        %4933 = vmatpush1.msra.mxu0 0.0
        %4934 = vmatprep.subr.mxu0 0.0
        %4935 = vmatpush1.msra.mxu0 0.0
        %4936 = vmatprep.subr.mxu0 0.0
        %4937 = vmatpush1.msra.mxu0 0.0
        %4938 = vmatprep.subr.mxu0 0.0
        %4939 = vmatpush1.msra.mxu0 0.0
        %4940 = vmatprep.subr.mxu0 0.0
        %4941 = vmatpush1.msra.mxu0 0.0
        %4942 = vmatprep.subr.mxu0 0.0
        %4943 = vmatpush1.msra.mxu0 0.0
        %4944 = vmatprep.subr.mxu0 0.0
        %4945 = vmatpush1.msra.mxu0 0.0
        %4946 = vmatprep.subr.mxu0 0.0
        %4947 = vmatpush1.msra.mxu0 0.0
        %4948 = vmatprep.subr.mxu0 0.0
        %4949 = vmatpush1.msra.mxu0 0.0
        %4950 = vmatprep.subr.mxu0 0.0
        %4951 = vmatpush1.msra.mxu0 0.0
        %4952 = vmatprep.subr.mxu0 0.0
        %4953 = vmatpush1.msra.mxu0 0.0
        %4954 = vmatprep.subr.mxu0 0.0
        %4955 = vmatpush1.msra.mxu0 0.0
        %4956 = vmatprep.subr.mxu0 0.0
        %4957 = vmatpush1.msra.mxu0 0.0
        %4958 = vmatprep.subr.mxu0 0.0
        %4959 = vmatpush1.msra.mxu0 0.0
        %4960 = vmatprep.subr.mxu0 0.0
        %4961 = vmatpush1.msra.mxu0 0.0
        %4962 = vmatprep.subr.mxu0 0.0
        %4963 = vmatpush1.msra.mxu0 0.0
        %4964 = vmatprep.subr.mxu0 0.0
        %4965 = vmatpush1.msra.mxu0 0.0
        %4966 = vmatprep.subr.mxu0 0.0
        %4967 = vmatpush1.msra.mxu0 0.0
        %4968 = vmatprep.subr.mxu0 0.0
        %4969 = vmatpush1.msra.mxu0 0.0
        %4970 = vmatprep.subr.mxu0 0.0
        %4971 = vmatpush1.msra.mxu0 0.0
        %4972 = vmatprep.subr.mxu0 0.0
        %4973 = vmatpush1.msra.mxu0 0.0
        %4974 = vmatprep.subr.mxu0 0.0
        %4975 = vmatpush1.msra.mxu0 0.0
        %4976 = vmatprep.subr.mxu0 0.0
        %4977 = vmatpush1.msra.mxu0 0.0
        %4978 = vmatprep.subr.mxu0 0.0
        %4979 = vmatpush1.msra.mxu0 0.0
        %4980 = vmatprep.subr.mxu0 0.0
        %4981 = vmatpush1.msra.mxu0 0.0
        %4982 = vmatprep.mubr.f32.mxu0 0.0
        %4983 = vmatmul.mubr.f32.gmra.mrb[0].mxu0 %v3203
        %v4984 = vpop.f32.mrb[0].mxu0
        %v4985 = vadd.f32 0.0, %v4984
        %v4986 = vpop.f32.mrb[0].mxu0
        %4987 = vmatprep.mubr.f32.mxu0 0.0
        %4988 = vmatmul.mubr.f32.gmra.mrb[0].mxu0 %v3206
        %v4989 = vpop.f32.mrb[0].mxu0
        %v4990 = vadd.f32 0.0, %v4989
        %v4991 = vpop.f32.mrb[0].mxu0
        %4992 = vdwg.mxu0
        %v4994 = vsel %vm1075, %v4825, 0
        %v4997 = vsel %vm1075, %v4830, 0
        %v5000 = vsel %vm1075, %v4905, 0
        %v5003 = vsel %vm1075, %v4910, 0
        %5005 = vmatprep.subr.mxu0 0.0
        %5006 = vmatpush1.xpose.msra.mxu0 %v5000
        %5007 = vmatprep.subr.mxu0 0.0
        %5008 = vmatpush1.xpose.msra.mxu0 %v5003
        %5009 = vmatprep.subr.mxu0 0.0
        %5010 = vmatpush1.xpose.msra.mxu0 0.0
        %5011 = vmatprep.subr.mxu0 0.0
        %5012 = vmatpush1.xpose.msra.mxu0 0.0
        %5013 = vmatprep.subr.mxu0 0.0
        %5014 = vmatpush1.xpose.msra.mxu0 0.0
        %5015 = vmatprep.subr.mxu0 0.0
        %5016 = vmatpush1.xpose.msra.mxu0 0.0
        %5017 = vmatprep.subr.mxu0 0.0
        %5018 = vmatpush1.xpose.msra.mxu0 0.0
        %5019 = vmatprep.subr.mxu0 0.0
        %5020 = vmatpush1.xpose.msra.mxu0 0.0
        %5021 = vmatprep.subr.mxu0 0.0
        %5022 = vmatpush1.xpose.msra.mxu0 0.0
        %5023 = vmatprep.subr.mxu0 0.0
        %5024 = vmatpush1.xpose.msra.mxu0 0.0
        %5025 = vmatprep.subr.mxu0 0.0
        %5026 = vmatpush1.xpose.msra.mxu0 0.0
        %5027 = vmatprep.subr.mxu0 0.0
        %5028 = vmatpush1.xpose.msra.mxu0 0.0
        %5029 = vmatprep.subr.mxu0 0.0
        %5030 = vmatpush1.xpose.msra.mxu0 0.0
        %5031 = vmatprep.subr.mxu0 0.0
        %5032 = vmatpush1.xpose.msra.mxu0 0.0
        %5033 = vmatprep.subr.mxu0 0.0
        %5034 = vmatpush1.xpose.msra.mxu0 0.0
        %5035 = vmatprep.subr.mxu0 0.0
        %5036 = vmatpush1.xpose.msra.mxu0 0.0
        %5037 = vmatprep.subr.mxu0 0.0
        %5038 = vmatpush1.xpose.msra.mxu0 0.0
        %5039 = vmatprep.subr.mxu0 0.0
        %5040 = vmatpush1.xpose.msra.mxu0 0.0
        %5041 = vmatprep.subr.mxu0 0.0
        %5042 = vmatpush1.xpose.msra.mxu0 0.0
        %5043 = vmatprep.subr.mxu0 0.0
        %5044 = vmatpush1.xpose.msra.mxu0 0.0
        %5045 = vmatprep.subr.mxu0 0.0
        %5046 = vmatpush1.xpose.msra.mxu0 0.0
        %5047 = vmatprep.subr.mxu0 0.0
        %5048 = vmatpush1.xpose.msra.mxu0 0.0
        %5049 = vmatprep.subr.mxu0 0.0
        %5050 = vmatpush1.xpose.msra.mxu0 0.0
        %5051 = vmatprep.subr.mxu0 0.0
        %5052 = vmatpush1.xpose.msra.mxu0 0.0
        %5053 = vmatprep.subr.mxu0 0.0
        %5054 = vmatpush1.xpose.msra.mxu0 0.0
        %5055 = vmatprep.subr.mxu0 0.0
        %5056 = vmatpush1.xpose.msra.mxu0 0.0
        %5057 = vmatprep.subr.mxu0 0.0
        %5058 = vmatpush1.xpose.msra.mxu0 0.0
        %5059 = vmatprep.subr.mxu0 0.0
        %5060 = vmatpush1.xpose.msra.mxu0 0.0
        %5061 = vmatprep.subr.mxu0 0.0
        %5062 = vmatpush1.xpose.msra.mxu0 0.0
        %5063 = vmatprep.subr.mxu0 0.0
        %5064 = vmatpush1.xpose.msra.mxu0 0.0
        %5065 = vmatprep.subr.mxu0 0.0
        %5066 = vmatpush1.xpose.msra.mxu0 0.0
        %5067 = vmatprep.subr.mxu0 0.0
        %5068 = vmatpush1.xpose.msra.mxu0 0.0
        %5069 = vmatprep.mubr.f32.mxu0 0.0
        %5070 = vmatmul.mubr.f32.gmra.mrb[0].mxu0 %v4994
        %v5071 = vpop.f32.mrb[0].mxu0
        %v5072 = vadd.f32 %v789, %v5071
        %v5073 = vpop.f32.mrb[0].mxu0
        %5074 = vmatprep.mubr.f32.mxu0 0.0
        %5075 = vmatmul.mubr.f32.gmra.mrb[0].mxu0 %v4997
        %v5076 = vpop.f32.mrb[0].mxu0
        %v5077 = vadd.f32 %v789, %v5076
        %v5078 = vpop.f32.mrb[0].mxu0
        %5079 = vdwg.mxu0
        %v5080 = vsel %vm1163, %v5072, -inf
        %5081 = vmax.xlane.f32.xlu0 %v5080
        %v5082 = vpop.xlane.xlu0 %5081
        %v5083 = vsel %vm1163, %v5077, -inf
        %5084 = vmax.xlane.f32.xlu0 %v5083
        %v5085 = vpop.xlane.xlu0 %5084
        %v5086 = vsub.f32 %v5072, %v5082
        %v5087 = vsub.f32 %v5077, %v5085
        %v5088 = vmul.f32 %v5086, 1.442695
        %v5089 = vpow.pop %v5088
        %v5090 = vmul.f32 %v5087, 1.442695
        %v5091 = vpow.pop %v5090
        %v5092 = vsel %vm1163, %v5089, 0.0
        %5093 = vadd.xlane.f32.xlu0 %v5092
        %v5094 = vpop.xlane.xlu0 %5093
        %v5095 = vsel %vm1163, %v5091, 0.0
        %5096 = vadd.xlane.f32.xlu0 %v5095
        %v5097 = vpop.xlane.xlu0 %5096
        %v5098 = vrcp.pop %v5094
        %v5099 = vrcp.pop %v5097
        %v5100 = vmul.f32 %v5089, %v5098
        %v5101 = vmul.f32 %v5091, %v5099
        %s5102 = scalar_lea.vmem %s687, 112 [#allocation4]
        %5103 = vst.msk [vmem:[%s5102] sm:$0xff] %vm1163, %v5100
        %5104 = vst.msk [vmem:[%s5102 + $0x8] sm:$0xff] %vm1163, %v5101
        %v5106 = vsel %vm1163, %v5100, 0
        %v5109 = vsel %vm1163, %v5101, 0
        %5111 = vmatprep.subr.mxu0 0.0
        %5112 = vmatpush1.msra.mxu0 %v4985
        %5113 = vmatprep.subr.mxu0 0.0
        %5114 = vmatpush1.msra.mxu0 %v4990
        %5115 = vmatprep.subr.mxu0 0.0
        %5116 = vmatpush1.msra.mxu0 0.0
        %5117 = vmatprep.subr.mxu0 0.0
        %5118 = vmatpush1.msra.mxu0 0.0
        %5119 = vmatprep.subr.mxu0 0.0
        %5120 = vmatpush1.msra.mxu0 0.0
        %5121 = vmatprep.subr.mxu0 0.0
        %5122 = vmatpush1.msra.mxu0 0.0
        %5123 = vmatprep.subr.mxu0 0.0
        %5124 = vmatpush1.msra.mxu0 0.0
        %5125 = vmatprep.subr.mxu0 0.0
        %5126 = vmatpush1.msra.mxu0 0.0
        %5127 = vmatprep.subr.mxu0 0.0
        %5128 = vmatpush1.msra.mxu0 0.0
        %5129 = vmatprep.subr.mxu0 0.0
        %5130 = vmatpush1.msra.mxu0 0.0
        %5131 = vmatprep.subr.mxu0 0.0
        %5132 = vmatpush1.msra.mxu0 0.0
        %5133 = vmatprep.subr.mxu0 0.0
        %5134 = vmatpush1.msra.mxu0 0.0
        %5135 = vmatprep.subr.mxu0 0.0
        %5136 = vmatpush1.msra.mxu0 0.0
        %5137 = vmatprep.subr.mxu0 0.0
        %5138 = vmatpush1.msra.mxu0 0.0
        %5139 = vmatprep.subr.mxu0 0.0
        %5140 = vmatpush1.msra.mxu0 0.0
        %5141 = vmatprep.subr.mxu0 0.0
        %5142 = vmatpush1.msra.mxu0 0.0
        %5143 = vmatprep.subr.mxu0 0.0
        %5144 = vmatpush1.msra.mxu0 0.0
        %5145 = vmatprep.subr.mxu0 0.0
        %5146 = vmatpush1.msra.mxu0 0.0
        %5147 = vmatprep.subr.mxu0 0.0
        %5148 = vmatpush1.msra.mxu0 0.0
        %5149 = vmatprep.subr.mxu0 0.0
        %5150 = vmatpush1.msra.mxu0 0.0
        %5151 = vmatprep.subr.mxu0 0.0
        %5152 = vmatpush1.msra.mxu0 0.0
        %5153 = vmatprep.subr.mxu0 0.0
        %5154 = vmatpush1.msra.mxu0 0.0
        %5155 = vmatprep.subr.mxu0 0.0
        %5156 = vmatpush1.msra.mxu0 0.0
        %5157 = vmatprep.subr.mxu0 0.0
        %5158 = vmatpush1.msra.mxu0 0.0
        %5159 = vmatprep.subr.mxu0 0.0
        %5160 = vmatpush1.msra.mxu0 0.0
        %5161 = vmatprep.subr.mxu0 0.0
        %5162 = vmatpush1.msra.mxu0 0.0
        %5163 = vmatprep.subr.mxu0 0.0
        %5164 = vmatpush1.msra.mxu0 0.0
        %5165 = vmatprep.subr.mxu0 0.0
        %5166 = vmatpush1.msra.mxu0 0.0
        %5167 = vmatprep.subr.mxu0 0.0
        %5168 = vmatpush1.msra.mxu0 0.0
        %5169 = vmatprep.subr.mxu0 0.0
        %5170 = vmatpush1.msra.mxu0 0.0
        %5171 = vmatprep.subr.mxu0 0.0
        %5172 = vmatpush1.msra.mxu0 0.0
        %5173 = vmatprep.subr.mxu0 0.0
        %5174 = vmatpush1.msra.mxu0 0.0
        %5175 = vmatprep.mubr.f32.mxu0 0.0
        %5176 = vmatmul.mubr.f32.gmra.mrb[0].mxu0 %v5106
        %v5177 = vpop.f32.mrb[0].mxu0
        %v5178 = vadd.f32 0.0, %v5177
        %v5179 = vpop.f32.mrb[0].mxu0
        %5180 = vmatprep.mubr.f32.mxu0 0.0
        %5181 = vmatmul.mubr.f32.gmra.mrb[0].mxu0 %v5109
        %v5182 = vpop.f32.mrb[0].mxu0
        %v5183 = vadd.f32 0.0, %v5182
        %v5184 = vpop.f32.mrb[0].mxu0
        %5185 = vdwg.mxu0
        %s5186 = scalar_lea.vmem %s6, 56
        %v5187 = vld [vmem:[%s5186] sm:$0xff]
        %v5189 = vsel %vm1075, %v5178, 0
        %v5192 = vsel %vm1075, %v5183, 0
        %5194 = vmatprep.subr.mxu0 0.0
        %5195 = vmatpush1.msra.mxu0 %v5187
        %5196 = vmatprep.subr.mxu0 0.0
        %5197 = vmatpush1.msra.mxu0 0.0
        %5198 = vmatprep.subr.mxu0 0.0
        %5199 = vmatpush1.msra.mxu0 0.0
        %5200 = vmatprep.subr.mxu0 0.0
        %5201 = vmatpush1.msra.mxu0 0.0
        %5202 = vmatprep.subr.mxu0 0.0
        %5203 = vmatpush1.msra.mxu0 0.0
        %5204 = vmatprep.subr.mxu0 0.0
        %5205 = vmatpush1.msra.mxu0 0.0
        %5206 = vmatprep.subr.mxu0 0.0
        %5207 = vmatpush1.msra.mxu0 0.0
        %5208 = vmatprep.subr.mxu0 0.0
        %5209 = vmatpush1.msra.mxu0 0.0
        %5210 = vmatprep.subr.mxu0 0.0
        %5211 = vmatpush1.msra.mxu0 0.0
        %5212 = vmatprep.subr.mxu0 0.0
        %5213 = vmatpush1.msra.mxu0 0.0
        %5214 = vmatprep.subr.mxu0 0.0
        %5215 = vmatpush1.msra.mxu0 0.0
        %5216 = vmatprep.subr.mxu0 0.0
        %5217 = vmatpush1.msra.mxu0 0.0
        %5218 = vmatprep.subr.mxu0 0.0
        %5219 = vmatpush1.msra.mxu0 0.0
        %5220 = vmatprep.subr.mxu0 0.0
        %5221 = vmatpush1.msra.mxu0 0.0
        %5222 = vmatprep.subr.mxu0 0.0
        %5223 = vmatpush1.msra.mxu0 0.0
        %5224 = vmatprep.subr.mxu0 0.0
        %5225 = vmatpush1.msra.mxu0 0.0
        %5226 = vmatprep.subr.mxu0 0.0
        %5227 = vmatpush1.msra.mxu0 0.0
        %5228 = vmatprep.subr.mxu0 0.0
        %5229 = vmatpush1.msra.mxu0 0.0
        %5230 = vmatprep.subr.mxu0 0.0
        %5231 = vmatpush1.msra.mxu0 0.0
        %5232 = vmatprep.subr.mxu0 0.0
        %5233 = vmatpush1.msra.mxu0 0.0
        %5234 = vmatprep.subr.mxu0 0.0
        %5235 = vmatpush1.msra.mxu0 0.0
        %5236 = vmatprep.subr.mxu0 0.0
        %5237 = vmatpush1.msra.mxu0 0.0
        %5238 = vmatprep.subr.mxu0 0.0
        %5239 = vmatpush1.msra.mxu0 0.0
        %5240 = vmatprep.subr.mxu0 0.0
        %5241 = vmatpush1.msra.mxu0 0.0
        %5242 = vmatprep.subr.mxu0 0.0
        %5243 = vmatpush1.msra.mxu0 0.0
        %5244 = vmatprep.subr.mxu0 0.0
        %5245 = vmatpush1.msra.mxu0 0.0
        %5246 = vmatprep.subr.mxu0 0.0
        %5247 = vmatpush1.msra.mxu0 0.0
        %5248 = vmatprep.subr.mxu0 0.0
        %5249 = vmatpush1.msra.mxu0 0.0
        %5250 = vmatprep.subr.mxu0 0.0
        %5251 = vmatpush1.msra.mxu0 0.0
        %5252 = vmatprep.subr.mxu0 0.0
        %5253 = vmatpush1.msra.mxu0 0.0
        %5254 = vmatprep.subr.mxu0 0.0
        %5255 = vmatpush1.msra.mxu0 0.0
        %5256 = vmatprep.subr.mxu0 0.0
        %5257 = vmatpush1.msra.mxu0 0.0
        %5258 = vmatprep.mubr.f32.mxu0 0.0
        %5259 = vmatmul.mubr.f32.gmra.mrb[0].mxu0 %v5189
        %v5260 = vpop.f32.mrb[0].mxu0
        %v5261 = vadd.f32 0.0, %v5260
        %v5262 = vpop.f32.mrb[0].mxu0
        %5263 = vmatprep.mubr.f32.mxu0 0.0
        %5264 = vmatmul.mubr.f32.gmra.mrb[0].mxu0 %v5192
        %v5265 = vpop.f32.mrb[0].mxu0
        %v5266 = vadd.f32 0.0, %v5265
        %v5267 = vpop.f32.mrb[0].mxu0
        %5268 = vdwg.mxu0
        %v5269 = vadd.f32 %v4751, %v5261
        %v5270 = vadd.f32 %v4752, %v5266
        %v5271 = vld [vmem:[%s7 + $0x1] sm:$0x1]
        %v5272 = vlaneseq
        %v5273 = vshrl.u32 %v5272, 7
        %v5274 = vsub.s32 0, %v5273
        %v5275 = vrot.slane %v5271, %v5274
        %v5276 = vadd.f32 %v5269, %v5275
        %v5277 = vadd.f32 %v5270, %v5275
        %v5278 = vadd.f32 %v5276, %v3155
        %v5279 = vadd.f32 %v5277, %v3156
        %v5280 = vld [vmem:[%s10 + $0x1] sm:$0x1]
        %v5281 = vld [vmem:[%s11 + $0x1] sm:$0x1]
        %v5282 = vsel %vm792, %v5278, 0.0
        %5283 = vadd.xlane.f32.xlu0 %v5282
        %v5284 = vpop.xlane.xlu0 %5283
        %v5285 = vsel %vm792, %v5279, 0.0
        %5286 = vadd.xlane.f32.xlu0 %v5285
        %v5287 = vpop.xlane.xlu0 %5286
        %v5288 = vmul.f32 %v5284, %v799
        %v5289 = vmul.f32 %v5287, %v799
        %v5290 = vsub.f32 %v5278, %v5288
        %v5291 = vsub.f32 %v5279, %v5289
        %v5292 = vmul.f32 %v5290, %v5290
        %v5293 = vmul.f32 %v5291, %v5291
        %v5294 = vsel %vm792, %v5292, 0.0
        %5295 = vadd.xlane.f32.xlu0 %v5294
        %v5296 = vpop.xlane.xlu0 %5295
        %v5297 = vsel %vm792, %v5293, 0.0
        %5298 = vadd.xlane.f32.xlu0 %v5297
        %v5299 = vpop.xlane.xlu0 %5298
        %v5300 = vmul.f32 %v5296, %v799
        %v5301 = vmul.f32 %v5299, %v799
        %v5302 = vadd.f32 %v5300, 1e-05
        %v5303 = vadd.f32 %v5301, 1e-05
        %v5304 = vrsqrt.pop %v5302
        %v5305 = vrsqrt.pop %v5303
        %v5306 = vmul.f32 %v5290, %v5304
        %v5307 = vmul.f32 %v5291, %v5305
        %v5308 = vlaneseq
        %v5309 = vshrl.u32 %v5308, 7
        %v5310 = vsub.s32 0, %v5309
        %v5311 = vrot.slane %v5280, %v5310
        %v5312 = vmul.f32 %v5306, %v5311
        %v5313 = vmul.f32 %v5307, %v5311
        %v5314 = vlaneseq
        %v5315 = vshrl.u32 %v5314, 7
        %v5316 = vsub.s32 0, %v5315
        %v5317 = vrot.slane %v5281, %v5316
        %v5318 = vadd.f32 %v5312, %v5317
        %v5319 = vadd.f32 %v5313, %v5317
        %s5320 = scalar_lea.vmem %s12, 32
        %v5321 = vld [vmem:[%s5320] sm:$0xff]
        %v5322 = vld [vmem:[%s5320 + $0x8] sm:$0xff]
        %v5323 = vld [vmem:[%s5320 + $0x10] sm:$0xff]
        %v5324 = vld [vmem:[%s5320 + $0x18] sm:$0xff]
        %v5325 = vld [vmem:[%s13 + $0x1] sm:$0x1]
        %v5326 = vlaneseq
        %v5327 = vshrl.u32 %v5326, 7
        %v5328 = vsub.s32 0, %v5327
        %v5329 = vrot.slane %v5325, %v5328
        %v5331 = vsel %vm792, %v5318, 0
        %v5334 = vsel %vm792, %v5319, 0
        %5336 = vmatprep.subr.mxu0 0.0
        %5337 = vmatpush1.msra.mxu0 %v5321
        %5338 = vmatprep.subr.mxu0 0.0
        %5339 = vmatpush1.msra.mxu0 %v5322
        %5340 = vmatprep.subr.mxu0 0.0
        %5341 = vmatpush1.msra.mxu0 %v5323
        %5342 = vmatprep.subr.mxu0 0.0
        %5343 = vmatpush1.msra.mxu0 %v5324
        %5344 = vmatprep.subr.mxu0 0.0
        %5345 = vmatpush1.msra.mxu0 0.0
        %5346 = vmatprep.subr.mxu0 0.0
        %5347 = vmatpush1.msra.mxu0 0.0
        %5348 = vmatprep.subr.mxu0 0.0
        %5349 = vmatpush1.msra.mxu0 0.0
        %5350 = vmatprep.subr.mxu0 0.0
        %5351 = vmatpush1.msra.mxu0 0.0
        %5352 = vmatprep.subr.mxu0 0.0
        %5353 = vmatpush1.msra.mxu0 0.0
        %5354 = vmatprep.subr.mxu0 0.0
        %5355 = vmatpush1.msra.mxu0 0.0
        %5356 = vmatprep.subr.mxu0 0.0
        %5357 = vmatpush1.msra.mxu0 0.0
        %5358 = vmatprep.subr.mxu0 0.0
        %5359 = vmatpush1.msra.mxu0 0.0
        %5360 = vmatprep.subr.mxu0 0.0
        %5361 = vmatpush1.msra.mxu0 0.0
        %5362 = vmatprep.subr.mxu0 0.0
        %5363 = vmatpush1.msra.mxu0 0.0
        %5364 = vmatprep.subr.mxu0 0.0
        %5365 = vmatpush1.msra.mxu0 0.0
        %5366 = vmatprep.subr.mxu0 0.0
        %5367 = vmatpush1.msra.mxu0 0.0
        %5368 = vmatprep.subr.mxu0 0.0
        %5369 = vmatpush1.msra.mxu0 0.0
        %5370 = vmatprep.subr.mxu0 0.0
        %5371 = vmatpush1.msra.mxu0 0.0
        %5372 = vmatprep.subr.mxu0 0.0
        %5373 = vmatpush1.msra.mxu0 0.0
        %5374 = vmatprep.subr.mxu0 0.0
        %5375 = vmatpush1.msra.mxu0 0.0
        %5376 = vmatprep.subr.mxu0 0.0
        %5377 = vmatpush1.msra.mxu0 0.0
        %5378 = vmatprep.subr.mxu0 0.0
        %5379 = vmatpush1.msra.mxu0 0.0
        %5380 = vmatprep.subr.mxu0 0.0
        %5381 = vmatpush1.msra.mxu0 0.0
        %5382 = vmatprep.subr.mxu0 0.0
        %5383 = vmatpush1.msra.mxu0 0.0
        %5384 = vmatprep.subr.mxu0 0.0
        %5385 = vmatpush1.msra.mxu0 0.0
        %5386 = vmatprep.subr.mxu0 0.0
        %5387 = vmatpush1.msra.mxu0 0.0
        %5388 = vmatprep.subr.mxu0 0.0
        %5389 = vmatpush1.msra.mxu0 0.0
        %5390 = vmatprep.subr.mxu0 0.0
        %5391 = vmatpush1.msra.mxu0 0.0
        %5392 = vmatprep.subr.mxu0 0.0
        %5393 = vmatpush1.msra.mxu0 0.0
        %5394 = vmatprep.subr.mxu0 0.0
        %5395 = vmatpush1.msra.mxu0 0.0
        %5396 = vmatprep.subr.mxu0 0.0
        %5397 = vmatpush1.msra.mxu0 0.0
        %5398 = vmatprep.subr.mxu0 0.0
        %5399 = vmatpush1.msra.mxu0 0.0
        %5400 = vmatprep.mubr.f32.mxu0 0.0
        %5401 = vmatmul.mubr.f32.gmra.mrb[0].mxu0 %v5331
        %v5402 = vpop.f32.mrb[0].mxu0
        %v5403 = vadd.f32 %v5329, %v5402
        %v5404 = vpop.f32.mrb[0].mxu0
        %5405 = vmatprep.mubr.f32.mxu0 0.0
        %5406 = vmatmul.mubr.f32.gmra.mrb[0].mxu0 %v5334
        %v5407 = vpop.f32.mrb[0].mxu0
        %v5408 = vadd.f32 %v5329, %v5407
        %v5409 = vpop.f32.mrb[0].mxu0
        %5410 = vdwg.mxu0
        %v5411 = vmul.f32 %v5403, 0.5
        %v5412 = vmul.f32 %v5408, 0.5
        %v5413 = vmul.f32 %v5403, 0.044715
        %v5414 = vmul.f32 %v5408, 0.044715
        %v5415 = vmul.f32 %v5413, %v5403
        %v5416 = vmul.f32 %v5414, %v5408
        %v5417 = vmul.f32 %v5415, %v5403
        %v5418 = vmul.f32 %v5416, %v5408
        %v5419 = vadd.f32 %v5403, %v5417
        %v5420 = vadd.f32 %v5408, %v5418
        %v5421 = vmul.f32 %v5419, 0.7978846
        %v5422 = vmul.f32 %v5420, 0.7978846
        %v5423 = vtanh.pop %v5421
        %v5424 = vtanh.pop %v5422
        %v5425 = vadd.f32 %v5423, 1.0
        %v5426 = vadd.f32 %v5424, 1.0
        %v5427 = vmul.f32 %v5411, %v5425
        %v5428 = vmul.f32 %v5412, %v5426
        %s5429 = scalar_lea.vmem %s14, 64
        %v5430 = vld [vmem:[%s5429] sm:$0xff]
        %v5431 = vld [vmem:[%s5429 + $0x8] sm:$0xff]
        %v5432 = vld [vmem:[%s5429 + $0x10] sm:$0xff]
        %v5433 = vld [vmem:[%s5429 + $0x18] sm:$0xff]
        %v5434 = vld [vmem:[%s5429 + $0x20] sm:$0xff]
        %v5435 = vld [vmem:[%s5429 + $0x28] sm:$0xff]
        %v5436 = vld [vmem:[%s5429 + $0x30] sm:$0xff]
        %v5437 = vld [vmem:[%s5429 + $0x38] sm:$0xff]
        %v5438 = vld [vmem:[%s15 + $0x1] sm:$0x1]
        %v5439 = vlaneseq
        %v5440 = vshrl.u32 %v5439, 7
        %v5441 = vsub.s32 0, %v5440
        %v5442 = vrot.slane %v5438, %v5441
        %v5444 = vsel %vm3073, %v5427, 0
        %v5447 = vsel %vm3073, %v5428, 0
        %5449 = vmatprep.subr.mxu0 0.0
        %5450 = vmatpush1.msra.mxu0 %v5430
        %5451 = vmatprep.subr.mxu0 0.0
        %5452 = vmatpush1.msra.mxu0 %v5431
        %5453 = vmatprep.subr.mxu0 0.0
        %5454 = vmatpush1.msra.mxu0 %v5432
        %5455 = vmatprep.subr.mxu0 0.0
        %5456 = vmatpush1.msra.mxu0 %v5433
        %5457 = vmatprep.subr.mxu0 0.0
        %5458 = vmatpush1.msra.mxu0 %v5434
        %5459 = vmatprep.subr.mxu0 0.0
        %5460 = vmatpush1.msra.mxu0 %v5435
        %5461 = vmatprep.subr.mxu0 0.0
        %5462 = vmatpush1.msra.mxu0 %v5436
        %5463 = vmatprep.subr.mxu0 0.0
        %5464 = vmatpush1.msra.mxu0 %v5437
        %5465 = vmatprep.subr.mxu0 0.0
        %5466 = vmatpush1.msra.mxu0 0.0
        %5467 = vmatprep.subr.mxu0 0.0
        %5468 = vmatpush1.msra.mxu0 0.0
        %5469 = vmatprep.subr.mxu0 0.0
        %5470 = vmatpush1.msra.mxu0 0.0
        %5471 = vmatprep.subr.mxu0 0.0
        %5472 = vmatpush1.msra.mxu0 0.0
        %5473 = vmatprep.subr.mxu0 0.0
        %5474 = vmatpush1.msra.mxu0 0.0
        %5475 = vmatprep.subr.mxu0 0.0
        %5476 = vmatpush1.msra.mxu0 0.0
        %5477 = vmatprep.subr.mxu0 0.0
        %5478 = vmatpush1.msra.mxu0 0.0
        %5479 = vmatprep.subr.mxu0 0.0
        %5480 = vmatpush1.msra.mxu0 0.0
        %5481 = vmatprep.subr.mxu0 0.0
        %5482 = vmatpush1.msra.mxu0 0.0
        %5483 = vmatprep.subr.mxu0 0.0
        %5484 = vmatpush1.msra.mxu0 0.0
        %5485 = vmatprep.subr.mxu0 0.0
        %5486 = vmatpush1.msra.mxu0 0.0
        %5487 = vmatprep.subr.mxu0 0.0
        %5488 = vmatpush1.msra.mxu0 0.0
        %5489 = vmatprep.subr.mxu0 0.0
        %5490 = vmatpush1.msra.mxu0 0.0
        %5491 = vmatprep.subr.mxu0 0.0
        %5492 = vmatpush1.msra.mxu0 0.0
        %5493 = vmatprep.subr.mxu0 0.0
        %5494 = vmatpush1.msra.mxu0 0.0
        %5495 = vmatprep.subr.mxu0 0.0
        %5496 = vmatpush1.msra.mxu0 0.0
        %5497 = vmatprep.subr.mxu0 0.0
        %5498 = vmatpush1.msra.mxu0 0.0
        %5499 = vmatprep.subr.mxu0 0.0
        %5500 = vmatpush1.msra.mxu0 0.0
        %5501 = vmatprep.subr.mxu0 0.0
        %5502 = vmatpush1.msra.mxu0 0.0
        %5503 = vmatprep.subr.mxu0 0.0
        %5504 = vmatpush1.msra.mxu0 0.0
        %5505 = vmatprep.subr.mxu0 0.0
        %5506 = vmatpush1.msra.mxu0 0.0
        %5507 = vmatprep.subr.mxu0 0.0
        %5508 = vmatpush1.msra.mxu0 0.0
        %5509 = vmatprep.subr.mxu0 0.0
        %5510 = vmatpush1.msra.mxu0 0.0
        %5511 = vmatprep.subr.mxu0 0.0
        %5512 = vmatpush1.msra.mxu0 0.0
        %5513 = vmatprep.mubr.f32.mxu0 0.0
        %5514 = vmatmul.mubr.f32.gmra.mrb[0].mxu0 %v5444
        %v5515 = vpop.f32.mrb[0].mxu0
        %v5516 = vadd.f32 %v5442, %v5515
        %v5517 = vpop.f32.mrb[0].mxu0
        %5518 = vmatprep.mubr.f32.mxu0 0.0
        %5519 = vmatmul.mubr.f32.gmra.mrb[0].mxu0 %v5447
        %v5520 = vpop.f32.mrb[0].mxu0
        %v5521 = vadd.f32 %v5442, %v5520
        %v5522 = vpop.f32.mrb[0].mxu0
        %5523 = vdwg.mxu0
        %v5524 = vadd.f32 %v5516, %v5278
        %v5525 = vadd.f32 %v5521, %v5279
        %v5526 = vld [vmem:[%s20] sm:$0x1]
        %v5528 = vsel %vm1163, %v5526, 0
        %5530 = vmatprep.subr.mxu0 0.0
        %5531 = vmatpush1.msra.mxu0 %v5524
        %5532 = vmatprep.subr.mxu0 0.0
        %5533 = vmatpush1.msra.mxu0 %v5525
        %5534 = vmatprep.subr.mxu0 0.0
        %5535 = vmatpush1.msra.mxu0 0.0
        %5536 = vmatprep.subr.mxu0 0.0
        %5537 = vmatpush1.msra.mxu0 0.0
        %5538 = vmatprep.subr.mxu0 0.0
        %5539 = vmatpush1.msra.mxu0 0.0
        %5540 = vmatprep.subr.mxu0 0.0
        %5541 = vmatpush1.msra.mxu0 0.0
        %5542 = vmatprep.subr.mxu0 0.0
        %5543 = vmatpush1.msra.mxu0 0.0
        %5544 = vmatprep.subr.mxu0 0.0
        %5545 = vmatpush1.msra.mxu0 0.0
        %5546 = vmatprep.subr.mxu0 0.0
        %5547 = vmatpush1.msra.mxu0 0.0
        %5548 = vmatprep.subr.mxu0 0.0
        %5549 = vmatpush1.msra.mxu0 0.0
        %5550 = vmatprep.subr.mxu0 0.0
        %5551 = vmatpush1.msra.mxu0 0.0
        %5552 = vmatprep.subr.mxu0 0.0
        %5553 = vmatpush1.msra.mxu0 0.0
        %5554 = vmatprep.subr.mxu0 0.0
        %5555 = vmatpush1.msra.mxu0 0.0
        %5556 = vmatprep.subr.mxu0 0.0
        %5557 = vmatpush1.msra.mxu0 0.0
        %5558 = vmatprep.subr.mxu0 0.0
        %5559 = vmatpush1.msra.mxu0 0.0
        %5560 = vmatprep.subr.mxu0 0.0
        %5561 = vmatpush1.msra.mxu0 0.0
        %5562 = vmatprep.subr.mxu0 0.0
        %5563 = vmatpush1.msra.mxu0 0.0
        %5564 = vmatprep.subr.mxu0 0.0
        %5565 = vmatpush1.msra.mxu0 0.0
        %5566 = vmatprep.subr.mxu0 0.0
        %5567 = vmatpush1.msra.mxu0 0.0
        %5568 = vmatprep.subr.mxu0 0.0
        %5569 = vmatpush1.msra.mxu0 0.0
        %5570 = vmatprep.subr.mxu0 0.0
        %5571 = vmatpush1.msra.mxu0 0.0
        %5572 = vmatprep.subr.mxu0 0.0
        %5573 = vmatpush1.msra.mxu0 0.0
        %5574 = vmatprep.subr.mxu0 0.0
        %5575 = vmatpush1.msra.mxu0 0.0
        %5576 = vmatprep.subr.mxu0 0.0
        %5577 = vmatpush1.msra.mxu0 0.0
        %5578 = vmatprep.subr.mxu0 0.0
        %5579 = vmatpush1.msra.mxu0 0.0
        %5580 = vmatprep.subr.mxu0 0.0
        %5581 = vmatpush1.msra.mxu0 0.0
        %5582 = vmatprep.subr.mxu0 0.0
        %5583 = vmatpush1.msra.mxu0 0.0
        %5584 = vmatprep.subr.mxu0 0.0
        %5585 = vmatpush1.msra.mxu0 0.0
        %5586 = vmatprep.subr.mxu0 0.0
        %5587 = vmatpush1.msra.mxu0 0.0
        %5588 = vmatprep.subr.mxu0 0.0
        %5589 = vmatpush1.msra.mxu0 0.0
        %5590 = vmatprep.subr.mxu0 0.0
        %5591 = vmatpush1.msra.mxu0 0.0
        %5592 = vmatprep.subr.mxu0 0.0
        %5593 = vmatpush1.msra.mxu0 0.0
        %5594 = vmatprep.mubr.f32.mxu0 0.0
        %5595 = vmatmul.mubr.f32.gmra.mrb[0].mxu0 %v5528
        %v5596 = vpop.f32.mrb[0].mxu0
        %v5597 = vadd.f32 0.0, %v5596
        %v5598 = vpop.f32.mrb[0].mxu0
        %5599 = vdwg.mxu0
        %v5600 = vld [vmem:[%s16] sm:$0x1]
        %v5601 = vld [vmem:[%s17] sm:$0x1]
        %vm5602 = vcmask 253952
        %v5603 = vsel %vm5602, %v5597, 0.0
        %5604 = vadd.xlane.f32.xlu0 %v5603
        %v5605 = vpop.xlane.xlu0 %5604
        %v5606 = vmul.f32 %v5605, %v799
        %v5607 = vsub.f32 %v5597, %v5606
        %v5608 = vmul.f32 %v5607, %v5607
        %v5609 = vsel %vm5602, %v5608, 0.0
        %5610 = vadd.xlane.f32.xlu0 %v5609
        %v5611 = vpop.xlane.xlu0 %5610
        %v5612 = vmul.f32 %v5611, %v799
        %v5613 = vadd.f32 %v5612, 1e-05
        %v5614 = vrsqrt.pop %v5613
        %v5615 = vmul.f32 %v5607, %v5614
        %v5616 = vmul.f32 %v5615, %v5600
        %v5617 = vadd.f32 %v5616, %v5601
        %v5618 = vld [vmem:[%s18] sm:$0xff]
        %v5619 = vld [vmem:[%s18 + $0x8] sm:$0xff]
        %v5620 = vld [vmem:[%s18 + $0x10] sm:$0xff]
        %v5621 = vld [vmem:[%s18 + $0x18] sm:$0xff]
        %v5622 = vld [vmem:[%s19] sm:$0x1]
        %v5624 = vsel %vm792, %v5617, 0
        %5626 = vmatprep.subr.mxu0 0.0
        %5627 = vmatpush1.msra.mxu0 %v5618
        %5628 = vmatprep.subr.mxu0 0.0
        %5629 = vmatpush1.msra.mxu0 %v5619
        %5630 = vmatprep.subr.mxu0 0.0
        %5631 = vmatpush1.msra.mxu0 %v5620
        %5632 = vmatprep.subr.mxu0 0.0
        %5633 = vmatpush1.msra.mxu0 %v5621
        %5634 = vmatprep.subr.mxu0 0.0
        %5635 = vmatpush1.msra.mxu0 0.0
        %5636 = vmatprep.subr.mxu0 0.0
        %5637 = vmatpush1.msra.mxu0 0.0
        %5638 = vmatprep.subr.mxu0 0.0
        %5639 = vmatpush1.msra.mxu0 0.0
        %5640 = vmatprep.subr.mxu0 0.0
        %5641 = vmatpush1.msra.mxu0 0.0
        %5642 = vmatprep.subr.mxu0 0.0
        %5643 = vmatpush1.msra.mxu0 0.0
        %5644 = vmatprep.subr.mxu0 0.0
        %5645 = vmatpush1.msra.mxu0 0.0
        %5646 = vmatprep.subr.mxu0 0.0
        %5647 = vmatpush1.msra.mxu0 0.0
        %5648 = vmatprep.subr.mxu0 0.0
        %5649 = vmatpush1.msra.mxu0 0.0
        %5650 = vmatprep.subr.mxu0 0.0
        %5651 = vmatpush1.msra.mxu0 0.0
        %5652 = vmatprep.subr.mxu0 0.0
        %5653 = vmatpush1.msra.mxu0 0.0
        %5654 = vmatprep.subr.mxu0 0.0
        %5655 = vmatpush1.msra.mxu0 0.0
        %5656 = vmatprep.subr.mxu0 0.0
        %5657 = vmatpush1.msra.mxu0 0.0
        %5658 = vmatprep.subr.mxu0 0.0
        %5659 = vmatpush1.msra.mxu0 0.0
        %5660 = vmatprep.subr.mxu0 0.0
        %5661 = vmatpush1.msra.mxu0 0.0
        %5662 = vmatprep.subr.mxu0 0.0
        %5663 = vmatpush1.msra.mxu0 0.0
        %5664 = vmatprep.subr.mxu0 0.0
        %5665 = vmatpush1.msra.mxu0 0.0
        %5666 = vmatprep.subr.mxu0 0.0
        %5667 = vmatpush1.msra.mxu0 0.0
        %5668 = vmatprep.subr.mxu0 0.0
        %5669 = vmatpush1.msra.mxu0 0.0
        %5670 = vmatprep.subr.mxu0 0.0
        %5671 = vmatpush1.msra.mxu0 0.0
        %5672 = vmatprep.subr.mxu0 0.0
        %5673 = vmatpush1.msra.mxu0 0.0
        %5674 = vmatprep.subr.mxu0 0.0
        %5675 = vmatpush1.msra.mxu0 0.0
        %5676 = vmatprep.subr.mxu0 0.0
        %5677 = vmatpush1.msra.mxu0 0.0
        %5678 = vmatprep.subr.mxu0 0.0
        %5679 = vmatpush1.msra.mxu0 0.0
        %5680 = vmatprep.subr.mxu0 0.0
        %5681 = vmatpush1.msra.mxu0 0.0
        %5682 = vmatprep.subr.mxu0 0.0
        %5683 = vmatpush1.msra.mxu0 0.0
        %5684 = vmatprep.subr.mxu0 0.0
        %5685 = vmatpush1.msra.mxu0 0.0
        %5686 = vmatprep.subr.mxu0 0.0
        %5687 = vmatpush1.msra.mxu0 0.0
        %5688 = vmatprep.subr.mxu0 0.0
        %5689 = vmatpush1.msra.mxu0 0.0
        %5690 = vmatprep.mubr.f32.mxu0 0.0
        %5691 = vmatmul.mubr.f32.gmra.mrb[0].mxu0 %v5624
        %v5692 = vpop.f32.mrb[0].mxu0
        %v5693 = vadd.f32 %v5622, %v5692
        %v5694 = vpop.f32.mrb[0].mxu0
        %5695 = vdwg.mxu0
        %vm5696 = vcmask 40960
        %5697 = vst.msk [vmem:[%s680] sm:$0x1] %vm5696, %v5693
        %s5698 = sand.u32 %s494, 1
        %s5699 = scalar_lea.sflag [#allocation3], %s5698
        %s5700 = sand.u32 %s494, 1
        %s5701 = scalar_lea.vmem [#allocation2], %s5700
        %s5702 = sand.u32 %s520, 1
        %s5703 = scalar_lea.sflag [#allocation5], %s5702
        %s5704 = sand.u32 %s520, 1
        %s5705 = smul.addr %s5704, 128
        %s5706 = scalar_lea.vmem [#allocation4], %s5705
        // Predicated region
        $region105: #{tpu_custom_call.1} parent=103 // pred_check
          %p5707 = pneg %p504
        $region106: #{tpu_custom_call.1} parent=103 // pred_check_branch
          %5709 = sbr.rel (%p5707) target = $region108
        $region107: #{tpu_custom_call.1} parent=103 // pred_region
          %s5711 = ssub.s32 16, 16
          %5712 = vsyncadd %s5699, %s5711
          %s5713 = smul.addr %s40, 16
          %s5714 = scalar_lea.hbm %s21, %s5713
          %s5716 = sshll.u32 %s5701, 4
          %s5717 = int_to_ptr.vmem [resolvable:$true] %s5716
          %5719 = dma.vmem_to_hbm [thread:$0]  %s5717, 16, %s5714, %s5699
        $region108: #{tpu_custom_call.1} parent=103 // pred_fallthru
          _
        // Predicated region
        $region109: #{tpu_custom_call.1} parent=103 // pred_check
          %p5720 = pneg %p530
        $region110: #{tpu_custom_call.1} parent=103 // pred_check_branch
          %5722 = sbr.rel (%p5720) target = $region112
        $region111: #{tpu_custom_call.1} parent=103 // pred_region
          #allocation7 [shape = 'u32[6]{0}', space=smem, size = 0x18, scoped, tag = 'DMA stride descriptor']
          %s5724 = ssub.s32 2048, 2048
          %5725 = vsyncadd %s5703, %s5724
          %s5726 = smul.addr %s40, 2
          %s5727 = smul.addr %s5726, 128
          %s5728 = scalar_lea.hbm %s22, %s5727
          %s5730 = sshll.u32 1, 14
          %s5731 = sxor.u32 4294967295, %s5730
          %s5734 = sshll.u32 7, 18
          %s5735 = sxor.u32 4294967295, %s5734
          %s5736 = sand.u32 0, %s5735
          %s5738 = sor.u32 %s5736, 0
          %s5740 = sshll.u32 3, 24
          %s5741 = sxor.u32 4294967295, %s5740
          %s5742 = sand.u32 %s5738, %s5741
          %s5744 = sor.u32 %s5742, 0
          %s5745 = sshll.u32 %s5706, 4
          %s5746 = int_to_ptr.vmem [resolvable:$true] %s5745
          %5752 = sst [smem:[#allocation7]] 256
          %s5753 = scalar_lea.smem [#allocation7], 1
          %5754 = sst [smem:[%s5753]] 512
          %s5755 = scalar_lea.smem [#allocation7], 2
          %5756 = sst [smem:[%s5755]] 2
          %s5757 = scalar_lea.smem [#allocation7], 3
          %5758 = sst [smem:[%s5757]] 128
          %s5759 = scalar_lea.smem [#allocation7], 4
          %5760 = sst [smem:[%s5759]] 128
          %s5761 = scalar_lea.smem [#allocation7], 5
          %5762 = sst [smem:[%s5761]] 8
          %5764 = dma.general %s5746, 2048, %s5728, %s5703, [#allocation6], [#allocation7], %s5744, 0
        $region112: #{tpu_custom_call.1} parent=103 // pred_fallthru
          _
      $region104: #{tpu_custom_call.1} parent=5 // pred_fallthru
        _
      %p5765 = scmp.le.s32.totalorder 2, %s35
      // Predicated region
      $region113: #{tpu_custom_call.1} parent=5 // pred_check
        %p5766 = pneg %p5765
      $region114: #{tpu_custom_call.1} parent=5 // pred_check_branch
        %5768 = sbr.rel (%p5766) target = $region116
      $region115: #{tpu_custom_call.1} parent=5 // pred_region
        %s5769 = ssub.s32 %s35, 2
        // Predicated region
        $region117: #{tpu_custom_call.1} parent=115 // pred_check
          %p5770 = pneg %p510
        $region118: #{tpu_custom_call.1} parent=115 // pred_check_branch
          %5772 = sbr.rel (%p5770) target = $region120
        $region119: #{tpu_custom_call.1} parent=115 // pred_region
          %s5773 = sand.u32 %s495, 1
          %s5774 = scalar_lea.sflag [#allocation3], %s5773
          %s5775 = sand.u32 %s495, 1
          %s5776 = scalar_lea.vmem [#allocation2], %s5775
          %5777 = dma.done %s5774, 16
        $region120: #{tpu_custom_call.1} parent=115 // pred_fallthru
          _
        // Predicated region
        $region121: #{tpu_custom_call.1} parent=115 // pred_check
          %p5778 = pneg %p536
        $region122: #{tpu_custom_call.1} parent=115 // pred_check_branch
          %5780 = sbr.rel (%p5778) target = $region124
        $region123: #{tpu_custom_call.1} parent=115 // pred_region
          %s5781 = sand.u32 %s521, 1
          %s5782 = scalar_lea.sflag [#allocation5], %s5781
          %s5783 = sand.u32 %s521, 1
          %s5784 = smul.addr %s5783, 128
          %s5785 = scalar_lea.vmem [#allocation4], %s5784
          %5786 = dma.done %s5782, 2048
        $region124: #{tpu_custom_call.1} parent=115 // pred_fallthru
          _
      $region116: #{tpu_custom_call.1} parent=5 // pred_fallthru
        _
    $region6: #{tpu_custom_call.1} parent=1 // loop_footer
      %s39 = sadd.s32 1, %s35
    $region7: #{tpu_custom_call.1} parent=1 // loop_footer_branch
      %34 = sbr.rel target = $region3
    $region8: #{tpu_custom_call.1} parent=1 // loop_exit
      _
    %5787 = vsyncpa [#allocation3], 1
    %s5788 = scalar_lea.sflag [#allocation3], 1
    %5789 = vsyncpa %s5788, 1
    %5790 = vsyncpa [#allocation5], 1
    %s5791 = scalar_lea.sflag [#allocation5], 1
    %5792 = vsyncpa %s5791, 1

</llo_original>
